<compile_context>
chip_gen: v6e
topology: v6e:2x2x1
jax: 0.10.0
libtpu: 0.0.40
codegen_flags: <defaults>
</compile_context>

<pallas_src>
import jax
import jax.numpy as jnp
import numpy as np
from jax import lax
from jax.experimental import pallas as pl
from jax.experimental.pallas import tpu as pltpu

# ---- problem sizes (small stand-ins, consistent with the module) ----
N_BATCH = 2
L_TOKENS = 16          # (image_size // patch_size)**2 = 4x4 explain tokens
D_EXPLAIN = 64         # stand-in for ViT hidden size 768
D_PRED = 32            # stand-in for pred_model hidden size
NUM_CLASSES = 8
MLP_HIDDEN = 128
BOTTLENECK = 64
EMBED = 128            # stand-in for embed_size=512
NUM_BLOCKS = 2
L_PAD = 128            # lane-dense output width (multiple of 128)


# ------------------------------------------------------------------ kernel ---

def _l2_normalize(x):
    # matches F.normalize(p=2, dim=-1, eps=1e-12): x / max(||x||, eps) == x * rsqrt(max(ssq, eps^2))
    ssq = jnp.sum(x * x, axis=-1, keepdims=True)
    return x * lax.rsqrt(jnp.maximum(ssq, 1e-24))


def _mlp_from_slab(x, w_ref, b_ref, wo_ref, bo_ref):
    """Assumed MLP: stem -> NUM_BLOCKS residual bottleneck blocks -> head.

    Stem + block weights live in one [K_total, 128] slab, their biases in one [5, 128] slab
    (bottleneck pieces zero-padded to 128 lanes so every block matmul is a full 128-wide MXU
    tile; padding contributes exactly zero).  The head (w_out/b_out) is a separate operand so
    the packing stays valid when EMBED != 128."""
    in_dim = x.shape[-1]
    h = jnp.dot(x, w_ref[0:in_dim, :], preferred_element_type=jnp.float32) + b_ref[0:1, :]
    h = jnp.maximum(h, 0.0)
    off = in_dim
    for blk in range(NUM_BLOCKS):
        w1 = w_ref[off:off + MLP_HIDDEN, :]; off += MLP_HIDDEN     # wb1 (cols 64: zero-pad)
        w2 = w_ref[off:off + MLP_HIDDEN, :]; off += MLP_HIDDEN     # wb2 (rows 64: zero-pad)
        b1 = b_ref[1 + 2 * blk:2 + 2 * blk, :]
        b2 = b_ref[2 + 2 * blk:3 + 2 * blk, :]
        z = jnp.maximum(jnp.dot(h, w1, preferred_element_type=jnp.float32) + b1, 0.0)
        h = h + jnp.dot(z, w2, preferred_element_type=jnp.float32) + b2
    return jnp.dot(h, wo_ref[...], preferred_element_type=jnp.float32) + bo_ref[...]


def mask_gen_forward_kernel(expl_ref, predh_ref, wsel_ref,     # activations / selected clf rows
                            pw_ref, pb_ref, pwo_ref, pbo_ref,  # pred_map packed params + head
                            ew_ref, eb_ref, ewo_ref, ebo_ref,  # explain_map packed params + head
                            scale_ref,                         # SMEM [1,1]: exp(logit_scale)
                            sim_ref):                          # out [N, L_PAD]
    # --- get_original_vision_feature ---
    # (hidden.unsqueeze(1) * W.unsqueeze(0) * selector.unsqueeze(-1)).sum(1)
    #   == hidden * W[class_idx]; the row gather W[class_idx] is done wrapper-side so the
    #   whole classifier matrix never travels HBM->VMEM.
    orig_feat = predh_ref[...] * wsel_ref[...]                 # [N, D_PRED]

    # --- SimilarityMeasure ---
    pred_emb = _l2_normalize(_mlp_from_slab(orig_feat, pw_ref, pb_ref, pwo_ref, pbo_ref))      # [N, EMBED]
    expl_emb = _l2_normalize(_mlp_from_slab(expl_ref[...], ew_ref, eb_ref, ewo_ref, ebo_ref))  # [N*L, EMBED]

    # sim[n, l] = <expl_emb[n, l], pred_emb[n]> : VPU multiply + lane reduce (no 1-col MXU op).
    expl3 = expl_emb.reshape(N_BATCH, L_TOKENS, EMBED)
    sim = jnp.sum(expl3 * pred_emb[:, None, :], axis=-1)       # [N, L]

    scale = scale_ref[0, 0]                                    # exp(logit_scale), SMEM scalar
    sim_scaled = sim * scale
    # Lane-dense store: pad L -> L_PAD=128 lanes so the output write is an unmasked full-lane
    # vst; wrapper slices back to [N, L].
    pad = jnp.zeros((N_BATCH, L_PAD - L_TOKENS), jnp.float32)
    sim_ref[...] = jnp.concatenate([sim_scaled, pad], axis=-1)


# ----------------------------------------------------------------- wrapper ---

def pack_mlp_params(params):
    """Pack stem + bottleneck-block weights into one [K_total, 128] slab and their biases into
    a [5, 128] slab (64-wide pieces zero-padded -> exact numerics).  The head (w_out/b_out)
    is returned separately so this stays valid for any EMBED (e.g. 512)."""
    w_rows = [params["w_in"]]                                   # [in, 128]
    b_rows = [params["b_in"]]                                   # [1, 128]
    for blk in range(NUM_BLOCKS):
        w1 = params["wb1"][blk]                                 # [128, 64]
        w2 = params["wb2"][blk]                                 # [64, 128]
        b1 = params["bb1"][blk]                                 # [1, 64]
        b2 = params["bb2"][blk]                                 # [1, 128]
        w_rows.append(jnp.pad(w1, ((0, 0), (0, MLP_HIDDEN - w1.shape[1]))))
        w_rows.append(jnp.pad(w2, ((0, MLP_HIDDEN - w2.shape[0]), (0, 0))))
        b_rows.append(jnp.pad(b1, ((0, 0), (0, MLP_HIDDEN - b1.shape[1]))))
        b_rows.append(b2)
    w_slab = jnp.concatenate(w_rows, axis=0)                    # [in + 4*128, 128]
    b_slab = jnp.concatenate(b_rows, axis=0)                    # [5, 128]
    return w_slab, b_slab, params["w_out"], params["b_out"]


def mask_gen_forward(expl_features, pred_hidden, class_idx, clf_w, pred_pack, expl_pack,
                     logit_scale):
    """Returns sim of shape [N, L] (same semantics as torch forward()['sim'])."""
    n, l, d = expl_features.shape
    expl2d = expl_features.reshape(n * l, d)   # batch all token rows through one MLP pass

    # One-hot selector path == row gather; done wrapper-side so only N rows reach VMEM.
    # (jnp.take clamps OOB indices; upstream argmax guarantees range anyway.)
    w_sel = jnp.take(clf_w, class_idx, axis=0)                  # [N, D_PRED]
    scale = jnp.exp(logit_scale).reshape(1, 1)                  # exp folded out of the kernel

    vmem = lambda: pl.BlockSpec(memory_space=pltpu.MemorySpace.VMEM)
    smem = pl.BlockSpec(memory_space=pltpu.MemorySpace.SMEM)

    out = pl.pallas_call(
        mask_gen_forward_kernel,
        out_shape=jax.ShapeDtypeStruct((n, L_PAD), jnp.float32),
        # No grid: single invocation, whole arrays in VMEM, single-buffered (nothing to
        # pipeline).  NOTE(v7x, real scale): add a 2-way "parallel" grid axis over the N*L
        # explain rows so both TensorCores are used.
        in_specs=[vmem(),            # expl2d      [N*L, D_EXPLAIN]
                  vmem(),            # pred_hidden [N, D_PRED]
                  vmem(),            # w_sel       [N, D_PRED]
                  vmem(), vmem(), vmem(), vmem(),   # pred_map slabs + head
                  vmem(), vmem(), vmem(), vmem(),   # explain_map slabs + head
                  smem],             # exp(logit_scale) [1,1]
        out_specs=vmem(),
        compiler_params=pltpu.CompilerParams(vmem_limit_bytes=32 * 1024 * 1024),
    )(expl2d, pred_hidden, w_sel,
      pred_pack[0], pred_pack[1], pred_pack[2], pred_pack[3],
      expl_pack[0], expl_pack[1], expl_pack[2], expl_pack[3],
      scale)
    return out[:, :l]


# ----------------------------------------------------- deterministic params ---

def _linear_init(key, fan_in, fan_out):
    kw, kb = jax.random.split(key)
    bound = 1.0 / np.sqrt(fan_in)
    w = jax.random.uniform(kw, (fan_in, fan_out), jnp.float32, -bound, bound)
    b = jax.random.uniform(kb, (1, fan_out), jnp.float32, -bound, bound)
    return w, b


def init_mlp_params(key, in_dim):
    keys = jax.random.split(key, 2 + 2 * NUM_BLOCKS)
    w_in, b_in = _linear_init(keys[0], in_dim, MLP_HIDDEN)
    w_out, b_out = _linear_init(keys[1], MLP_HIDDEN, EMBED)
    wb1, bb1, wb2, bb2 = [], [], [], []
    for i in range(NUM_BLOCKS):
        w1, b1 = _linear_init(keys[2 + 2 * i], MLP_HIDDEN, BOTTLENECK)
        w2, b2 = _linear_init(keys[3 + 2 * i], BOTTLENECK, MLP_HIDDEN)
        wb1.append(w1); bb1.append(b1); wb2.append(w2); bb2.append(b2)
    return dict(
        w_in=w_in, b_in=b_in,
        wb1=jnp.stack(wb1), bb1=jnp.stack(bb1),   # [2,128,64], [2,1,64]
        wb2=jnp.stack(wb2), bb2=jnp.stack(bb2),   # [2,64,128], [2,1,128]
        w_out=w_out, b_out=b_out,
    )


# --------------------------------------------------------- pure-JAX reference ---

def _mlp_ref(x, p):
    h = jnp.maximum(x @ p["w_in"] + p["b_in"], 0.0)
    for i in range(NUM_BLOCKS):
        z = jnp.maximum(h @ p["wb1"][i] + p["bb1"][i], 0.0)
        h = h + z @ p["wb2"][i] + p["bb2"][i]
    return h @ p["w_out"] + p["b_out"]


def forward_ref(expl, predh, selector, clf_w, pp, ep, logit_scale):
    # get_original_vision_feature, exactly as the torch module (one-hot selector path)
    orig = (predh[:, None, :] * clf_w[None, :, :] * selector[:, :, None]).sum(axis=1)
    pe = _mlp_ref(orig, pp)
    pe = pe / jnp.maximum(jnp.linalg.norm(pe, axis=-1, keepdims=True), 1e-12)
    ee = _mlp_ref(expl.reshape(-1, expl.shape[-1]), ep)
    ee = ee.reshape(expl.shape[0], expl.shape[1], EMBED)
    ee = ee / jnp.maximum(jnp.linalg.norm(ee, axis=-1, keepdims=True), 1e-12)
    return jnp.einsum("nle,ne->nl", ee, pe) * jnp.exp(logit_scale[0, 0])


# ------------------------------------------------------------------- main ---

if __name__ == "__main__":
    key = jax.random.PRNGKey(0)
    k1, k2, k3, k4, k5, k6 = jax.random.split(key, 6)

    expl_features = jax.random.normal(k1, (N_BATCH, L_TOKENS, D_EXPLAIN), jnp.float32)
    pred_hidden = jax.random.normal(k2, (N_BATCH, D_PRED), jnp.float32)
    fake_logits = jax.random.normal(k3, (N_BATCH, NUM_CLASSES), jnp.float32)
    class_idx = jnp.argmax(fake_logits, axis=-1).astype(jnp.int32)        # predicted class
    selector = jax.nn.one_hot(class_idx, NUM_CLASSES, dtype=jnp.float32)  # reference path only
    clf_w = jax.random.normal(k4, (NUM_CLASSES, D_PRED), jnp.float32) * 0.02

    pred_params = init_mlp_params(k5, D_PRED)
    explain_params = init_mlp_params(k6, D_EXPLAIN)
    logit_scale = jnp.ones((1, 1), jnp.float32)   # nn.Parameter(torch.tensor(1.0))

    pred_pack = pack_mlp_params(pred_params)       # [544,128], [5,128], [128,128], [1,128]
    expl_pack = pack_mlp_params(explain_params)    # [576,128], [5,128], [128,128], [1,128]

    with jax.default_matmul_precision("float32"):
        sim = mask_gen_forward(expl_features, pred_hidden, class_idx, clf_w,
                               pred_pack, expl_pack, logit_scale)
        sim = jax.block_until_ready(sim)

        sim_expected = forward_ref(expl_features, pred_hidden, selector, clf_w,
                                   pred_params, explain_params, logit_scale)
        sim_expected = jax.block_until_ready(sim_expected)

    np.testing.assert_allclose(np.asarray(sim), np.asarray(sim_expected),
                               rtol=5e-3, atol=5e-3)
    print("KERNEL_OK")
</pallas_src>

<mosaic_0001>
module attributes {stable_mosaic.version = 11 : i64} {
  func.func @mask_gen_forward_kernel(%arg0: memref<32x64xf32, #tpu.memory_space<vmem>>, %arg1: memref<2x32xf32, #tpu.memory_space<vmem>>, %arg2: memref<2x32xf32, #tpu.memory_space<vmem>>, %arg3: memref<544x128xf32, #tpu.memory_space<vmem>>, %arg4: memref<5x128xf32, #tpu.memory_space<vmem>>, %arg5: memref<128x128xf32, #tpu.memory_space<vmem>>, %arg6: memref<1x128xf32, #tpu.memory_space<vmem>>, %arg7: memref<576x128xf32, #tpu.memory_space<vmem>>, %arg8: memref<5x128xf32, #tpu.memory_space<vmem>>, %arg9: memref<128x128xf32, #tpu.memory_space<vmem>>, %arg10: memref<1x128xf32, #tpu.memory_space<vmem>>, %arg11: memref<1x1xf32, #tpu.memory_space<smem>>, %arg12: memref<2x128xf32, #tpu.memory_space<vmem>>) attributes {dimension_semantics = [], scalar_prefetch = 0 : i64, scratch_operands = 0 : i64, tpu.core_type = #tpu.core_type<tc>} {
    %c0 = arith.constant 0 : index
    %c0_0 = arith.constant 0 : index
    %0 = vector.load %arg1[%c0, %c0_0] : memref<2x32xf32, #tpu.memory_space<vmem>>, vector<2x32xf32>
    %c0_1 = arith.constant 0 : index
    %c0_2 = arith.constant 0 : index
    %1 = vector.load %arg2[%c0_1, %c0_2] : memref<2x32xf32, #tpu.memory_space<vmem>>, vector<2x32xf32>
    %2 = arith.mulf %0, %1 : vector<2x32xf32>
    %c0_3 = arith.constant 0 : index
    %c0_4 = arith.constant 0 : index
    %3 = vector.load %arg3[%c0_3, %c0_4] : memref<544x128xf32, #tpu.memory_space<vmem>>, vector<32x128xf32>
    %cst = arith.constant dense<0.000000e+00> : vector<2x128xf32>
    %4 = tpu.matmul %2, %3, %cst {dimension_numbers = #tpu.dot_dimension_numbers<[1], [0], [0], [1], [0, 0, 1, 1], [], []>, precision = #tpu.contract_precision<fp32>} : vector<2x32xf32>, vector<32x128xf32>, vector<2x128xf32> -> vector<2x128xf32>
    %c0_5 = arith.constant 0 : index
    %c0_6 = arith.constant 0 : index
    %5 = vector.load %arg4[%c0_5, %c0_6] : memref<5x128xf32, #tpu.memory_space<vmem>>, vector<1x128xf32>
    %6 = vector.broadcast %5 : vector<1x128xf32> to vector<2x128xf32>
    %7 = arith.addf %4, %6 : vector<2x128xf32>
    %cst_7 = arith.constant 0.000000e+00 : f32
    %8 = vector.broadcast %cst_7 : f32 to vector<2x128xf32>
    %9 = arith.maximumf %7, %8 : vector<2x128xf32>
    %c32 = arith.constant 32 : index
    %c0_8 = arith.constant 0 : index
    %10 = vector.load %arg3[%c32, %c0_8] : memref<544x128xf32, #tpu.memory_space<vmem>>, vector<128x128xf32>
    %c160 = arith.constant 160 : index
    %c0_9 = arith.constant 0 : index
    %11 = vector.load %arg3[%c160, %c0_9] : memref<544x128xf32, #tpu.memory_space<vmem>>, vector<128x128xf32>
    %c1 = arith.constant 1 : index
    %c0_10 = arith.constant 0 : index
    %12 = vector.load %arg4[%c1, %c0_10] : memref<5x128xf32, #tpu.memory_space<vmem>>, vector<1x128xf32>
    %c2 = arith.constant 2 : index
    %c0_11 = arith.constant 0 : index
    %13 = vector.load %arg4[%c2, %c0_11] : memref<5x128xf32, #tpu.memory_space<vmem>>, vector<1x128xf32>
    %cst_12 = arith.constant dense<0.000000e+00> : vector<2x128xf32>
    %14 = tpu.matmul %9, %10, %cst_12 {dimension_numbers = #tpu.dot_dimension_numbers<[1], [0], [0], [1], [0, 0, 1, 1], [], []>, precision = #tpu.contract_precision<fp32>} : vector<2x128xf32>, vector<128x128xf32>, vector<2x128xf32> -> vector<2x128xf32>
    %15 = vector.broadcast %12 : vector<1x128xf32> to vector<2x128xf32>
    %16 = arith.addf %14, %15 : vector<2x128xf32>
    %cst_13 = arith.constant 0.000000e+00 : f32
    %17 = vector.broadcast %cst_13 : f32 to vector<2x128xf32>
    %18 = arith.maximumf %16, %17 : vector<2x128xf32>
    %cst_14 = arith.constant dense<0.000000e+00> : vector<2x128xf32>
    %19 = tpu.matmul %18, %11, %cst_14 {dimension_numbers = #tpu.dot_dimension_numbers<[1], [0], [0], [1], [0, 0, 1, 1], [], []>, precision = #tpu.contract_precision<fp32>} : vector<2x128xf32>, vector<128x128xf32>, vector<2x128xf32> -> vector<2x128xf32>
    %20 = arith.addf %9, %19 : vector<2x128xf32>
    %21 = vector.broadcast %13 : vector<1x128xf32> to vector<2x128xf32>
    %22 = arith.addf %20, %21 : vector<2x128xf32>
    %c288 = arith.constant 288 : index
    %c0_15 = arith.constant 0 : index
    %23 = vector.load %arg3[%c288, %c0_15] : memref<544x128xf32, #tpu.memory_space<vmem>>, vector<128x128xf32>
    %c416 = arith.constant 416 : index
    %c0_16 = arith.constant 0 : index
    %24 = vector.load %arg3[%c416, %c0_16] : memref<544x128xf32, #tpu.memory_space<vmem>>, vector<128x128xf32>
    %c3 = arith.constant 3 : index
    %c0_17 = arith.constant 0 : index
    %25 = vector.load %arg4[%c3, %c0_17] : memref<5x128xf32, #tpu.memory_space<vmem>>, vector<1x128xf32>
    %c4 = arith.constant 4 : index
    %c0_18 = arith.constant 0 : index
    %26 = vector.load %arg4[%c4, %c0_18] : memref<5x128xf32, #tpu.memory_space<vmem>>, vector<1x128xf32>
    %cst_19 = arith.constant dense<0.000000e+00> : vector<2x128xf32>
    %27 = tpu.matmul %22, %23, %cst_19 {dimension_numbers = #tpu.dot_dimension_numbers<[1], [0], [0], [1], [0, 0, 1, 1], [], []>, precision = #tpu.contract_precision<fp32>} : vector<2x128xf32>, vector<128x128xf32>, vector<2x128xf32> -> vector<2x128xf32>
    %28 = vector.broadcast %25 : vector<1x128xf32> to vector<2x128xf32>
    %29 = arith.addf %27, %28 : vector<2x128xf32>
    %cst_20 = arith.constant 0.000000e+00 : f32
    %30 = vector.broadcast %cst_20 : f32 to vector<2x128xf32>
    %31 = arith.maximumf %29, %30 : vector<2x128xf32>
    %cst_21 = arith.constant dense<0.000000e+00> : vector<2x128xf32>
    %32 = tpu.matmul %31, %24, %cst_21 {dimension_numbers = #tpu.dot_dimension_numbers<[1], [0], [0], [1], [0, 0, 1, 1], [], []>, precision = #tpu.contract_precision<fp32>} : vector<2x128xf32>, vector<128x128xf32>, vector<2x128xf32> -> vector<2x128xf32>
    %33 = arith.addf %22, %32 : vector<2x128xf32>
    %34 = vector.broadcast %26 : vector<1x128xf32> to vector<2x128xf32>
    %35 = arith.addf %33, %34 : vector<2x128xf32>
    %c0_22 = arith.constant 0 : index
    %c0_23 = arith.constant 0 : index
    %36 = vector.load %arg5[%c0_22, %c0_23] : memref<128x128xf32, #tpu.memory_space<vmem>>, vector<128x128xf32>
    %cst_24 = arith.constant dense<0.000000e+00> : vector<2x128xf32>
    %37 = tpu.matmul %35, %36, %cst_24 {dimension_numbers = #tpu.dot_dimension_numbers<[1], [0], [0], [1], [0, 0, 1, 1], [], []>, precision = #tpu.contract_precision<fp32>} : vector<2x128xf32>, vector<128x128xf32>, vector<2x128xf32> -> vector<2x128xf32>
    %c0_25 = arith.constant 0 : index
    %c0_26 = arith.constant 0 : index
    %38 = vector.load %arg6[%c0_25, %c0_26] : memref<1x128xf32, #tpu.memory_space<vmem>>, vector<1x128xf32>
    %39 = vector.broadcast %38 : vector<1x128xf32> to vector<2x128xf32>
    %40 = arith.addf %37, %39 : vector<2x128xf32>
    %41 = arith.mulf %40, %40 : vector<2x128xf32>
    %cst_27 = arith.constant dense<0.000000e+00> : vector<2xf32>
    %42 = vector.multi_reduction <add>, %41, %cst_27 [1] : vector<2x128xf32> to vector<2xf32>
    %43 = vector.shape_cast %42 : vector<2xf32> to vector<2x1xf32>
    %cst_28 = arith.constant 1.000000e-24 : f32
    %44 = vector.broadcast %cst_28 : f32 to vector<2x1xf32>
    %45 = arith.maximumf %43, %44 : vector<2x1xf32>
    %46 = math.rsqrt %45 : vector<2x1xf32>
    %47 = vector.broadcast %46 : vector<2x1xf32> to vector<2x128xf32>
    %48 = arith.mulf %40, %47 : vector<2x128xf32>
    %c0_29 = arith.constant 0 : index
    %c0_30 = arith.constant 0 : index
    %49 = vector.load %arg0[%c0_29, %c0_30] : memref<32x64xf32, #tpu.memory_space<vmem>>, vector<32x64xf32>
    %c0_31 = arith.constant 0 : index
    %c0_32 = arith.constant 0 : index
    %50 = vector.load %arg7[%c0_31, %c0_32] : memref<576x128xf32, #tpu.memory_space<vmem>>, vector<64x128xf32>
    %cst_33 = arith.constant dense<0.000000e+00> : vector<32x128xf32>
    %51 = tpu.matmul %49, %50, %cst_33 {dimension_numbers = #tpu.dot_dimension_numbers<[1], [0], [0], [1], [0, 0, 1, 1], [], []>, precision = #tpu.contract_precision<fp32>} : vector<32x64xf32>, vector<64x128xf32>, vector<32x128xf32> -> vector<32x128xf32>
    %c0_34 = arith.constant 0 : index
    %c0_35 = arith.constant 0 : index
    %52 = vector.load %arg8[%c0_34, %c0_35] : memref<5x128xf32, #tpu.memory_space<vmem>>, vector<1x128xf32>
    %53 = vector.broadcast %52 : vector<1x128xf32> to vector<32x128xf32>
    %54 = arith.addf %51, %53 : vector<32x128xf32>
    %cst_36 = arith.constant 0.000000e+00 : f32
    %55 = vector.broadcast %cst_36 : f32 to vector<32x128xf32>
    %56 = arith.maximumf %54, %55 : vector<32x128xf32>
    %c64 = arith.constant 64 : index
    %c0_37 = arith.constant 0 : index
    %57 = vector.load %arg7[%c64, %c0_37] : memref<576x128xf32, #tpu.memory_space<vmem>>, vector<128x128xf32>
    %c192 = arith.constant 192 : index
    %c0_38 = arith.constant 0 : index
    %58 = vector.load %arg7[%c192, %c0_38] : memref<576x128xf32, #tpu.memory_space<vmem>>, vector<128x128xf32>
    %c1_39 = arith.constant 1 : index
    %c0_40 = arith.constant 0 : index
    %59 = vector.load %arg8[%c1_39, %c0_40] : memref<5x128xf32, #tpu.memory_space<vmem>>, vector<1x128xf32>
    %c2_41 = arith.constant 2 : index
    %c0_42 = arith.constant 0 : index
    %60 = vector.load %arg8[%c2_41, %c0_42] : memref<5x128xf32, #tpu.memory_space<vmem>>, vector<1x128xf32>
    %cst_43 = arith.constant dense<0.000000e+00> : vector<32x128xf32>
    %61 = tpu.matmul %56, %57, %cst_43 {dimension_numbers = #tpu.dot_dimension_numbers<[1], [0], [0], [1], [0, 0, 1, 1], [], []>, precision = #tpu.contract_precision<fp32>} : vector<32x128xf32>, vector<128x128xf32>, vector<32x128xf32> -> vector<32x128xf32>
    %62 = vector.broadcast %59 : vector<1x128xf32> to vector<32x128xf32>
    %63 = arith.addf %61, %62 : vector<32x128xf32>
    %cst_44 = arith.constant 0.000000e+00 : f32
    %64 = vector.broadcast %cst_44 : f32 to vector<32x128xf32>
    %65 = arith.maximumf %63, %64 : vector<32x128xf32>
    %cst_45 = arith.constant dense<0.000000e+00> : vector<32x128xf32>
    %66 = tpu.matmul %65, %58, %cst_45 {dimension_numbers = #tpu.dot_dimension_numbers<[1], [0], [0], [1], [0, 0, 1, 1], [], []>, precision = #tpu.contract_precision<fp32>} : vector<32x128xf32>, vector<128x128xf32>, vector<32x128xf32> -> vector<32x128xf32>
    %67 = arith.addf %56, %66 : vector<32x128xf32>
    %68 = vector.broadcast %60 : vector<1x128xf32> to vector<32x128xf32>
    %69 = arith.addf %67, %68 : vector<32x128xf32>
    %c320 = arith.constant 320 : index
    %c0_46 = arith.constant 0 : index
    %70 = vector.load %arg7[%c320, %c0_46] : memref<576x128xf32, #tpu.memory_space<vmem>>, vector<128x128xf32>
    %c448 = arith.constant 448 : index
    %c0_47 = arith.constant 0 : index
    %71 = vector.load %arg7[%c448, %c0_47] : memref<576x128xf32, #tpu.memory_space<vmem>>, vector<128x128xf32>
    %c3_48 = arith.constant 3 : index
    %c0_49 = arith.constant 0 : index
    %72 = vector.load %arg8[%c3_48, %c0_49] : memref<5x128xf32, #tpu.memory_space<vmem>>, vector<1x128xf32>
    %c4_50 = arith.constant 4 : index
    %c0_51 = arith.constant 0 : index
    %73 = vector.load %arg8[%c4_50, %c0_51] : memref<5x128xf32, #tpu.memory_space<vmem>>, vector<1x128xf32>
    %cst_52 = arith.constant dense<0.000000e+00> : vector<32x128xf32>
    %74 = tpu.matmul %69, %70, %cst_52 {dimension_numbers = #tpu.dot_dimension_numbers<[1], [0], [0], [1], [0, 0, 1, 1], [], []>, precision = #tpu.contract_precision<fp32>} : vector<32x128xf32>, vector<128x128xf32>, vector<32x128xf32> -> vector<32x128xf32>
    %75 = vector.broadcast %72 : vector<1x128xf32> to vector<32x128xf32>
    %76 = arith.addf %74, %75 : vector<32x128xf32>
    %cst_53 = arith.constant 0.000000e+00 : f32
    %77 = vector.broadcast %cst_53 : f32 to vector<32x128xf32>
    %78 = arith.maximumf %76, %77 : vector<32x128xf32>
    %cst_54 = arith.constant dense<0.000000e+00> : vector<32x128xf32>
    %79 = tpu.matmul %78, %71, %cst_54 {dimension_numbers = #tpu.dot_dimension_numbers<[1], [0], [0], [1], [0, 0, 1, 1], [], []>, precision = #tpu.contract_precision<fp32>} : vector<32x128xf32>, vector<128x128xf32>, vector<32x128xf32> -> vector<32x128xf32>
    %80 = arith.addf %69, %79 : vector<32x128xf32>
    %81 = vector.broadcast %73 : vector<1x128xf32> to vector<32x128xf32>
    %82 = arith.addf %80, %81 : vector<32x128xf32>
    %c0_55 = arith.constant 0 : index
    %c0_56 = arith.constant 0 : index
    %83 = vector.load %arg9[%c0_55, %c0_56] : memref<128x128xf32, #tpu.memory_space<vmem>>, vector<128x128xf32>
    %cst_57 = arith.constant dense<0.000000e+00> : vector<32x128xf32>
    %84 = tpu.matmul %82, %83, %cst_57 {dimension_numbers = #tpu.dot_dimension_numbers<[1], [0], [0], [1], [0, 0, 1, 1], [], []>, precision = #tpu.contract_precision<fp32>} : vector<32x128xf32>, vector<128x128xf32>, vector<32x128xf32> -> vector<32x128xf32>
    %c0_58 = arith.constant 0 : index
    %c0_59 = arith.constant 0 : index
    %85 = vector.load %arg10[%c0_58, %c0_59] : memref<1x128xf32, #tpu.memory_space<vmem>>, vector<1x128xf32>
    %86 = vector.broadcast %85 : vector<1x128xf32> to vector<32x128xf32>
    %87 = arith.addf %84, %86 : vector<32x128xf32>
    %88 = arith.mulf %87, %87 : vector<32x128xf32>
    %cst_60 = arith.constant dense<0.000000e+00> : vector<32xf32>
    %89 = vector.multi_reduction <add>, %88, %cst_60 [1] : vector<32x128xf32> to vector<32xf32>
    %90 = vector.shape_cast %89 : vector<32xf32> to vector<32x1xf32>
    %cst_61 = arith.constant 1.000000e-24 : f32
    %91 = vector.broadcast %cst_61 : f32 to vector<32x1xf32>
    %92 = arith.maximumf %90, %91 : vector<32x1xf32>
    %93 = math.rsqrt %92 : vector<32x1xf32>
    %94 = vector.broadcast %93 : vector<32x1xf32> to vector<32x128xf32>
    %95 = arith.mulf %87, %94 : vector<32x128xf32>
    %96 = vector.shape_cast %95 : vector<32x128xf32> to vector<2x16x128xf32>
    %97 = vector.shape_cast %48 : vector<2x128xf32> to vector<2x1x128xf32>
    %98 = vector.broadcast %97 : vector<2x1x128xf32> to vector<2x16x128xf32>
    %99 = arith.mulf %96, %98 : vector<2x16x128xf32>
    %cst_62 = arith.constant dense<0.000000e+00> : vector<2x16xf32>
    %100 = vector.multi_reduction <add>, %99, %cst_62 [2] : vector<2x16x128xf32> to vector<2x16xf32>
    %c0_63 = arith.constant 0 : index
    %c0_64 = arith.constant 0 : index
    %101 = memref.load %arg11[%c0_63, %c0_64] : memref<1x1xf32, #tpu.memory_space<smem>>
    %102 = vector.broadcast %101 : f32 to vector<2x16xf32>
    %103 = arith.mulf %100, %102 : vector<2x16xf32>
    %cst_65 = arith.constant 0.000000e+00 : f32
    %104 = vector.broadcast %cst_65 : f32 to vector<2x112xf32>
    %105 = tpu.concatenate %103, %104 in 1 : vector<2x16xf32>, vector<2x112xf32> -> vector<2x128xf32>
    %c0_66 = arith.constant 0 : index
    %c0_67 = arith.constant 0 : index
    %106 = vector.load %arg12[%c0_66, %c0_67] : memref<2x128xf32, #tpu.memory_space<vmem>>, vector<2x128xf32>
    tpu.vector_store %arg12[%c0_66, %c0_67], %105 {strides = array<i32>} : memref<2x128xf32, #tpu.memory_space<vmem>>, vector<2x128xf32>,
    return
  }
}

</mosaic_0001>

<llo_original>
// kernel: tpu_custom_call.1
$region0: #{tpu_custom_call.1}
  #allocation0 [shape = 'u32[]', space=smem, size = 0x4, offset = 0x4, fixed_abs, tag = 'smem constant byte address 0x4 - core index']
  #allocation1 [shape = 'u32[144,128]{1,0:T(1,128)}', space=vmem, size = 0x12000, scoped, tag = 'internal scratch']
  #allocation2 [shape = 'f32[1,1]{1,0:T(1,128)S(6)}', space=smem, size = 0x200, scoped, tag = 'scoped memory for tpu_custom_call.1']
  %s0 = inlined_call_operand.hbm [shape: f32[32,64], index: 0, kind: input, shape index: {}]
  %s1 = inlined_call_operand.hbm [shape: f32[2,32], index: 1, kind: input, shape index: {}]
  %s2 = inlined_call_operand.hbm [shape: f32[2,32], index: 2, kind: input, shape index: {}]
  %s3 = inlined_call_operand.hbm [shape: f32[544,128], index: 3, kind: input, shape index: {}]
  %s4 = inlined_call_operand.vmem [shape: f32[5,128], index: 4, kind: input, shape index: {}]
  %s5 = inlined_call_operand.hbm [shape: f32[128,128], index: 5, kind: input, shape index: {}]
  %s6 = inlined_call_operand.hbm [shape: f32[1,128], index: 6, kind: input, shape index: {}]
  %s7 = inlined_call_operand.hbm [shape: f32[576,128], index: 7, kind: input, shape index: {}]
  %s8 = inlined_call_operand.vmem [shape: f32[5,128], index: 8, kind: input, shape index: {}]
  %s9 = inlined_call_operand.hbm [shape: f32[128,128], index: 9, kind: input, shape index: {}]
  %s10 = inlined_call_operand.vmem [shape: f32[1,128], index: 10, kind: input, shape index: {}]
  %s11 = inlined_call_operand.<no memory space> [shape: f32[1,1], index: 11, kind: input, shape index: {}]
  %s12 = inlined_call_operand.hbm [shape: f32[2,128], index: 12, kind: output, shape index: {}]
  %s13 = sld [smem:[#allocation0]]
  $region90: #{tpu_custom_call.1} parent=0
    _
  %s15 = ssub.s32 1, %s13
  %s16 = scalar_select 0, %s15, %s13
  %17 = sst [smem:[#allocation2]] %s11
  $region1: #{tpu_custom_call.1} parent=0
    #allocation3 [shape = 'u8[16384]{0}', space=vmem, size = 0x4000, scoped, tag = 'input window, operand 0, single buffered']
    #allocation4 [shape = 's32[1]{0}', space=sflag, size = 0x4, scoped, tag = 'scoped memory for tpu_custom_call.1']
    #allocation5 [shape = 's32[1]{0}', space=sflag, size = 0x4, scoped, tag = 'scoped memory for tpu_custom_call.1']
    #allocation6 [shape = 'u8[1024]{0}', space=vmem, size = 0x400, scoped, tag = 'input window, operand 1, single buffered']
    #allocation7 [shape = 's32[1]{0}', space=sflag, size = 0x4, scoped, tag = 'scoped memory for tpu_custom_call.1']
    #allocation8 [shape = 'u8[1024]{0}', space=vmem, size = 0x400, scoped, tag = 'input window, operand 2, single buffered']
    #allocation9 [shape = 'u8[278528]{0}', space=vmem, size = 0x44000, scoped, tag = 'input window, operand 3, single buffered']
    #allocation10 [shape = 's32[1]{0}', space=sflag, size = 0x4, scoped, tag = 'scoped memory for tpu_custom_call.1']
    #allocation11 [shape = 'u8[65536]{0}', space=vmem, size = 0x10000, scoped, tag = 'input window, operand 5, single buffered']
    #allocation12 [shape = 'u8[512]{0}', space=vmem, size = 0x400, scoped, tag = 'input window, operand 6, single buffered']
    #allocation13 [shape = 's32[1]{0}', space=sflag, size = 0x4, scoped, tag = 'scoped memory for tpu_custom_call.1']
    #allocation14 [shape = 'u8[294912]{0}', space=vmem, size = 0x48000, scoped, tag = 'input window, operand 7, single buffered']
    #allocation15 [shape = 'u8[65536]{0}', space=vmem, size = 0x10000, scoped, tag = 'input window, operand 9, single buffered']
    #allocation16 [shape = 's32[1]{0}', space=sflag, size = 0x4, scoped, tag = 'scoped memory for tpu_custom_call.1']
    #allocation17 [shape = 'u8[1024]{0}', space=vmem, size = 0x400, scoped, tag = 'output window, operand 0, single buffered']
    %18 = vsyncpa [#allocation4], 0
    %19 = vsyncpa [#allocation7], 0
    %20 = vsyncpa [#allocation10], 0
    %21 = vsyncpa [#allocation13], 0
    %22 = vsyncpa [#allocation16], 0
    %23 = vsyncpa [#allocation5], 0
    // Predicated region
    $region2: #{tpu_custom_call.1} parent=1 // pred_check
      _
    $region3: #{tpu_custom_call.1} parent=1 // pred_check_branch
      %25 = sbr.rel (0) target = $region5
    $region4: #{tpu_custom_call.1} parent=1 // pred_region
      %s27 = ssub.s32 512, 512
      %28 = vsyncadd [#allocation4], %s27
      %s29 = sshll.u32 [#allocation3], 4
      %s30 = int_to_ptr.vmem [resolvable:$true] %s29
      %35 = dma.hbm_to_vmem [thread:$0]  %s0, 512, %s30, [#allocation4], 128, 128, 8
    $region5: #{tpu_custom_call.1} parent=1 // pred_fallthru
      _
    // Predicated region
    $region6: #{tpu_custom_call.1} parent=1 // pred_check
      _
    $region7: #{tpu_custom_call.1} parent=1 // pred_check_branch
      %37 = sbr.rel (0) target = $region9
    $region8: #{tpu_custom_call.1} parent=1 // pred_region
      %s39 = ssub.s32 32, 32
      %40 = vsyncadd [#allocation7], %s39
      %s42 = sshll.u32 [#allocation6], 4
      %s43 = int_to_ptr.vmem [resolvable:$true] %s42
      %45 = dma.hbm_to_vmem [thread:$0]  %s1, 32, %s43, [#allocation7]
    $region9: #{tpu_custom_call.1} parent=1 // pred_fallthru
      _
    // Predicated region
    $region10: #{tpu_custom_call.1} parent=1 // pred_check
      _
    $region11: #{tpu_custom_call.1} parent=1 // pred_check_branch
      %47 = sbr.rel (0) target = $region13
    $region12: #{tpu_custom_call.1} parent=1 // pred_region
      %s49 = ssub.s32 32, 32
      %50 = vsyncadd [#allocation7], %s49
      %s52 = sshll.u32 [#allocation8], 4
      %s53 = int_to_ptr.vmem [resolvable:$true] %s52
      %55 = dma.hbm_to_vmem [thread:$0]  %s2, 32, %s53, [#allocation7]
    $region13: #{tpu_custom_call.1} parent=1 // pred_fallthru
      _
    // Predicated region
    $region14: #{tpu_custom_call.1} parent=1 // pred_check
      _
    $region15: #{tpu_custom_call.1} parent=1 // pred_check_branch
      %57 = sbr.rel (0) target = $region17
    $region16: #{tpu_custom_call.1} parent=1 // pred_region
      %s59 = ssub.s32 8704, 8704
      %60 = vsyncadd [#allocation10], %s59
      %s61 = sshll.u32 [#allocation9], 4
      %s62 = int_to_ptr.vmem [resolvable:$true] %s61
      %67 = dma.hbm_to_vmem [thread:$0]  %s3, 8704, %s62, [#allocation10], 128, 128, 8
    $region17: #{tpu_custom_call.1} parent=1 // pred_fallthru
      _
    // Predicated region
    $region18: #{tpu_custom_call.1} parent=1 // pred_check
      _
    $region19: #{tpu_custom_call.1} parent=1 // pred_check_branch
      %69 = sbr.rel (0) target = $region21
    $region20: #{tpu_custom_call.1} parent=1 // pred_region
      _
    $region21: #{tpu_custom_call.1} parent=1 // pred_fallthru
      _
    // Predicated region
    $region22: #{tpu_custom_call.1} parent=1 // pred_check
      _
    $region23: #{tpu_custom_call.1} parent=1 // pred_check_branch
      %71 = sbr.rel (0) target = $region25
    $region24: #{tpu_custom_call.1} parent=1 // pred_region
      %s73 = ssub.s32 2048, 2048
      %74 = vsyncadd [#allocation10], %s73
      %s75 = sshll.u32 [#allocation11], 4
      %s76 = int_to_ptr.vmem [resolvable:$true] %s75
      %81 = dma.hbm_to_vmem [thread:$0]  %s5, 2048, %s76, [#allocation10], 128, 128, 8
    $region25: #{tpu_custom_call.1} parent=1 // pred_fallthru
      _
    // Predicated region
    $region26: #{tpu_custom_call.1} parent=1 // pred_check
      _
    $region27: #{tpu_custom_call.1} parent=1 // pred_check_branch
      %83 = sbr.rel (0) target = $region29
    $region28: #{tpu_custom_call.1} parent=1 // pred_region
      %s85 = ssub.s32 16, 16
      %86 = vsyncadd [#allocation13], %s85
      %s88 = sshll.u32 [#allocation12], 4
      %s89 = int_to_ptr.vmem [resolvable:$true] %s88
      %91 = dma.hbm_to_vmem [thread:$0]  %s6, 16, %s89, [#allocation13]
    $region29: #{tpu_custom_call.1} parent=1 // pred_fallthru
      _
    // Predicated region
    $region30: #{tpu_custom_call.1} parent=1 // pred_check
      _
    $region31: #{tpu_custom_call.1} parent=1 // pred_check_branch
      %93 = sbr.rel (0) target = $region33
    $region32: #{tpu_custom_call.1} parent=1 // pred_region
      %s95 = ssub.s32 9216, 9216
      %96 = vsyncadd [#allocation13], %s95
      %s97 = sshll.u32 [#allocation14], 4
      %s98 = int_to_ptr.vmem [resolvable:$true] %s97
      %103 = dma.hbm_to_vmem [thread:$0]  %s7, 9216, %s98, [#allocation13], 128, 128, 8
    $region33: #{tpu_custom_call.1} parent=1 // pred_fallthru
      _
    // Predicated region
    $region34: #{tpu_custom_call.1} parent=1 // pred_check
      _
    $region35: #{tpu_custom_call.1} parent=1 // pred_check_branch
      %105 = sbr.rel (0) target = $region37
    $region36: #{tpu_custom_call.1} parent=1 // pred_region
      _
    $region37: #{tpu_custom_call.1} parent=1 // pred_fallthru
      _
    // Predicated region
    $region38: #{tpu_custom_call.1} parent=1 // pred_check
      _
    $region39: #{tpu_custom_call.1} parent=1 // pred_check_branch
      %107 = sbr.rel (0) target = $region41
    $region40: #{tpu_custom_call.1} parent=1 // pred_region
      %s109 = ssub.s32 2048, 2048
      %110 = vsyncadd [#allocation16], %s109
      %s111 = sshll.u32 [#allocation15], 4
      %s112 = int_to_ptr.vmem [resolvable:$true] %s111
      %117 = dma.hbm_to_vmem [thread:$0]  %s9, 2048, %s112, [#allocation16], 128, 128, 8
    $region41: #{tpu_custom_call.1} parent=1 // pred_fallthru
      _
    // Predicated region
    $region42: #{tpu_custom_call.1} parent=1 // pred_check
      _
    $region43: #{tpu_custom_call.1} parent=1 // pred_check_branch
      %119 = sbr.rel (0) target = $region45
    $region44: #{tpu_custom_call.1} parent=1 // pred_region
      _
    $region45: #{tpu_custom_call.1} parent=1 // pred_fallthru
      _
    // Predicated region
    $region46: #{tpu_custom_call.1} parent=1 // pred_check
      _
    $region47: #{tpu_custom_call.1} parent=1 // pred_check_branch
      %121 = sbr.rel (0) target = $region49
    $region48: #{tpu_custom_call.1} parent=1 // pred_region
      _
    $region49: #{tpu_custom_call.1} parent=1 // pred_fallthru
      _
    // Predicated region
    $region50: #{tpu_custom_call.1} parent=1 // pred_check
      _
    $region51: #{tpu_custom_call.1} parent=1 // pred_check_branch
      %123 = sbr.rel (0) target = $region53
    $region52: #{tpu_custom_call.1} parent=1 // pred_region
      %124 = dma.done [#allocation4], 512
    $region53: #{tpu_custom_call.1} parent=1 // pred_fallthru
      _
    // Predicated region
    $region54: #{tpu_custom_call.1} parent=1 // pred_check
      _
    $region55: #{tpu_custom_call.1} parent=1 // pred_check_branch
      %126 = sbr.rel (0) target = $region57
    $region56: #{tpu_custom_call.1} parent=1 // pred_region
      %127 = dma.done [#allocation7], 32
    $region57: #{tpu_custom_call.1} parent=1 // pred_fallthru
      _
    // Predicated region
    $region58: #{tpu_custom_call.1} parent=1 // pred_check
      _
    $region59: #{tpu_custom_call.1} parent=1 // pred_check_branch
      %129 = sbr.rel (0) target = $region61
    $region60: #{tpu_custom_call.1} parent=1 // pred_region
      %130 = dma.done [#allocation7], 32
    $region61: #{tpu_custom_call.1} parent=1 // pred_fallthru
      _
    // Predicated region
    $region62: #{tpu_custom_call.1} parent=1 // pred_check
      _
    $region63: #{tpu_custom_call.1} parent=1 // pred_check_branch
      %132 = sbr.rel (0) target = $region65
    $region64: #{tpu_custom_call.1} parent=1 // pred_region
      %133 = dma.done [#allocation10], 8704
    $region65: #{tpu_custom_call.1} parent=1 // pred_fallthru
      _
    // Predicated region
    $region66: #{tpu_custom_call.1} parent=1 // pred_check
      _
    $region67: #{tpu_custom_call.1} parent=1 // pred_check_branch
      %135 = sbr.rel (0) target = $region69
    $region68: #{tpu_custom_call.1} parent=1 // pred_region
      %136 = dma.done [#allocation10], 2048
    $region69: #{tpu_custom_call.1} parent=1 // pred_fallthru
      _
    // Predicated region
    $region70: #{tpu_custom_call.1} parent=1 // pred_check
      _
    $region71: #{tpu_custom_call.1} parent=1 // pred_check_branch
      %138 = sbr.rel (0) target = $region73
    $region72: #{tpu_custom_call.1} parent=1 // pred_region
      %139 = dma.done [#allocation13], 16
    $region73: #{tpu_custom_call.1} parent=1 // pred_fallthru
      _
    // Predicated region
    $region74: #{tpu_custom_call.1} parent=1 // pred_check
      _
    $region75: #{tpu_custom_call.1} parent=1 // pred_check_branch
      %141 = sbr.rel (0) target = $region77
    $region76: #{tpu_custom_call.1} parent=1 // pred_region
      %142 = dma.done [#allocation13], 9216
    $region77: #{tpu_custom_call.1} parent=1 // pred_fallthru
      _
    // Predicated region
    $region78: #{tpu_custom_call.1} parent=1 // pred_check
      _
    $region79: #{tpu_custom_call.1} parent=1 // pred_check_branch
      %144 = sbr.rel (0) target = $region81
    $region80: #{tpu_custom_call.1} parent=1 // pred_region
      %145 = dma.done [#allocation16], 2048
    $region81: #{tpu_custom_call.1} parent=1 // pred_fallthru
      _
    %v146 = vld [vmem:[#allocation6] sm:$0x3]
    %v147 = vld [vmem:[#allocation8] sm:$0x3]
    %v148 = vmul.f32 %v146, %v147
    %v149 = vld [vmem:[#allocation9] sm:$0xff]
    %v150 = vld [vmem:[#allocation9 + $0x8] sm:$0xff]
    %v151 = vld [vmem:[#allocation9 + $0x10] sm:$0xff]
    %v152 = vld [vmem:[#allocation9 + $0x18] sm:$0xff]
    %v153 = vld [vmem:[%s4] sm:$0x1]
    %v154 = vlaneseq
    %v155 = vshrl.u32 %v154, 7
    %v156 = vsub.s32 0, %v155
    %v157 = vrot.slane %v153, %v156
    %vm158 = vcmask 261120
    %v160 = vsel %vm158, %v148, 0
    %162 = vmatprep.subr.mxu0 0.0
    %163 = vmatpush1.msra.mxu0 0.0
    %164 = vmatprep.subr.mxu0 0.0
    %165 = vmatpush1.msra.mxu0 0.0
    %166 = vmatprep.subr.mxu0 0.0
    %167 = vmatpush1.msra.mxu0 0.0
    %168 = vmatprep.subr.mxu0 0.0
    %169 = vmatpush1.msra.mxu0 0.0
    %170 = vmatprep.subr.mxu0 0.0
    %171 = vmatpush1.msra.mxu0 0.0
    %172 = vmatprep.subr.mxu0 0.0
    %173 = vmatpush1.msra.mxu0 0.0
    %174 = vmatprep.subr.mxu0 0.0
    %175 = vmatpush1.msra.mxu0 0.0
    %176 = vmatprep.subr.mxu0 0.0
    %177 = vmatpush1.msra.mxu0 0.0
    %178 = vmatprep.subr.mxu0 0.0
    %179 = vmatpush1.msra.mxu0 0.0
    %180 = vmatprep.subr.mxu0 0.0
    %181 = vmatpush1.msra.mxu0 0.0
    %182 = vmatprep.subr.mxu0 0.0
    %183 = vmatpush1.msra.mxu0 0.0
    %184 = vmatprep.subr.mxu0 0.0
    %185 = vmatpush1.msra.mxu0 0.0
    %186 = vmatprep.subr.mxu0 0.0
    %v187 = vand.u32 %v152, 4294901760
    %188 = vmatpush1.msra.mxu0 %v187
    %189 = vmatprep.subr.mxu0 0.0
    %v190 = vand.u32 %v151, 4294901760
    %191 = vmatpush1.msra.mxu0 %v190
    %192 = vmatprep.subr.mxu0 0.0
    %v193 = vand.u32 %v150, 4294901760
    %194 = vmatpush1.msra.mxu0 %v193
    %195 = vmatprep.subr.mxu0 0.0
    %v196 = vand.u32 %v149, 4294901760
    %197 = vmatpush1.msra.mxu0 %v196
    %198 = vmatprep.subr.mxu0 0.0
    %199 = vmatpush2.msra.mxu0 0.0
    %200 = vmatprep.subr.mxu0 0.0
    %201 = vmatpush2.msra.mxu0 0.0
    %202 = vmatprep.subr.mxu0 0.0
    %203 = vmatpush2.msra.mxu0 0.0
    %204 = vmatprep.subr.mxu0 0.0
    %205 = vmatpush2.msra.mxu0 0.0
    %206 = vmatprep.subr.mxu0 0.0
    %207 = vmatpush2.msra.mxu0 0.0
    %208 = vmatprep.subr.mxu0 0.0
    %209 = vmatpush2.msra.mxu0 0.0
    %210 = vmatprep.subr.mxu0 0.0
    %211 = vmatpush2.msra.mxu0 0.0
    %212 = vmatprep.subr.mxu0 0.0
    %213 = vmatpush2.msra.mxu0 0.0
    %214 = vmatprep.subr.mxu0 0.0
    %215 = vmatpush2.msra.mxu0 0.0
    %216 = vmatprep.subr.mxu0 0.0
    %217 = vmatpush2.msra.mxu0 0.0
    %218 = vmatprep.subr.mxu0 0.0
    %219 = vmatpush2.msra.mxu0 0.0
    %220 = vmatprep.subr.mxu0 0.0
    %221 = vmatpush2.msra.mxu0 0.0
    %222 = vmatprep.subr.mxu0 0.0
    %223 = vmatpush2.msra.mxu0 0.0
    %224 = vmatprep.subr.mxu0 0.0
    %225 = vmatpush2.msra.mxu0 0.0
    %226 = vmatprep.subr.mxu0 0.0
    %227 = vmatpush2.msra.mxu0 0.0
    %228 = vmatprep.subr.mxu0 0.0
    %229 = vmatpush2.msra.mxu0 0.0
    %230 = vmatprep.mubr.f32.mxu0 0.0
    %v231 = vand.u32 %v160, 4294901760
    %v232 = vsub.f32 %v160, %v231
    %v233 = vand.u32 %v232, 4294901760
    %v234 = vsub.f32 %v232, %v233
    %v235 = vand.u32 %v234, 4294901760
    %236 = vmatmul.mubr.f32.gmra.mxu0 %v235
    %v237 = vpop.f32.mrf.mxu0
    %v238 = vadd.f32 %v157, %v237
    %v239 = vpop.f32.mrf.mxu0
    %240 = vdwg.mxu0
    %241 = vmatprep.subr.mxu0 0.0
    %242 = vmatpush1.msra.mxu0 0.0
    %243 = vmatprep.subr.mxu0 0.0
    %244 = vmatpush1.msra.mxu0 0.0
    %245 = vmatprep.subr.mxu0 0.0
    %246 = vmatpush1.msra.mxu0 0.0
    %247 = vmatprep.subr.mxu0 0.0
    %248 = vmatpush1.msra.mxu0 0.0
    %249 = vmatprep.subr.mxu0 0.0
    %250 = vmatpush1.msra.mxu0 0.0
    %251 = vmatprep.subr.mxu0 0.0
    %252 = vmatpush1.msra.mxu0 0.0
    %253 = vmatprep.subr.mxu0 0.0
    %254 = vmatpush1.msra.mxu0 0.0
    %255 = vmatprep.subr.mxu0 0.0
    %256 = vmatpush1.msra.mxu0 0.0
    %257 = vmatprep.subr.mxu0 0.0
    %258 = vmatpush1.msra.mxu0 0.0
    %259 = vmatprep.subr.mxu0 0.0
    %260 = vmatpush1.msra.mxu0 0.0
    %261 = vmatprep.subr.mxu0 0.0
    %262 = vmatpush1.msra.mxu0 0.0
    %263 = vmatprep.subr.mxu0 0.0
    %264 = vmatpush1.msra.mxu0 0.0
    %265 = vmatprep.subr.mxu0 0.0
    %v266 = vand.u32 %v152, 4294901760
    %v267 = vsub.f32 %v152, %v266
    %v268 = vand.u32 %v267, 4294901760
    %v269 = vsub.f32 %v267, %v268
    %v270 = vand.u32 %v269, 4294901760
    %271 = vmatpush1.msra.mxu0 %v270
    %272 = vmatprep.subr.mxu0 0.0
    %v273 = vand.u32 %v151, 4294901760
    %v274 = vsub.f32 %v151, %v273
    %v275 = vand.u32 %v274, 4294901760
    %v276 = vsub.f32 %v274, %v275
    %v277 = vand.u32 %v276, 4294901760
    %278 = vmatpush1.msra.mxu0 %v277
    %279 = vmatprep.subr.mxu0 0.0
    %v280 = vand.u32 %v150, 4294901760
    %v281 = vsub.f32 %v150, %v280
    %v282 = vand.u32 %v281, 4294901760
    %v283 = vsub.f32 %v281, %v282
    %v284 = vand.u32 %v283, 4294901760
    %285 = vmatpush1.msra.mxu0 %v284
    %286 = vmatprep.subr.mxu0 0.0
    %v287 = vand.u32 %v149, 4294901760
    %v288 = vsub.f32 %v149, %v287
    %v289 = vand.u32 %v288, 4294901760
    %v290 = vsub.f32 %v288, %v289
    %v291 = vand.u32 %v290, 4294901760
    %292 = vmatpush1.msra.mxu0 %v291
    %293 = vmatprep.subr.mxu0 0.0
    %294 = vmatpush2.msra.mxu0 0.0
    %295 = vmatprep.subr.mxu0 0.0
    %296 = vmatpush2.msra.mxu0 0.0
    %297 = vmatprep.subr.mxu0 0.0
    %298 = vmatpush2.msra.mxu0 0.0
    %299 = vmatprep.subr.mxu0 0.0
    %300 = vmatpush2.msra.mxu0 0.0
    %301 = vmatprep.subr.mxu0 0.0
    %302 = vmatpush2.msra.mxu0 0.0
    %303 = vmatprep.subr.mxu0 0.0
    %304 = vmatpush2.msra.mxu0 0.0
    %305 = vmatprep.subr.mxu0 0.0
    %306 = vmatpush2.msra.mxu0 0.0
    %307 = vmatprep.subr.mxu0 0.0
    %308 = vmatpush2.msra.mxu0 0.0
    %309 = vmatprep.subr.mxu0 0.0
    %310 = vmatpush2.msra.mxu0 0.0
    %311 = vmatprep.subr.mxu0 0.0
    %312 = vmatpush2.msra.mxu0 0.0
    %313 = vmatprep.subr.mxu0 0.0
    %314 = vmatpush2.msra.mxu0 0.0
    %315 = vmatprep.subr.mxu0 0.0
    %316 = vmatpush2.msra.mxu0 0.0
    %317 = vmatprep.subr.mxu0 0.0
    %318 = vmatpush2.msra.mxu0 0.0
    %319 = vmatprep.subr.mxu0 0.0
    %320 = vmatpush2.msra.mxu0 0.0
    %321 = vmatprep.subr.mxu0 0.0
    %322 = vmatpush2.msra.mxu0 0.0
    %323 = vmatprep.subr.mxu0 0.0
    %324 = vmatpush2.msra.mxu0 0.0
    %325 = vmatprep.mubr.f32.mxu0 0.0
    %v326 = vand.u32 %v160, 4294901760
    %327 = vmatmul.mubr.f32.gmra.mxu0 %v326
    %v328 = vpop.f32.mrf.mxu0
    %v329 = vadd.f32 %v238, %v328
    %v330 = vpop.f32.mrf.mxu0
    %331 = vdwg.mxu0
    %332 = vmatprep.subr.mxu0 0.0
    %333 = vmatpush1.msra.mxu0 0.0
    %334 = vmatprep.subr.mxu0 0.0
    %335 = vmatpush1.msra.mxu0 0.0
    %336 = vmatprep.subr.mxu0 0.0
    %337 = vmatpush1.msra.mxu0 0.0
    %338 = vmatprep.subr.mxu0 0.0
    %339 = vmatpush1.msra.mxu0 0.0
    %340 = vmatprep.subr.mxu0 0.0
    %341 = vmatpush1.msra.mxu0 0.0
    %342 = vmatprep.subr.mxu0 0.0
    %343 = vmatpush1.msra.mxu0 0.0
    %344 = vmatprep.subr.mxu0 0.0
    %345 = vmatpush1.msra.mxu0 0.0
    %346 = vmatprep.subr.mxu0 0.0
    %347 = vmatpush1.msra.mxu0 0.0
    %348 = vmatprep.subr.mxu0 0.0
    %349 = vmatpush1.msra.mxu0 0.0
    %350 = vmatprep.subr.mxu0 0.0
    %351 = vmatpush1.msra.mxu0 0.0
    %352 = vmatprep.subr.mxu0 0.0
    %353 = vmatpush1.msra.mxu0 0.0
    %354 = vmatprep.subr.mxu0 0.0
    %355 = vmatpush1.msra.mxu0 0.0
    %356 = vmatprep.subr.mxu0 0.0
    %v357 = vand.u32 %v152, 4294901760
    %v358 = vsub.f32 %v152, %v357
    %359 = vmatpush1.msra.mxu0 %v358
    %360 = vmatprep.subr.mxu0 0.0
    %v361 = vand.u32 %v151, 4294901760
    %v362 = vsub.f32 %v151, %v361
    %363 = vmatpush1.msra.mxu0 %v362
    %364 = vmatprep.subr.mxu0 0.0
    %v365 = vand.u32 %v150, 4294901760
    %v366 = vsub.f32 %v150, %v365
    %367 = vmatpush1.msra.mxu0 %v366
    %368 = vmatprep.subr.mxu0 0.0
    %v369 = vand.u32 %v149, 4294901760
    %v370 = vsub.f32 %v149, %v369
    %371 = vmatpush1.msra.mxu0 %v370
    %372 = vmatprep.subr.mxu0 0.0
    %373 = vmatpush2.msra.mxu0 0.0
    %374 = vmatprep.subr.mxu0 0.0
    %375 = vmatpush2.msra.mxu0 0.0
    %376 = vmatprep.subr.mxu0 0.0
    %377 = vmatpush2.msra.mxu0 0.0
    %378 = vmatprep.subr.mxu0 0.0
    %379 = vmatpush2.msra.mxu0 0.0
    %380 = vmatprep.subr.mxu0 0.0
    %381 = vmatpush2.msra.mxu0 0.0
    %382 = vmatprep.subr.mxu0 0.0
    %383 = vmatpush2.msra.mxu0 0.0
    %384 = vmatprep.subr.mxu0 0.0
    %385 = vmatpush2.msra.mxu0 0.0
    %386 = vmatprep.subr.mxu0 0.0
    %387 = vmatpush2.msra.mxu0 0.0
    %388 = vmatprep.subr.mxu0 0.0
    %389 = vmatpush2.msra.mxu0 0.0
    %390 = vmatprep.subr.mxu0 0.0
    %391 = vmatpush2.msra.mxu0 0.0
    %392 = vmatprep.subr.mxu0 0.0
    %393 = vmatpush2.msra.mxu0 0.0
    %394 = vmatprep.subr.mxu0 0.0
    %395 = vmatpush2.msra.mxu0 0.0
    %396 = vmatprep.subr.mxu0 0.0
    %397 = vmatpush2.msra.mxu0 0.0
    %398 = vmatprep.subr.mxu0 0.0
    %399 = vmatpush2.msra.mxu0 0.0
    %400 = vmatprep.subr.mxu0 0.0
    %401 = vmatpush2.msra.mxu0 0.0
    %402 = vmatprep.subr.mxu0 0.0
    %403 = vmatpush2.msra.mxu0 0.0
    %404 = vmatprep.mubr.f32.mxu0 0.0
    %v405 = vand.u32 %v160, 4294901760
    %v406 = vsub.f32 %v160, %v405
    %407 = vmatmul.mubr.f32.gmra.mxu0 %v406
    %v408 = vpop.f32.mrf.mxu0
    %v409 = vadd.f32 %v329, %v408
    %v410 = vpop.f32.mrf.mxu0
    %411 = vdwg.mxu0
    %412 = vmatprep.subr.mxu0 0.0
    %413 = vmatpush1.msra.mxu0 0.0
    %414 = vmatprep.subr.mxu0 0.0
    %415 = vmatpush1.msra.mxu0 0.0
    %416 = vmatprep.subr.mxu0 0.0
    %417 = vmatpush1.msra.mxu0 0.0
    %418 = vmatprep.subr.mxu0 0.0
    %419 = vmatpush1.msra.mxu0 0.0
    %420 = vmatprep.subr.mxu0 0.0
    %421 = vmatpush1.msra.mxu0 0.0
    %422 = vmatprep.subr.mxu0 0.0
    %423 = vmatpush1.msra.mxu0 0.0
    %424 = vmatprep.subr.mxu0 0.0
    %425 = vmatpush1.msra.mxu0 0.0
    %426 = vmatprep.subr.mxu0 0.0
    %427 = vmatpush1.msra.mxu0 0.0
    %428 = vmatprep.subr.mxu0 0.0
    %429 = vmatpush1.msra.mxu0 0.0
    %430 = vmatprep.subr.mxu0 0.0
    %431 = vmatpush1.msra.mxu0 0.0
    %432 = vmatprep.subr.mxu0 0.0
    %433 = vmatpush1.msra.mxu0 0.0
    %434 = vmatprep.subr.mxu0 0.0
    %435 = vmatpush1.msra.mxu0 0.0
    %436 = vmatprep.subr.mxu0 0.0
    %v437 = vand.u32 %v152, 4294901760
    %438 = vmatpush1.msra.mxu0 %v437
    %439 = vmatprep.subr.mxu0 0.0
    %v440 = vand.u32 %v151, 4294901760
    %441 = vmatpush1.msra.mxu0 %v440
    %442 = vmatprep.subr.mxu0 0.0
    %v443 = vand.u32 %v150, 4294901760
    %444 = vmatpush1.msra.mxu0 %v443
    %445 = vmatprep.subr.mxu0 0.0
    %v446 = vand.u32 %v149, 4294901760
    %447 = vmatpush1.msra.mxu0 %v446
    %448 = vmatprep.subr.mxu0 0.0
    %449 = vmatpush2.msra.mxu0 0.0
    %450 = vmatprep.subr.mxu0 0.0
    %451 = vmatpush2.msra.mxu0 0.0
    %452 = vmatprep.subr.mxu0 0.0
    %453 = vmatpush2.msra.mxu0 0.0
    %454 = vmatprep.subr.mxu0 0.0
    %455 = vmatpush2.msra.mxu0 0.0
    %456 = vmatprep.subr.mxu0 0.0
    %457 = vmatpush2.msra.mxu0 0.0
    %458 = vmatprep.subr.mxu0 0.0
    %459 = vmatpush2.msra.mxu0 0.0
    %460 = vmatprep.subr.mxu0 0.0
    %461 = vmatpush2.msra.mxu0 0.0
    %462 = vmatprep.subr.mxu0 0.0
    %463 = vmatpush2.msra.mxu0 0.0
    %464 = vmatprep.subr.mxu0 0.0
    %465 = vmatpush2.msra.mxu0 0.0
    %466 = vmatprep.subr.mxu0 0.0
    %467 = vmatpush2.msra.mxu0 0.0
    %468 = vmatprep.subr.mxu0 0.0
    %469 = vmatpush2.msra.mxu0 0.0
    %470 = vmatprep.subr.mxu0 0.0
    %471 = vmatpush2.msra.mxu0 0.0
    %472 = vmatprep.subr.mxu0 0.0
    %473 = vmatpush2.msra.mxu0 0.0
    %474 = vmatprep.subr.mxu0 0.0
    %475 = vmatpush2.msra.mxu0 0.0
    %476 = vmatprep.subr.mxu0 0.0
    %477 = vmatpush2.msra.mxu0 0.0
    %478 = vmatprep.subr.mxu0 0.0
    %479 = vmatpush2.msra.mxu0 0.0
    %480 = vmatprep.mubr.f32.mxu0 0.0
    %v481 = vand.u32 %v160, 4294901760
    %v482 = vsub.f32 %v160, %v481
    %v483 = vand.u32 %v482, 4294901760
    %484 = vmatmul.mubr.f32.gmra.mxu0 %v483
    %v485 = vpop.f32.mrf.mxu0
    %v486 = vadd.f32 %v409, %v485
    %v487 = vpop.f32.mrf.mxu0
    %488 = vdwg.mxu0
    %489 = vmatprep.subr.mxu0 0.0
    %490 = vmatpush1.msra.mxu0 0.0
    %491 = vmatprep.subr.mxu0 0.0
    %492 = vmatpush1.msra.mxu0 0.0
    %493 = vmatprep.subr.mxu0 0.0
    %494 = vmatpush1.msra.mxu0 0.0
    %495 = vmatprep.subr.mxu0 0.0
    %496 = vmatpush1.msra.mxu0 0.0
    %497 = vmatprep.subr.mxu0 0.0
    %498 = vmatpush1.msra.mxu0 0.0
    %499 = vmatprep.subr.mxu0 0.0
    %500 = vmatpush1.msra.mxu0 0.0
    %501 = vmatprep.subr.mxu0 0.0
    %502 = vmatpush1.msra.mxu0 0.0
    %503 = vmatprep.subr.mxu0 0.0
    %504 = vmatpush1.msra.mxu0 0.0
    %505 = vmatprep.subr.mxu0 0.0
    %506 = vmatpush1.msra.mxu0 0.0
    %507 = vmatprep.subr.mxu0 0.0
    %508 = vmatpush1.msra.mxu0 0.0
    %509 = vmatprep.subr.mxu0 0.0
    %510 = vmatpush1.msra.mxu0 0.0
    %511 = vmatprep.subr.mxu0 0.0
    %512 = vmatpush1.msra.mxu0 0.0
    %513 = vmatprep.subr.mxu0 0.0
    %v514 = vand.u32 %v152, 4294901760
    %v515 = vsub.f32 %v152, %v514
    %v516 = vand.u32 %v515, 4294901760
    %517 = vmatpush1.msra.mxu0 %v516
    %518 = vmatprep.subr.mxu0 0.0
    %v519 = vand.u32 %v151, 4294901760
    %v520 = vsub.f32 %v151, %v519
    %v521 = vand.u32 %v520, 4294901760
    %522 = vmatpush1.msra.mxu0 %v521
    %523 = vmatprep.subr.mxu0 0.0
    %v524 = vand.u32 %v150, 4294901760
    %v525 = vsub.f32 %v150, %v524
    %v526 = vand.u32 %v525, 4294901760
    %527 = vmatpush1.msra.mxu0 %v526
    %528 = vmatprep.subr.mxu0 0.0
    %v529 = vand.u32 %v149, 4294901760
    %v530 = vsub.f32 %v149, %v529
    %v531 = vand.u32 %v530, 4294901760
    %532 = vmatpush1.msra.mxu0 %v531
    %533 = vmatprep.subr.mxu0 0.0
    %534 = vmatpush2.msra.mxu0 0.0
    %535 = vmatprep.subr.mxu0 0.0
    %536 = vmatpush2.msra.mxu0 0.0
    %537 = vmatprep.subr.mxu0 0.0
    %538 = vmatpush2.msra.mxu0 0.0
    %539 = vmatprep.subr.mxu0 0.0
    %540 = vmatpush2.msra.mxu0 0.0
    %541 = vmatprep.subr.mxu0 0.0
    %542 = vmatpush2.msra.mxu0 0.0
    %543 = vmatprep.subr.mxu0 0.0
    %544 = vmatpush2.msra.mxu0 0.0
    %545 = vmatprep.subr.mxu0 0.0
    %546 = vmatpush2.msra.mxu0 0.0
    %547 = vmatprep.subr.mxu0 0.0
    %548 = vmatpush2.msra.mxu0 0.0
    %549 = vmatprep.subr.mxu0 0.0
    %550 = vmatpush2.msra.mxu0 0.0
    %551 = vmatprep.subr.mxu0 0.0
    %552 = vmatpush2.msra.mxu0 0.0
    %553 = vmatprep.subr.mxu0 0.0
    %554 = vmatpush2.msra.mxu0 0.0
    %555 = vmatprep.subr.mxu0 0.0
    %556 = vmatpush2.msra.mxu0 0.0
    %557 = vmatprep.subr.mxu0 0.0
    %558 = vmatpush2.msra.mxu0 0.0
    %559 = vmatprep.subr.mxu0 0.0
    %560 = vmatpush2.msra.mxu0 0.0
    %561 = vmatprep.subr.mxu0 0.0
    %562 = vmatpush2.msra.mxu0 0.0
    %563 = vmatprep.subr.mxu0 0.0
    %564 = vmatpush2.msra.mxu0 0.0
    %565 = vmatprep.mubr.f32.mxu0 0.0
    %v566 = vand.u32 %v160, 4294901760
    %567 = vmatmul.mubr.f32.gmra.mxu0 %v566
    %v568 = vpop.f32.mrf.mxu0
    %v569 = vadd.f32 %v486, %v568
    %v570 = vpop.f32.mrf.mxu0
    %571 = vdwg.mxu0
    %572 = vmatprep.subr.mxu0 0.0
    %573 = vmatpush1.msra.mxu0 0.0
    %574 = vmatprep.subr.mxu0 0.0
    %575 = vmatpush1.msra.mxu0 0.0
    %576 = vmatprep.subr.mxu0 0.0
    %577 = vmatpush1.msra.mxu0 0.0
    %578 = vmatprep.subr.mxu0 0.0
    %579 = vmatpush1.msra.mxu0 0.0
    %580 = vmatprep.subr.mxu0 0.0
    %581 = vmatpush1.msra.mxu0 0.0
    %582 = vmatprep.subr.mxu0 0.0
    %583 = vmatpush1.msra.mxu0 0.0
    %584 = vmatprep.subr.mxu0 0.0
    %585 = vmatpush1.msra.mxu0 0.0
    %586 = vmatprep.subr.mxu0 0.0
    %587 = vmatpush1.msra.mxu0 0.0
    %588 = vmatprep.subr.mxu0 0.0
    %589 = vmatpush1.msra.mxu0 0.0
    %590 = vmatprep.subr.mxu0 0.0
    %591 = vmatpush1.msra.mxu0 0.0
    %592 = vmatprep.subr.mxu0 0.0
    %593 = vmatpush1.msra.mxu0 0.0
    %594 = vmatprep.subr.mxu0 0.0
    %595 = vmatpush1.msra.mxu0 0.0
    %596 = vmatprep.subr.mxu0 0.0
    %v597 = vand.u32 %v152, 4294901760
    %598 = vmatpush1.msra.mxu0 %v597
    %599 = vmatprep.subr.mxu0 0.0
    %v600 = vand.u32 %v151, 4294901760
    %601 = vmatpush1.msra.mxu0 %v600
    %602 = vmatprep.subr.mxu0 0.0
    %v603 = vand.u32 %v150, 4294901760
    %604 = vmatpush1.msra.mxu0 %v603
    %605 = vmatprep.subr.mxu0 0.0
    %v606 = vand.u32 %v149, 4294901760
    %607 = vmatpush1.msra.mxu0 %v606
    %608 = vmatprep.subr.mxu0 0.0
    %609 = vmatpush2.msra.mxu0 0.0
    %610 = vmatprep.subr.mxu0 0.0
    %611 = vmatpush2.msra.mxu0 0.0
    %612 = vmatprep.subr.mxu0 0.0
    %613 = vmatpush2.msra.mxu0 0.0
    %614 = vmatprep.subr.mxu0 0.0
    %615 = vmatpush2.msra.mxu0 0.0
    %616 = vmatprep.subr.mxu0 0.0
    %617 = vmatpush2.msra.mxu0 0.0
    %618 = vmatprep.subr.mxu0 0.0
    %619 = vmatpush2.msra.mxu0 0.0
    %620 = vmatprep.subr.mxu0 0.0
    %621 = vmatpush2.msra.mxu0 0.0
    %622 = vmatprep.subr.mxu0 0.0
    %623 = vmatpush2.msra.mxu0 0.0
    %624 = vmatprep.subr.mxu0 0.0
    %625 = vmatpush2.msra.mxu0 0.0
    %626 = vmatprep.subr.mxu0 0.0
    %627 = vmatpush2.msra.mxu0 0.0
    %628 = vmatprep.subr.mxu0 0.0
    %629 = vmatpush2.msra.mxu0 0.0
    %630 = vmatprep.subr.mxu0 0.0
    %631 = vmatpush2.msra.mxu0 0.0
    %632 = vmatprep.subr.mxu0 0.0
    %633 = vmatpush2.msra.mxu0 0.0
    %634 = vmatprep.subr.mxu0 0.0
    %635 = vmatpush2.msra.mxu0 0.0
    %636 = vmatprep.subr.mxu0 0.0
    %637 = vmatpush2.msra.mxu0 0.0
    %638 = vmatprep.subr.mxu0 0.0
    %639 = vmatpush2.msra.mxu0 0.0
    %640 = vmatprep.mubr.f32.mxu0 0.0
    %v641 = vand.u32 %v160, 4294901760
    %642 = vmatmul.mubr.f32.gmra.mxu0 %v641
    %v643 = vpop.f32.mrf.mxu0
    %v644 = vadd.f32 %v569, %v643
    %v645 = vpop.f32.mrf.mxu0
    %646 = vdwg.mxu0
    %v647 = vmax.f32 %v644, 0.0
    %v648 = vld [vmem:[#allocation9 + $0x20] sm:$0xff]
    %v649 = vld [vmem:[#allocation9 + $0x28] sm:$0xff]
    %v650 = vld [vmem:[#allocation9 + $0x30] sm:$0xff]
    %v651 = vld [vmem:[#allocation9 + $0x38] sm:$0xff]
    %v652 = vld [vmem:[#allocation9 + $0x40] sm:$0xff]
    %v653 = vld [vmem:[#allocation9 + $0x48] sm:$0xff]
    %v654 = vld [vmem:[#allocation9 + $0x50] sm:$0xff]
    %v655 = vld [vmem:[#allocation9 + $0x58] sm:$0xff]
    %v656 = vld [vmem:[#allocation9 + $0x60] sm:$0xff]
    %v657 = vld [vmem:[#allocation9 + $0x68] sm:$0xff]
    %v658 = vld [vmem:[#allocation9 + $0x70] sm:$0xff]
    %v659 = vld [vmem:[#allocation9 + $0x78] sm:$0xff]
    %v660 = vld [vmem:[#allocation9 + $0x80] sm:$0xff]
    %v661 = vld [vmem:[#allocation9 + $0x88] sm:$0xff]
    %v662 = vld [vmem:[#allocation9 + $0x90] sm:$0xff]
    %v663 = vld [vmem:[#allocation9 + $0x98] sm:$0xff]
    %v664 = vld [vmem:[#allocation9 + $0xa0] sm:$0xff]
    %v665 = vld [vmem:[#allocation9 + $0xa8] sm:$0xff]
    %v666 = vld [vmem:[#allocation9 + $0xb0] sm:$0xff]
    %v667 = vld [vmem:[#allocation9 + $0xb8] sm:$0xff]
    %v668 = vld [vmem:[#allocation9 + $0xc0] sm:$0xff]
    %v669 = vld [vmem:[#allocation9 + $0xc8] sm:$0xff]
    %v670 = vld [vmem:[#allocation9 + $0xd0] sm:$0xff]
    %v671 = vld [vmem:[#allocation9 + $0xd8] sm:$0xff]
    %v672 = vld [vmem:[#allocation9 + $0xe0] sm:$0xff]
    %v673 = vld [vmem:[#allocation9 + $0xe8] sm:$0xff]
    %v674 = vld [vmem:[#allocation9 + $0xf0] sm:$0xff]
    %v675 = vld [vmem:[#allocation9 + $0xf8] sm:$0xff]
    %v676 = vld [vmem:[#allocation9 + $0x100] sm:$0xff]
    %v677 = vld [vmem:[#allocation9 + $0x108] sm:$0xff]
    %v678 = vld [vmem:[#allocation9 + $0x110] sm:$0xff]
    %v679 = vld [vmem:[#allocation9 + $0x118] sm:$0xff]
    %v680 = vld [vmem:[%s4 + $0x1] sm:$0x1]
    %v681 = vld [vmem:[%s4 + $0x2] sm:$0x1]
    %v682 = vlaneseq
    %v683 = vshrl.u32 %v682, 7
    %v684 = vsub.s32 0, %v683
    %v685 = vrot.slane %v680, %v684
    %686 = vmatprep.subr.mxu0 0.0
    %v687 = vand.u32 %v663, 4294901760
    %688 = vmatpush1.msra.mxu0 %v687
    %689 = vmatprep.subr.mxu0 0.0
    %v690 = vand.u32 %v662, 4294901760
    %691 = vmatpush1.msra.mxu0 %v690
    %692 = vmatprep.subr.mxu0 0.0
    %v693 = vand.u32 %v661, 4294901760
    %694 = vmatpush1.msra.mxu0 %v693
    %695 = vmatprep.subr.mxu0 0.0
    %v696 = vand.u32 %v660, 4294901760
    %697 = vmatpush1.msra.mxu0 %v696
    %698 = vmatprep.subr.mxu0 0.0
    %v699 = vand.u32 %v659, 4294901760
    %700 = vmatpush1.msra.mxu0 %v699
    %701 = vmatprep.subr.mxu0 0.0
    %v702 = vand.u32 %v658, 4294901760
    %703 = vmatpush1.msra.mxu0 %v702
    %704 = vmatprep.subr.mxu0 0.0
    %v705 = vand.u32 %v657, 4294901760
    %706 = vmatpush1.msra.mxu0 %v705
    %707 = vmatprep.subr.mxu0 0.0
    %v708 = vand.u32 %v656, 4294901760
    %709 = vmatpush1.msra.mxu0 %v708
    %710 = vmatprep.subr.mxu0 0.0
    %v711 = vand.u32 %v655, 4294901760
    %712 = vmatpush1.msra.mxu0 %v711
    %713 = vmatprep.subr.mxu0 0.0
    %v714 = vand.u32 %v654, 4294901760
    %715 = vmatpush1.msra.mxu0 %v714
    %716 = vmatprep.subr.mxu0 0.0
    %v717 = vand.u32 %v653, 4294901760
    %718 = vmatpush1.msra.mxu0 %v717
    %719 = vmatprep.subr.mxu0 0.0
    %v720 = vand.u32 %v652, 4294901760
    %721 = vmatpush1.msra.mxu0 %v720
    %722 = vmatprep.subr.mxu0 0.0
    %v723 = vand.u32 %v651, 4294901760
    %724 = vmatpush1.msra.mxu0 %v723
    %725 = vmatprep.subr.mxu0 0.0
    %v726 = vand.u32 %v650, 4294901760
    %727 = vmatpush1.msra.mxu0 %v726
    %728 = vmatprep.subr.mxu0 0.0
    %v729 = vand.u32 %v649, 4294901760
    %730 = vmatpush1.msra.mxu0 %v729
    %731 = vmatprep.subr.mxu0 0.0
    %v732 = vand.u32 %v648, 4294901760
    %733 = vmatpush1.msra.mxu0 %v732
    %734 = vmatprep.subr.mxu0 0.0
    %735 = vmatpush2.msra.mxu0 0.0
    %736 = vmatprep.subr.mxu0 0.0
    %737 = vmatpush2.msra.mxu0 0.0
    %738 = vmatprep.subr.mxu0 0.0
    %739 = vmatpush2.msra.mxu0 0.0
    %740 = vmatprep.subr.mxu0 0.0
    %741 = vmatpush2.msra.mxu0 0.0
    %742 = vmatprep.subr.mxu0 0.0
    %743 = vmatpush2.msra.mxu0 0.0
    %744 = vmatprep.subr.mxu0 0.0
    %745 = vmatpush2.msra.mxu0 0.0
    %746 = vmatprep.subr.mxu0 0.0
    %747 = vmatpush2.msra.mxu0 0.0
    %748 = vmatprep.subr.mxu0 0.0
    %749 = vmatpush2.msra.mxu0 0.0
    %750 = vmatprep.subr.mxu0 0.0
    %751 = vmatpush2.msra.mxu0 0.0
    %752 = vmatprep.subr.mxu0 0.0
    %753 = vmatpush2.msra.mxu0 0.0
    %754 = vmatprep.subr.mxu0 0.0
    %755 = vmatpush2.msra.mxu0 0.0
    %756 = vmatprep.subr.mxu0 0.0
    %757 = vmatpush2.msra.mxu0 0.0
    %758 = vmatprep.subr.mxu0 0.0
    %759 = vmatpush2.msra.mxu0 0.0
    %760 = vmatprep.subr.mxu0 0.0
    %761 = vmatpush2.msra.mxu0 0.0
    %762 = vmatprep.subr.mxu0 0.0
    %763 = vmatpush2.msra.mxu0 0.0
    %764 = vmatprep.subr.mxu0 0.0
    %765 = vmatpush2.msra.mxu0 0.0
    %766 = vmatprep.mubr.f32.mxu0 0.0
    %v767 = vand.u32 %v647, 4294901760
    %v768 = vsub.f32 %v647, %v767
    %v769 = vand.u32 %v768, 4294901760
    %v770 = vsub.f32 %v768, %v769
    %v771 = vand.u32 %v770, 4294901760
    %772 = vmatmul.mubr.f32.gmra.mxu0 %v771
    %v773 = vpop.f32.mrf.mxu0
    %v774 = vadd.f32 %v685, %v773
    %v775 = vpop.f32.mrf.mxu0
    %776 = vdwg.mxu0
    %777 = vmatprep.subr.mxu0 0.0
    %v778 = vand.u32 %v663, 4294901760
    %v779 = vsub.f32 %v663, %v778
    %v780 = vand.u32 %v779, 4294901760
    %v781 = vsub.f32 %v779, %v780
    %v782 = vand.u32 %v781, 4294901760
    %783 = vmatpush1.msra.mxu0 %v782
    %784 = vmatprep.subr.mxu0 0.0
    %v785 = vand.u32 %v662, 4294901760
    %v786 = vsub.f32 %v662, %v785
    %v787 = vand.u32 %v786, 4294901760
    %v788 = vsub.f32 %v786, %v787
    %v789 = vand.u32 %v788, 4294901760
    %790 = vmatpush1.msra.mxu0 %v789
    %791 = vmatprep.subr.mxu0 0.0
    %v792 = vand.u32 %v661, 4294901760
    %v793 = vsub.f32 %v661, %v792
    %v794 = vand.u32 %v793, 4294901760
    %v795 = vsub.f32 %v793, %v794
    %v796 = vand.u32 %v795, 4294901760
    %797 = vmatpush1.msra.mxu0 %v796
    %798 = vmatprep.subr.mxu0 0.0
    %v799 = vand.u32 %v660, 4294901760
    %v800 = vsub.f32 %v660, %v799
    %v801 = vand.u32 %v800, 4294901760
    %v802 = vsub.f32 %v800, %v801
    %v803 = vand.u32 %v802, 4294901760
    %804 = vmatpush1.msra.mxu0 %v803
    %805 = vmatprep.subr.mxu0 0.0
    %v806 = vand.u32 %v659, 4294901760
    %v807 = vsub.f32 %v659, %v806
    %v808 = vand.u32 %v807, 4294901760
    %v809 = vsub.f32 %v807, %v808
    %v810 = vand.u32 %v809, 4294901760
    %811 = vmatpush1.msra.mxu0 %v810
    %812 = vmatprep.subr.mxu0 0.0
    %v813 = vand.u32 %v658, 4294901760
    %v814 = vsub.f32 %v658, %v813
    %v815 = vand.u32 %v814, 4294901760
    %v816 = vsub.f32 %v814, %v815
    %v817 = vand.u32 %v816, 4294901760
    %818 = vmatpush1.msra.mxu0 %v817
    %819 = vmatprep.subr.mxu0 0.0
    %v820 = vand.u32 %v657, 4294901760
    %v821 = vsub.f32 %v657, %v820
    %v822 = vand.u32 %v821, 4294901760
    %v823 = vsub.f32 %v821, %v822
    %v824 = vand.u32 %v823, 4294901760
    %825 = vmatpush1.msra.mxu0 %v824
    %826 = vmatprep.subr.mxu0 0.0
    %v827 = vand.u32 %v656, 4294901760
    %v828 = vsub.f32 %v656, %v827
    %v829 = vand.u32 %v828, 4294901760
    %v830 = vsub.f32 %v828, %v829
    %v831 = vand.u32 %v830, 4294901760
    %832 = vmatpush1.msra.mxu0 %v831
    %833 = vmatprep.subr.mxu0 0.0
    %v834 = vand.u32 %v655, 4294901760
    %v835 = vsub.f32 %v655, %v834
    %v836 = vand.u32 %v835, 4294901760
    %v837 = vsub.f32 %v835, %v836
    %v838 = vand.u32 %v837, 4294901760
    %839 = vmatpush1.msra.mxu0 %v838
    %840 = vmatprep.subr.mxu0 0.0
    %v841 = vand.u32 %v654, 4294901760
    %v842 = vsub.f32 %v654, %v841
    %v843 = vand.u32 %v842, 4294901760
    %v844 = vsub.f32 %v842, %v843
    %v845 = vand.u32 %v844, 4294901760
    %846 = vmatpush1.msra.mxu0 %v845
    %847 = vmatprep.subr.mxu0 0.0
    %v848 = vand.u32 %v653, 4294901760
    %v849 = vsub.f32 %v653, %v848
    %v850 = vand.u32 %v849, 4294901760
    %v851 = vsub.f32 %v849, %v850
    %v852 = vand.u32 %v851, 4294901760
    %853 = vmatpush1.msra.mxu0 %v852
    %854 = vmatprep.subr.mxu0 0.0
    %v855 = vand.u32 %v652, 4294901760
    %v856 = vsub.f32 %v652, %v855
    %v857 = vand.u32 %v856, 4294901760
    %v858 = vsub.f32 %v856, %v857
    %v859 = vand.u32 %v858, 4294901760
    %860 = vmatpush1.msra.mxu0 %v859
    %861 = vmatprep.subr.mxu0 0.0
    %v862 = vand.u32 %v651, 4294901760
    %v863 = vsub.f32 %v651, %v862
    %v864 = vand.u32 %v863, 4294901760
    %v865 = vsub.f32 %v863, %v864
    %v866 = vand.u32 %v865, 4294901760
    %867 = vmatpush1.msra.mxu0 %v866
    %868 = vmatprep.subr.mxu0 0.0
    %v869 = vand.u32 %v650, 4294901760
    %v870 = vsub.f32 %v650, %v869
    %v871 = vand.u32 %v870, 4294901760
    %v872 = vsub.f32 %v870, %v871
    %v873 = vand.u32 %v872, 4294901760
    %874 = vmatpush1.msra.mxu0 %v873
    %875 = vmatprep.subr.mxu0 0.0
    %v876 = vand.u32 %v649, 4294901760
    %v877 = vsub.f32 %v649, %v876
    %v878 = vand.u32 %v877, 4294901760
    %v879 = vsub.f32 %v877, %v878
    %v880 = vand.u32 %v879, 4294901760
    %881 = vmatpush1.msra.mxu0 %v880
    %882 = vmatprep.subr.mxu0 0.0
    %v883 = vand.u32 %v648, 4294901760
    %v884 = vsub.f32 %v648, %v883
    %v885 = vand.u32 %v884, 4294901760
    %v886 = vsub.f32 %v884, %v885
    %v887 = vand.u32 %v886, 4294901760
    %888 = vmatpush1.msra.mxu0 %v887
    %889 = vmatprep.subr.mxu0 0.0
    %890 = vmatpush2.msra.mxu0 0.0
    %891 = vmatprep.subr.mxu0 0.0
    %892 = vmatpush2.msra.mxu0 0.0
    %893 = vmatprep.subr.mxu0 0.0
    %894 = vmatpush2.msra.mxu0 0.0
    %895 = vmatprep.subr.mxu0 0.0
    %896 = vmatpush2.msra.mxu0 0.0
    %897 = vmatprep.subr.mxu0 0.0
    %898 = vmatpush2.msra.mxu0 0.0
    %899 = vmatprep.subr.mxu0 0.0
    %900 = vmatpush2.msra.mxu0 0.0
    %901 = vmatprep.subr.mxu0 0.0
    %902 = vmatpush2.msra.mxu0 0.0
    %903 = vmatprep.subr.mxu0 0.0
    %904 = vmatpush2.msra.mxu0 0.0
    %905 = vmatprep.subr.mxu0 0.0
    %906 = vmatpush2.msra.mxu0 0.0
    %907 = vmatprep.subr.mxu0 0.0
    %908 = vmatpush2.msra.mxu0 0.0
    %909 = vmatprep.subr.mxu0 0.0
    %910 = vmatpush2.msra.mxu0 0.0
    %911 = vmatprep.subr.mxu0 0.0
    %912 = vmatpush2.msra.mxu0 0.0
    %913 = vmatprep.subr.mxu0 0.0
    %914 = vmatpush2.msra.mxu0 0.0
    %915 = vmatprep.subr.mxu0 0.0
    %916 = vmatpush2.msra.mxu0 0.0
    %917 = vmatprep.subr.mxu0 0.0
    %918 = vmatpush2.msra.mxu0 0.0
    %919 = vmatprep.subr.mxu0 0.0
    %920 = vmatpush2.msra.mxu0 0.0
    %921 = vmatprep.mubr.f32.mxu0 0.0
    %v922 = vand.u32 %v647, 4294901760
    %923 = vmatmul.mubr.f32.gmra.mxu0 %v922
    %v924 = vpop.f32.mrf.mxu0
    %v925 = vadd.f32 %v774, %v924
    %v926 = vpop.f32.mrf.mxu0
    %927 = vdwg.mxu0
    %928 = vmatprep.subr.mxu0 0.0
    %v929 = vand.u32 %v663, 4294901760
    %v930 = vsub.f32 %v663, %v929
    %931 = vmatpush1.msra.mxu0 %v930
    %932 = vmatprep.subr.mxu0 0.0
    %v933 = vand.u32 %v662, 4294901760
    %v934 = vsub.f32 %v662, %v933
    %935 = vmatpush1.msra.mxu0 %v934
    %936 = vmatprep.subr.mxu0 0.0
    %v937 = vand.u32 %v661, 4294901760
    %v938 = vsub.f32 %v661, %v937
    %939 = vmatpush1.msra.mxu0 %v938
    %940 = vmatprep.subr.mxu0 0.0
    %v941 = vand.u32 %v660, 4294901760
    %v942 = vsub.f32 %v660, %v941
    %943 = vmatpush1.msra.mxu0 %v942
    %944 = vmatprep.subr.mxu0 0.0
    %v945 = vand.u32 %v659, 4294901760
    %v946 = vsub.f32 %v659, %v945
    %947 = vmatpush1.msra.mxu0 %v946
    %948 = vmatprep.subr.mxu0 0.0
    %v949 = vand.u32 %v658, 4294901760
    %v950 = vsub.f32 %v658, %v949
    %951 = vmatpush1.msra.mxu0 %v950
    %952 = vmatprep.subr.mxu0 0.0
    %v953 = vand.u32 %v657, 4294901760
    %v954 = vsub.f32 %v657, %v953
    %955 = vmatpush1.msra.mxu0 %v954
    %956 = vmatprep.subr.mxu0 0.0
    %v957 = vand.u32 %v656, 4294901760
    %v958 = vsub.f32 %v656, %v957
    %959 = vmatpush1.msra.mxu0 %v958
    %960 = vmatprep.subr.mxu0 0.0
    %v961 = vand.u32 %v655, 4294901760
    %v962 = vsub.f32 %v655, %v961
    %963 = vmatpush1.msra.mxu0 %v962
    %964 = vmatprep.subr.mxu0 0.0
    %v965 = vand.u32 %v654, 4294901760
    %v966 = vsub.f32 %v654, %v965
    %967 = vmatpush1.msra.mxu0 %v966
    %968 = vmatprep.subr.mxu0 0.0
    %v969 = vand.u32 %v653, 4294901760
    %v970 = vsub.f32 %v653, %v969
    %971 = vmatpush1.msra.mxu0 %v970
    %972 = vmatprep.subr.mxu0 0.0
    %v973 = vand.u32 %v652, 4294901760
    %v974 = vsub.f32 %v652, %v973
    %975 = vmatpush1.msra.mxu0 %v974
    %976 = vmatprep.subr.mxu0 0.0
    %v977 = vand.u32 %v651, 4294901760
    %v978 = vsub.f32 %v651, %v977
    %979 = vmatpush1.msra.mxu0 %v978
    %980 = vmatprep.subr.mxu0 0.0
    %v981 = vand.u32 %v650, 4294901760
    %v982 = vsub.f32 %v650, %v981
    %983 = vmatpush1.msra.mxu0 %v982
    %984 = vmatprep.subr.mxu0 0.0
    %v985 = vand.u32 %v649, 4294901760
    %v986 = vsub.f32 %v649, %v985
    %987 = vmatpush1.msra.mxu0 %v986
    %988 = vmatprep.subr.mxu0 0.0
    %v989 = vand.u32 %v648, 4294901760
    %v990 = vsub.f32 %v648, %v989
    %991 = vmatpush1.msra.mxu0 %v990
    %992 = vmatprep.subr.mxu0 0.0
    %993 = vmatpush2.msra.mxu0 0.0
    %994 = vmatprep.subr.mxu0 0.0
    %995 = vmatpush2.msra.mxu0 0.0
    %996 = vmatprep.subr.mxu0 0.0
    %997 = vmatpush2.msra.mxu0 0.0
    %998 = vmatprep.subr.mxu0 0.0
    %999 = vmatpush2.msra.mxu0 0.0
    %1000 = vmatprep.subr.mxu0 0.0
    %1001 = vmatpush2.msra.mxu0 0.0
    %1002 = vmatprep.subr.mxu0 0.0
    %1003 = vmatpush2.msra.mxu0 0.0
    %1004 = vmatprep.subr.mxu0 0.0
    %1005 = vmatpush2.msra.mxu0 0.0
    %1006 = vmatprep.subr.mxu0 0.0
    %1007 = vmatpush2.msra.mxu0 0.0
    %1008 = vmatprep.subr.mxu0 0.0
    %1009 = vmatpush2.msra.mxu0 0.0
    %1010 = vmatprep.subr.mxu0 0.0
    %1011 = vmatpush2.msra.mxu0 0.0
    %1012 = vmatprep.subr.mxu0 0.0
    %1013 = vmatpush2.msra.mxu0 0.0
    %1014 = vmatprep.subr.mxu0 0.0
    %1015 = vmatpush2.msra.mxu0 0.0
    %1016 = vmatprep.subr.mxu0 0.0
    %1017 = vmatpush2.msra.mxu0 0.0
    %1018 = vmatprep.subr.mxu0 0.0
    %1019 = vmatpush2.msra.mxu0 0.0
    %1020 = vmatprep.subr.mxu0 0.0
    %1021 = vmatpush2.msra.mxu0 0.0
    %1022 = vmatprep.subr.mxu0 0.0
    %1023 = vmatpush2.msra.mxu0 0.0
    %1024 = vmatprep.mubr.f32.mxu0 0.0
    %v1025 = vand.u32 %v647, 4294901760
    %v1026 = vsub.f32 %v647, %v1025
    %1027 = vmatmul.mubr.f32.gmra.mxu0 %v1026
    %v1028 = vpop.f32.mrf.mxu0
    %v1029 = vadd.f32 %v925, %v1028
    %v1030 = vpop.f32.mrf.mxu0
    %1031 = vdwg.mxu0
    %1032 = vmatprep.subr.mxu0 0.0
    %v1033 = vand.u32 %v663, 4294901760
    %1034 = vmatpush1.msra.mxu0 %v1033
    %1035 = vmatprep.subr.mxu0 0.0
    %v1036 = vand.u32 %v662, 4294901760
    %1037 = vmatpush1.msra.mxu0 %v1036
    %1038 = vmatprep.subr.mxu0 0.0
    %v1039 = vand.u32 %v661, 4294901760
    %1040 = vmatpush1.msra.mxu0 %v1039
    %1041 = vmatprep.subr.mxu0 0.0
    %v1042 = vand.u32 %v660, 4294901760
    %1043 = vmatpush1.msra.mxu0 %v1042
    %1044 = vmatprep.subr.mxu0 0.0
    %v1045 = vand.u32 %v659, 4294901760
    %1046 = vmatpush1.msra.mxu0 %v1045
    %1047 = vmatprep.subr.mxu0 0.0
    %v1048 = vand.u32 %v658, 4294901760
    %1049 = vmatpush1.msra.mxu0 %v1048
    %1050 = vmatprep.subr.mxu0 0.0
    %v1051 = vand.u32 %v657, 4294901760
    %1052 = vmatpush1.msra.mxu0 %v1051
    %1053 = vmatprep.subr.mxu0 0.0
    %v1054 = vand.u32 %v656, 4294901760
    %1055 = vmatpush1.msra.mxu0 %v1054
    %1056 = vmatprep.subr.mxu0 0.0
    %v1057 = vand.u32 %v655, 4294901760
    %1058 = vmatpush1.msra.mxu0 %v1057
    %1059 = vmatprep.subr.mxu0 0.0
    %v1060 = vand.u32 %v654, 4294901760
    %1061 = vmatpush1.msra.mxu0 %v1060
    %1062 = vmatprep.subr.mxu0 0.0
    %v1063 = vand.u32 %v653, 4294901760
    %1064 = vmatpush1.msra.mxu0 %v1063
    %1065 = vmatprep.subr.mxu0 0.0
    %v1066 = vand.u32 %v652, 4294901760
    %1067 = vmatpush1.msra.mxu0 %v1066
    %1068 = vmatprep.subr.mxu0 0.0
    %v1069 = vand.u32 %v651, 4294901760
    %1070 = vmatpush1.msra.mxu0 %v1069
    %1071 = vmatprep.subr.mxu0 0.0
    %v1072 = vand.u32 %v650, 4294901760
    %1073 = vmatpush1.msra.mxu0 %v1072
    %1074 = vmatprep.subr.mxu0 0.0
    %v1075 = vand.u32 %v649, 4294901760
    %1076 = vmatpush1.msra.mxu0 %v1075
    %1077 = vmatprep.subr.mxu0 0.0
    %v1078 = vand.u32 %v648, 4294901760
    %1079 = vmatpush1.msra.mxu0 %v1078
    %1080 = vmatprep.subr.mxu0 0.0
    %1081 = vmatpush2.msra.mxu0 0.0
    %1082 = vmatprep.subr.mxu0 0.0
    %1083 = vmatpush2.msra.mxu0 0.0
    %1084 = vmatprep.subr.mxu0 0.0
    %1085 = vmatpush2.msra.mxu0 0.0
    %1086 = vmatprep.subr.mxu0 0.0
    %1087 = vmatpush2.msra.mxu0 0.0
    %1088 = vmatprep.subr.mxu0 0.0
    %1089 = vmatpush2.msra.mxu0 0.0
    %1090 = vmatprep.subr.mxu0 0.0
    %1091 = vmatpush2.msra.mxu0 0.0
    %1092 = vmatprep.subr.mxu0 0.0
    %1093 = vmatpush2.msra.mxu0 0.0
    %1094 = vmatprep.subr.mxu0 0.0
    %1095 = vmatpush2.msra.mxu0 0.0
    %1096 = vmatprep.subr.mxu0 0.0
    %1097 = vmatpush2.msra.mxu0 0.0
    %1098 = vmatprep.subr.mxu0 0.0
    %1099 = vmatpush2.msra.mxu0 0.0
    %1100 = vmatprep.subr.mxu0 0.0
    %1101 = vmatpush2.msra.mxu0 0.0
    %1102 = vmatprep.subr.mxu0 0.0
    %1103 = vmatpush2.msra.mxu0 0.0
    %1104 = vmatprep.subr.mxu0 0.0
    %1105 = vmatpush2.msra.mxu0 0.0
    %1106 = vmatprep.subr.mxu0 0.0
    %1107 = vmatpush2.msra.mxu0 0.0
    %1108 = vmatprep.subr.mxu0 0.0
    %1109 = vmatpush2.msra.mxu0 0.0
    %1110 = vmatprep.subr.mxu0 0.0
    %1111 = vmatpush2.msra.mxu0 0.0
    %1112 = vmatprep.mubr.f32.mxu0 0.0
    %v1113 = vand.u32 %v647, 4294901760
    %v1114 = vsub.f32 %v647, %v1113
    %v1115 = vand.u32 %v1114, 4294901760
    %1116 = vmatmul.mubr.f32.gmra.mxu0 %v1115
    %v1117 = vpop.f32.mrf.mxu0
    %v1118 = vadd.f32 %v1029, %v1117
    %v1119 = vpop.f32.mrf.mxu0
    %1120 = vdwg.mxu0
    %1121 = vmatprep.subr.mxu0 0.0
    %v1122 = vand.u32 %v663, 4294901760
    %v1123 = vsub.f32 %v663, %v1122
    %v1124 = vand.u32 %v1123, 4294901760
    %1125 = vmatpush1.msra.mxu0 %v1124
    %1126 = vmatprep.subr.mxu0 0.0
    %v1127 = vand.u32 %v662, 4294901760
    %v1128 = vsub.f32 %v662, %v1127
    %v1129 = vand.u32 %v1128, 4294901760
    %1130 = vmatpush1.msra.mxu0 %v1129
    %1131 = vmatprep.subr.mxu0 0.0
    %v1132 = vand.u32 %v661, 4294901760
    %v1133 = vsub.f32 %v661, %v1132
    %v1134 = vand.u32 %v1133, 4294901760
    %1135 = vmatpush1.msra.mxu0 %v1134
    %1136 = vmatprep.subr.mxu0 0.0
    %v1137 = vand.u32 %v660, 4294901760
    %v1138 = vsub.f32 %v660, %v1137
    %v1139 = vand.u32 %v1138, 4294901760
    %1140 = vmatpush1.msra.mxu0 %v1139
    %1141 = vmatprep.subr.mxu0 0.0
    %v1142 = vand.u32 %v659, 4294901760
    %v1143 = vsub.f32 %v659, %v1142
    %v1144 = vand.u32 %v1143, 4294901760
    %1145 = vmatpush1.msra.mxu0 %v1144
    %1146 = vmatprep.subr.mxu0 0.0
    %v1147 = vand.u32 %v658, 4294901760
    %v1148 = vsub.f32 %v658, %v1147
    %v1149 = vand.u32 %v1148, 4294901760
    %1150 = vmatpush1.msra.mxu0 %v1149
    %1151 = vmatprep.subr.mxu0 0.0
    %v1152 = vand.u32 %v657, 4294901760
    %v1153 = vsub.f32 %v657, %v1152
    %v1154 = vand.u32 %v1153, 4294901760
    %1155 = vmatpush1.msra.mxu0 %v1154
    %1156 = vmatprep.subr.mxu0 0.0
    %v1157 = vand.u32 %v656, 4294901760
    %v1158 = vsub.f32 %v656, %v1157
    %v1159 = vand.u32 %v1158, 4294901760
    %1160 = vmatpush1.msra.mxu0 %v1159
    %1161 = vmatprep.subr.mxu0 0.0
    %v1162 = vand.u32 %v655, 4294901760
    %v1163 = vsub.f32 %v655, %v1162
    %v1164 = vand.u32 %v1163, 4294901760
    %1165 = vmatpush1.msra.mxu0 %v1164
    %1166 = vmatprep.subr.mxu0 0.0
    %v1167 = vand.u32 %v654, 4294901760
    %v1168 = vsub.f32 %v654, %v1167
    %v1169 = vand.u32 %v1168, 4294901760
    %1170 = vmatpush1.msra.mxu0 %v1169
    %1171 = vmatprep.subr.mxu0 0.0
    %v1172 = vand.u32 %v653, 4294901760
    %v1173 = vsub.f32 %v653, %v1172
    %v1174 = vand.u32 %v1173, 4294901760
    %1175 = vmatpush1.msra.mxu0 %v1174
    %1176 = vmatprep.subr.mxu0 0.0
    %v1177 = vand.u32 %v652, 4294901760
    %v1178 = vsub.f32 %v652, %v1177
    %v1179 = vand.u32 %v1178, 4294901760
    %1180 = vmatpush1.msra.mxu0 %v1179
    %1181 = vmatprep.subr.mxu0 0.0
    %v1182 = vand.u32 %v651, 4294901760
    %v1183 = vsub.f32 %v651, %v1182
    %v1184 = vand.u32 %v1183, 4294901760
    %1185 = vmatpush1.msra.mxu0 %v1184
    %1186 = vmatprep.subr.mxu0 0.0
    %v1187 = vand.u32 %v650, 4294901760
    %v1188 = vsub.f32 %v650, %v1187
    %v1189 = vand.u32 %v1188, 4294901760
    %1190 = vmatpush1.msra.mxu0 %v1189
    %1191 = vmatprep.subr.mxu0 0.0
    %v1192 = vand.u32 %v649, 4294901760
    %v1193 = vsub.f32 %v649, %v1192
    %v1194 = vand.u32 %v1193, 4294901760
    %1195 = vmatpush1.msra.mxu0 %v1194
    %1196 = vmatprep.subr.mxu0 0.0
    %v1197 = vand.u32 %v648, 4294901760
    %v1198 = vsub.f32 %v648, %v1197
    %v1199 = vand.u32 %v1198, 4294901760
    %1200 = vmatpush1.msra.mxu0 %v1199
    %1201 = vmatprep.subr.mxu0 0.0
    %1202 = vmatpush2.msra.mxu0 0.0
    %1203 = vmatprep.subr.mxu0 0.0
    %1204 = vmatpush2.msra.mxu0 0.0
    %1205 = vmatprep.subr.mxu0 0.0
    %1206 = vmatpush2.msra.mxu0 0.0
    %1207 = vmatprep.subr.mxu0 0.0
    %1208 = vmatpush2.msra.mxu0 0.0
    %1209 = vmatprep.subr.mxu0 0.0
    %1210 = vmatpush2.msra.mxu0 0.0
    %1211 = vmatprep.subr.mxu0 0.0
    %1212 = vmatpush2.msra.mxu0 0.0
    %1213 = vmatprep.subr.mxu0 0.0
    %1214 = vmatpush2.msra.mxu0 0.0
    %1215 = vmatprep.subr.mxu0 0.0
    %1216 = vmatpush2.msra.mxu0 0.0
    %1217 = vmatprep.subr.mxu0 0.0
    %1218 = vmatpush2.msra.mxu0 0.0
    %1219 = vmatprep.subr.mxu0 0.0
    %1220 = vmatpush2.msra.mxu0 0.0
    %1221 = vmatprep.subr.mxu0 0.0
    %1222 = vmatpush2.msra.mxu0 0.0
    %1223 = vmatprep.subr.mxu0 0.0
    %1224 = vmatpush2.msra.mxu0 0.0
    %1225 = vmatprep.subr.mxu0 0.0
    %1226 = vmatpush2.msra.mxu0 0.0
    %1227 = vmatprep.subr.mxu0 0.0
    %1228 = vmatpush2.msra.mxu0 0.0
    %1229 = vmatprep.subr.mxu0 0.0
    %1230 = vmatpush2.msra.mxu0 0.0
    %1231 = vmatprep.subr.mxu0 0.0
    %1232 = vmatpush2.msra.mxu0 0.0
    %1233 = vmatprep.mubr.f32.mxu0 0.0
    %v1234 = vand.u32 %v647, 4294901760
    %1235 = vmatmul.mubr.f32.gmra.mxu0 %v1234
    %v1236 = vpop.f32.mrf.mxu0
    %v1237 = vadd.f32 %v1118, %v1236
    %v1238 = vpop.f32.mrf.mxu0
    %1239 = vdwg.mxu0
    %1240 = vmatprep.subr.mxu0 0.0
    %v1241 = vand.u32 %v663, 4294901760
    %1242 = vmatpush1.msra.mxu0 %v1241
    %1243 = vmatprep.subr.mxu0 0.0
    %v1244 = vand.u32 %v662, 4294901760
    %1245 = vmatpush1.msra.mxu0 %v1244
    %1246 = vmatprep.subr.mxu0 0.0
    %v1247 = vand.u32 %v661, 4294901760
    %1248 = vmatpush1.msra.mxu0 %v1247
    %1249 = vmatprep.subr.mxu0 0.0
    %v1250 = vand.u32 %v660, 4294901760
    %1251 = vmatpush1.msra.mxu0 %v1250
    %1252 = vmatprep.subr.mxu0 0.0
    %v1253 = vand.u32 %v659, 4294901760
    %1254 = vmatpush1.msra.mxu0 %v1253
    %1255 = vmatprep.subr.mxu0 0.0
    %v1256 = vand.u32 %v658, 4294901760
    %1257 = vmatpush1.msra.mxu0 %v1256
    %1258 = vmatprep.subr.mxu0 0.0
    %v1259 = vand.u32 %v657, 4294901760
    %1260 = vmatpush1.msra.mxu0 %v1259
    %1261 = vmatprep.subr.mxu0 0.0
    %v1262 = vand.u32 %v656, 4294901760
    %1263 = vmatpush1.msra.mxu0 %v1262
    %1264 = vmatprep.subr.mxu0 0.0
    %v1265 = vand.u32 %v655, 4294901760
    %1266 = vmatpush1.msra.mxu0 %v1265
    %1267 = vmatprep.subr.mxu0 0.0
    %v1268 = vand.u32 %v654, 4294901760
    %1269 = vmatpush1.msra.mxu0 %v1268
    %1270 = vmatprep.subr.mxu0 0.0
    %v1271 = vand.u32 %v653, 4294901760
    %1272 = vmatpush1.msra.mxu0 %v1271
    %1273 = vmatprep.subr.mxu0 0.0
    %v1274 = vand.u32 %v652, 4294901760
    %1275 = vmatpush1.msra.mxu0 %v1274
    %1276 = vmatprep.subr.mxu0 0.0
    %v1277 = vand.u32 %v651, 4294901760
    %1278 = vmatpush1.msra.mxu0 %v1277
    %1279 = vmatprep.subr.mxu0 0.0
    %v1280 = vand.u32 %v650, 4294901760
    %1281 = vmatpush1.msra.mxu0 %v1280
    %1282 = vmatprep.subr.mxu0 0.0
    %v1283 = vand.u32 %v649, 4294901760
    %1284 = vmatpush1.msra.mxu0 %v1283
    %1285 = vmatprep.subr.mxu0 0.0
    %v1286 = vand.u32 %v648, 4294901760
    %1287 = vmatpush1.msra.mxu0 %v1286
    %1288 = vmatprep.subr.mxu0 0.0
    %1289 = vmatpush2.msra.mxu0 0.0
    %1290 = vmatprep.subr.mxu0 0.0
    %1291 = vmatpush2.msra.mxu0 0.0
    %1292 = vmatprep.subr.mxu0 0.0
    %1293 = vmatpush2.msra.mxu0 0.0
    %1294 = vmatprep.subr.mxu0 0.0
    %1295 = vmatpush2.msra.mxu0 0.0
    %1296 = vmatprep.subr.mxu0 0.0
    %1297 = vmatpush2.msra.mxu0 0.0
    %1298 = vmatprep.subr.mxu0 0.0
    %1299 = vmatpush2.msra.mxu0 0.0
    %1300 = vmatprep.subr.mxu0 0.0
    %1301 = vmatpush2.msra.mxu0 0.0
    %1302 = vmatprep.subr.mxu0 0.0
    %1303 = vmatpush2.msra.mxu0 0.0
    %1304 = vmatprep.subr.mxu0 0.0
    %1305 = vmatpush2.msra.mxu0 0.0
    %1306 = vmatprep.subr.mxu0 0.0
    %1307 = vmatpush2.msra.mxu0 0.0
    %1308 = vmatprep.subr.mxu0 0.0
    %1309 = vmatpush2.msra.mxu0 0.0
    %1310 = vmatprep.subr.mxu0 0.0
    %1311 = vmatpush2.msra.mxu0 0.0
    %1312 = vmatprep.subr.mxu0 0.0
    %1313 = vmatpush2.msra.mxu0 0.0
    %1314 = vmatprep.subr.mxu0 0.0
    %1315 = vmatpush2.msra.mxu0 0.0
    %1316 = vmatprep.subr.mxu0 0.0
    %1317 = vmatpush2.msra.mxu0 0.0
    %1318 = vmatprep.subr.mxu0 0.0
    %1319 = vmatpush2.msra.mxu0 0.0
    %1320 = vmatprep.mubr.f32.mxu0 0.0
    %v1321 = vand.u32 %v647, 4294901760
    %1322 = vmatmul.mubr.f32.gmra.mxu0 %v1321
    %v1323 = vpop.f32.mrf.mxu0
    %v1324 = vadd.f32 %v1237, %v1323
    %v1325 = vpop.f32.mrf.mxu0
    %1326 = vdwg.mxu0
    %v1327 = vmax.f32 %v1324, 0.0
    %1328 = vmatprep.subr.mxu0 0.0
    %v1329 = vand.u32 %v679, 4294901760
    %1330 = vmatpush1.msra.mxu0 %v1329
    %1331 = vmatprep.subr.mxu0 0.0
    %v1332 = vand.u32 %v678, 4294901760
    %1333 = vmatpush1.msra.mxu0 %v1332
    %1334 = vmatprep.subr.mxu0 0.0
    %v1335 = vand.u32 %v677, 4294901760
    %1336 = vmatpush1.msra.mxu0 %v1335
    %1337 = vmatprep.subr.mxu0 0.0
    %v1338 = vand.u32 %v676, 4294901760
    %1339 = vmatpush1.msra.mxu0 %v1338
    %1340 = vmatprep.subr.mxu0 0.0
    %v1341 = vand.u32 %v675, 4294901760
    %1342 = vmatpush1.msra.mxu0 %v1341
    %1343 = vmatprep.subr.mxu0 0.0
    %v1344 = vand.u32 %v674, 4294901760
    %1345 = vmatpush1.msra.mxu0 %v1344
    %1346 = vmatprep.subr.mxu0 0.0
    %v1347 = vand.u32 %v673, 4294901760
    %1348 = vmatpush1.msra.mxu0 %v1347
    %1349 = vmatprep.subr.mxu0 0.0
    %v1350 = vand.u32 %v672, 4294901760
    %1351 = vmatpush1.msra.mxu0 %v1350
    %1352 = vmatprep.subr.mxu0 0.0
    %v1353 = vand.u32 %v671, 4294901760
    %1354 = vmatpush1.msra.mxu0 %v1353
    %1355 = vmatprep.subr.mxu0 0.0
    %v1356 = vand.u32 %v670, 4294901760
    %1357 = vmatpush1.msra.mxu0 %v1356
    %1358 = vmatprep.subr.mxu0 0.0
    %v1359 = vand.u32 %v669, 4294901760
    %1360 = vmatpush1.msra.mxu0 %v1359
    %1361 = vmatprep.subr.mxu0 0.0
    %v1362 = vand.u32 %v668, 4294901760
    %1363 = vmatpush1.msra.mxu0 %v1362
    %1364 = vmatprep.subr.mxu0 0.0
    %v1365 = vand.u32 %v667, 4294901760
    %1366 = vmatpush1.msra.mxu0 %v1365
    %1367 = vmatprep.subr.mxu0 0.0
    %v1368 = vand.u32 %v666, 4294901760
    %1369 = vmatpush1.msra.mxu0 %v1368
    %1370 = vmatprep.subr.mxu0 0.0
    %v1371 = vand.u32 %v665, 4294901760
    %1372 = vmatpush1.msra.mxu0 %v1371
    %1373 = vmatprep.subr.mxu0 0.0
    %v1374 = vand.u32 %v664, 4294901760
    %1375 = vmatpush1.msra.mxu0 %v1374
    %1376 = vmatprep.subr.mxu0 0.0
    %1377 = vmatpush2.msra.mxu0 0.0
    %1378 = vmatprep.subr.mxu0 0.0
    %1379 = vmatpush2.msra.mxu0 0.0
    %1380 = vmatprep.subr.mxu0 0.0
    %1381 = vmatpush2.msra.mxu0 0.0
    %1382 = vmatprep.subr.mxu0 0.0
    %1383 = vmatpush2.msra.mxu0 0.0
    %1384 = vmatprep.subr.mxu0 0.0
    %1385 = vmatpush2.msra.mxu0 0.0
    %1386 = vmatprep.subr.mxu0 0.0
    %1387 = vmatpush2.msra.mxu0 0.0
    %1388 = vmatprep.subr.mxu0 0.0
    %1389 = vmatpush2.msra.mxu0 0.0
    %1390 = vmatprep.subr.mxu0 0.0
    %1391 = vmatpush2.msra.mxu0 0.0
    %1392 = vmatprep.subr.mxu0 0.0
    %1393 = vmatpush2.msra.mxu0 0.0
    %1394 = vmatprep.subr.mxu0 0.0
    %1395 = vmatpush2.msra.mxu0 0.0
    %1396 = vmatprep.subr.mxu0 0.0
    %1397 = vmatpush2.msra.mxu0 0.0
    %1398 = vmatprep.subr.mxu0 0.0
    %1399 = vmatpush2.msra.mxu0 0.0
    %1400 = vmatprep.subr.mxu0 0.0
    %1401 = vmatpush2.msra.mxu0 0.0
    %1402 = vmatprep.subr.mxu0 0.0
    %1403 = vmatpush2.msra.mxu0 0.0
    %1404 = vmatprep.subr.mxu0 0.0
    %1405 = vmatpush2.msra.mxu0 0.0
    %1406 = vmatprep.subr.mxu0 0.0
    %1407 = vmatpush2.msra.mxu0 0.0
    %1408 = vmatprep.mubr.f32.mxu0 0.0
    %v1409 = vand.u32 %v1327, 4294901760
    %v1410 = vsub.f32 %v1327, %v1409
    %v1411 = vand.u32 %v1410, 4294901760
    %v1412 = vsub.f32 %v1410, %v1411
    %v1413 = vand.u32 %v1412, 4294901760
    %1414 = vmatmul.mubr.f32.gmra.mxu0 %v1413
    %v1415 = vpop.f32.mrf.mxu0
    %v1416 = vadd.f32 0.0, %v1415
    %v1417 = vpop.f32.mrf.mxu0
    %1418 = vdwg.mxu0
    %1419 = vmatprep.subr.mxu0 0.0
    %v1420 = vand.u32 %v679, 4294901760
    %v1421 = vsub.f32 %v679, %v1420
    %v1422 = vand.u32 %v1421, 4294901760
    %v1423 = vsub.f32 %v1421, %v1422
    %v1424 = vand.u32 %v1423, 4294901760
    %1425 = vmatpush1.msra.mxu0 %v1424
    %1426 = vmatprep.subr.mxu0 0.0
    %v1427 = vand.u32 %v678, 4294901760
    %v1428 = vsub.f32 %v678, %v1427
    %v1429 = vand.u32 %v1428, 4294901760
    %v1430 = vsub.f32 %v1428, %v1429
    %v1431 = vand.u32 %v1430, 4294901760
    %1432 = vmatpush1.msra.mxu0 %v1431
    %1433 = vmatprep.subr.mxu0 0.0
    %v1434 = vand.u32 %v677, 4294901760
    %v1435 = vsub.f32 %v677, %v1434
    %v1436 = vand.u32 %v1435, 4294901760
    %v1437 = vsub.f32 %v1435, %v1436
    %v1438 = vand.u32 %v1437, 4294901760
    %1439 = vmatpush1.msra.mxu0 %v1438
    %1440 = vmatprep.subr.mxu0 0.0
    %v1441 = vand.u32 %v676, 4294901760
    %v1442 = vsub.f32 %v676, %v1441
    %v1443 = vand.u32 %v1442, 4294901760
    %v1444 = vsub.f32 %v1442, %v1443
    %v1445 = vand.u32 %v1444, 4294901760
    %1446 = vmatpush1.msra.mxu0 %v1445
    %1447 = vmatprep.subr.mxu0 0.0
    %v1448 = vand.u32 %v675, 4294901760
    %v1449 = vsub.f32 %v675, %v1448
    %v1450 = vand.u32 %v1449, 4294901760
    %v1451 = vsub.f32 %v1449, %v1450
    %v1452 = vand.u32 %v1451, 4294901760
    %1453 = vmatpush1.msra.mxu0 %v1452
    %1454 = vmatprep.subr.mxu0 0.0
    %v1455 = vand.u32 %v674, 4294901760
    %v1456 = vsub.f32 %v674, %v1455
    %v1457 = vand.u32 %v1456, 4294901760
    %v1458 = vsub.f32 %v1456, %v1457
    %v1459 = vand.u32 %v1458, 4294901760
    %1460 = vmatpush1.msra.mxu0 %v1459
    %1461 = vmatprep.subr.mxu0 0.0
    %v1462 = vand.u32 %v673, 4294901760
    %v1463 = vsub.f32 %v673, %v1462
    %v1464 = vand.u32 %v1463, 4294901760
    %v1465 = vsub.f32 %v1463, %v1464
    %v1466 = vand.u32 %v1465, 4294901760
    %1467 = vmatpush1.msra.mxu0 %v1466
    %1468 = vmatprep.subr.mxu0 0.0
    %v1469 = vand.u32 %v672, 4294901760
    %v1470 = vsub.f32 %v672, %v1469
    %v1471 = vand.u32 %v1470, 4294901760
    %v1472 = vsub.f32 %v1470, %v1471
    %v1473 = vand.u32 %v1472, 4294901760
    %1474 = vmatpush1.msra.mxu0 %v1473
    %1475 = vmatprep.subr.mxu0 0.0
    %v1476 = vand.u32 %v671, 4294901760
    %v1477 = vsub.f32 %v671, %v1476
    %v1478 = vand.u32 %v1477, 4294901760
    %v1479 = vsub.f32 %v1477, %v1478
    %v1480 = vand.u32 %v1479, 4294901760
    %1481 = vmatpush1.msra.mxu0 %v1480
    %1482 = vmatprep.subr.mxu0 0.0
    %v1483 = vand.u32 %v670, 4294901760
    %v1484 = vsub.f32 %v670, %v1483
    %v1485 = vand.u32 %v1484, 4294901760
    %v1486 = vsub.f32 %v1484, %v1485
    %v1487 = vand.u32 %v1486, 4294901760
    %1488 = vmatpush1.msra.mxu0 %v1487
    %1489 = vmatprep.subr.mxu0 0.0
    %v1490 = vand.u32 %v669, 4294901760
    %v1491 = vsub.f32 %v669, %v1490
    %v1492 = vand.u32 %v1491, 4294901760
    %v1493 = vsub.f32 %v1491, %v1492
    %v1494 = vand.u32 %v1493, 4294901760
    %1495 = vmatpush1.msra.mxu0 %v1494
    %1496 = vmatprep.subr.mxu0 0.0
    %v1497 = vand.u32 %v668, 4294901760
    %v1498 = vsub.f32 %v668, %v1497
    %v1499 = vand.u32 %v1498, 4294901760
    %v1500 = vsub.f32 %v1498, %v1499
    %v1501 = vand.u32 %v1500, 4294901760
    %1502 = vmatpush1.msra.mxu0 %v1501
    %1503 = vmatprep.subr.mxu0 0.0
    %v1504 = vand.u32 %v667, 4294901760
    %v1505 = vsub.f32 %v667, %v1504
    %v1506 = vand.u32 %v1505, 4294901760
    %v1507 = vsub.f32 %v1505, %v1506
    %v1508 = vand.u32 %v1507, 4294901760
    %1509 = vmatpush1.msra.mxu0 %v1508
    %1510 = vmatprep.subr.mxu0 0.0
    %v1511 = vand.u32 %v666, 4294901760
    %v1512 = vsub.f32 %v666, %v1511
    %v1513 = vand.u32 %v1512, 4294901760
    %v1514 = vsub.f32 %v1512, %v1513
    %v1515 = vand.u32 %v1514, 4294901760
    %1516 = vmatpush1.msra.mxu0 %v1515
    %1517 = vmatprep.subr.mxu0 0.0
    %v1518 = vand.u32 %v665, 4294901760
    %v1519 = vsub.f32 %v665, %v1518
    %v1520 = vand.u32 %v1519, 4294901760
    %v1521 = vsub.f32 %v1519, %v1520
    %v1522 = vand.u32 %v1521, 4294901760
    %1523 = vmatpush1.msra.mxu0 %v1522
    %1524 = vmatprep.subr.mxu0 0.0
    %v1525 = vand.u32 %v664, 4294901760
    %v1526 = vsub.f32 %v664, %v1525
    %v1527 = vand.u32 %v1526, 4294901760
    %v1528 = vsub.f32 %v1526, %v1527
    %v1529 = vand.u32 %v1528, 4294901760
    %1530 = vmatpush1.msra.mxu0 %v1529
    %1531 = vmatprep.subr.mxu0 0.0
    %1532 = vmatpush2.msra.mxu0 0.0
    %1533 = vmatprep.subr.mxu0 0.0
    %1534 = vmatpush2.msra.mxu0 0.0
    %1535 = vmatprep.subr.mxu0 0.0
    %1536 = vmatpush2.msra.mxu0 0.0
    %1537 = vmatprep.subr.mxu0 0.0
    %1538 = vmatpush2.msra.mxu0 0.0
    %1539 = vmatprep.subr.mxu0 0.0
    %1540 = vmatpush2.msra.mxu0 0.0
    %1541 = vmatprep.subr.mxu0 0.0
    %1542 = vmatpush2.msra.mxu0 0.0
    %1543 = vmatprep.subr.mxu0 0.0
    %1544 = vmatpush2.msra.mxu0 0.0
    %1545 = vmatprep.subr.mxu0 0.0
    %1546 = vmatpush2.msra.mxu0 0.0
    %1547 = vmatprep.subr.mxu0 0.0
    %1548 = vmatpush2.msra.mxu0 0.0
    %1549 = vmatprep.subr.mxu0 0.0
    %1550 = vmatpush2.msra.mxu0 0.0
    %1551 = vmatprep.subr.mxu0 0.0
    %1552 = vmatpush2.msra.mxu0 0.0
    %1553 = vmatprep.subr.mxu0 0.0
    %1554 = vmatpush2.msra.mxu0 0.0
    %1555 = vmatprep.subr.mxu0 0.0
    %1556 = vmatpush2.msra.mxu0 0.0
    %1557 = vmatprep.subr.mxu0 0.0
    %1558 = vmatpush2.msra.mxu0 0.0
    %1559 = vmatprep.subr.mxu0 0.0
    %1560 = vmatpush2.msra.mxu0 0.0
    %1561 = vmatprep.subr.mxu0 0.0
    %1562 = vmatpush2.msra.mxu0 0.0
    %1563 = vmatprep.mubr.f32.mxu0 0.0
    %v1564 = vand.u32 %v1327, 4294901760
    %1565 = vmatmul.mubr.f32.gmra.mxu0 %v1564
    %v1566 = vpop.f32.mrf.mxu0
    %v1567 = vadd.f32 %v1416, %v1566
    %v1568 = vpop.f32.mrf.mxu0
    %1569 = vdwg.mxu0
    %1570 = vmatprep.subr.mxu0 0.0
    %v1571 = vand.u32 %v679, 4294901760
    %v1572 = vsub.f32 %v679, %v1571
    %1573 = vmatpush1.msra.mxu0 %v1572
    %1574 = vmatprep.subr.mxu0 0.0
    %v1575 = vand.u32 %v678, 4294901760
    %v1576 = vsub.f32 %v678, %v1575
    %1577 = vmatpush1.msra.mxu0 %v1576
    %1578 = vmatprep.subr.mxu0 0.0
    %v1579 = vand.u32 %v677, 4294901760
    %v1580 = vsub.f32 %v677, %v1579
    %1581 = vmatpush1.msra.mxu0 %v1580
    %1582 = vmatprep.subr.mxu0 0.0
    %v1583 = vand.u32 %v676, 4294901760
    %v1584 = vsub.f32 %v676, %v1583
    %1585 = vmatpush1.msra.mxu0 %v1584
    %1586 = vmatprep.subr.mxu0 0.0
    %v1587 = vand.u32 %v675, 4294901760
    %v1588 = vsub.f32 %v675, %v1587
    %1589 = vmatpush1.msra.mxu0 %v1588
    %1590 = vmatprep.subr.mxu0 0.0
    %v1591 = vand.u32 %v674, 4294901760
    %v1592 = vsub.f32 %v674, %v1591
    %1593 = vmatpush1.msra.mxu0 %v1592
    %1594 = vmatprep.subr.mxu0 0.0
    %v1595 = vand.u32 %v673, 4294901760
    %v1596 = vsub.f32 %v673, %v1595
    %1597 = vmatpush1.msra.mxu0 %v1596
    %1598 = vmatprep.subr.mxu0 0.0
    %v1599 = vand.u32 %v672, 4294901760
    %v1600 = vsub.f32 %v672, %v1599
    %1601 = vmatpush1.msra.mxu0 %v1600
    %1602 = vmatprep.subr.mxu0 0.0
    %v1603 = vand.u32 %v671, 4294901760
    %v1604 = vsub.f32 %v671, %v1603
    %1605 = vmatpush1.msra.mxu0 %v1604
    %1606 = vmatprep.subr.mxu0 0.0
    %v1607 = vand.u32 %v670, 4294901760
    %v1608 = vsub.f32 %v670, %v1607
    %1609 = vmatpush1.msra.mxu0 %v1608
    %1610 = vmatprep.subr.mxu0 0.0
    %v1611 = vand.u32 %v669, 4294901760
    %v1612 = vsub.f32 %v669, %v1611
    %1613 = vmatpush1.msra.mxu0 %v1612
    %1614 = vmatprep.subr.mxu0 0.0
    %v1615 = vand.u32 %v668, 4294901760
    %v1616 = vsub.f32 %v668, %v1615
    %1617 = vmatpush1.msra.mxu0 %v1616
    %1618 = vmatprep.subr.mxu0 0.0
    %v1619 = vand.u32 %v667, 4294901760
    %v1620 = vsub.f32 %v667, %v1619
    %1621 = vmatpush1.msra.mxu0 %v1620
    %1622 = vmatprep.subr.mxu0 0.0
    %v1623 = vand.u32 %v666, 4294901760
    %v1624 = vsub.f32 %v666, %v1623
    %1625 = vmatpush1.msra.mxu0 %v1624
    %1626 = vmatprep.subr.mxu0 0.0
    %v1627 = vand.u32 %v665, 4294901760
    %v1628 = vsub.f32 %v665, %v1627
    %1629 = vmatpush1.msra.mxu0 %v1628
    %1630 = vmatprep.subr.mxu0 0.0
    %v1631 = vand.u32 %v664, 4294901760
    %v1632 = vsub.f32 %v664, %v1631
    %1633 = vmatpush1.msra.mxu0 %v1632
    %1634 = vmatprep.subr.mxu0 0.0
    %1635 = vmatpush2.msra.mxu0 0.0
    %1636 = vmatprep.subr.mxu0 0.0
    %1637 = vmatpush2.msra.mxu0 0.0
    %1638 = vmatprep.subr.mxu0 0.0
    %1639 = vmatpush2.msra.mxu0 0.0
    %1640 = vmatprep.subr.mxu0 0.0
    %1641 = vmatpush2.msra.mxu0 0.0
    %1642 = vmatprep.subr.mxu0 0.0
    %1643 = vmatpush2.msra.mxu0 0.0
    %1644 = vmatprep.subr.mxu0 0.0
    %1645 = vmatpush2.msra.mxu0 0.0
    %1646 = vmatprep.subr.mxu0 0.0
    %1647 = vmatpush2.msra.mxu0 0.0
    %1648 = vmatprep.subr.mxu0 0.0
    %1649 = vmatpush2.msra.mxu0 0.0
    %1650 = vmatprep.subr.mxu0 0.0
    %1651 = vmatpush2.msra.mxu0 0.0
    %1652 = vmatprep.subr.mxu0 0.0
    %1653 = vmatpush2.msra.mxu0 0.0
    %1654 = vmatprep.subr.mxu0 0.0
    %1655 = vmatpush2.msra.mxu0 0.0
    %1656 = vmatprep.subr.mxu0 0.0
    %1657 = vmatpush2.msra.mxu0 0.0
    %1658 = vmatprep.subr.mxu0 0.0
    %1659 = vmatpush2.msra.mxu0 0.0
    %1660 = vmatprep.subr.mxu0 0.0
    %1661 = vmatpush2.msra.mxu0 0.0
    %1662 = vmatprep.subr.mxu0 0.0
    %1663 = vmatpush2.msra.mxu0 0.0
    %1664 = vmatprep.subr.mxu0 0.0
    %1665 = vmatpush2.msra.mxu0 0.0
    %1666 = vmatprep.mubr.f32.mxu0 0.0
    %v1667 = vand.u32 %v1327, 4294901760
    %v1668 = vsub.f32 %v1327, %v1667
    %1669 = vmatmul.mubr.f32.gmra.mxu0 %v1668
    %v1670 = vpop.f32.mrf.mxu0
    %v1671 = vadd.f32 %v1567, %v1670
    %v1672 = vpop.f32.mrf.mxu0
    %1673 = vdwg.mxu0
    %1674 = vmatprep.subr.mxu0 0.0
    %v1675 = vand.u32 %v679, 4294901760
    %1676 = vmatpush1.msra.mxu0 %v1675
    %1677 = vmatprep.subr.mxu0 0.0
    %v1678 = vand.u32 %v678, 4294901760
    %1679 = vmatpush1.msra.mxu0 %v1678
    %1680 = vmatprep.subr.mxu0 0.0
    %v1681 = vand.u32 %v677, 4294901760
    %1682 = vmatpush1.msra.mxu0 %v1681
    %1683 = vmatprep.subr.mxu0 0.0
    %v1684 = vand.u32 %v676, 4294901760
    %1685 = vmatpush1.msra.mxu0 %v1684
    %1686 = vmatprep.subr.mxu0 0.0
    %v1687 = vand.u32 %v675, 4294901760
    %1688 = vmatpush1.msra.mxu0 %v1687
    %1689 = vmatprep.subr.mxu0 0.0
    %v1690 = vand.u32 %v674, 4294901760
    %1691 = vmatpush1.msra.mxu0 %v1690
    %1692 = vmatprep.subr.mxu0 0.0
    %v1693 = vand.u32 %v673, 4294901760
    %1694 = vmatpush1.msra.mxu0 %v1693
    %1695 = vmatprep.subr.mxu0 0.0
    %v1696 = vand.u32 %v672, 4294901760
    %1697 = vmatpush1.msra.mxu0 %v1696
    %1698 = vmatprep.subr.mxu0 0.0
    %v1699 = vand.u32 %v671, 4294901760
    %1700 = vmatpush1.msra.mxu0 %v1699
    %1701 = vmatprep.subr.mxu0 0.0
    %v1702 = vand.u32 %v670, 4294901760
    %1703 = vmatpush1.msra.mxu0 %v1702
    %1704 = vmatprep.subr.mxu0 0.0
    %v1705 = vand.u32 %v669, 4294901760
    %1706 = vmatpush1.msra.mxu0 %v1705
    %1707 = vmatprep.subr.mxu0 0.0
    %v1708 = vand.u32 %v668, 4294901760
    %1709 = vmatpush1.msra.mxu0 %v1708
    %1710 = vmatprep.subr.mxu0 0.0
    %v1711 = vand.u32 %v667, 4294901760
    %1712 = vmatpush1.msra.mxu0 %v1711
    %1713 = vmatprep.subr.mxu0 0.0
    %v1714 = vand.u32 %v666, 4294901760
    %1715 = vmatpush1.msra.mxu0 %v1714
    %1716 = vmatprep.subr.mxu0 0.0
    %v1717 = vand.u32 %v665, 4294901760
    %1718 = vmatpush1.msra.mxu0 %v1717
    %1719 = vmatprep.subr.mxu0 0.0
    %v1720 = vand.u32 %v664, 4294901760
    %1721 = vmatpush1.msra.mxu0 %v1720
    %1722 = vmatprep.subr.mxu0 0.0
    %1723 = vmatpush2.msra.mxu0 0.0
    %1724 = vmatprep.subr.mxu0 0.0
    %1725 = vmatpush2.msra.mxu0 0.0
    %1726 = vmatprep.subr.mxu0 0.0
    %1727 = vmatpush2.msra.mxu0 0.0
    %1728 = vmatprep.subr.mxu0 0.0
    %1729 = vmatpush2.msra.mxu0 0.0
    %1730 = vmatprep.subr.mxu0 0.0
    %1731 = vmatpush2.msra.mxu0 0.0
    %1732 = vmatprep.subr.mxu0 0.0
    %1733 = vmatpush2.msra.mxu0 0.0
    %1734 = vmatprep.subr.mxu0 0.0
    %1735 = vmatpush2.msra.mxu0 0.0
    %1736 = vmatprep.subr.mxu0 0.0
    %1737 = vmatpush2.msra.mxu0 0.0
    %1738 = vmatprep.subr.mxu0 0.0
    %1739 = vmatpush2.msra.mxu0 0.0
    %1740 = vmatprep.subr.mxu0 0.0
    %1741 = vmatpush2.msra.mxu0 0.0
    %1742 = vmatprep.subr.mxu0 0.0
    %1743 = vmatpush2.msra.mxu0 0.0
    %1744 = vmatprep.subr.mxu0 0.0
    %1745 = vmatpush2.msra.mxu0 0.0
    %1746 = vmatprep.subr.mxu0 0.0
    %1747 = vmatpush2.msra.mxu0 0.0
    %1748 = vmatprep.subr.mxu0 0.0
    %1749 = vmatpush2.msra.mxu0 0.0
    %1750 = vmatprep.subr.mxu0 0.0
    %1751 = vmatpush2.msra.mxu0 0.0
    %1752 = vmatprep.subr.mxu0 0.0
    %1753 = vmatpush2.msra.mxu0 0.0
    %1754 = vmatprep.mubr.f32.mxu0 0.0
    %v1755 = vand.u32 %v1327, 4294901760
    %v1756 = vsub.f32 %v1327, %v1755
    %v1757 = vand.u32 %v1756, 4294901760
    %1758 = vmatmul.mubr.f32.gmra.mxu0 %v1757
    %v1759 = vpop.f32.mrf.mxu0
    %v1760 = vadd.f32 %v1671, %v1759
    %v1761 = vpop.f32.mrf.mxu0
    %1762 = vdwg.mxu0
    %1763 = vmatprep.subr.mxu0 0.0
    %v1764 = vand.u32 %v679, 4294901760
    %v1765 = vsub.f32 %v679, %v1764
    %v1766 = vand.u32 %v1765, 4294901760
    %1767 = vmatpush1.msra.mxu0 %v1766
    %1768 = vmatprep.subr.mxu0 0.0
    %v1769 = vand.u32 %v678, 4294901760
    %v1770 = vsub.f32 %v678, %v1769
    %v1771 = vand.u32 %v1770, 4294901760
    %1772 = vmatpush1.msra.mxu0 %v1771
    %1773 = vmatprep.subr.mxu0 0.0
    %v1774 = vand.u32 %v677, 4294901760
    %v1775 = vsub.f32 %v677, %v1774
    %v1776 = vand.u32 %v1775, 4294901760
    %1777 = vmatpush1.msra.mxu0 %v1776
    %1778 = vmatprep.subr.mxu0 0.0
    %v1779 = vand.u32 %v676, 4294901760
    %v1780 = vsub.f32 %v676, %v1779
    %v1781 = vand.u32 %v1780, 4294901760
    %1782 = vmatpush1.msra.mxu0 %v1781
    %1783 = vmatprep.subr.mxu0 0.0
    %v1784 = vand.u32 %v675, 4294901760
    %v1785 = vsub.f32 %v675, %v1784
    %v1786 = vand.u32 %v1785, 4294901760
    %1787 = vmatpush1.msra.mxu0 %v1786
    %1788 = vmatprep.subr.mxu0 0.0
    %v1789 = vand.u32 %v674, 4294901760
    %v1790 = vsub.f32 %v674, %v1789
    %v1791 = vand.u32 %v1790, 4294901760
    %1792 = vmatpush1.msra.mxu0 %v1791
    %1793 = vmatprep.subr.mxu0 0.0
    %v1794 = vand.u32 %v673, 4294901760
    %v1795 = vsub.f32 %v673, %v1794
    %v1796 = vand.u32 %v1795, 4294901760
    %1797 = vmatpush1.msra.mxu0 %v1796
    %1798 = vmatprep.subr.mxu0 0.0
    %v1799 = vand.u32 %v672, 4294901760
    %v1800 = vsub.f32 %v672, %v1799
    %v1801 = vand.u32 %v1800, 4294901760
    %1802 = vmatpush1.msra.mxu0 %v1801
    %1803 = vmatprep.subr.mxu0 0.0
    %v1804 = vand.u32 %v671, 4294901760
    %v1805 = vsub.f32 %v671, %v1804
    %v1806 = vand.u32 %v1805, 4294901760
    %1807 = vmatpush1.msra.mxu0 %v1806
    %1808 = vmatprep.subr.mxu0 0.0
    %v1809 = vand.u32 %v670, 4294901760
    %v1810 = vsub.f32 %v670, %v1809
    %v1811 = vand.u32 %v1810, 4294901760
    %1812 = vmatpush1.msra.mxu0 %v1811
    %1813 = vmatprep.subr.mxu0 0.0
    %v1814 = vand.u32 %v669, 4294901760
    %v1815 = vsub.f32 %v669, %v1814
    %v1816 = vand.u32 %v1815, 4294901760
    %1817 = vmatpush1.msra.mxu0 %v1816
    %1818 = vmatprep.subr.mxu0 0.0
    %v1819 = vand.u32 %v668, 4294901760
    %v1820 = vsub.f32 %v668, %v1819
    %v1821 = vand.u32 %v1820, 4294901760
    %1822 = vmatpush1.msra.mxu0 %v1821
    %1823 = vmatprep.subr.mxu0 0.0
    %v1824 = vand.u32 %v667, 4294901760
    %v1825 = vsub.f32 %v667, %v1824
    %v1826 = vand.u32 %v1825, 4294901760
    %1827 = vmatpush1.msra.mxu0 %v1826
    %1828 = vmatprep.subr.mxu0 0.0
    %v1829 = vand.u32 %v666, 4294901760
    %v1830 = vsub.f32 %v666, %v1829
    %v1831 = vand.u32 %v1830, 4294901760
    %1832 = vmatpush1.msra.mxu0 %v1831
    %1833 = vmatprep.subr.mxu0 0.0
    %v1834 = vand.u32 %v665, 4294901760
    %v1835 = vsub.f32 %v665, %v1834
    %v1836 = vand.u32 %v1835, 4294901760
    %1837 = vmatpush1.msra.mxu0 %v1836
    %1838 = vmatprep.subr.mxu0 0.0
    %v1839 = vand.u32 %v664, 4294901760
    %v1840 = vsub.f32 %v664, %v1839
    %v1841 = vand.u32 %v1840, 4294901760
    %1842 = vmatpush1.msra.mxu0 %v1841
    %1843 = vmatprep.subr.mxu0 0.0
    %1844 = vmatpush2.msra.mxu0 0.0
    %1845 = vmatprep.subr.mxu0 0.0
    %1846 = vmatpush2.msra.mxu0 0.0
    %1847 = vmatprep.subr.mxu0 0.0
    %1848 = vmatpush2.msra.mxu0 0.0
    %1849 = vmatprep.subr.mxu0 0.0
    %1850 = vmatpush2.msra.mxu0 0.0
    %1851 = vmatprep.subr.mxu0 0.0
    %1852 = vmatpush2.msra.mxu0 0.0
    %1853 = vmatprep.subr.mxu0 0.0
    %1854 = vmatpush2.msra.mxu0 0.0
    %1855 = vmatprep.subr.mxu0 0.0
    %1856 = vmatpush2.msra.mxu0 0.0
    %1857 = vmatprep.subr.mxu0 0.0
    %1858 = vmatpush2.msra.mxu0 0.0
    %1859 = vmatprep.subr.mxu0 0.0
    %1860 = vmatpush2.msra.mxu0 0.0
    %1861 = vmatprep.subr.mxu0 0.0
    %1862 = vmatpush2.msra.mxu0 0.0
    %1863 = vmatprep.subr.mxu0 0.0
    %1864 = vmatpush2.msra.mxu0 0.0
    %1865 = vmatprep.subr.mxu0 0.0
    %1866 = vmatpush2.msra.mxu0 0.0
    %1867 = vmatprep.subr.mxu0 0.0
    %1868 = vmatpush2.msra.mxu0 0.0
    %1869 = vmatprep.subr.mxu0 0.0
    %1870 = vmatpush2.msra.mxu0 0.0
    %1871 = vmatprep.subr.mxu0 0.0
    %1872 = vmatpush2.msra.mxu0 0.0
    %1873 = vmatprep.subr.mxu0 0.0
    %1874 = vmatpush2.msra.mxu0 0.0
    %1875 = vmatprep.mubr.f32.mxu0 0.0
    %v1876 = vand.u32 %v1327, 4294901760
    %1877 = vmatmul.mubr.f32.gmra.mxu0 %v1876
    %v1878 = vpop.f32.mrf.mxu0
    %v1879 = vadd.f32 %v1760, %v1878
    %v1880 = vpop.f32.mrf.mxu0
    %1881 = vdwg.mxu0
    %1882 = vmatprep.subr.mxu0 0.0
    %v1883 = vand.u32 %v679, 4294901760
    %1884 = vmatpush1.msra.mxu0 %v1883
    %1885 = vmatprep.subr.mxu0 0.0
    %v1886 = vand.u32 %v678, 4294901760
    %1887 = vmatpush1.msra.mxu0 %v1886
    %1888 = vmatprep.subr.mxu0 0.0
    %v1889 = vand.u32 %v677, 4294901760
    %1890 = vmatpush1.msra.mxu0 %v1889
    %1891 = vmatprep.subr.mxu0 0.0
    %v1892 = vand.u32 %v676, 4294901760
    %1893 = vmatpush1.msra.mxu0 %v1892
    %1894 = vmatprep.subr.mxu0 0.0
    %v1895 = vand.u32 %v675, 4294901760
    %1896 = vmatpush1.msra.mxu0 %v1895
    %1897 = vmatprep.subr.mxu0 0.0
    %v1898 = vand.u32 %v674, 4294901760
    %1899 = vmatpush1.msra.mxu0 %v1898
    %1900 = vmatprep.subr.mxu0 0.0
    %v1901 = vand.u32 %v673, 4294901760
    %1902 = vmatpush1.msra.mxu0 %v1901
    %1903 = vmatprep.subr.mxu0 0.0
    %v1904 = vand.u32 %v672, 4294901760
    %1905 = vmatpush1.msra.mxu0 %v1904
    %1906 = vmatprep.subr.mxu0 0.0
    %v1907 = vand.u32 %v671, 4294901760
    %1908 = vmatpush1.msra.mxu0 %v1907
    %1909 = vmatprep.subr.mxu0 0.0
    %v1910 = vand.u32 %v670, 4294901760
    %1911 = vmatpush1.msra.mxu0 %v1910
    %1912 = vmatprep.subr.mxu0 0.0
    %v1913 = vand.u32 %v669, 4294901760
    %1914 = vmatpush1.msra.mxu0 %v1913
    %1915 = vmatprep.subr.mxu0 0.0
    %v1916 = vand.u32 %v668, 4294901760
    %1917 = vmatpush1.msra.mxu0 %v1916
    %1918 = vmatprep.subr.mxu0 0.0
    %v1919 = vand.u32 %v667, 4294901760
    %1920 = vmatpush1.msra.mxu0 %v1919
    %1921 = vmatprep.subr.mxu0 0.0
    %v1922 = vand.u32 %v666, 4294901760
    %1923 = vmatpush1.msra.mxu0 %v1922
    %1924 = vmatprep.subr.mxu0 0.0
    %v1925 = vand.u32 %v665, 4294901760
    %1926 = vmatpush1.msra.mxu0 %v1925
    %1927 = vmatprep.subr.mxu0 0.0
    %v1928 = vand.u32 %v664, 4294901760
    %1929 = vmatpush1.msra.mxu0 %v1928
    %1930 = vmatprep.subr.mxu0 0.0
    %1931 = vmatpush2.msra.mxu0 0.0
    %1932 = vmatprep.subr.mxu0 0.0
    %1933 = vmatpush2.msra.mxu0 0.0
    %1934 = vmatprep.subr.mxu0 0.0
    %1935 = vmatpush2.msra.mxu0 0.0
    %1936 = vmatprep.subr.mxu0 0.0
    %1937 = vmatpush2.msra.mxu0 0.0
    %1938 = vmatprep.subr.mxu0 0.0
    %1939 = vmatpush2.msra.mxu0 0.0
    %1940 = vmatprep.subr.mxu0 0.0
    %1941 = vmatpush2.msra.mxu0 0.0
    %1942 = vmatprep.subr.mxu0 0.0
    %1943 = vmatpush2.msra.mxu0 0.0
    %1944 = vmatprep.subr.mxu0 0.0
    %1945 = vmatpush2.msra.mxu0 0.0
    %1946 = vmatprep.subr.mxu0 0.0
    %1947 = vmatpush2.msra.mxu0 0.0
    %1948 = vmatprep.subr.mxu0 0.0
    %1949 = vmatpush2.msra.mxu0 0.0
    %1950 = vmatprep.subr.mxu0 0.0
    %1951 = vmatpush2.msra.mxu0 0.0
    %1952 = vmatprep.subr.mxu0 0.0
    %1953 = vmatpush2.msra.mxu0 0.0
    %1954 = vmatprep.subr.mxu0 0.0
    %1955 = vmatpush2.msra.mxu0 0.0
    %1956 = vmatprep.subr.mxu0 0.0
    %1957 = vmatpush2.msra.mxu0 0.0
    %1958 = vmatprep.subr.mxu0 0.0
    %1959 = vmatpush2.msra.mxu0 0.0
    %1960 = vmatprep.subr.mxu0 0.0
    %1961 = vmatpush2.msra.mxu0 0.0
    %1962 = vmatprep.mubr.f32.mxu0 0.0
    %v1963 = vand.u32 %v1327, 4294901760
    %1964 = vmatmul.mubr.f32.gmra.mxu0 %v1963
    %v1965 = vpop.f32.mrf.mxu0
    %v1966 = vadd.f32 %v1879, %v1965
    %v1967 = vpop.f32.mrf.mxu0
    %1968 = vdwg.mxu0
    %v1969 = vadd.f32 %v647, %v1966
    %v1970 = vlaneseq
    %v1971 = vshrl.u32 %v1970, 7
    %v1972 = vsub.s32 0, %v1971
    %v1973 = vrot.slane %v681, %v1972
    %v1974 = vadd.f32 %v1969, %v1973
    %v1975 = vld [vmem:[#allocation9 + $0x120] sm:$0xff]
    %v1976 = vld [vmem:[#allocation9 + $0x128] sm:$0xff]
    %v1977 = vld [vmem:[#allocation9 + $0x130] sm:$0xff]
    %v1978 = vld [vmem:[#allocation9 + $0x138] sm:$0xff]
    %v1979 = vld [vmem:[#allocation9 + $0x140] sm:$0xff]
    %v1980 = vld [vmem:[#allocation9 + $0x148] sm:$0xff]
    %v1981 = vld [vmem:[#allocation9 + $0x150] sm:$0xff]
    %v1982 = vld [vmem:[#allocation9 + $0x158] sm:$0xff]
    %v1983 = vld [vmem:[#allocation9 + $0x160] sm:$0xff]
    %v1984 = vld [vmem:[#allocation9 + $0x168] sm:$0xff]
    %v1985 = vld [vmem:[#allocation9 + $0x170] sm:$0xff]
    %v1986 = vld [vmem:[#allocation9 + $0x178] sm:$0xff]
    %v1987 = vld [vmem:[#allocation9 + $0x180] sm:$0xff]
    %v1988 = vld [vmem:[#allocation9 + $0x188] sm:$0xff]
    %v1989 = vld [vmem:[#allocation9 + $0x190] sm:$0xff]
    %v1990 = vld [vmem:[#allocation9 + $0x198] sm:$0xff]
    %v1991 = vld [vmem:[#allocation9 + $0x1a0] sm:$0xff]
    %v1992 = vld [vmem:[#allocation9 + $0x1a8] sm:$0xff]
    %v1993 = vld [vmem:[#allocation9 + $0x1b0] sm:$0xff]
    %v1994 = vld [vmem:[#allocation9 + $0x1b8] sm:$0xff]
    %v1995 = vld [vmem:[#allocation9 + $0x1c0] sm:$0xff]
    %v1996 = vld [vmem:[#allocation9 + $0x1c8] sm:$0xff]
    %v1997 = vld [vmem:[#allocation9 + $0x1d0] sm:$0xff]
    %v1998 = vld [vmem:[#allocation9 + $0x1d8] sm:$0xff]
    %v1999 = vld [vmem:[#allocation9 + $0x1e0] sm:$0xff]
    %v2000 = vld [vmem:[#allocation9 + $0x1e8] sm:$0xff]
    %v2001 = vld [vmem:[#allocation9 + $0x1f0] sm:$0xff]
    %v2002 = vld [vmem:[#allocation9 + $0x1f8] sm:$0xff]
    %v2003 = vld [vmem:[#allocation9 + $0x200] sm:$0xff]
    %v2004 = vld [vmem:[#allocation9 + $0x208] sm:$0xff]
    %v2005 = vld [vmem:[#allocation9 + $0x210] sm:$0xff]
    %v2006 = vld [vmem:[#allocation9 + $0x218] sm:$0xff]
    %v2007 = vld [vmem:[%s4 + $0x3] sm:$0x1]
    %v2008 = vld [vmem:[%s4 + $0x4] sm:$0x1]
    %v2009 = vlaneseq
    %v2010 = vshrl.u32 %v2009, 7
    %v2011 = vsub.s32 0, %v2010
    %v2012 = vrot.slane %v2007, %v2011
    %2013 = vmatprep.subr.mxu0 0.0
    %v2014 = vand.u32 %v1990, 4294901760
    %2015 = vmatpush1.msra.mxu0 %v2014
    %2016 = vmatprep.subr.mxu0 0.0
    %v2017 = vand.u32 %v1989, 4294901760
    %2018 = vmatpush1.msra.mxu0 %v2017
    %2019 = vmatprep.subr.mxu0 0.0
    %v2020 = vand.u32 %v1988, 4294901760
    %2021 = vmatpush1.msra.mxu0 %v2020
    %2022 = vmatprep.subr.mxu0 0.0
    %v2023 = vand.u32 %v1987, 4294901760
    %2024 = vmatpush1.msra.mxu0 %v2023
    %2025 = vmatprep.subr.mxu0 0.0
    %v2026 = vand.u32 %v1986, 4294901760
    %2027 = vmatpush1.msra.mxu0 %v2026
    %2028 = vmatprep.subr.mxu0 0.0
    %v2029 = vand.u32 %v1985, 4294901760
    %2030 = vmatpush1.msra.mxu0 %v2029
    %2031 = vmatprep.subr.mxu0 0.0
    %v2032 = vand.u32 %v1984, 4294901760
    %2033 = vmatpush1.msra.mxu0 %v2032
    %2034 = vmatprep.subr.mxu0 0.0
    %v2035 = vand.u32 %v1983, 4294901760
    %2036 = vmatpush1.msra.mxu0 %v2035
    %2037 = vmatprep.subr.mxu0 0.0
    %v2038 = vand.u32 %v1982, 4294901760
    %2039 = vmatpush1.msra.mxu0 %v2038
    %2040 = vmatprep.subr.mxu0 0.0
    %v2041 = vand.u32 %v1981, 4294901760
    %2042 = vmatpush1.msra.mxu0 %v2041
    %2043 = vmatprep.subr.mxu0 0.0
    %v2044 = vand.u32 %v1980, 4294901760
    %2045 = vmatpush1.msra.mxu0 %v2044
    %2046 = vmatprep.subr.mxu0 0.0
    %v2047 = vand.u32 %v1979, 4294901760
    %2048 = vmatpush1.msra.mxu0 %v2047
    %2049 = vmatprep.subr.mxu0 0.0
    %v2050 = vand.u32 %v1978, 4294901760
    %2051 = vmatpush1.msra.mxu0 %v2050
    %2052 = vmatprep.subr.mxu0 0.0
    %v2053 = vand.u32 %v1977, 4294901760
    %2054 = vmatpush1.msra.mxu0 %v2053
    %2055 = vmatprep.subr.mxu0 0.0
    %v2056 = vand.u32 %v1976, 4294901760
    %2057 = vmatpush1.msra.mxu0 %v2056
    %2058 = vmatprep.subr.mxu0 0.0
    %v2059 = vand.u32 %v1975, 4294901760
    %2060 = vmatpush1.msra.mxu0 %v2059
    %2061 = vmatprep.subr.mxu0 0.0
    %2062 = vmatpush2.msra.mxu0 0.0
    %2063 = vmatprep.subr.mxu0 0.0
    %2064 = vmatpush2.msra.mxu0 0.0
    %2065 = vmatprep.subr.mxu0 0.0
    %2066 = vmatpush2.msra.mxu0 0.0
    %2067 = vmatprep.subr.mxu0 0.0
    %2068 = vmatpush2.msra.mxu0 0.0
    %2069 = vmatprep.subr.mxu0 0.0
    %2070 = vmatpush2.msra.mxu0 0.0
    %2071 = vmatprep.subr.mxu0 0.0
    %2072 = vmatpush2.msra.mxu0 0.0
    %2073 = vmatprep.subr.mxu0 0.0
    %2074 = vmatpush2.msra.mxu0 0.0
    %2075 = vmatprep.subr.mxu0 0.0
    %2076 = vmatpush2.msra.mxu0 0.0
    %2077 = vmatprep.subr.mxu0 0.0
    %2078 = vmatpush2.msra.mxu0 0.0
    %2079 = vmatprep.subr.mxu0 0.0
    %2080 = vmatpush2.msra.mxu0 0.0
    %2081 = vmatprep.subr.mxu0 0.0
    %2082 = vmatpush2.msra.mxu0 0.0
    %2083 = vmatprep.subr.mxu0 0.0
    %2084 = vmatpush2.msra.mxu0 0.0
    %2085 = vmatprep.subr.mxu0 0.0
    %2086 = vmatpush2.msra.mxu0 0.0
    %2087 = vmatprep.subr.mxu0 0.0
    %2088 = vmatpush2.msra.mxu0 0.0
    %2089 = vmatprep.subr.mxu0 0.0
    %2090 = vmatpush2.msra.mxu0 0.0
    %2091 = vmatprep.subr.mxu0 0.0
    %2092 = vmatpush2.msra.mxu0 0.0
    %2093 = vmatprep.mubr.f32.mxu0 0.0
    %v2094 = vand.u32 %v1974, 4294901760
    %v2095 = vsub.f32 %v1974, %v2094
    %v2096 = vand.u32 %v2095, 4294901760
    %v2097 = vsub.f32 %v2095, %v2096
    %v2098 = vand.u32 %v2097, 4294901760
    %2099 = vmatmul.mubr.f32.gmra.mxu0 %v2098
    %v2100 = vpop.f32.mrf.mxu0
    %v2101 = vadd.f32 %v2012, %v2100
    %v2102 = vpop.f32.mrf.mxu0
    %2103 = vdwg.mxu0
    %2104 = vmatprep.subr.mxu0 0.0
    %v2105 = vand.u32 %v1990, 4294901760
    %v2106 = vsub.f32 %v1990, %v2105
    %v2107 = vand.u32 %v2106, 4294901760
    %v2108 = vsub.f32 %v2106, %v2107
    %v2109 = vand.u32 %v2108, 4294901760
    %2110 = vmatpush1.msra.mxu0 %v2109
    %2111 = vmatprep.subr.mxu0 0.0
    %v2112 = vand.u32 %v1989, 4294901760
    %v2113 = vsub.f32 %v1989, %v2112
    %v2114 = vand.u32 %v2113, 4294901760
    %v2115 = vsub.f32 %v2113, %v2114
    %v2116 = vand.u32 %v2115, 4294901760
    %2117 = vmatpush1.msra.mxu0 %v2116
    %2118 = vmatprep.subr.mxu0 0.0
    %v2119 = vand.u32 %v1988, 4294901760
    %v2120 = vsub.f32 %v1988, %v2119
    %v2121 = vand.u32 %v2120, 4294901760
    %v2122 = vsub.f32 %v2120, %v2121
    %v2123 = vand.u32 %v2122, 4294901760
    %2124 = vmatpush1.msra.mxu0 %v2123
    %2125 = vmatprep.subr.mxu0 0.0
    %v2126 = vand.u32 %v1987, 4294901760
    %v2127 = vsub.f32 %v1987, %v2126
    %v2128 = vand.u32 %v2127, 4294901760
    %v2129 = vsub.f32 %v2127, %v2128
    %v2130 = vand.u32 %v2129, 4294901760
    %2131 = vmatpush1.msra.mxu0 %v2130
    %2132 = vmatprep.subr.mxu0 0.0
    %v2133 = vand.u32 %v1986, 4294901760
    %v2134 = vsub.f32 %v1986, %v2133
    %v2135 = vand.u32 %v2134, 4294901760
    %v2136 = vsub.f32 %v2134, %v2135
    %v2137 = vand.u32 %v2136, 4294901760
    %2138 = vmatpush1.msra.mxu0 %v2137
    %2139 = vmatprep.subr.mxu0 0.0
    %v2140 = vand.u32 %v1985, 4294901760
    %v2141 = vsub.f32 %v1985, %v2140
    %v2142 = vand.u32 %v2141, 4294901760
    %v2143 = vsub.f32 %v2141, %v2142
    %v2144 = vand.u32 %v2143, 4294901760
    %2145 = vmatpush1.msra.mxu0 %v2144
    %2146 = vmatprep.subr.mxu0 0.0
    %v2147 = vand.u32 %v1984, 4294901760
    %v2148 = vsub.f32 %v1984, %v2147
    %v2149 = vand.u32 %v2148, 4294901760
    %v2150 = vsub.f32 %v2148, %v2149
    %v2151 = vand.u32 %v2150, 4294901760
    %2152 = vmatpush1.msra.mxu0 %v2151
    %2153 = vmatprep.subr.mxu0 0.0
    %v2154 = vand.u32 %v1983, 4294901760
    %v2155 = vsub.f32 %v1983, %v2154
    %v2156 = vand.u32 %v2155, 4294901760
    %v2157 = vsub.f32 %v2155, %v2156
    %v2158 = vand.u32 %v2157, 4294901760
    %2159 = vmatpush1.msra.mxu0 %v2158
    %2160 = vmatprep.subr.mxu0 0.0
    %v2161 = vand.u32 %v1982, 4294901760
    %v2162 = vsub.f32 %v1982, %v2161
    %v2163 = vand.u32 %v2162, 4294901760
    %v2164 = vsub.f32 %v2162, %v2163
    %v2165 = vand.u32 %v2164, 4294901760
    %2166 = vmatpush1.msra.mxu0 %v2165
    %2167 = vmatprep.subr.mxu0 0.0
    %v2168 = vand.u32 %v1981, 4294901760
    %v2169 = vsub.f32 %v1981, %v2168
    %v2170 = vand.u32 %v2169, 4294901760
    %v2171 = vsub.f32 %v2169, %v2170
    %v2172 = vand.u32 %v2171, 4294901760
    %2173 = vmatpush1.msra.mxu0 %v2172
    %2174 = vmatprep.subr.mxu0 0.0
    %v2175 = vand.u32 %v1980, 4294901760
    %v2176 = vsub.f32 %v1980, %v2175
    %v2177 = vand.u32 %v2176, 4294901760
    %v2178 = vsub.f32 %v2176, %v2177
    %v2179 = vand.u32 %v2178, 4294901760
    %2180 = vmatpush1.msra.mxu0 %v2179
    %2181 = vmatprep.subr.mxu0 0.0
    %v2182 = vand.u32 %v1979, 4294901760
    %v2183 = vsub.f32 %v1979, %v2182
    %v2184 = vand.u32 %v2183, 4294901760
    %v2185 = vsub.f32 %v2183, %v2184
    %v2186 = vand.u32 %v2185, 4294901760
    %2187 = vmatpush1.msra.mxu0 %v2186
    %2188 = vmatprep.subr.mxu0 0.0
    %v2189 = vand.u32 %v1978, 4294901760
    %v2190 = vsub.f32 %v1978, %v2189
    %v2191 = vand.u32 %v2190, 4294901760
    %v2192 = vsub.f32 %v2190, %v2191
    %v2193 = vand.u32 %v2192, 4294901760
    %2194 = vmatpush1.msra.mxu0 %v2193
    %2195 = vmatprep.subr.mxu0 0.0
    %v2196 = vand.u32 %v1977, 4294901760
    %v2197 = vsub.f32 %v1977, %v2196
    %v2198 = vand.u32 %v2197, 4294901760
    %v2199 = vsub.f32 %v2197, %v2198
    %v2200 = vand.u32 %v2199, 4294901760
    %2201 = vmatpush1.msra.mxu0 %v2200
    %2202 = vmatprep.subr.mxu0 0.0
    %v2203 = vand.u32 %v1976, 4294901760
    %v2204 = vsub.f32 %v1976, %v2203
    %v2205 = vand.u32 %v2204, 4294901760
    %v2206 = vsub.f32 %v2204, %v2205
    %v2207 = vand.u32 %v2206, 4294901760
    %2208 = vmatpush1.msra.mxu0 %v2207
    %2209 = vmatprep.subr.mxu0 0.0
    %v2210 = vand.u32 %v1975, 4294901760
    %v2211 = vsub.f32 %v1975, %v2210
    %v2212 = vand.u32 %v2211, 4294901760
    %v2213 = vsub.f32 %v2211, %v2212
    %v2214 = vand.u32 %v2213, 4294901760
    %2215 = vmatpush1.msra.mxu0 %v2214
    %2216 = vmatprep.subr.mxu0 0.0
    %2217 = vmatpush2.msra.mxu0 0.0
    %2218 = vmatprep.subr.mxu0 0.0
    %2219 = vmatpush2.msra.mxu0 0.0
    %2220 = vmatprep.subr.mxu0 0.0
    %2221 = vmatpush2.msra.mxu0 0.0
    %2222 = vmatprep.subr.mxu0 0.0
    %2223 = vmatpush2.msra.mxu0 0.0
    %2224 = vmatprep.subr.mxu0 0.0
    %2225 = vmatpush2.msra.mxu0 0.0
    %2226 = vmatprep.subr.mxu0 0.0
    %2227 = vmatpush2.msra.mxu0 0.0
    %2228 = vmatprep.subr.mxu0 0.0
    %2229 = vmatpush2.msra.mxu0 0.0
    %2230 = vmatprep.subr.mxu0 0.0
    %2231 = vmatpush2.msra.mxu0 0.0
    %2232 = vmatprep.subr.mxu0 0.0
    %2233 = vmatpush2.msra.mxu0 0.0
    %2234 = vmatprep.subr.mxu0 0.0
    %2235 = vmatpush2.msra.mxu0 0.0
    %2236 = vmatprep.subr.mxu0 0.0
    %2237 = vmatpush2.msra.mxu0 0.0
    %2238 = vmatprep.subr.mxu0 0.0
    %2239 = vmatpush2.msra.mxu0 0.0
    %2240 = vmatprep.subr.mxu0 0.0
    %2241 = vmatpush2.msra.mxu0 0.0
    %2242 = vmatprep.subr.mxu0 0.0
    %2243 = vmatpush2.msra.mxu0 0.0
    %2244 = vmatprep.subr.mxu0 0.0
    %2245 = vmatpush2.msra.mxu0 0.0
    %2246 = vmatprep.subr.mxu0 0.0
    %2247 = vmatpush2.msra.mxu0 0.0
    %2248 = vmatprep.mubr.f32.mxu0 0.0
    %v2249 = vand.u32 %v1974, 4294901760
    %2250 = vmatmul.mubr.f32.gmra.mxu0 %v2249
    %v2251 = vpop.f32.mrf.mxu0
    %v2252 = vadd.f32 %v2101, %v2251
    %v2253 = vpop.f32.mrf.mxu0
    %2254 = vdwg.mxu0
    %2255 = vmatprep.subr.mxu0 0.0
    %v2256 = vand.u32 %v1990, 4294901760
    %v2257 = vsub.f32 %v1990, %v2256
    %2258 = vmatpush1.msra.mxu0 %v2257
    %2259 = vmatprep.subr.mxu0 0.0
    %v2260 = vand.u32 %v1989, 4294901760
    %v2261 = vsub.f32 %v1989, %v2260
    %2262 = vmatpush1.msra.mxu0 %v2261
    %2263 = vmatprep.subr.mxu0 0.0
    %v2264 = vand.u32 %v1988, 4294901760
    %v2265 = vsub.f32 %v1988, %v2264
    %2266 = vmatpush1.msra.mxu0 %v2265
    %2267 = vmatprep.subr.mxu0 0.0
    %v2268 = vand.u32 %v1987, 4294901760
    %v2269 = vsub.f32 %v1987, %v2268
    %2270 = vmatpush1.msra.mxu0 %v2269
    %2271 = vmatprep.subr.mxu0 0.0
    %v2272 = vand.u32 %v1986, 4294901760
    %v2273 = vsub.f32 %v1986, %v2272
    %2274 = vmatpush1.msra.mxu0 %v2273
    %2275 = vmatprep.subr.mxu0 0.0
    %v2276 = vand.u32 %v1985, 4294901760
    %v2277 = vsub.f32 %v1985, %v2276
    %2278 = vmatpush1.msra.mxu0 %v2277
    %2279 = vmatprep.subr.mxu0 0.0
    %v2280 = vand.u32 %v1984, 4294901760
    %v2281 = vsub.f32 %v1984, %v2280
    %2282 = vmatpush1.msra.mxu0 %v2281
    %2283 = vmatprep.subr.mxu0 0.0
    %v2284 = vand.u32 %v1983, 4294901760
    %v2285 = vsub.f32 %v1983, %v2284
    %2286 = vmatpush1.msra.mxu0 %v2285
    %2287 = vmatprep.subr.mxu0 0.0
    %v2288 = vand.u32 %v1982, 4294901760
    %v2289 = vsub.f32 %v1982, %v2288
    %2290 = vmatpush1.msra.mxu0 %v2289
    %2291 = vmatprep.subr.mxu0 0.0
    %v2292 = vand.u32 %v1981, 4294901760
    %v2293 = vsub.f32 %v1981, %v2292
    %2294 = vmatpush1.msra.mxu0 %v2293
    %2295 = vmatprep.subr.mxu0 0.0
    %v2296 = vand.u32 %v1980, 4294901760
    %v2297 = vsub.f32 %v1980, %v2296
    %2298 = vmatpush1.msra.mxu0 %v2297
    %2299 = vmatprep.subr.mxu0 0.0
    %v2300 = vand.u32 %v1979, 4294901760
    %v2301 = vsub.f32 %v1979, %v2300
    %2302 = vmatpush1.msra.mxu0 %v2301
    %2303 = vmatprep.subr.mxu0 0.0
    %v2304 = vand.u32 %v1978, 4294901760
    %v2305 = vsub.f32 %v1978, %v2304
    %2306 = vmatpush1.msra.mxu0 %v2305
    %2307 = vmatprep.subr.mxu0 0.0
    %v2308 = vand.u32 %v1977, 4294901760
    %v2309 = vsub.f32 %v1977, %v2308
    %2310 = vmatpush1.msra.mxu0 %v2309
    %2311 = vmatprep.subr.mxu0 0.0
    %v2312 = vand.u32 %v1976, 4294901760
    %v2313 = vsub.f32 %v1976, %v2312
    %2314 = vmatpush1.msra.mxu0 %v2313
    %2315 = vmatprep.subr.mxu0 0.0
    %v2316 = vand.u32 %v1975, 4294901760
    %v2317 = vsub.f32 %v1975, %v2316
    %2318 = vmatpush1.msra.mxu0 %v2317
    %2319 = vmatprep.subr.mxu0 0.0
    %2320 = vmatpush2.msra.mxu0 0.0
    %2321 = vmatprep.subr.mxu0 0.0
    %2322 = vmatpush2.msra.mxu0 0.0
    %2323 = vmatprep.subr.mxu0 0.0
    %2324 = vmatpush2.msra.mxu0 0.0
    %2325 = vmatprep.subr.mxu0 0.0
    %2326 = vmatpush2.msra.mxu0 0.0
    %2327 = vmatprep.subr.mxu0 0.0
    %2328 = vmatpush2.msra.mxu0 0.0
    %2329 = vmatprep.subr.mxu0 0.0
    %2330 = vmatpush2.msra.mxu0 0.0
    %2331 = vmatprep.subr.mxu0 0.0
    %2332 = vmatpush2.msra.mxu0 0.0
    %2333 = vmatprep.subr.mxu0 0.0
    %2334 = vmatpush2.msra.mxu0 0.0
    %2335 = vmatprep.subr.mxu0 0.0
    %2336 = vmatpush2.msra.mxu0 0.0
    %2337 = vmatprep.subr.mxu0 0.0
    %2338 = vmatpush2.msra.mxu0 0.0
    %2339 = vmatprep.subr.mxu0 0.0
    %2340 = vmatpush2.msra.mxu0 0.0
    %2341 = vmatprep.subr.mxu0 0.0
    %2342 = vmatpush2.msra.mxu0 0.0
    %2343 = vmatprep.subr.mxu0 0.0
    %2344 = vmatpush2.msra.mxu0 0.0
    %2345 = vmatprep.subr.mxu0 0.0
    %2346 = vmatpush2.msra.mxu0 0.0
    %2347 = vmatprep.subr.mxu0 0.0
    %2348 = vmatpush2.msra.mxu0 0.0
    %2349 = vmatprep.subr.mxu0 0.0
    %2350 = vmatpush2.msra.mxu0 0.0
    %2351 = vmatprep.mubr.f32.mxu0 0.0
    %v2352 = vand.u32 %v1974, 4294901760
    %v2353 = vsub.f32 %v1974, %v2352
    %2354 = vmatmul.mubr.f32.gmra.mxu0 %v2353
    %v2355 = vpop.f32.mrf.mxu0
    %v2356 = vadd.f32 %v2252, %v2355
    %v2357 = vpop.f32.mrf.mxu0
    %2358 = vdwg.mxu0
    %2359 = vmatprep.subr.mxu0 0.0
    %v2360 = vand.u32 %v1990, 4294901760
    %2361 = vmatpush1.msra.mxu0 %v2360
    %2362 = vmatprep.subr.mxu0 0.0
    %v2363 = vand.u32 %v1989, 4294901760
    %2364 = vmatpush1.msra.mxu0 %v2363
    %2365 = vmatprep.subr.mxu0 0.0
    %v2366 = vand.u32 %v1988, 4294901760
    %2367 = vmatpush1.msra.mxu0 %v2366
    %2368 = vmatprep.subr.mxu0 0.0
    %v2369 = vand.u32 %v1987, 4294901760
    %2370 = vmatpush1.msra.mxu0 %v2369
    %2371 = vmatprep.subr.mxu0 0.0
    %v2372 = vand.u32 %v1986, 4294901760
    %2373 = vmatpush1.msra.mxu0 %v2372
    %2374 = vmatprep.subr.mxu0 0.0
    %v2375 = vand.u32 %v1985, 4294901760
    %2376 = vmatpush1.msra.mxu0 %v2375
    %2377 = vmatprep.subr.mxu0 0.0
    %v2378 = vand.u32 %v1984, 4294901760
    %2379 = vmatpush1.msra.mxu0 %v2378
    %2380 = vmatprep.subr.mxu0 0.0
    %v2381 = vand.u32 %v1983, 4294901760
    %2382 = vmatpush1.msra.mxu0 %v2381
    %2383 = vmatprep.subr.mxu0 0.0
    %v2384 = vand.u32 %v1982, 4294901760
    %2385 = vmatpush1.msra.mxu0 %v2384
    %2386 = vmatprep.subr.mxu0 0.0
    %v2387 = vand.u32 %v1981, 4294901760
    %2388 = vmatpush1.msra.mxu0 %v2387
    %2389 = vmatprep.subr.mxu0 0.0
    %v2390 = vand.u32 %v1980, 4294901760
    %2391 = vmatpush1.msra.mxu0 %v2390
    %2392 = vmatprep.subr.mxu0 0.0
    %v2393 = vand.u32 %v1979, 4294901760
    %2394 = vmatpush1.msra.mxu0 %v2393
    %2395 = vmatprep.subr.mxu0 0.0
    %v2396 = vand.u32 %v1978, 4294901760
    %2397 = vmatpush1.msra.mxu0 %v2396
    %2398 = vmatprep.subr.mxu0 0.0
    %v2399 = vand.u32 %v1977, 4294901760
    %2400 = vmatpush1.msra.mxu0 %v2399
    %2401 = vmatprep.subr.mxu0 0.0
    %v2402 = vand.u32 %v1976, 4294901760
    %2403 = vmatpush1.msra.mxu0 %v2402
    %2404 = vmatprep.subr.mxu0 0.0
    %v2405 = vand.u32 %v1975, 4294901760
    %2406 = vmatpush1.msra.mxu0 %v2405
    %2407 = vmatprep.subr.mxu0 0.0
    %2408 = vmatpush2.msra.mxu0 0.0
    %2409 = vmatprep.subr.mxu0 0.0
    %2410 = vmatpush2.msra.mxu0 0.0
    %2411 = vmatprep.subr.mxu0 0.0
    %2412 = vmatpush2.msra.mxu0 0.0
    %2413 = vmatprep.subr.mxu0 0.0
    %2414 = vmatpush2.msra.mxu0 0.0
    %2415 = vmatprep.subr.mxu0 0.0
    %2416 = vmatpush2.msra.mxu0 0.0
    %2417 = vmatprep.subr.mxu0 0.0
    %2418 = vmatpush2.msra.mxu0 0.0
    %2419 = vmatprep.subr.mxu0 0.0
    %2420 = vmatpush2.msra.mxu0 0.0
    %2421 = vmatprep.subr.mxu0 0.0
    %2422 = vmatpush2.msra.mxu0 0.0
    %2423 = vmatprep.subr.mxu0 0.0
    %2424 = vmatpush2.msra.mxu0 0.0
    %2425 = vmatprep.subr.mxu0 0.0
    %2426 = vmatpush2.msra.mxu0 0.0
    %2427 = vmatprep.subr.mxu0 0.0
    %2428 = vmatpush2.msra.mxu0 0.0
    %2429 = vmatprep.subr.mxu0 0.0
    %2430 = vmatpush2.msra.mxu0 0.0
    %2431 = vmatprep.subr.mxu0 0.0
    %2432 = vmatpush2.msra.mxu0 0.0
    %2433 = vmatprep.subr.mxu0 0.0
    %2434 = vmatpush2.msra.mxu0 0.0
    %2435 = vmatprep.subr.mxu0 0.0
    %2436 = vmatpush2.msra.mxu0 0.0
    %2437 = vmatprep.subr.mxu0 0.0
    %2438 = vmatpush2.msra.mxu0 0.0
    %2439 = vmatprep.mubr.f32.mxu0 0.0
    %v2440 = vand.u32 %v1974, 4294901760
    %v2441 = vsub.f32 %v1974, %v2440
    %v2442 = vand.u32 %v2441, 4294901760
    %2443 = vmatmul.mubr.f32.gmra.mxu0 %v2442
    %v2444 = vpop.f32.mrf.mxu0
    %v2445 = vadd.f32 %v2356, %v2444
    %v2446 = vpop.f32.mrf.mxu0
    %2447 = vdwg.mxu0
    %2448 = vmatprep.subr.mxu0 0.0
    %v2449 = vand.u32 %v1990, 4294901760
    %v2450 = vsub.f32 %v1990, %v2449
    %v2451 = vand.u32 %v2450, 4294901760
    %2452 = vmatpush1.msra.mxu0 %v2451
    %2453 = vmatprep.subr.mxu0 0.0
    %v2454 = vand.u32 %v1989, 4294901760
    %v2455 = vsub.f32 %v1989, %v2454
    %v2456 = vand.u32 %v2455, 4294901760
    %2457 = vmatpush1.msra.mxu0 %v2456
    %2458 = vmatprep.subr.mxu0 0.0
    %v2459 = vand.u32 %v1988, 4294901760
    %v2460 = vsub.f32 %v1988, %v2459
    %v2461 = vand.u32 %v2460, 4294901760
    %2462 = vmatpush1.msra.mxu0 %v2461
    %2463 = vmatprep.subr.mxu0 0.0
    %v2464 = vand.u32 %v1987, 4294901760
    %v2465 = vsub.f32 %v1987, %v2464
    %v2466 = vand.u32 %v2465, 4294901760
    %2467 = vmatpush1.msra.mxu0 %v2466
    %2468 = vmatprep.subr.mxu0 0.0
    %v2469 = vand.u32 %v1986, 4294901760
    %v2470 = vsub.f32 %v1986, %v2469
    %v2471 = vand.u32 %v2470, 4294901760
    %2472 = vmatpush1.msra.mxu0 %v2471
    %2473 = vmatprep.subr.mxu0 0.0
    %v2474 = vand.u32 %v1985, 4294901760
    %v2475 = vsub.f32 %v1985, %v2474
    %v2476 = vand.u32 %v2475, 4294901760
    %2477 = vmatpush1.msra.mxu0 %v2476
    %2478 = vmatprep.subr.mxu0 0.0
    %v2479 = vand.u32 %v1984, 4294901760
    %v2480 = vsub.f32 %v1984, %v2479
    %v2481 = vand.u32 %v2480, 4294901760
    %2482 = vmatpush1.msra.mxu0 %v2481
    %2483 = vmatprep.subr.mxu0 0.0
    %v2484 = vand.u32 %v1983, 4294901760
    %v2485 = vsub.f32 %v1983, %v2484
    %v2486 = vand.u32 %v2485, 4294901760
    %2487 = vmatpush1.msra.mxu0 %v2486
    %2488 = vmatprep.subr.mxu0 0.0
    %v2489 = vand.u32 %v1982, 4294901760
    %v2490 = vsub.f32 %v1982, %v2489
    %v2491 = vand.u32 %v2490, 4294901760
    %2492 = vmatpush1.msra.mxu0 %v2491
    %2493 = vmatprep.subr.mxu0 0.0
    %v2494 = vand.u32 %v1981, 4294901760
    %v2495 = vsub.f32 %v1981, %v2494
    %v2496 = vand.u32 %v2495, 4294901760
    %2497 = vmatpush1.msra.mxu0 %v2496
    %2498 = vmatprep.subr.mxu0 0.0
    %v2499 = vand.u32 %v1980, 4294901760
    %v2500 = vsub.f32 %v1980, %v2499
    %v2501 = vand.u32 %v2500, 4294901760
    %2502 = vmatpush1.msra.mxu0 %v2501
    %2503 = vmatprep.subr.mxu0 0.0
    %v2504 = vand.u32 %v1979, 4294901760
    %v2505 = vsub.f32 %v1979, %v2504
    %v2506 = vand.u32 %v2505, 4294901760
    %2507 = vmatpush1.msra.mxu0 %v2506
    %2508 = vmatprep.subr.mxu0 0.0
    %v2509 = vand.u32 %v1978, 4294901760
    %v2510 = vsub.f32 %v1978, %v2509
    %v2511 = vand.u32 %v2510, 4294901760
    %2512 = vmatpush1.msra.mxu0 %v2511
    %2513 = vmatprep.subr.mxu0 0.0
    %v2514 = vand.u32 %v1977, 4294901760
    %v2515 = vsub.f32 %v1977, %v2514
    %v2516 = vand.u32 %v2515, 4294901760
    %2517 = vmatpush1.msra.mxu0 %v2516
    %2518 = vmatprep.subr.mxu0 0.0
    %v2519 = vand.u32 %v1976, 4294901760
    %v2520 = vsub.f32 %v1976, %v2519
    %v2521 = vand.u32 %v2520, 4294901760
    %2522 = vmatpush1.msra.mxu0 %v2521
    %2523 = vmatprep.subr.mxu0 0.0
    %v2524 = vand.u32 %v1975, 4294901760
    %v2525 = vsub.f32 %v1975, %v2524
    %v2526 = vand.u32 %v2525, 4294901760
    %2527 = vmatpush1.msra.mxu0 %v2526
    %2528 = vmatprep.subr.mxu0 0.0
    %2529 = vmatpush2.msra.mxu0 0.0
    %2530 = vmatprep.subr.mxu0 0.0
    %2531 = vmatpush2.msra.mxu0 0.0
    %2532 = vmatprep.subr.mxu0 0.0
    %2533 = vmatpush2.msra.mxu0 0.0
    %2534 = vmatprep.subr.mxu0 0.0
    %2535 = vmatpush2.msra.mxu0 0.0
    %2536 = vmatprep.subr.mxu0 0.0
    %2537 = vmatpush2.msra.mxu0 0.0
    %2538 = vmatprep.subr.mxu0 0.0
    %2539 = vmatpush2.msra.mxu0 0.0
    %2540 = vmatprep.subr.mxu0 0.0
    %2541 = vmatpush2.msra.mxu0 0.0
    %2542 = vmatprep.subr.mxu0 0.0
    %2543 = vmatpush2.msra.mxu0 0.0
    %2544 = vmatprep.subr.mxu0 0.0
    %2545 = vmatpush2.msra.mxu0 0.0
    %2546 = vmatprep.subr.mxu0 0.0
    %2547 = vmatpush2.msra.mxu0 0.0
    %2548 = vmatprep.subr.mxu0 0.0
    %2549 = vmatpush2.msra.mxu0 0.0
    %2550 = vmatprep.subr.mxu0 0.0
    %2551 = vmatpush2.msra.mxu0 0.0
    %2552 = vmatprep.subr.mxu0 0.0
    %2553 = vmatpush2.msra.mxu0 0.0
    %2554 = vmatprep.subr.mxu0 0.0
    %2555 = vmatpush2.msra.mxu0 0.0
    %2556 = vmatprep.subr.mxu0 0.0
    %2557 = vmatpush2.msra.mxu0 0.0
    %2558 = vmatprep.subr.mxu0 0.0
    %2559 = vmatpush2.msra.mxu0 0.0
    %2560 = vmatprep.mubr.f32.mxu0 0.0
    %v2561 = vand.u32 %v1974, 4294901760
    %2562 = vmatmul.mubr.f32.gmra.mxu0 %v2561
    %v2563 = vpop.f32.mrf.mxu0
    %v2564 = vadd.f32 %v2445, %v2563
    %v2565 = vpop.f32.mrf.mxu0
    %2566 = vdwg.mxu0
    %2567 = vmatprep.subr.mxu0 0.0
    %v2568 = vand.u32 %v1990, 4294901760
    %2569 = vmatpush1.msra.mxu0 %v2568
    %2570 = vmatprep.subr.mxu0 0.0
    %v2571 = vand.u32 %v1989, 4294901760
    %2572 = vmatpush1.msra.mxu0 %v2571
    %2573 = vmatprep.subr.mxu0 0.0
    %v2574 = vand.u32 %v1988, 4294901760
    %2575 = vmatpush1.msra.mxu0 %v2574
    %2576 = vmatprep.subr.mxu0 0.0
    %v2577 = vand.u32 %v1987, 4294901760
    %2578 = vmatpush1.msra.mxu0 %v2577
    %2579 = vmatprep.subr.mxu0 0.0
    %v2580 = vand.u32 %v1986, 4294901760
    %2581 = vmatpush1.msra.mxu0 %v2580
    %2582 = vmatprep.subr.mxu0 0.0
    %v2583 = vand.u32 %v1985, 4294901760
    %2584 = vmatpush1.msra.mxu0 %v2583
    %2585 = vmatprep.subr.mxu0 0.0
    %v2586 = vand.u32 %v1984, 4294901760
    %2587 = vmatpush1.msra.mxu0 %v2586
    %2588 = vmatprep.subr.mxu0 0.0
    %v2589 = vand.u32 %v1983, 4294901760
    %2590 = vmatpush1.msra.mxu0 %v2589
    %2591 = vmatprep.subr.mxu0 0.0
    %v2592 = vand.u32 %v1982, 4294901760
    %2593 = vmatpush1.msra.mxu0 %v2592
    %2594 = vmatprep.subr.mxu0 0.0
    %v2595 = vand.u32 %v1981, 4294901760
    %2596 = vmatpush1.msra.mxu0 %v2595
    %2597 = vmatprep.subr.mxu0 0.0
    %v2598 = vand.u32 %v1980, 4294901760
    %2599 = vmatpush1.msra.mxu0 %v2598
    %2600 = vmatprep.subr.mxu0 0.0
    %v2601 = vand.u32 %v1979, 4294901760
    %2602 = vmatpush1.msra.mxu0 %v2601
    %2603 = vmatprep.subr.mxu0 0.0
    %v2604 = vand.u32 %v1978, 4294901760
    %2605 = vmatpush1.msra.mxu0 %v2604
    %2606 = vmatprep.subr.mxu0 0.0
    %v2607 = vand.u32 %v1977, 4294901760
    %2608 = vmatpush1.msra.mxu0 %v2607
    %2609 = vmatprep.subr.mxu0 0.0
    %v2610 = vand.u32 %v1976, 4294901760
    %2611 = vmatpush1.msra.mxu0 %v2610
    %2612 = vmatprep.subr.mxu0 0.0
    %v2613 = vand.u32 %v1975, 4294901760
    %2614 = vmatpush1.msra.mxu0 %v2613
    %2615 = vmatprep.subr.mxu0 0.0
    %2616 = vmatpush2.msra.mxu0 0.0
    %2617 = vmatprep.subr.mxu0 0.0
    %2618 = vmatpush2.msra.mxu0 0.0
    %2619 = vmatprep.subr.mxu0 0.0
    %2620 = vmatpush2.msra.mxu0 0.0
    %2621 = vmatprep.subr.mxu0 0.0
    %2622 = vmatpush2.msra.mxu0 0.0
    %2623 = vmatprep.subr.mxu0 0.0
    %2624 = vmatpush2.msra.mxu0 0.0
    %2625 = vmatprep.subr.mxu0 0.0
    %2626 = vmatpush2.msra.mxu0 0.0
    %2627 = vmatprep.subr.mxu0 0.0
    %2628 = vmatpush2.msra.mxu0 0.0
    %2629 = vmatprep.subr.mxu0 0.0
    %2630 = vmatpush2.msra.mxu0 0.0
    %2631 = vmatprep.subr.mxu0 0.0
    %2632 = vmatpush2.msra.mxu0 0.0
    %2633 = vmatprep.subr.mxu0 0.0
    %2634 = vmatpush2.msra.mxu0 0.0
    %2635 = vmatprep.subr.mxu0 0.0
    %2636 = vmatpush2.msra.mxu0 0.0
    %2637 = vmatprep.subr.mxu0 0.0
    %2638 = vmatpush2.msra.mxu0 0.0
    %2639 = vmatprep.subr.mxu0 0.0
    %2640 = vmatpush2.msra.mxu0 0.0
    %2641 = vmatprep.subr.mxu0 0.0
    %2642 = vmatpush2.msra.mxu0 0.0
    %2643 = vmatprep.subr.mxu0 0.0
    %2644 = vmatpush2.msra.mxu0 0.0
    %2645 = vmatprep.subr.mxu0 0.0
    %2646 = vmatpush2.msra.mxu0 0.0
    %2647 = vmatprep.mubr.f32.mxu0 0.0
    %v2648 = vand.u32 %v1974, 4294901760
    %2649 = vmatmul.mubr.f32.gmra.mxu0 %v2648
    %v2650 = vpop.f32.mrf.mxu0
    %v2651 = vadd.f32 %v2564, %v2650
    %v2652 = vpop.f32.mrf.mxu0
    %2653 = vdwg.mxu0
    %v2654 = vmax.f32 %v2651, 0.0
    %2655 = vmatprep.subr.mxu0 0.0
    %v2656 = vand.u32 %v2006, 4294901760
    %2657 = vmatpush1.msra.mxu0 %v2656
    %2658 = vmatprep.subr.mxu0 0.0
    %v2659 = vand.u32 %v2005, 4294901760
    %2660 = vmatpush1.msra.mxu0 %v2659
    %2661 = vmatprep.subr.mxu0 0.0
    %v2662 = vand.u32 %v2004, 4294901760
    %2663 = vmatpush1.msra.mxu0 %v2662
    %2664 = vmatprep.subr.mxu0 0.0
    %v2665 = vand.u32 %v2003, 4294901760
    %2666 = vmatpush1.msra.mxu0 %v2665
    %2667 = vmatprep.subr.mxu0 0.0
    %v2668 = vand.u32 %v2002, 4294901760
    %2669 = vmatpush1.msra.mxu0 %v2668
    %2670 = vmatprep.subr.mxu0 0.0
    %v2671 = vand.u32 %v2001, 4294901760
    %2672 = vmatpush1.msra.mxu0 %v2671
    %2673 = vmatprep.subr.mxu0 0.0
    %v2674 = vand.u32 %v2000, 4294901760
    %2675 = vmatpush1.msra.mxu0 %v2674
    %2676 = vmatprep.subr.mxu0 0.0
    %v2677 = vand.u32 %v1999, 4294901760
    %2678 = vmatpush1.msra.mxu0 %v2677
    %2679 = vmatprep.subr.mxu0 0.0
    %v2680 = vand.u32 %v1998, 4294901760
    %2681 = vmatpush1.msra.mxu0 %v2680
    %2682 = vmatprep.subr.mxu0 0.0
    %v2683 = vand.u32 %v1997, 4294901760
    %2684 = vmatpush1.msra.mxu0 %v2683
    %2685 = vmatprep.subr.mxu0 0.0
    %v2686 = vand.u32 %v1996, 4294901760
    %2687 = vmatpush1.msra.mxu0 %v2686
    %2688 = vmatprep.subr.mxu0 0.0
    %v2689 = vand.u32 %v1995, 4294901760
    %2690 = vmatpush1.msra.mxu0 %v2689
    %2691 = vmatprep.subr.mxu0 0.0
    %v2692 = vand.u32 %v1994, 4294901760
    %2693 = vmatpush1.msra.mxu0 %v2692
    %2694 = vmatprep.subr.mxu0 0.0
    %v2695 = vand.u32 %v1993, 4294901760
    %2696 = vmatpush1.msra.mxu0 %v2695
    %2697 = vmatprep.subr.mxu0 0.0
    %v2698 = vand.u32 %v1992, 4294901760
    %2699 = vmatpush1.msra.mxu0 %v2698
    %2700 = vmatprep.subr.mxu0 0.0
    %v2701 = vand.u32 %v1991, 4294901760
    %2702 = vmatpush1.msra.mxu0 %v2701
    %2703 = vmatprep.subr.mxu0 0.0
    %2704 = vmatpush2.msra.mxu0 0.0
    %2705 = vmatprep.subr.mxu0 0.0
    %2706 = vmatpush2.msra.mxu0 0.0
    %2707 = vmatprep.subr.mxu0 0.0
    %2708 = vmatpush2.msra.mxu0 0.0
    %2709 = vmatprep.subr.mxu0 0.0
    %2710 = vmatpush2.msra.mxu0 0.0
    %2711 = vmatprep.subr.mxu0 0.0
    %2712 = vmatpush2.msra.mxu0 0.0
    %2713 = vmatprep.subr.mxu0 0.0
    %2714 = vmatpush2.msra.mxu0 0.0
    %2715 = vmatprep.subr.mxu0 0.0
    %2716 = vmatpush2.msra.mxu0 0.0
    %2717 = vmatprep.subr.mxu0 0.0
    %2718 = vmatpush2.msra.mxu0 0.0
    %2719 = vmatprep.subr.mxu0 0.0
    %2720 = vmatpush2.msra.mxu0 0.0
    %2721 = vmatprep.subr.mxu0 0.0
    %2722 = vmatpush2.msra.mxu0 0.0
    %2723 = vmatprep.subr.mxu0 0.0
    %2724 = vmatpush2.msra.mxu0 0.0
    %2725 = vmatprep.subr.mxu0 0.0
    %2726 = vmatpush2.msra.mxu0 0.0
    %2727 = vmatprep.subr.mxu0 0.0
    %2728 = vmatpush2.msra.mxu0 0.0
    %2729 = vmatprep.subr.mxu0 0.0
    %2730 = vmatpush2.msra.mxu0 0.0
    %2731 = vmatprep.subr.mxu0 0.0
    %2732 = vmatpush2.msra.mxu0 0.0
    %2733 = vmatprep.subr.mxu0 0.0
    %2734 = vmatpush2.msra.mxu0 0.0
    %2735 = vmatprep.mubr.f32.mxu0 0.0
    %v2736 = vand.u32 %v2654, 4294901760
    %v2737 = vsub.f32 %v2654, %v2736
    %v2738 = vand.u32 %v2737, 4294901760
    %v2739 = vsub.f32 %v2737, %v2738
    %v2740 = vand.u32 %v2739, 4294901760
    %2741 = vmatmul.mubr.f32.gmra.mxu0 %v2740
    %v2742 = vpop.f32.mrf.mxu0
    %v2743 = vadd.f32 0.0, %v2742
    %v2744 = vpop.f32.mrf.mxu0
    %2745 = vdwg.mxu0
    %2746 = vmatprep.subr.mxu0 0.0
    %v2747 = vand.u32 %v2006, 4294901760
    %v2748 = vsub.f32 %v2006, %v2747
    %v2749 = vand.u32 %v2748, 4294901760
    %v2750 = vsub.f32 %v2748, %v2749
    %v2751 = vand.u32 %v2750, 4294901760
    %2752 = vmatpush1.msra.mxu0 %v2751
    %2753 = vmatprep.subr.mxu0 0.0
    %v2754 = vand.u32 %v2005, 4294901760
    %v2755 = vsub.f32 %v2005, %v2754
    %v2756 = vand.u32 %v2755, 4294901760
    %v2757 = vsub.f32 %v2755, %v2756
    %v2758 = vand.u32 %v2757, 4294901760
    %2759 = vmatpush1.msra.mxu0 %v2758
    %2760 = vmatprep.subr.mxu0 0.0
    %v2761 = vand.u32 %v2004, 4294901760
    %v2762 = vsub.f32 %v2004, %v2761
    %v2763 = vand.u32 %v2762, 4294901760
    %v2764 = vsub.f32 %v2762, %v2763
    %v2765 = vand.u32 %v2764, 4294901760
    %2766 = vmatpush1.msra.mxu0 %v2765
    %2767 = vmatprep.subr.mxu0 0.0
    %v2768 = vand.u32 %v2003, 4294901760
    %v2769 = vsub.f32 %v2003, %v2768
    %v2770 = vand.u32 %v2769, 4294901760
    %v2771 = vsub.f32 %v2769, %v2770
    %v2772 = vand.u32 %v2771, 4294901760
    %2773 = vmatpush1.msra.mxu0 %v2772
    %2774 = vmatprep.subr.mxu0 0.0
    %v2775 = vand.u32 %v2002, 4294901760
    %v2776 = vsub.f32 %v2002, %v2775
    %v2777 = vand.u32 %v2776, 4294901760
    %v2778 = vsub.f32 %v2776, %v2777
    %v2779 = vand.u32 %v2778, 4294901760
    %2780 = vmatpush1.msra.mxu0 %v2779
    %2781 = vmatprep.subr.mxu0 0.0
    %v2782 = vand.u32 %v2001, 4294901760
    %v2783 = vsub.f32 %v2001, %v2782
    %v2784 = vand.u32 %v2783, 4294901760
    %v2785 = vsub.f32 %v2783, %v2784
    %v2786 = vand.u32 %v2785, 4294901760
    %2787 = vmatpush1.msra.mxu0 %v2786
    %2788 = vmatprep.subr.mxu0 0.0
    %v2789 = vand.u32 %v2000, 4294901760
    %v2790 = vsub.f32 %v2000, %v2789
    %v2791 = vand.u32 %v2790, 4294901760
    %v2792 = vsub.f32 %v2790, %v2791
    %v2793 = vand.u32 %v2792, 4294901760
    %2794 = vmatpush1.msra.mxu0 %v2793
    %2795 = vmatprep.subr.mxu0 0.0
    %v2796 = vand.u32 %v1999, 4294901760
    %v2797 = vsub.f32 %v1999, %v2796
    %v2798 = vand.u32 %v2797, 4294901760
    %v2799 = vsub.f32 %v2797, %v2798
    %v2800 = vand.u32 %v2799, 4294901760
    %2801 = vmatpush1.msra.mxu0 %v2800
    %2802 = vmatprep.subr.mxu0 0.0
    %v2803 = vand.u32 %v1998, 4294901760
    %v2804 = vsub.f32 %v1998, %v2803
    %v2805 = vand.u32 %v2804, 4294901760
    %v2806 = vsub.f32 %v2804, %v2805
    %v2807 = vand.u32 %v2806, 4294901760
    %2808 = vmatpush1.msra.mxu0 %v2807
    %2809 = vmatprep.subr.mxu0 0.0
    %v2810 = vand.u32 %v1997, 4294901760
    %v2811 = vsub.f32 %v1997, %v2810
    %v2812 = vand.u32 %v2811, 4294901760
    %v2813 = vsub.f32 %v2811, %v2812
    %v2814 = vand.u32 %v2813, 4294901760
    %2815 = vmatpush1.msra.mxu0 %v2814
    %2816 = vmatprep.subr.mxu0 0.0
    %v2817 = vand.u32 %v1996, 4294901760
    %v2818 = vsub.f32 %v1996, %v2817
    %v2819 = vand.u32 %v2818, 4294901760
    %v2820 = vsub.f32 %v2818, %v2819
    %v2821 = vand.u32 %v2820, 4294901760
    %2822 = vmatpush1.msra.mxu0 %v2821
    %2823 = vmatprep.subr.mxu0 0.0
    %v2824 = vand.u32 %v1995, 4294901760
    %v2825 = vsub.f32 %v1995, %v2824
    %v2826 = vand.u32 %v2825, 4294901760
    %v2827 = vsub.f32 %v2825, %v2826
    %v2828 = vand.u32 %v2827, 4294901760
    %2829 = vmatpush1.msra.mxu0 %v2828
    %2830 = vmatprep.subr.mxu0 0.0
    %v2831 = vand.u32 %v1994, 4294901760
    %v2832 = vsub.f32 %v1994, %v2831
    %v2833 = vand.u32 %v2832, 4294901760
    %v2834 = vsub.f32 %v2832, %v2833
    %v2835 = vand.u32 %v2834, 4294901760
    %2836 = vmatpush1.msra.mxu0 %v2835
    %2837 = vmatprep.subr.mxu0 0.0
    %v2838 = vand.u32 %v1993, 4294901760
    %v2839 = vsub.f32 %v1993, %v2838
    %v2840 = vand.u32 %v2839, 4294901760
    %v2841 = vsub.f32 %v2839, %v2840
    %v2842 = vand.u32 %v2841, 4294901760
    %2843 = vmatpush1.msra.mxu0 %v2842
    %2844 = vmatprep.subr.mxu0 0.0
    %v2845 = vand.u32 %v1992, 4294901760
    %v2846 = vsub.f32 %v1992, %v2845
    %v2847 = vand.u32 %v2846, 4294901760
    %v2848 = vsub.f32 %v2846, %v2847
    %v2849 = vand.u32 %v2848, 4294901760
    %2850 = vmatpush1.msra.mxu0 %v2849
    %2851 = vmatprep.subr.mxu0 0.0
    %v2852 = vand.u32 %v1991, 4294901760
    %v2853 = vsub.f32 %v1991, %v2852
    %v2854 = vand.u32 %v2853, 4294901760
    %v2855 = vsub.f32 %v2853, %v2854
    %v2856 = vand.u32 %v2855, 4294901760
    %2857 = vmatpush1.msra.mxu0 %v2856
    %2858 = vmatprep.subr.mxu0 0.0
    %2859 = vmatpush2.msra.mxu0 0.0
    %2860 = vmatprep.subr.mxu0 0.0
    %2861 = vmatpush2.msra.mxu0 0.0
    %2862 = vmatprep.subr.mxu0 0.0
    %2863 = vmatpush2.msra.mxu0 0.0
    %2864 = vmatprep.subr.mxu0 0.0
    %2865 = vmatpush2.msra.mxu0 0.0
    %2866 = vmatprep.subr.mxu0 0.0
    %2867 = vmatpush2.msra.mxu0 0.0
    %2868 = vmatprep.subr.mxu0 0.0
    %2869 = vmatpush2.msra.mxu0 0.0
    %2870 = vmatprep.subr.mxu0 0.0
    %2871 = vmatpush2.msra.mxu0 0.0
    %2872 = vmatprep.subr.mxu0 0.0
    %2873 = vmatpush2.msra.mxu0 0.0
    %2874 = vmatprep.subr.mxu0 0.0
    %2875 = vmatpush2.msra.mxu0 0.0
    %2876 = vmatprep.subr.mxu0 0.0
    %2877 = vmatpush2.msra.mxu0 0.0
    %2878 = vmatprep.subr.mxu0 0.0
    %2879 = vmatpush2.msra.mxu0 0.0
    %2880 = vmatprep.subr.mxu0 0.0
    %2881 = vmatpush2.msra.mxu0 0.0
    %2882 = vmatprep.subr.mxu0 0.0
    %2883 = vmatpush2.msra.mxu0 0.0
    %2884 = vmatprep.subr.mxu0 0.0
    %2885 = vmatpush2.msra.mxu0 0.0
    %2886 = vmatprep.subr.mxu0 0.0
    %2887 = vmatpush2.msra.mxu0 0.0
    %2888 = vmatprep.subr.mxu0 0.0
    %2889 = vmatpush2.msra.mxu0 0.0
    %2890 = vmatprep.mubr.f32.mxu0 0.0
    %v2891 = vand.u32 %v2654, 4294901760
    %2892 = vmatmul.mubr.f32.gmra.mxu0 %v2891
    %v2893 = vpop.f32.mrf.mxu0
    %v2894 = vadd.f32 %v2743, %v2893
    %v2895 = vpop.f32.mrf.mxu0
    %2896 = vdwg.mxu0
    %2897 = vmatprep.subr.mxu0 0.0
    %v2898 = vand.u32 %v2006, 4294901760
    %v2899 = vsub.f32 %v2006, %v2898
    %2900 = vmatpush1.msra.mxu0 %v2899
    %2901 = vmatprep.subr.mxu0 0.0
    %v2902 = vand.u32 %v2005, 4294901760
    %v2903 = vsub.f32 %v2005, %v2902
    %2904 = vmatpush1.msra.mxu0 %v2903
    %2905 = vmatprep.subr.mxu0 0.0
    %v2906 = vand.u32 %v2004, 4294901760
    %v2907 = vsub.f32 %v2004, %v2906
    %2908 = vmatpush1.msra.mxu0 %v2907
    %2909 = vmatprep.subr.mxu0 0.0
    %v2910 = vand.u32 %v2003, 4294901760
    %v2911 = vsub.f32 %v2003, %v2910
    %2912 = vmatpush1.msra.mxu0 %v2911
    %2913 = vmatprep.subr.mxu0 0.0
    %v2914 = vand.u32 %v2002, 4294901760
    %v2915 = vsub.f32 %v2002, %v2914
    %2916 = vmatpush1.msra.mxu0 %v2915
    %2917 = vmatprep.subr.mxu0 0.0
    %v2918 = vand.u32 %v2001, 4294901760
    %v2919 = vsub.f32 %v2001, %v2918
    %2920 = vmatpush1.msra.mxu0 %v2919
    %2921 = vmatprep.subr.mxu0 0.0
    %v2922 = vand.u32 %v2000, 4294901760
    %v2923 = vsub.f32 %v2000, %v2922
    %2924 = vmatpush1.msra.mxu0 %v2923
    %2925 = vmatprep.subr.mxu0 0.0
    %v2926 = vand.u32 %v1999, 4294901760
    %v2927 = vsub.f32 %v1999, %v2926
    %2928 = vmatpush1.msra.mxu0 %v2927
    %2929 = vmatprep.subr.mxu0 0.0
    %v2930 = vand.u32 %v1998, 4294901760
    %v2931 = vsub.f32 %v1998, %v2930
    %2932 = vmatpush1.msra.mxu0 %v2931
    %2933 = vmatprep.subr.mxu0 0.0
    %v2934 = vand.u32 %v1997, 4294901760
    %v2935 = vsub.f32 %v1997, %v2934
    %2936 = vmatpush1.msra.mxu0 %v2935
    %2937 = vmatprep.subr.mxu0 0.0
    %v2938 = vand.u32 %v1996, 4294901760
    %v2939 = vsub.f32 %v1996, %v2938
    %2940 = vmatpush1.msra.mxu0 %v2939
    %2941 = vmatprep.subr.mxu0 0.0
    %v2942 = vand.u32 %v1995, 4294901760
    %v2943 = vsub.f32 %v1995, %v2942
    %2944 = vmatpush1.msra.mxu0 %v2943
    %2945 = vmatprep.subr.mxu0 0.0
    %v2946 = vand.u32 %v1994, 4294901760
    %v2947 = vsub.f32 %v1994, %v2946
    %2948 = vmatpush1.msra.mxu0 %v2947
    %2949 = vmatprep.subr.mxu0 0.0
    %v2950 = vand.u32 %v1993, 4294901760
    %v2951 = vsub.f32 %v1993, %v2950
    %2952 = vmatpush1.msra.mxu0 %v2951
    %2953 = vmatprep.subr.mxu0 0.0
    %v2954 = vand.u32 %v1992, 4294901760
    %v2955 = vsub.f32 %v1992, %v2954
    %2956 = vmatpush1.msra.mxu0 %v2955
    %2957 = vmatprep.subr.mxu0 0.0
    %v2958 = vand.u32 %v1991, 4294901760
    %v2959 = vsub.f32 %v1991, %v2958
    %2960 = vmatpush1.msra.mxu0 %v2959
    %2961 = vmatprep.subr.mxu0 0.0
    %2962 = vmatpush2.msra.mxu0 0.0
    %2963 = vmatprep.subr.mxu0 0.0
    %2964 = vmatpush2.msra.mxu0 0.0
    %2965 = vmatprep.subr.mxu0 0.0
    %2966 = vmatpush2.msra.mxu0 0.0
    %2967 = vmatprep.subr.mxu0 0.0
    %2968 = vmatpush2.msra.mxu0 0.0
    %2969 = vmatprep.subr.mxu0 0.0
    %2970 = vmatpush2.msra.mxu0 0.0
    %2971 = vmatprep.subr.mxu0 0.0
    %2972 = vmatpush2.msra.mxu0 0.0
    %2973 = vmatprep.subr.mxu0 0.0
    %2974 = vmatpush2.msra.mxu0 0.0
    %2975 = vmatprep.subr.mxu0 0.0
    %2976 = vmatpush2.msra.mxu0 0.0
    %2977 = vmatprep.subr.mxu0 0.0
    %2978 = vmatpush2.msra.mxu0 0.0
    %2979 = vmatprep.subr.mxu0 0.0
    %2980 = vmatpush2.msra.mxu0 0.0
    %2981 = vmatprep.subr.mxu0 0.0
    %2982 = vmatpush2.msra.mxu0 0.0
    %2983 = vmatprep.subr.mxu0 0.0
    %2984 = vmatpush2.msra.mxu0 0.0
    %2985 = vmatprep.subr.mxu0 0.0
    %2986 = vmatpush2.msra.mxu0 0.0
    %2987 = vmatprep.subr.mxu0 0.0
    %2988 = vmatpush2.msra.mxu0 0.0
    %2989 = vmatprep.subr.mxu0 0.0
    %2990 = vmatpush2.msra.mxu0 0.0
    %2991 = vmatprep.subr.mxu0 0.0
    %2992 = vmatpush2.msra.mxu0 0.0
    %2993 = vmatprep.mubr.f32.mxu0 0.0
    %v2994 = vand.u32 %v2654, 4294901760
    %v2995 = vsub.f32 %v2654, %v2994
    %2996 = vmatmul.mubr.f32.gmra.mxu0 %v2995
    %v2997 = vpop.f32.mrf.mxu0
    %v2998 = vadd.f32 %v2894, %v2997
    %v2999 = vpop.f32.mrf.mxu0
    %3000 = vdwg.mxu0
    %3001 = vmatprep.subr.mxu0 0.0
    %v3002 = vand.u32 %v2006, 4294901760
    %3003 = vmatpush1.msra.mxu0 %v3002
    %3004 = vmatprep.subr.mxu0 0.0
    %v3005 = vand.u32 %v2005, 4294901760
    %3006 = vmatpush1.msra.mxu0 %v3005
    %3007 = vmatprep.subr.mxu0 0.0
    %v3008 = vand.u32 %v2004, 4294901760
    %3009 = vmatpush1.msra.mxu0 %v3008
    %3010 = vmatprep.subr.mxu0 0.0
    %v3011 = vand.u32 %v2003, 4294901760
    %3012 = vmatpush1.msra.mxu0 %v3011
    %3013 = vmatprep.subr.mxu0 0.0
    %v3014 = vand.u32 %v2002, 4294901760
    %3015 = vmatpush1.msra.mxu0 %v3014
    %3016 = vmatprep.subr.mxu0 0.0
    %v3017 = vand.u32 %v2001, 4294901760
    %3018 = vmatpush1.msra.mxu0 %v3017
    %3019 = vmatprep.subr.mxu0 0.0
    %v3020 = vand.u32 %v2000, 4294901760
    %3021 = vmatpush1.msra.mxu0 %v3020
    %3022 = vmatprep.subr.mxu0 0.0
    %v3023 = vand.u32 %v1999, 4294901760
    %3024 = vmatpush1.msra.mxu0 %v3023
    %3025 = vmatprep.subr.mxu0 0.0
    %v3026 = vand.u32 %v1998, 4294901760
    %3027 = vmatpush1.msra.mxu0 %v3026
    %3028 = vmatprep.subr.mxu0 0.0
    %v3029 = vand.u32 %v1997, 4294901760
    %3030 = vmatpush1.msra.mxu0 %v3029
    %3031 = vmatprep.subr.mxu0 0.0
    %v3032 = vand.u32 %v1996, 4294901760
    %3033 = vmatpush1.msra.mxu0 %v3032
    %3034 = vmatprep.subr.mxu0 0.0
    %v3035 = vand.u32 %v1995, 4294901760
    %3036 = vmatpush1.msra.mxu0 %v3035
    %3037 = vmatprep.subr.mxu0 0.0
    %v3038 = vand.u32 %v1994, 4294901760
    %3039 = vmatpush1.msra.mxu0 %v3038
    %3040 = vmatprep.subr.mxu0 0.0
    %v3041 = vand.u32 %v1993, 4294901760
    %3042 = vmatpush1.msra.mxu0 %v3041
    %3043 = vmatprep.subr.mxu0 0.0
    %v3044 = vand.u32 %v1992, 4294901760
    %3045 = vmatpush1.msra.mxu0 %v3044
    %3046 = vmatprep.subr.mxu0 0.0
    %v3047 = vand.u32 %v1991, 4294901760
    %3048 = vmatpush1.msra.mxu0 %v3047
    %3049 = vmatprep.subr.mxu0 0.0
    %3050 = vmatpush2.msra.mxu0 0.0
    %3051 = vmatprep.subr.mxu0 0.0
    %3052 = vmatpush2.msra.mxu0 0.0
    %3053 = vmatprep.subr.mxu0 0.0
    %3054 = vmatpush2.msra.mxu0 0.0
    %3055 = vmatprep.subr.mxu0 0.0
    %3056 = vmatpush2.msra.mxu0 0.0
    %3057 = vmatprep.subr.mxu0 0.0
    %3058 = vmatpush2.msra.mxu0 0.0
    %3059 = vmatprep.subr.mxu0 0.0
    %3060 = vmatpush2.msra.mxu0 0.0
    %3061 = vmatprep.subr.mxu0 0.0
    %3062 = vmatpush2.msra.mxu0 0.0
    %3063 = vmatprep.subr.mxu0 0.0
    %3064 = vmatpush2.msra.mxu0 0.0
    %3065 = vmatprep.subr.mxu0 0.0
    %3066 = vmatpush2.msra.mxu0 0.0
    %3067 = vmatprep.subr.mxu0 0.0
    %3068 = vmatpush2.msra.mxu0 0.0
    %3069 = vmatprep.subr.mxu0 0.0
    %3070 = vmatpush2.msra.mxu0 0.0
    %3071 = vmatprep.subr.mxu0 0.0
    %3072 = vmatpush2.msra.mxu0 0.0
    %3073 = vmatprep.subr.mxu0 0.0
    %3074 = vmatpush2.msra.mxu0 0.0
    %3075 = vmatprep.subr.mxu0 0.0
    %3076 = vmatpush2.msra.mxu0 0.0
    %3077 = vmatprep.subr.mxu0 0.0
    %3078 = vmatpush2.msra.mxu0 0.0
    %3079 = vmatprep.subr.mxu0 0.0
    %3080 = vmatpush2.msra.mxu0 0.0
    %3081 = vmatprep.mubr.f32.mxu0 0.0
    %v3082 = vand.u32 %v2654, 4294901760
    %v3083 = vsub.f32 %v2654, %v3082
    %v3084 = vand.u32 %v3083, 4294901760
    %3085 = vmatmul.mubr.f32.gmra.mxu0 %v3084
    %v3086 = vpop.f32.mrf.mxu0
    %v3087 = vadd.f32 %v2998, %v3086
    %v3088 = vpop.f32.mrf.mxu0
    %3089 = vdwg.mxu0
    %3090 = vmatprep.subr.mxu0 0.0
    %v3091 = vand.u32 %v2006, 4294901760
    %v3092 = vsub.f32 %v2006, %v3091
    %v3093 = vand.u32 %v3092, 4294901760
    %3094 = vmatpush1.msra.mxu0 %v3093
    %3095 = vmatprep.subr.mxu0 0.0
    %v3096 = vand.u32 %v2005, 4294901760
    %v3097 = vsub.f32 %v2005, %v3096
    %v3098 = vand.u32 %v3097, 4294901760
    %3099 = vmatpush1.msra.mxu0 %v3098
    %3100 = vmatprep.subr.mxu0 0.0
    %v3101 = vand.u32 %v2004, 4294901760
    %v3102 = vsub.f32 %v2004, %v3101
    %v3103 = vand.u32 %v3102, 4294901760
    %3104 = vmatpush1.msra.mxu0 %v3103
    %3105 = vmatprep.subr.mxu0 0.0
    %v3106 = vand.u32 %v2003, 4294901760
    %v3107 = vsub.f32 %v2003, %v3106
    %v3108 = vand.u32 %v3107, 4294901760
    %3109 = vmatpush1.msra.mxu0 %v3108
    %3110 = vmatprep.subr.mxu0 0.0
    %v3111 = vand.u32 %v2002, 4294901760
    %v3112 = vsub.f32 %v2002, %v3111
    %v3113 = vand.u32 %v3112, 4294901760
    %3114 = vmatpush1.msra.mxu0 %v3113
    %3115 = vmatprep.subr.mxu0 0.0
    %v3116 = vand.u32 %v2001, 4294901760
    %v3117 = vsub.f32 %v2001, %v3116
    %v3118 = vand.u32 %v3117, 4294901760
    %3119 = vmatpush1.msra.mxu0 %v3118
    %3120 = vmatprep.subr.mxu0 0.0
    %v3121 = vand.u32 %v2000, 4294901760
    %v3122 = vsub.f32 %v2000, %v3121
    %v3123 = vand.u32 %v3122, 4294901760
    %3124 = vmatpush1.msra.mxu0 %v3123
    %3125 = vmatprep.subr.mxu0 0.0
    %v3126 = vand.u32 %v1999, 4294901760
    %v3127 = vsub.f32 %v1999, %v3126
    %v3128 = vand.u32 %v3127, 4294901760
    %3129 = vmatpush1.msra.mxu0 %v3128
    %3130 = vmatprep.subr.mxu0 0.0
    %v3131 = vand.u32 %v1998, 4294901760
    %v3132 = vsub.f32 %v1998, %v3131
    %v3133 = vand.u32 %v3132, 4294901760
    %3134 = vmatpush1.msra.mxu0 %v3133
    %3135 = vmatprep.subr.mxu0 0.0
    %v3136 = vand.u32 %v1997, 4294901760
    %v3137 = vsub.f32 %v1997, %v3136
    %v3138 = vand.u32 %v3137, 4294901760
    %3139 = vmatpush1.msra.mxu0 %v3138
    %3140 = vmatprep.subr.mxu0 0.0
    %v3141 = vand.u32 %v1996, 4294901760
    %v3142 = vsub.f32 %v1996, %v3141
    %v3143 = vand.u32 %v3142, 4294901760
    %3144 = vmatpush1.msra.mxu0 %v3143
    %3145 = vmatprep.subr.mxu0 0.0
    %v3146 = vand.u32 %v1995, 4294901760
    %v3147 = vsub.f32 %v1995, %v3146
    %v3148 = vand.u32 %v3147, 4294901760
    %3149 = vmatpush1.msra.mxu0 %v3148
    %3150 = vmatprep.subr.mxu0 0.0
    %v3151 = vand.u32 %v1994, 4294901760
    %v3152 = vsub.f32 %v1994, %v3151
    %v3153 = vand.u32 %v3152, 4294901760
    %3154 = vmatpush1.msra.mxu0 %v3153
    %3155 = vmatprep.subr.mxu0 0.0
    %v3156 = vand.u32 %v1993, 4294901760
    %v3157 = vsub.f32 %v1993, %v3156
    %v3158 = vand.u32 %v3157, 4294901760
    %3159 = vmatpush1.msra.mxu0 %v3158
    %3160 = vmatprep.subr.mxu0 0.0
    %v3161 = vand.u32 %v1992, 4294901760
    %v3162 = vsub.f32 %v1992, %v3161
    %v3163 = vand.u32 %v3162, 4294901760
    %3164 = vmatpush1.msra.mxu0 %v3163
    %3165 = vmatprep.subr.mxu0 0.0
    %v3166 = vand.u32 %v1991, 4294901760
    %v3167 = vsub.f32 %v1991, %v3166
    %v3168 = vand.u32 %v3167, 4294901760
    %3169 = vmatpush1.msra.mxu0 %v3168
    %3170 = vmatprep.subr.mxu0 0.0
    %3171 = vmatpush2.msra.mxu0 0.0
    %3172 = vmatprep.subr.mxu0 0.0
    %3173 = vmatpush2.msra.mxu0 0.0
    %3174 = vmatprep.subr.mxu0 0.0
    %3175 = vmatpush2.msra.mxu0 0.0
    %3176 = vmatprep.subr.mxu0 0.0
    %3177 = vmatpush2.msra.mxu0 0.0
    %3178 = vmatprep.subr.mxu0 0.0
    %3179 = vmatpush2.msra.mxu0 0.0
    %3180 = vmatprep.subr.mxu0 0.0
    %3181 = vmatpush2.msra.mxu0 0.0
    %3182 = vmatprep.subr.mxu0 0.0
    %3183 = vmatpush2.msra.mxu0 0.0
    %3184 = vmatprep.subr.mxu0 0.0
    %3185 = vmatpush2.msra.mxu0 0.0
    %3186 = vmatprep.subr.mxu0 0.0
    %3187 = vmatpush2.msra.mxu0 0.0
    %3188 = vmatprep.subr.mxu0 0.0
    %3189 = vmatpush2.msra.mxu0 0.0
    %3190 = vmatprep.subr.mxu0 0.0
    %3191 = vmatpush2.msra.mxu0 0.0
    %3192 = vmatprep.subr.mxu0 0.0
    %3193 = vmatpush2.msra.mxu0 0.0
    %3194 = vmatprep.subr.mxu0 0.0
    %3195 = vmatpush2.msra.mxu0 0.0
    %3196 = vmatprep.subr.mxu0 0.0
    %3197 = vmatpush2.msra.mxu0 0.0
    %3198 = vmatprep.subr.mxu0 0.0
    %3199 = vmatpush2.msra.mxu0 0.0
    %3200 = vmatprep.subr.mxu0 0.0
    %3201 = vmatpush2.msra.mxu0 0.0
    %3202 = vmatprep.mubr.f32.mxu0 0.0
    %v3203 = vand.u32 %v2654, 4294901760
    %3204 = vmatmul.mubr.f32.gmra.mxu0 %v3203
    %v3205 = vpop.f32.mrf.mxu0
    %v3206 = vadd.f32 %v3087, %v3205
    %v3207 = vpop.f32.mrf.mxu0
    %3208 = vdwg.mxu0
    %3209 = vmatprep.subr.mxu0 0.0
    %v3210 = vand.u32 %v2006, 4294901760
    %3211 = vmatpush1.msra.mxu0 %v3210
    %3212 = vmatprep.subr.mxu0 0.0
    %v3213 = vand.u32 %v2005, 4294901760
    %3214 = vmatpush1.msra.mxu0 %v3213
    %3215 = vmatprep.subr.mxu0 0.0
    %v3216 = vand.u32 %v2004, 4294901760
    %3217 = vmatpush1.msra.mxu0 %v3216
    %3218 = vmatprep.subr.mxu0 0.0
    %v3219 = vand.u32 %v2003, 4294901760
    %3220 = vmatpush1.msra.mxu0 %v3219
    %3221 = vmatprep.subr.mxu0 0.0
    %v3222 = vand.u32 %v2002, 4294901760
    %3223 = vmatpush1.msra.mxu0 %v3222
    %3224 = vmatprep.subr.mxu0 0.0
    %v3225 = vand.u32 %v2001, 4294901760
    %3226 = vmatpush1.msra.mxu0 %v3225
    %3227 = vmatprep.subr.mxu0 0.0
    %v3228 = vand.u32 %v2000, 4294901760
    %3229 = vmatpush1.msra.mxu0 %v3228
    %3230 = vmatprep.subr.mxu0 0.0
    %v3231 = vand.u32 %v1999, 4294901760
    %3232 = vmatpush1.msra.mxu0 %v3231
    %3233 = vmatprep.subr.mxu0 0.0
    %v3234 = vand.u32 %v1998, 4294901760
    %3235 = vmatpush1.msra.mxu0 %v3234
    %3236 = vmatprep.subr.mxu0 0.0
    %v3237 = vand.u32 %v1997, 4294901760
    %3238 = vmatpush1.msra.mxu0 %v3237
    %3239 = vmatprep.subr.mxu0 0.0
    %v3240 = vand.u32 %v1996, 4294901760
    %3241 = vmatpush1.msra.mxu0 %v3240
    %3242 = vmatprep.subr.mxu0 0.0
    %v3243 = vand.u32 %v1995, 4294901760
    %3244 = vmatpush1.msra.mxu0 %v3243
    %3245 = vmatprep.subr.mxu0 0.0
    %v3246 = vand.u32 %v1994, 4294901760
    %3247 = vmatpush1.msra.mxu0 %v3246
    %3248 = vmatprep.subr.mxu0 0.0
    %v3249 = vand.u32 %v1993, 4294901760
    %3250 = vmatpush1.msra.mxu0 %v3249
    %3251 = vmatprep.subr.mxu0 0.0
    %v3252 = vand.u32 %v1992, 4294901760
    %3253 = vmatpush1.msra.mxu0 %v3252
    %3254 = vmatprep.subr.mxu0 0.0
    %v3255 = vand.u32 %v1991, 4294901760
    %3256 = vmatpush1.msra.mxu0 %v3255
    %3257 = vmatprep.subr.mxu0 0.0
    %3258 = vmatpush2.msra.mxu0 0.0
    %3259 = vmatprep.subr.mxu0 0.0
    %3260 = vmatpush2.msra.mxu0 0.0
    %3261 = vmatprep.subr.mxu0 0.0
    %3262 = vmatpush2.msra.mxu0 0.0
    %3263 = vmatprep.subr.mxu0 0.0
    %3264 = vmatpush2.msra.mxu0 0.0
    %3265 = vmatprep.subr.mxu0 0.0
    %3266 = vmatpush2.msra.mxu0 0.0
    %3267 = vmatprep.subr.mxu0 0.0
    %3268 = vmatpush2.msra.mxu0 0.0
    %3269 = vmatprep.subr.mxu0 0.0
    %3270 = vmatpush2.msra.mxu0 0.0
    %3271 = vmatprep.subr.mxu0 0.0
    %3272 = vmatpush2.msra.mxu0 0.0
    %3273 = vmatprep.subr.mxu0 0.0
    %3274 = vmatpush2.msra.mxu0 0.0
    %3275 = vmatprep.subr.mxu0 0.0
    %3276 = vmatpush2.msra.mxu0 0.0
    %3277 = vmatprep.subr.mxu0 0.0
    %3278 = vmatpush2.msra.mxu0 0.0
    %3279 = vmatprep.subr.mxu0 0.0
    %3280 = vmatpush2.msra.mxu0 0.0
    %3281 = vmatprep.subr.mxu0 0.0
    %3282 = vmatpush2.msra.mxu0 0.0
    %3283 = vmatprep.subr.mxu0 0.0
    %3284 = vmatpush2.msra.mxu0 0.0
    %3285 = vmatprep.subr.mxu0 0.0
    %3286 = vmatpush2.msra.mxu0 0.0
    %3287 = vmatprep.subr.mxu0 0.0
    %3288 = vmatpush2.msra.mxu0 0.0
    %3289 = vmatprep.mubr.f32.mxu0 0.0
    %v3290 = vand.u32 %v2654, 4294901760
    %3291 = vmatmul.mubr.f32.gmra.mxu0 %v3290
    %v3292 = vpop.f32.mrf.mxu0
    %v3293 = vadd.f32 %v3206, %v3292
    %v3294 = vpop.f32.mrf.mxu0
    %3295 = vdwg.mxu0
    %v3296 = vadd.f32 %v1974, %v3293
    %v3297 = vlaneseq
    %v3298 = vshrl.u32 %v3297, 7
    %v3299 = vsub.s32 0, %v3298
    %v3300 = vrot.slane %v2008, %v3299
    %v3301 = vadd.f32 %v3296, %v3300
    %v3302 = vld [vmem:[#allocation11] sm:$0xff]
    %v3303 = vld [vmem:[#allocation11 + $0x8] sm:$0xff]
    %v3304 = vld [vmem:[#allocation11 + $0x10] sm:$0xff]
    %v3305 = vld [vmem:[#allocation11 + $0x18] sm:$0xff]
    %v3306 = vld [vmem:[#allocation11 + $0x20] sm:$0xff]
    %v3307 = vld [vmem:[#allocation11 + $0x28] sm:$0xff]
    %v3308 = vld [vmem:[#allocation11 + $0x30] sm:$0xff]
    %v3309 = vld [vmem:[#allocation11 + $0x38] sm:$0xff]
    %v3310 = vld [vmem:[#allocation11 + $0x40] sm:$0xff]
    %v3311 = vld [vmem:[#allocation11 + $0x48] sm:$0xff]
    %v3312 = vld [vmem:[#allocation11 + $0x50] sm:$0xff]
    %v3313 = vld [vmem:[#allocation11 + $0x58] sm:$0xff]
    %v3314 = vld [vmem:[#allocation11 + $0x60] sm:$0xff]
    %v3315 = vld [vmem:[#allocation11 + $0x68] sm:$0xff]
    %v3316 = vld [vmem:[#allocation11 + $0x70] sm:$0xff]
    %v3317 = vld [vmem:[#allocation11 + $0x78] sm:$0xff]
    %v3318 = vld [vmem:[#allocation12] sm:$0x1]
    %v3320 = vlaneseq
    %v3321 = vshrl.u32 %v3320, 7
    %v3322 = vsub.s32 0, %v3321
    %v3323 = vrot.slane %v3318, %v3322
    %3325 = vmatprep.subr.mxu0 0.0
    %v3326 = vand.u32 %v3317, 4294901760
    %3327 = vmatpush1.msra.mxu0 %v3326
    %3328 = vmatprep.subr.mxu0 0.0
    %v3329 = vand.u32 %v3316, 4294901760
    %3330 = vmatpush1.msra.mxu0 %v3329
    %3331 = vmatprep.subr.mxu0 0.0
    %v3332 = vand.u32 %v3315, 4294901760
    %3333 = vmatpush1.msra.mxu0 %v3332
    %3334 = vmatprep.subr.mxu0 0.0
    %v3335 = vand.u32 %v3314, 4294901760
    %3336 = vmatpush1.msra.mxu0 %v3335
    %3337 = vmatprep.subr.mxu0 0.0
    %v3338 = vand.u32 %v3313, 4294901760
    %3339 = vmatpush1.msra.mxu0 %v3338
    %3340 = vmatprep.subr.mxu0 0.0
    %v3341 = vand.u32 %v3312, 4294901760
    %3342 = vmatpush1.msra.mxu0 %v3341
    %3343 = vmatprep.subr.mxu0 0.0
    %v3344 = vand.u32 %v3311, 4294901760
    %3345 = vmatpush1.msra.mxu0 %v3344
    %3346 = vmatprep.subr.mxu0 0.0
    %v3347 = vand.u32 %v3310, 4294901760
    %3348 = vmatpush1.msra.mxu0 %v3347
    %3349 = vmatprep.subr.mxu0 0.0
    %v3350 = vand.u32 %v3309, 4294901760
    %3351 = vmatpush1.msra.mxu0 %v3350
    %3352 = vmatprep.subr.mxu0 0.0
    %v3353 = vand.u32 %v3308, 4294901760
    %3354 = vmatpush1.msra.mxu0 %v3353
    %3355 = vmatprep.subr.mxu0 0.0
    %v3356 = vand.u32 %v3307, 4294901760
    %3357 = vmatpush1.msra.mxu0 %v3356
    %3358 = vmatprep.subr.mxu0 0.0
    %v3359 = vand.u32 %v3306, 4294901760
    %3360 = vmatpush1.msra.mxu0 %v3359
    %3361 = vmatprep.subr.mxu0 0.0
    %v3362 = vand.u32 %v3305, 4294901760
    %3363 = vmatpush1.msra.mxu0 %v3362
    %3364 = vmatprep.subr.mxu0 0.0
    %v3365 = vand.u32 %v3304, 4294901760
    %3366 = vmatpush1.msra.mxu0 %v3365
    %3367 = vmatprep.subr.mxu0 0.0
    %v3368 = vand.u32 %v3303, 4294901760
    %3369 = vmatpush1.msra.mxu0 %v3368
    %3370 = vmatprep.subr.mxu0 0.0
    %v3371 = vand.u32 %v3302, 4294901760
    %3372 = vmatpush1.msra.mxu0 %v3371
    %3373 = vmatprep.subr.mxu0 0.0
    %3374 = vmatpush2.msra.mxu0 0.0
    %3375 = vmatprep.subr.mxu0 0.0
    %3376 = vmatpush2.msra.mxu0 0.0
    %3377 = vmatprep.subr.mxu0 0.0
    %3378 = vmatpush2.msra.mxu0 0.0
    %3379 = vmatprep.subr.mxu0 0.0
    %3380 = vmatpush2.msra.mxu0 0.0
    %3381 = vmatprep.subr.mxu0 0.0
    %3382 = vmatpush2.msra.mxu0 0.0
    %3383 = vmatprep.subr.mxu0 0.0
    %3384 = vmatpush2.msra.mxu0 0.0
    %3385 = vmatprep.subr.mxu0 0.0
    %3386 = vmatpush2.msra.mxu0 0.0
    %3387 = vmatprep.subr.mxu0 0.0
    %3388 = vmatpush2.msra.mxu0 0.0
    %3389 = vmatprep.subr.mxu0 0.0
    %3390 = vmatpush2.msra.mxu0 0.0
    %3391 = vmatprep.subr.mxu0 0.0
    %3392 = vmatpush2.msra.mxu0 0.0
    %3393 = vmatprep.subr.mxu0 0.0
    %3394 = vmatpush2.msra.mxu0 0.0
    %3395 = vmatprep.subr.mxu0 0.0
    %3396 = vmatpush2.msra.mxu0 0.0
    %3397 = vmatprep.subr.mxu0 0.0
    %3398 = vmatpush2.msra.mxu0 0.0
    %3399 = vmatprep.subr.mxu0 0.0
    %3400 = vmatpush2.msra.mxu0 0.0
    %3401 = vmatprep.subr.mxu0 0.0
    %3402 = vmatpush2.msra.mxu0 0.0
    %3403 = vmatprep.subr.mxu0 0.0
    %3404 = vmatpush2.msra.mxu0 0.0
    %3405 = vmatprep.mubr.f32.mxu0 0.0
    %v3406 = vand.u32 %v3301, 4294901760
    %v3407 = vsub.f32 %v3301, %v3406
    %v3408 = vand.u32 %v3407, 4294901760
    %v3409 = vsub.f32 %v3407, %v3408
    %v3410 = vand.u32 %v3409, 4294901760
    %3411 = vmatmul.mubr.f32.gmra.mxu0 %v3410
    %v3412 = vpop.f32.mrf.mxu0
    %v3413 = vadd.f32 %v3323, %v3412
    %v3414 = vpop.f32.mrf.mxu0
    %3415 = vdwg.mxu0
    %3416 = vmatprep.subr.mxu0 0.0
    %v3417 = vand.u32 %v3317, 4294901760
    %v3418 = vsub.f32 %v3317, %v3417
    %v3419 = vand.u32 %v3418, 4294901760
    %v3420 = vsub.f32 %v3418, %v3419
    %v3421 = vand.u32 %v3420, 4294901760
    %3422 = vmatpush1.msra.mxu0 %v3421
    %3423 = vmatprep.subr.mxu0 0.0
    %v3424 = vand.u32 %v3316, 4294901760
    %v3425 = vsub.f32 %v3316, %v3424
    %v3426 = vand.u32 %v3425, 4294901760
    %v3427 = vsub.f32 %v3425, %v3426
    %v3428 = vand.u32 %v3427, 4294901760
    %3429 = vmatpush1.msra.mxu0 %v3428
    %3430 = vmatprep.subr.mxu0 0.0
    %v3431 = vand.u32 %v3315, 4294901760
    %v3432 = vsub.f32 %v3315, %v3431
    %v3433 = vand.u32 %v3432, 4294901760
    %v3434 = vsub.f32 %v3432, %v3433
    %v3435 = vand.u32 %v3434, 4294901760
    %3436 = vmatpush1.msra.mxu0 %v3435
    %3437 = vmatprep.subr.mxu0 0.0
    %v3438 = vand.u32 %v3314, 4294901760
    %v3439 = vsub.f32 %v3314, %v3438
    %v3440 = vand.u32 %v3439, 4294901760
    %v3441 = vsub.f32 %v3439, %v3440
    %v3442 = vand.u32 %v3441, 4294901760
    %3443 = vmatpush1.msra.mxu0 %v3442
    %3444 = vmatprep.subr.mxu0 0.0
    %v3445 = vand.u32 %v3313, 4294901760
    %v3446 = vsub.f32 %v3313, %v3445
    %v3447 = vand.u32 %v3446, 4294901760
    %v3448 = vsub.f32 %v3446, %v3447
    %v3449 = vand.u32 %v3448, 4294901760
    %3450 = vmatpush1.msra.mxu0 %v3449
    %3451 = vmatprep.subr.mxu0 0.0
    %v3452 = vand.u32 %v3312, 4294901760
    %v3453 = vsub.f32 %v3312, %v3452
    %v3454 = vand.u32 %v3453, 4294901760
    %v3455 = vsub.f32 %v3453, %v3454
    %v3456 = vand.u32 %v3455, 4294901760
    %3457 = vmatpush1.msra.mxu0 %v3456
    %3458 = vmatprep.subr.mxu0 0.0
    %v3459 = vand.u32 %v3311, 4294901760
    %v3460 = vsub.f32 %v3311, %v3459
    %v3461 = vand.u32 %v3460, 4294901760
    %v3462 = vsub.f32 %v3460, %v3461
    %v3463 = vand.u32 %v3462, 4294901760
    %3464 = vmatpush1.msra.mxu0 %v3463
    %3465 = vmatprep.subr.mxu0 0.0
    %v3466 = vand.u32 %v3310, 4294901760
    %v3467 = vsub.f32 %v3310, %v3466
    %v3468 = vand.u32 %v3467, 4294901760
    %v3469 = vsub.f32 %v3467, %v3468
    %v3470 = vand.u32 %v3469, 4294901760
    %3471 = vmatpush1.msra.mxu0 %v3470
    %3472 = vmatprep.subr.mxu0 0.0
    %v3473 = vand.u32 %v3309, 4294901760
    %v3474 = vsub.f32 %v3309, %v3473
    %v3475 = vand.u32 %v3474, 4294901760
    %v3476 = vsub.f32 %v3474, %v3475
    %v3477 = vand.u32 %v3476, 4294901760
    %3478 = vmatpush1.msra.mxu0 %v3477
    %3479 = vmatprep.subr.mxu0 0.0
    %v3480 = vand.u32 %v3308, 4294901760
    %v3481 = vsub.f32 %v3308, %v3480
    %v3482 = vand.u32 %v3481, 4294901760
    %v3483 = vsub.f32 %v3481, %v3482
    %v3484 = vand.u32 %v3483, 4294901760
    %3485 = vmatpush1.msra.mxu0 %v3484
    %3486 = vmatprep.subr.mxu0 0.0
    %v3487 = vand.u32 %v3307, 4294901760
    %v3488 = vsub.f32 %v3307, %v3487
    %v3489 = vand.u32 %v3488, 4294901760
    %v3490 = vsub.f32 %v3488, %v3489
    %v3491 = vand.u32 %v3490, 4294901760
    %3492 = vmatpush1.msra.mxu0 %v3491
    %3493 = vmatprep.subr.mxu0 0.0
    %v3494 = vand.u32 %v3306, 4294901760
    %v3495 = vsub.f32 %v3306, %v3494
    %v3496 = vand.u32 %v3495, 4294901760
    %v3497 = vsub.f32 %v3495, %v3496
    %v3498 = vand.u32 %v3497, 4294901760
    %3499 = vmatpush1.msra.mxu0 %v3498
    %3500 = vmatprep.subr.mxu0 0.0
    %v3501 = vand.u32 %v3305, 4294901760
    %v3502 = vsub.f32 %v3305, %v3501
    %v3503 = vand.u32 %v3502, 4294901760
    %v3504 = vsub.f32 %v3502, %v3503
    %v3505 = vand.u32 %v3504, 4294901760
    %3506 = vmatpush1.msra.mxu0 %v3505
    %3507 = vmatprep.subr.mxu0 0.0
    %v3508 = vand.u32 %v3304, 4294901760
    %v3509 = vsub.f32 %v3304, %v3508
    %v3510 = vand.u32 %v3509, 4294901760
    %v3511 = vsub.f32 %v3509, %v3510
    %v3512 = vand.u32 %v3511, 4294901760
    %3513 = vmatpush1.msra.mxu0 %v3512
    %3514 = vmatprep.subr.mxu0 0.0
    %v3515 = vand.u32 %v3303, 4294901760
    %v3516 = vsub.f32 %v3303, %v3515
    %v3517 = vand.u32 %v3516, 4294901760
    %v3518 = vsub.f32 %v3516, %v3517
    %v3519 = vand.u32 %v3518, 4294901760
    %3520 = vmatpush1.msra.mxu0 %v3519
    %3521 = vmatprep.subr.mxu0 0.0
    %v3522 = vand.u32 %v3302, 4294901760
    %v3523 = vsub.f32 %v3302, %v3522
    %v3524 = vand.u32 %v3523, 4294901760
    %v3525 = vsub.f32 %v3523, %v3524
    %v3526 = vand.u32 %v3525, 4294901760
    %3527 = vmatpush1.msra.mxu0 %v3526
    %3528 = vmatprep.subr.mxu0 0.0
    %3529 = vmatpush2.msra.mxu0 0.0
    %3530 = vmatprep.subr.mxu0 0.0
    %3531 = vmatpush2.msra.mxu0 0.0
    %3532 = vmatprep.subr.mxu0 0.0
    %3533 = vmatpush2.msra.mxu0 0.0
    %3534 = vmatprep.subr.mxu0 0.0
    %3535 = vmatpush2.msra.mxu0 0.0
    %3536 = vmatprep.subr.mxu0 0.0
    %3537 = vmatpush2.msra.mxu0 0.0
    %3538 = vmatprep.subr.mxu0 0.0
    %3539 = vmatpush2.msra.mxu0 0.0
    %3540 = vmatprep.subr.mxu0 0.0
    %3541 = vmatpush2.msra.mxu0 0.0
    %3542 = vmatprep.subr.mxu0 0.0
    %3543 = vmatpush2.msra.mxu0 0.0
    %3544 = vmatprep.subr.mxu0 0.0
    %3545 = vmatpush2.msra.mxu0 0.0
    %3546 = vmatprep.subr.mxu0 0.0
    %3547 = vmatpush2.msra.mxu0 0.0
    %3548 = vmatprep.subr.mxu0 0.0
    %3549 = vmatpush2.msra.mxu0 0.0
    %3550 = vmatprep.subr.mxu0 0.0
    %3551 = vmatpush2.msra.mxu0 0.0
    %3552 = vmatprep.subr.mxu0 0.0
    %3553 = vmatpush2.msra.mxu0 0.0
    %3554 = vmatprep.subr.mxu0 0.0
    %3555 = vmatpush2.msra.mxu0 0.0
    %3556 = vmatprep.subr.mxu0 0.0
    %3557 = vmatpush2.msra.mxu0 0.0
    %3558 = vmatprep.subr.mxu0 0.0
    %3559 = vmatpush2.msra.mxu0 0.0
    %3560 = vmatprep.mubr.f32.mxu0 0.0
    %v3561 = vand.u32 %v3301, 4294901760
    %3562 = vmatmul.mubr.f32.gmra.mxu0 %v3561
    %v3563 = vpop.f32.mrf.mxu0
    %v3564 = vadd.f32 %v3413, %v3563
    %v3565 = vpop.f32.mrf.mxu0
    %3566 = vdwg.mxu0
    %3567 = vmatprep.subr.mxu0 0.0
    %v3568 = vand.u32 %v3317, 4294901760
    %v3569 = vsub.f32 %v3317, %v3568
    %3570 = vmatpush1.msra.mxu0 %v3569
    %3571 = vmatprep.subr.mxu0 0.0
    %v3572 = vand.u32 %v3316, 4294901760
    %v3573 = vsub.f32 %v3316, %v3572
    %3574 = vmatpush1.msra.mxu0 %v3573
    %3575 = vmatprep.subr.mxu0 0.0
    %v3576 = vand.u32 %v3315, 4294901760
    %v3577 = vsub.f32 %v3315, %v3576
    %3578 = vmatpush1.msra.mxu0 %v3577
    %3579 = vmatprep.subr.mxu0 0.0
    %v3580 = vand.u32 %v3314, 4294901760
    %v3581 = vsub.f32 %v3314, %v3580
    %3582 = vmatpush1.msra.mxu0 %v3581
    %3583 = vmatprep.subr.mxu0 0.0
    %v3584 = vand.u32 %v3313, 4294901760
    %v3585 = vsub.f32 %v3313, %v3584
    %3586 = vmatpush1.msra.mxu0 %v3585
    %3587 = vmatprep.subr.mxu0 0.0
    %v3588 = vand.u32 %v3312, 4294901760
    %v3589 = vsub.f32 %v3312, %v3588
    %3590 = vmatpush1.msra.mxu0 %v3589
    %3591 = vmatprep.subr.mxu0 0.0
    %v3592 = vand.u32 %v3311, 4294901760
    %v3593 = vsub.f32 %v3311, %v3592
    %3594 = vmatpush1.msra.mxu0 %v3593
    %3595 = vmatprep.subr.mxu0 0.0
    %v3596 = vand.u32 %v3310, 4294901760
    %v3597 = vsub.f32 %v3310, %v3596
    %3598 = vmatpush1.msra.mxu0 %v3597
    %3599 = vmatprep.subr.mxu0 0.0
    %v3600 = vand.u32 %v3309, 4294901760
    %v3601 = vsub.f32 %v3309, %v3600
    %3602 = vmatpush1.msra.mxu0 %v3601
    %3603 = vmatprep.subr.mxu0 0.0
    %v3604 = vand.u32 %v3308, 4294901760
    %v3605 = vsub.f32 %v3308, %v3604
    %3606 = vmatpush1.msra.mxu0 %v3605
    %3607 = vmatprep.subr.mxu0 0.0
    %v3608 = vand.u32 %v3307, 4294901760
    %v3609 = vsub.f32 %v3307, %v3608
    %3610 = vmatpush1.msra.mxu0 %v3609
    %3611 = vmatprep.subr.mxu0 0.0
    %v3612 = vand.u32 %v3306, 4294901760
    %v3613 = vsub.f32 %v3306, %v3612
    %3614 = vmatpush1.msra.mxu0 %v3613
    %3615 = vmatprep.subr.mxu0 0.0
    %v3616 = vand.u32 %v3305, 4294901760
    %v3617 = vsub.f32 %v3305, %v3616
    %3618 = vmatpush1.msra.mxu0 %v3617
    %3619 = vmatprep.subr.mxu0 0.0
    %v3620 = vand.u32 %v3304, 4294901760
    %v3621 = vsub.f32 %v3304, %v3620
    %3622 = vmatpush1.msra.mxu0 %v3621
    %3623 = vmatprep.subr.mxu0 0.0
    %v3624 = vand.u32 %v3303, 4294901760
    %v3625 = vsub.f32 %v3303, %v3624
    %3626 = vmatpush1.msra.mxu0 %v3625
    %3627 = vmatprep.subr.mxu0 0.0
    %v3628 = vand.u32 %v3302, 4294901760
    %v3629 = vsub.f32 %v3302, %v3628
    %3630 = vmatpush1.msra.mxu0 %v3629
    %3631 = vmatprep.subr.mxu0 0.0
    %3632 = vmatpush2.msra.mxu0 0.0
    %3633 = vmatprep.subr.mxu0 0.0
    %3634 = vmatpush2.msra.mxu0 0.0
    %3635 = vmatprep.subr.mxu0 0.0
    %3636 = vmatpush2.msra.mxu0 0.0
    %3637 = vmatprep.subr.mxu0 0.0
    %3638 = vmatpush2.msra.mxu0 0.0
    %3639 = vmatprep.subr.mxu0 0.0
    %3640 = vmatpush2.msra.mxu0 0.0
    %3641 = vmatprep.subr.mxu0 0.0
    %3642 = vmatpush2.msra.mxu0 0.0
    %3643 = vmatprep.subr.mxu0 0.0
    %3644 = vmatpush2.msra.mxu0 0.0
    %3645 = vmatprep.subr.mxu0 0.0
    %3646 = vmatpush2.msra.mxu0 0.0
    %3647 = vmatprep.subr.mxu0 0.0
    %3648 = vmatpush2.msra.mxu0 0.0
    %3649 = vmatprep.subr.mxu0 0.0
    %3650 = vmatpush2.msra.mxu0 0.0
    %3651 = vmatprep.subr.mxu0 0.0
    %3652 = vmatpush2.msra.mxu0 0.0
    %3653 = vmatprep.subr.mxu0 0.0
    %3654 = vmatpush2.msra.mxu0 0.0
    %3655 = vmatprep.subr.mxu0 0.0
    %3656 = vmatpush2.msra.mxu0 0.0
    %3657 = vmatprep.subr.mxu0 0.0
    %3658 = vmatpush2.msra.mxu0 0.0
    %3659 = vmatprep.subr.mxu0 0.0
    %3660 = vmatpush2.msra.mxu0 0.0
    %3661 = vmatprep.subr.mxu0 0.0
    %3662 = vmatpush2.msra.mxu0 0.0
    %3663 = vmatprep.mubr.f32.mxu0 0.0
    %v3664 = vand.u32 %v3301, 4294901760
    %v3665 = vsub.f32 %v3301, %v3664
    %3666 = vmatmul.mubr.f32.gmra.mxu0 %v3665
    %v3667 = vpop.f32.mrf.mxu0
    %v3668 = vadd.f32 %v3564, %v3667
    %v3669 = vpop.f32.mrf.mxu0
    %3670 = vdwg.mxu0
    %3671 = vmatprep.subr.mxu0 0.0
    %v3672 = vand.u32 %v3317, 4294901760
    %3673 = vmatpush1.msra.mxu0 %v3672
    %3674 = vmatprep.subr.mxu0 0.0
    %v3675 = vand.u32 %v3316, 4294901760
    %3676 = vmatpush1.msra.mxu0 %v3675
    %3677 = vmatprep.subr.mxu0 0.0
    %v3678 = vand.u32 %v3315, 4294901760
    %3679 = vmatpush1.msra.mxu0 %v3678
    %3680 = vmatprep.subr.mxu0 0.0
    %v3681 = vand.u32 %v3314, 4294901760
    %3682 = vmatpush1.msra.mxu0 %v3681
    %3683 = vmatprep.subr.mxu0 0.0
    %v3684 = vand.u32 %v3313, 4294901760
    %3685 = vmatpush1.msra.mxu0 %v3684
    %3686 = vmatprep.subr.mxu0 0.0
    %v3687 = vand.u32 %v3312, 4294901760
    %3688 = vmatpush1.msra.mxu0 %v3687
    %3689 = vmatprep.subr.mxu0 0.0
    %v3690 = vand.u32 %v3311, 4294901760
    %3691 = vmatpush1.msra.mxu0 %v3690
    %3692 = vmatprep.subr.mxu0 0.0
    %v3693 = vand.u32 %v3310, 4294901760
    %3694 = vmatpush1.msra.mxu0 %v3693
    %3695 = vmatprep.subr.mxu0 0.0
    %v3696 = vand.u32 %v3309, 4294901760
    %3697 = vmatpush1.msra.mxu0 %v3696
    %3698 = vmatprep.subr.mxu0 0.0
    %v3699 = vand.u32 %v3308, 4294901760
    %3700 = vmatpush1.msra.mxu0 %v3699
    %3701 = vmatprep.subr.mxu0 0.0
    %v3702 = vand.u32 %v3307, 4294901760
    %3703 = vmatpush1.msra.mxu0 %v3702
    %3704 = vmatprep.subr.mxu0 0.0
    %v3705 = vand.u32 %v3306, 4294901760
    %3706 = vmatpush1.msra.mxu0 %v3705
    %3707 = vmatprep.subr.mxu0 0.0
    %v3708 = vand.u32 %v3305, 4294901760
    %3709 = vmatpush1.msra.mxu0 %v3708
    %3710 = vmatprep.subr.mxu0 0.0
    %v3711 = vand.u32 %v3304, 4294901760
    %3712 = vmatpush1.msra.mxu0 %v3711
    %3713 = vmatprep.subr.mxu0 0.0
    %v3714 = vand.u32 %v3303, 4294901760
    %3715 = vmatpush1.msra.mxu0 %v3714
    %3716 = vmatprep.subr.mxu0 0.0
    %v3717 = vand.u32 %v3302, 4294901760
    %3718 = vmatpush1.msra.mxu0 %v3717
    %3719 = vmatprep.subr.mxu0 0.0
    %3720 = vmatpush2.msra.mxu0 0.0
    %3721 = vmatprep.subr.mxu0 0.0
    %3722 = vmatpush2.msra.mxu0 0.0
    %3723 = vmatprep.subr.mxu0 0.0
    %3724 = vmatpush2.msra.mxu0 0.0
    %3725 = vmatprep.subr.mxu0 0.0
    %3726 = vmatpush2.msra.mxu0 0.0
    %3727 = vmatprep.subr.mxu0 0.0
    %3728 = vmatpush2.msra.mxu0 0.0
    %3729 = vmatprep.subr.mxu0 0.0
    %3730 = vmatpush2.msra.mxu0 0.0
    %3731 = vmatprep.subr.mxu0 0.0
    %3732 = vmatpush2.msra.mxu0 0.0
    %3733 = vmatprep.subr.mxu0 0.0
    %3734 = vmatpush2.msra.mxu0 0.0
    %3735 = vmatprep.subr.mxu0 0.0
    %3736 = vmatpush2.msra.mxu0 0.0
    %3737 = vmatprep.subr.mxu0 0.0
    %3738 = vmatpush2.msra.mxu0 0.0
    %3739 = vmatprep.subr.mxu0 0.0
    %3740 = vmatpush2.msra.mxu0 0.0
    %3741 = vmatprep.subr.mxu0 0.0
    %3742 = vmatpush2.msra.mxu0 0.0
    %3743 = vmatprep.subr.mxu0 0.0
    %3744 = vmatpush2.msra.mxu0 0.0
    %3745 = vmatprep.subr.mxu0 0.0
    %3746 = vmatpush2.msra.mxu0 0.0
    %3747 = vmatprep.subr.mxu0 0.0
    %3748 = vmatpush2.msra.mxu0 0.0
    %3749 = vmatprep.subr.mxu0 0.0
    %3750 = vmatpush2.msra.mxu0 0.0
    %3751 = vmatprep.mubr.f32.mxu0 0.0
    %v3752 = vand.u32 %v3301, 4294901760
    %v3753 = vsub.f32 %v3301, %v3752
    %v3754 = vand.u32 %v3753, 4294901760
    %3755 = vmatmul.mubr.f32.gmra.mxu0 %v3754
    %v3756 = vpop.f32.mrf.mxu0
    %v3757 = vadd.f32 %v3668, %v3756
    %v3758 = vpop.f32.mrf.mxu0
    %3759 = vdwg.mxu0
    %3760 = vmatprep.subr.mxu0 0.0
    %v3761 = vand.u32 %v3317, 4294901760
    %v3762 = vsub.f32 %v3317, %v3761
    %v3763 = vand.u32 %v3762, 4294901760
    %3764 = vmatpush1.msra.mxu0 %v3763
    %3765 = vmatprep.subr.mxu0 0.0
    %v3766 = vand.u32 %v3316, 4294901760
    %v3767 = vsub.f32 %v3316, %v3766
    %v3768 = vand.u32 %v3767, 4294901760
    %3769 = vmatpush1.msra.mxu0 %v3768
    %3770 = vmatprep.subr.mxu0 0.0
    %v3771 = vand.u32 %v3315, 4294901760
    %v3772 = vsub.f32 %v3315, %v3771
    %v3773 = vand.u32 %v3772, 4294901760
    %3774 = vmatpush1.msra.mxu0 %v3773
    %3775 = vmatprep.subr.mxu0 0.0
    %v3776 = vand.u32 %v3314, 4294901760
    %v3777 = vsub.f32 %v3314, %v3776
    %v3778 = vand.u32 %v3777, 4294901760
    %3779 = vmatpush1.msra.mxu0 %v3778
    %3780 = vmatprep.subr.mxu0 0.0
    %v3781 = vand.u32 %v3313, 4294901760
    %v3782 = vsub.f32 %v3313, %v3781
    %v3783 = vand.u32 %v3782, 4294901760
    %3784 = vmatpush1.msra.mxu0 %v3783
    %3785 = vmatprep.subr.mxu0 0.0
    %v3786 = vand.u32 %v3312, 4294901760
    %v3787 = vsub.f32 %v3312, %v3786
    %v3788 = vand.u32 %v3787, 4294901760
    %3789 = vmatpush1.msra.mxu0 %v3788
    %3790 = vmatprep.subr.mxu0 0.0
    %v3791 = vand.u32 %v3311, 4294901760
    %v3792 = vsub.f32 %v3311, %v3791
    %v3793 = vand.u32 %v3792, 4294901760
    %3794 = vmatpush1.msra.mxu0 %v3793
    %3795 = vmatprep.subr.mxu0 0.0
    %v3796 = vand.u32 %v3310, 4294901760
    %v3797 = vsub.f32 %v3310, %v3796
    %v3798 = vand.u32 %v3797, 4294901760
    %3799 = vmatpush1.msra.mxu0 %v3798
    %3800 = vmatprep.subr.mxu0 0.0
    %v3801 = vand.u32 %v3309, 4294901760
    %v3802 = vsub.f32 %v3309, %v3801
    %v3803 = vand.u32 %v3802, 4294901760
    %3804 = vmatpush1.msra.mxu0 %v3803
    %3805 = vmatprep.subr.mxu0 0.0
    %v3806 = vand.u32 %v3308, 4294901760
    %v3807 = vsub.f32 %v3308, %v3806
    %v3808 = vand.u32 %v3807, 4294901760
    %3809 = vmatpush1.msra.mxu0 %v3808
    %3810 = vmatprep.subr.mxu0 0.0
    %v3811 = vand.u32 %v3307, 4294901760
    %v3812 = vsub.f32 %v3307, %v3811
    %v3813 = vand.u32 %v3812, 4294901760
    %3814 = vmatpush1.msra.mxu0 %v3813
    %3815 = vmatprep.subr.mxu0 0.0
    %v3816 = vand.u32 %v3306, 4294901760
    %v3817 = vsub.f32 %v3306, %v3816
    %v3818 = vand.u32 %v3817, 4294901760
    %3819 = vmatpush1.msra.mxu0 %v3818
    %3820 = vmatprep.subr.mxu0 0.0
    %v3821 = vand.u32 %v3305, 4294901760
    %v3822 = vsub.f32 %v3305, %v3821
    %v3823 = vand.u32 %v3822, 4294901760
    %3824 = vmatpush1.msra.mxu0 %v3823
    %3825 = vmatprep.subr.mxu0 0.0
    %v3826 = vand.u32 %v3304, 4294901760
    %v3827 = vsub.f32 %v3304, %v3826
    %v3828 = vand.u32 %v3827, 4294901760
    %3829 = vmatpush1.msra.mxu0 %v3828
    %3830 = vmatprep.subr.mxu0 0.0
    %v3831 = vand.u32 %v3303, 4294901760
    %v3832 = vsub.f32 %v3303, %v3831
    %v3833 = vand.u32 %v3832, 4294901760
    %3834 = vmatpush1.msra.mxu0 %v3833
    %3835 = vmatprep.subr.mxu0 0.0
    %v3836 = vand.u32 %v3302, 4294901760
    %v3837 = vsub.f32 %v3302, %v3836
    %v3838 = vand.u32 %v3837, 4294901760
    %3839 = vmatpush1.msra.mxu0 %v3838
    %3840 = vmatprep.subr.mxu0 0.0
    %3841 = vmatpush2.msra.mxu0 0.0
    %3842 = vmatprep.subr.mxu0 0.0
    %3843 = vmatpush2.msra.mxu0 0.0
    %3844 = vmatprep.subr.mxu0 0.0
    %3845 = vmatpush2.msra.mxu0 0.0
    %3846 = vmatprep.subr.mxu0 0.0
    %3847 = vmatpush2.msra.mxu0 0.0
    %3848 = vmatprep.subr.mxu0 0.0
    %3849 = vmatpush2.msra.mxu0 0.0
    %3850 = vmatprep.subr.mxu0 0.0
    %3851 = vmatpush2.msra.mxu0 0.0
    %3852 = vmatprep.subr.mxu0 0.0
    %3853 = vmatpush2.msra.mxu0 0.0
    %3854 = vmatprep.subr.mxu0 0.0
    %3855 = vmatpush2.msra.mxu0 0.0
    %3856 = vmatprep.subr.mxu0 0.0
    %3857 = vmatpush2.msra.mxu0 0.0
    %3858 = vmatprep.subr.mxu0 0.0
    %3859 = vmatpush2.msra.mxu0 0.0
    %3860 = vmatprep.subr.mxu0 0.0
    %3861 = vmatpush2.msra.mxu0 0.0
    %3862 = vmatprep.subr.mxu0 0.0
    %3863 = vmatpush2.msra.mxu0 0.0
    %3864 = vmatprep.subr.mxu0 0.0
    %3865 = vmatpush2.msra.mxu0 0.0
    %3866 = vmatprep.subr.mxu0 0.0
    %3867 = vmatpush2.msra.mxu0 0.0
    %3868 = vmatprep.subr.mxu0 0.0
    %3869 = vmatpush2.msra.mxu0 0.0
    %3870 = vmatprep.subr.mxu0 0.0
    %3871 = vmatpush2.msra.mxu0 0.0
    %3872 = vmatprep.mubr.f32.mxu0 0.0
    %v3873 = vand.u32 %v3301, 4294901760
    %3874 = vmatmul.mubr.f32.gmra.mxu0 %v3873
    %v3875 = vpop.f32.mrf.mxu0
    %v3876 = vadd.f32 %v3757, %v3875
    %v3877 = vpop.f32.mrf.mxu0
    %3878 = vdwg.mxu0
    %3879 = vmatprep.subr.mxu0 0.0
    %v3880 = vand.u32 %v3317, 4294901760
    %3881 = vmatpush1.msra.mxu0 %v3880
    %3882 = vmatprep.subr.mxu0 0.0
    %v3883 = vand.u32 %v3316, 4294901760
    %3884 = vmatpush1.msra.mxu0 %v3883
    %3885 = vmatprep.subr.mxu0 0.0
    %v3886 = vand.u32 %v3315, 4294901760
    %3887 = vmatpush1.msra.mxu0 %v3886
    %3888 = vmatprep.subr.mxu0 0.0
    %v3889 = vand.u32 %v3314, 4294901760
    %3890 = vmatpush1.msra.mxu0 %v3889
    %3891 = vmatprep.subr.mxu0 0.0
    %v3892 = vand.u32 %v3313, 4294901760
    %3893 = vmatpush1.msra.mxu0 %v3892
    %3894 = vmatprep.subr.mxu0 0.0
    %v3895 = vand.u32 %v3312, 4294901760
    %3896 = vmatpush1.msra.mxu0 %v3895
    %3897 = vmatprep.subr.mxu0 0.0
    %v3898 = vand.u32 %v3311, 4294901760
    %3899 = vmatpush1.msra.mxu0 %v3898
    %3900 = vmatprep.subr.mxu0 0.0
    %v3901 = vand.u32 %v3310, 4294901760
    %3902 = vmatpush1.msra.mxu0 %v3901
    %3903 = vmatprep.subr.mxu0 0.0
    %v3904 = vand.u32 %v3309, 4294901760
    %3905 = vmatpush1.msra.mxu0 %v3904
    %3906 = vmatprep.subr.mxu0 0.0
    %v3907 = vand.u32 %v3308, 4294901760
    %3908 = vmatpush1.msra.mxu0 %v3907
    %3909 = vmatprep.subr.mxu0 0.0
    %v3910 = vand.u32 %v3307, 4294901760
    %3911 = vmatpush1.msra.mxu0 %v3910
    %3912 = vmatprep.subr.mxu0 0.0
    %v3913 = vand.u32 %v3306, 4294901760
    %3914 = vmatpush1.msra.mxu0 %v3913
    %3915 = vmatprep.subr.mxu0 0.0
    %v3916 = vand.u32 %v3305, 4294901760
    %3917 = vmatpush1.msra.mxu0 %v3916
    %3918 = vmatprep.subr.mxu0 0.0
    %v3919 = vand.u32 %v3304, 4294901760
    %3920 = vmatpush1.msra.mxu0 %v3919
    %3921 = vmatprep.subr.mxu0 0.0
    %v3922 = vand.u32 %v3303, 4294901760
    %3923 = vmatpush1.msra.mxu0 %v3922
    %3924 = vmatprep.subr.mxu0 0.0
    %v3925 = vand.u32 %v3302, 4294901760
    %3926 = vmatpush1.msra.mxu0 %v3925
    %3927 = vmatprep.subr.mxu0 0.0
    %3928 = vmatpush2.msra.mxu0 0.0
    %3929 = vmatprep.subr.mxu0 0.0
    %3930 = vmatpush2.msra.mxu0 0.0
    %3931 = vmatprep.subr.mxu0 0.0
    %3932 = vmatpush2.msra.mxu0 0.0
    %3933 = vmatprep.subr.mxu0 0.0
    %3934 = vmatpush2.msra.mxu0 0.0
    %3935 = vmatprep.subr.mxu0 0.0
    %3936 = vmatpush2.msra.mxu0 0.0
    %3937 = vmatprep.subr.mxu0 0.0
    %3938 = vmatpush2.msra.mxu0 0.0
    %3939 = vmatprep.subr.mxu0 0.0
    %3940 = vmatpush2.msra.mxu0 0.0
    %3941 = vmatprep.subr.mxu0 0.0
    %3942 = vmatpush2.msra.mxu0 0.0
    %3943 = vmatprep.subr.mxu0 0.0
    %3944 = vmatpush2.msra.mxu0 0.0
    %3945 = vmatprep.subr.mxu0 0.0
    %3946 = vmatpush2.msra.mxu0 0.0
    %3947 = vmatprep.subr.mxu0 0.0
    %3948 = vmatpush2.msra.mxu0 0.0
    %3949 = vmatprep.subr.mxu0 0.0
    %3950 = vmatpush2.msra.mxu0 0.0
    %3951 = vmatprep.subr.mxu0 0.0
    %3952 = vmatpush2.msra.mxu0 0.0
    %3953 = vmatprep.subr.mxu0 0.0
    %3954 = vmatpush2.msra.mxu0 0.0
    %3955 = vmatprep.subr.mxu0 0.0
    %3956 = vmatpush2.msra.mxu0 0.0
    %3957 = vmatprep.subr.mxu0 0.0
    %3958 = vmatpush2.msra.mxu0 0.0
    %3959 = vmatprep.mubr.f32.mxu0 0.0
    %v3960 = vand.u32 %v3301, 4294901760
    %3961 = vmatmul.mubr.f32.gmra.mxu0 %v3960
    %v3962 = vpop.f32.mrf.mxu0
    %v3963 = vadd.f32 %v3876, %v3962
    %v3964 = vpop.f32.mrf.mxu0
    %3965 = vdwg.mxu0
    %v3966 = vmul.f32 %v3963, %v3963
    %vm3967 = vcmask 1041408
    %v3968 = vsel %vm3967, %v3966, 0.0
    %3969 = vadd.xlane.f32.xlu0 %v3968
    %v3970 = vpop.xlane.xlu0 %3969
    %v3971 = vmax.f32 %v3970, 1e-24
    %v3972 = vrsqrt.pop %v3971
    %v3973 = vmul.f32 %v3963, %v3972
    %v3974 = vld [vmem:[#allocation3] sm:$0xff]
    %v3975 = vld [vmem:[#allocation3 + $0x8] sm:$0xff]
    %v3976 = vld [vmem:[#allocation3 + $0x10] sm:$0xff]
    %v3977 = vld [vmem:[#allocation3 + $0x18] sm:$0xff]
    %v3978 = vld [vmem:[#allocation14] sm:$0xff]
    %v3979 = vld [vmem:[#allocation14 + $0x8] sm:$0xff]
    %v3980 = vld [vmem:[#allocation14 + $0x10] sm:$0xff]
    %v3981 = vld [vmem:[#allocation14 + $0x18] sm:$0xff]
    %v3982 = vld [vmem:[#allocation14 + $0x20] sm:$0xff]
    %v3983 = vld [vmem:[#allocation14 + $0x28] sm:$0xff]
    %v3984 = vld [vmem:[#allocation14 + $0x30] sm:$0xff]
    %v3985 = vld [vmem:[#allocation14 + $0x38] sm:$0xff]
    %v3986 = vld [vmem:[%s8] sm:$0x1]
    %v3987 = vlaneseq
    %v3988 = vshrl.u32 %v3987, 7
    %v3989 = vsub.s32 0, %v3988
    %v3990 = vrot.slane %v3986, %v3989
    %vm3991 = vcmask 523264
    %v3993 = vsel %vm3991, %v3974, 0
    %v3996 = vsel %vm3991, %v3975, 0
    %v3999 = vsel %vm3991, %v3976, 0
    %v4002 = vsel %vm3991, %v3977, 0
    %4004 = vmatprep.subr.mxu0 0.0
    %4005 = vmatpush1.msra.mxu0 0.0
    %4006 = vmatprep.subr.mxu0 0.0
    %4007 = vmatpush1.msra.mxu0 0.0
    %4008 = vmatprep.subr.mxu0 0.0
    %4009 = vmatpush1.msra.mxu0 0.0
    %4010 = vmatprep.subr.mxu0 0.0
    %4011 = vmatpush1.msra.mxu0 0.0
    %4012 = vmatprep.subr.mxu0 0.0
    %4013 = vmatpush1.msra.mxu0 0.0
    %4014 = vmatprep.subr.mxu0 0.0
    %4015 = vmatpush1.msra.mxu0 0.0
    %4016 = vmatprep.subr.mxu0 0.0
    %4017 = vmatpush1.msra.mxu0 0.0
    %4018 = vmatprep.subr.mxu0 0.0
    %4019 = vmatpush1.msra.mxu0 0.0
    %4020 = vmatprep.subr.mxu0 0.0
    %v4021 = vand.u32 %v3985, 4294901760
    %4022 = vmatpush1.msra.mxu0 %v4021
    %4023 = vmatprep.subr.mxu0 0.0
    %v4024 = vand.u32 %v3984, 4294901760
    %4025 = vmatpush1.msra.mxu0 %v4024
    %4026 = vmatprep.subr.mxu0 0.0
    %v4027 = vand.u32 %v3983, 4294901760
    %4028 = vmatpush1.msra.mxu0 %v4027
    %4029 = vmatprep.subr.mxu0 0.0
    %v4030 = vand.u32 %v3982, 4294901760
    %4031 = vmatpush1.msra.mxu0 %v4030
    %4032 = vmatprep.subr.mxu0 0.0
    %v4033 = vand.u32 %v3981, 4294901760
    %4034 = vmatpush1.msra.mxu0 %v4033
    %4035 = vmatprep.subr.mxu0 0.0
    %v4036 = vand.u32 %v3980, 4294901760
    %4037 = vmatpush1.msra.mxu0 %v4036
    %4038 = vmatprep.subr.mxu0 0.0
    %v4039 = vand.u32 %v3979, 4294901760
    %4040 = vmatpush1.msra.mxu0 %v4039
    %4041 = vmatprep.subr.mxu0 0.0
    %v4042 = vand.u32 %v3978, 4294901760
    %4043 = vmatpush1.msra.mxu0 %v4042
    %4044 = vmatprep.subr.mxu0 0.0
    %4045 = vmatpush2.msra.mxu0 0.0
    %4046 = vmatprep.subr.mxu0 0.0
    %4047 = vmatpush2.msra.mxu0 0.0
    %4048 = vmatprep.subr.mxu0 0.0
    %4049 = vmatpush2.msra.mxu0 0.0
    %4050 = vmatprep.subr.mxu0 0.0
    %4051 = vmatpush2.msra.mxu0 0.0
    %4052 = vmatprep.subr.mxu0 0.0
    %4053 = vmatpush2.msra.mxu0 0.0
    %4054 = vmatprep.subr.mxu0 0.0
    %4055 = vmatpush2.msra.mxu0 0.0
    %4056 = vmatprep.subr.mxu0 0.0
    %4057 = vmatpush2.msra.mxu0 0.0
    %4058 = vmatprep.subr.mxu0 0.0
    %4059 = vmatpush2.msra.mxu0 0.0
    %4060 = vmatprep.subr.mxu0 0.0
    %4061 = vmatpush2.msra.mxu0 0.0
    %4062 = vmatprep.subr.mxu0 0.0
    %4063 = vmatpush2.msra.mxu0 0.0
    %4064 = vmatprep.subr.mxu0 0.0
    %4065 = vmatpush2.msra.mxu0 0.0
    %4066 = vmatprep.subr.mxu0 0.0
    %4067 = vmatpush2.msra.mxu0 0.0
    %4068 = vmatprep.subr.mxu0 0.0
    %4069 = vmatpush2.msra.mxu0 0.0
    %4070 = vmatprep.subr.mxu0 0.0
    %4071 = vmatpush2.msra.mxu0 0.0
    %4072 = vmatprep.subr.mxu0 0.0
    %4073 = vmatpush2.msra.mxu0 0.0
    %4074 = vmatprep.subr.mxu0 0.0
    %4075 = vmatpush2.msra.mxu0 0.0
    %4076 = vmatprep.mubr.f32.mxu0 0.0
    %v4077 = vand.u32 %v3993, 4294901760
    %v4078 = vsub.f32 %v3993, %v4077
    %v4079 = vand.u32 %v4078, 4294901760
    %v4080 = vsub.f32 %v4078, %v4079
    %v4081 = vand.u32 %v4080, 4294901760
    %4082 = vmatmul.mubr.f32.gmra.mxu0 %v4081
    %v4083 = vpop.f32.mrf.mxu0
    %v4084 = vadd.f32 %v3990, %v4083
    %v4085 = vpop.f32.mrf.mxu0
    %4086 = vmatprep.mubr.f32.mxu0 0.0
    %v4087 = vand.u32 %v3996, 4294901760
    %v4088 = vsub.f32 %v3996, %v4087
    %v4089 = vand.u32 %v4088, 4294901760
    %v4090 = vsub.f32 %v4088, %v4089
    %v4091 = vand.u32 %v4090, 4294901760
    %4092 = vmatmul.mubr.f32.gmra.mxu0 %v4091
    %v4093 = vpop.f32.mrf.mxu0
    %v4094 = vadd.f32 %v3990, %v4093
    %v4095 = vpop.f32.mrf.mxu0
    %4096 = vmatprep.mubr.f32.mxu0 0.0
    %v4097 = vand.u32 %v3999, 4294901760
    %v4098 = vsub.f32 %v3999, %v4097
    %v4099 = vand.u32 %v4098, 4294901760
    %v4100 = vsub.f32 %v4098, %v4099
    %v4101 = vand.u32 %v4100, 4294901760
    %4102 = vmatmul.mubr.f32.gmra.mxu0 %v4101
    %v4103 = vpop.f32.mrf.mxu0
    %v4104 = vadd.f32 %v3990, %v4103
    %v4105 = vpop.f32.mrf.mxu0
    %4106 = vmatprep.mubr.f32.mxu0 0.0
    %v4107 = vand.u32 %v4002, 4294901760
    %v4108 = vsub.f32 %v4002, %v4107
    %v4109 = vand.u32 %v4108, 4294901760
    %v4110 = vsub.f32 %v4108, %v4109
    %v4111 = vand.u32 %v4110, 4294901760
    %4112 = vmatmul.mubr.f32.gmra.mxu0 %v4111
    %v4113 = vpop.f32.mrf.mxu0
    %v4114 = vadd.f32 %v3990, %v4113
    %v4115 = vpop.f32.mrf.mxu0
    %4116 = vdwg.mxu0
    %4117 = vmatprep.subr.mxu0 0.0
    %4118 = vmatpush1.msra.mxu0 0.0
    %4119 = vmatprep.subr.mxu0 0.0
    %4120 = vmatpush1.msra.mxu0 0.0
    %4121 = vmatprep.subr.mxu0 0.0
    %4122 = vmatpush1.msra.mxu0 0.0
    %4123 = vmatprep.subr.mxu0 0.0
    %4124 = vmatpush1.msra.mxu0 0.0
    %4125 = vmatprep.subr.mxu0 0.0
    %4126 = vmatpush1.msra.mxu0 0.0
    %4127 = vmatprep.subr.mxu0 0.0
    %4128 = vmatpush1.msra.mxu0 0.0
    %4129 = vmatprep.subr.mxu0 0.0
    %4130 = vmatpush1.msra.mxu0 0.0
    %4131 = vmatprep.subr.mxu0 0.0
    %4132 = vmatpush1.msra.mxu0 0.0
    %4133 = vmatprep.subr.mxu0 0.0
    %v4134 = vand.u32 %v3985, 4294901760
    %v4135 = vsub.f32 %v3985, %v4134
    %v4136 = vand.u32 %v4135, 4294901760
    %v4137 = vsub.f32 %v4135, %v4136
    %v4138 = vand.u32 %v4137, 4294901760
    %4139 = vmatpush1.msra.mxu0 %v4138
    %4140 = vmatprep.subr.mxu0 0.0
    %v4141 = vand.u32 %v3984, 4294901760
    %v4142 = vsub.f32 %v3984, %v4141
    %v4143 = vand.u32 %v4142, 4294901760
    %v4144 = vsub.f32 %v4142, %v4143
    %v4145 = vand.u32 %v4144, 4294901760
    %4146 = vmatpush1.msra.mxu0 %v4145
    %4147 = vmatprep.subr.mxu0 0.0
    %v4148 = vand.u32 %v3983, 4294901760
    %v4149 = vsub.f32 %v3983, %v4148
    %v4150 = vand.u32 %v4149, 4294901760
    %v4151 = vsub.f32 %v4149, %v4150
    %v4152 = vand.u32 %v4151, 4294901760
    %4153 = vmatpush1.msra.mxu0 %v4152
    %4154 = vmatprep.subr.mxu0 0.0
    %v4155 = vand.u32 %v3982, 4294901760
    %v4156 = vsub.f32 %v3982, %v4155
    %v4157 = vand.u32 %v4156, 4294901760
    %v4158 = vsub.f32 %v4156, %v4157
    %v4159 = vand.u32 %v4158, 4294901760
    %4160 = vmatpush1.msra.mxu0 %v4159
    %4161 = vmatprep.subr.mxu0 0.0
    %v4162 = vand.u32 %v3981, 4294901760
    %v4163 = vsub.f32 %v3981, %v4162
    %v4164 = vand.u32 %v4163, 4294901760
    %v4165 = vsub.f32 %v4163, %v4164
    %v4166 = vand.u32 %v4165, 4294901760
    %4167 = vmatpush1.msra.mxu0 %v4166
    %4168 = vmatprep.subr.mxu0 0.0
    %v4169 = vand.u32 %v3980, 4294901760
    %v4170 = vsub.f32 %v3980, %v4169
    %v4171 = vand.u32 %v4170, 4294901760
    %v4172 = vsub.f32 %v4170, %v4171
    %v4173 = vand.u32 %v4172, 4294901760
    %4174 = vmatpush1.msra.mxu0 %v4173
    %4175 = vmatprep.subr.mxu0 0.0
    %v4176 = vand.u32 %v3979, 4294901760
    %v4177 = vsub.f32 %v3979, %v4176
    %v4178 = vand.u32 %v4177, 4294901760
    %v4179 = vsub.f32 %v4177, %v4178
    %v4180 = vand.u32 %v4179, 4294901760
    %4181 = vmatpush1.msra.mxu0 %v4180
    %4182 = vmatprep.subr.mxu0 0.0
    %v4183 = vand.u32 %v3978, 4294901760
    %v4184 = vsub.f32 %v3978, %v4183
    %v4185 = vand.u32 %v4184, 4294901760
    %v4186 = vsub.f32 %v4184, %v4185
    %v4187 = vand.u32 %v4186, 4294901760
    %4188 = vmatpush1.msra.mxu0 %v4187
    %4189 = vmatprep.subr.mxu0 0.0
    %4190 = vmatpush2.msra.mxu0 0.0
    %4191 = vmatprep.subr.mxu0 0.0
    %4192 = vmatpush2.msra.mxu0 0.0
    %4193 = vmatprep.subr.mxu0 0.0
    %4194 = vmatpush2.msra.mxu0 0.0
    %4195 = vmatprep.subr.mxu0 0.0
    %4196 = vmatpush2.msra.mxu0 0.0
    %4197 = vmatprep.subr.mxu0 0.0
    %4198 = vmatpush2.msra.mxu0 0.0
    %4199 = vmatprep.subr.mxu0 0.0
    %4200 = vmatpush2.msra.mxu0 0.0
    %4201 = vmatprep.subr.mxu0 0.0
    %4202 = vmatpush2.msra.mxu0 0.0
    %4203 = vmatprep.subr.mxu0 0.0
    %4204 = vmatpush2.msra.mxu0 0.0
    %4205 = vmatprep.subr.mxu0 0.0
    %4206 = vmatpush2.msra.mxu0 0.0
    %4207 = vmatprep.subr.mxu0 0.0
    %4208 = vmatpush2.msra.mxu0 0.0
    %4209 = vmatprep.subr.mxu0 0.0
    %4210 = vmatpush2.msra.mxu0 0.0
    %4211 = vmatprep.subr.mxu0 0.0
    %4212 = vmatpush2.msra.mxu0 0.0
    %4213 = vmatprep.subr.mxu0 0.0
    %4214 = vmatpush2.msra.mxu0 0.0
    %4215 = vmatprep.subr.mxu0 0.0
    %4216 = vmatpush2.msra.mxu0 0.0
    %4217 = vmatprep.subr.mxu0 0.0
    %4218 = vmatpush2.msra.mxu0 0.0
    %4219 = vmatprep.subr.mxu0 0.0
    %4220 = vmatpush2.msra.mxu0 0.0
    %4221 = vmatprep.mubr.f32.mxu0 0.0
    %v4222 = vand.u32 %v3993, 4294901760
    %4223 = vmatmul.mubr.f32.gmra.mxu0 %v4222
    %v4224 = vpop.f32.mrf.mxu0
    %v4225 = vadd.f32 %v4084, %v4224
    %v4226 = vpop.f32.mrf.mxu0
    %4227 = vmatprep.mubr.f32.mxu0 0.0
    %v4228 = vand.u32 %v3996, 4294901760
    %4229 = vmatmul.mubr.f32.gmra.mxu0 %v4228
    %v4230 = vpop.f32.mrf.mxu0
    %v4231 = vadd.f32 %v4094, %v4230
    %v4232 = vpop.f32.mrf.mxu0
    %4233 = vmatprep.mubr.f32.mxu0 0.0
    %v4234 = vand.u32 %v3999, 4294901760
    %4235 = vmatmul.mubr.f32.gmra.mxu0 %v4234
    %v4236 = vpop.f32.mrf.mxu0
    %v4237 = vadd.f32 %v4104, %v4236
    %v4238 = vpop.f32.mrf.mxu0
    %4239 = vmatprep.mubr.f32.mxu0 0.0
    %v4240 = vand.u32 %v4002, 4294901760
    %4241 = vmatmul.mubr.f32.gmra.mxu0 %v4240
    %v4242 = vpop.f32.mrf.mxu0
    %v4243 = vadd.f32 %v4114, %v4242
    %v4244 = vpop.f32.mrf.mxu0
    %4245 = vdwg.mxu0
    %4246 = vmatprep.subr.mxu0 0.0
    %4247 = vmatpush1.msra.mxu0 0.0
    %4248 = vmatprep.subr.mxu0 0.0
    %4249 = vmatpush1.msra.mxu0 0.0
    %4250 = vmatprep.subr.mxu0 0.0
    %4251 = vmatpush1.msra.mxu0 0.0
    %4252 = vmatprep.subr.mxu0 0.0
    %4253 = vmatpush1.msra.mxu0 0.0
    %4254 = vmatprep.subr.mxu0 0.0
    %4255 = vmatpush1.msra.mxu0 0.0
    %4256 = vmatprep.subr.mxu0 0.0
    %4257 = vmatpush1.msra.mxu0 0.0
    %4258 = vmatprep.subr.mxu0 0.0
    %4259 = vmatpush1.msra.mxu0 0.0
    %4260 = vmatprep.subr.mxu0 0.0
    %4261 = vmatpush1.msra.mxu0 0.0
    %4262 = vmatprep.subr.mxu0 0.0
    %v4263 = vand.u32 %v3985, 4294901760
    %v4264 = vsub.f32 %v3985, %v4263
    %4265 = vmatpush1.msra.mxu0 %v4264
    %4266 = vmatprep.subr.mxu0 0.0
    %v4267 = vand.u32 %v3984, 4294901760
    %v4268 = vsub.f32 %v3984, %v4267
    %4269 = vmatpush1.msra.mxu0 %v4268
    %4270 = vmatprep.subr.mxu0 0.0
    %v4271 = vand.u32 %v3983, 4294901760
    %v4272 = vsub.f32 %v3983, %v4271
    %4273 = vmatpush1.msra.mxu0 %v4272
    %4274 = vmatprep.subr.mxu0 0.0
    %v4275 = vand.u32 %v3982, 4294901760
    %v4276 = vsub.f32 %v3982, %v4275
    %4277 = vmatpush1.msra.mxu0 %v4276
    %4278 = vmatprep.subr.mxu0 0.0
    %v4279 = vand.u32 %v3981, 4294901760
    %v4280 = vsub.f32 %v3981, %v4279
    %4281 = vmatpush1.msra.mxu0 %v4280
    %4282 = vmatprep.subr.mxu0 0.0
    %v4283 = vand.u32 %v3980, 4294901760
    %v4284 = vsub.f32 %v3980, %v4283
    %4285 = vmatpush1.msra.mxu0 %v4284
    %4286 = vmatprep.subr.mxu0 0.0
    %v4287 = vand.u32 %v3979, 4294901760
    %v4288 = vsub.f32 %v3979, %v4287
    %4289 = vmatpush1.msra.mxu0 %v4288
    %4290 = vmatprep.subr.mxu0 0.0
    %v4291 = vand.u32 %v3978, 4294901760
    %v4292 = vsub.f32 %v3978, %v4291
    %4293 = vmatpush1.msra.mxu0 %v4292
    %4294 = vmatprep.subr.mxu0 0.0
    %4295 = vmatpush2.msra.mxu0 0.0
    %4296 = vmatprep.subr.mxu0 0.0
    %4297 = vmatpush2.msra.mxu0 0.0
    %4298 = vmatprep.subr.mxu0 0.0
    %4299 = vmatpush2.msra.mxu0 0.0
    %4300 = vmatprep.subr.mxu0 0.0
    %4301 = vmatpush2.msra.mxu0 0.0
    %4302 = vmatprep.subr.mxu0 0.0
    %4303 = vmatpush2.msra.mxu0 0.0
    %4304 = vmatprep.subr.mxu0 0.0
    %4305 = vmatpush2.msra.mxu0 0.0
    %4306 = vmatprep.subr.mxu0 0.0
    %4307 = vmatpush2.msra.mxu0 0.0
    %4308 = vmatprep.subr.mxu0 0.0
    %4309 = vmatpush2.msra.mxu0 0.0
    %4310 = vmatprep.subr.mxu0 0.0
    %4311 = vmatpush2.msra.mxu0 0.0
    %4312 = vmatprep.subr.mxu0 0.0
    %4313 = vmatpush2.msra.mxu0 0.0
    %4314 = vmatprep.subr.mxu0 0.0
    %4315 = vmatpush2.msra.mxu0 0.0
    %4316 = vmatprep.subr.mxu0 0.0
    %4317 = vmatpush2.msra.mxu0 0.0
    %4318 = vmatprep.subr.mxu0 0.0
    %4319 = vmatpush2.msra.mxu0 0.0
    %4320 = vmatprep.subr.mxu0 0.0
    %4321 = vmatpush2.msra.mxu0 0.0
    %4322 = vmatprep.subr.mxu0 0.0
    %4323 = vmatpush2.msra.mxu0 0.0
    %4324 = vmatprep.subr.mxu0 0.0
    %4325 = vmatpush2.msra.mxu0 0.0
    %4326 = vmatprep.mubr.f32.mxu0 0.0
    %v4327 = vand.u32 %v3993, 4294901760
    %v4328 = vsub.f32 %v3993, %v4327
    %4329 = vmatmul.mubr.f32.gmra.mxu0 %v4328
    %v4330 = vpop.f32.mrf.mxu0
    %v4331 = vadd.f32 %v4225, %v4330
    %v4332 = vpop.f32.mrf.mxu0
    %4333 = vmatprep.mubr.f32.mxu0 0.0
    %v4334 = vand.u32 %v3996, 4294901760
    %v4335 = vsub.f32 %v3996, %v4334
    %4336 = vmatmul.mubr.f32.gmra.mxu0 %v4335
    %v4337 = vpop.f32.mrf.mxu0
    %v4338 = vadd.f32 %v4231, %v4337
    %v4339 = vpop.f32.mrf.mxu0
    %4340 = vmatprep.mubr.f32.mxu0 0.0
    %v4341 = vand.u32 %v3999, 4294901760
    %v4342 = vsub.f32 %v3999, %v4341
    %4343 = vmatmul.mubr.f32.gmra.mxu0 %v4342
    %v4344 = vpop.f32.mrf.mxu0
    %v4345 = vadd.f32 %v4237, %v4344
    %v4346 = vpop.f32.mrf.mxu0
    %4347 = vmatprep.mubr.f32.mxu0 0.0
    %v4348 = vand.u32 %v4002, 4294901760
    %v4349 = vsub.f32 %v4002, %v4348
    %4350 = vmatmul.mubr.f32.gmra.mxu0 %v4349
    %v4351 = vpop.f32.mrf.mxu0
    %v4352 = vadd.f32 %v4243, %v4351
    %v4353 = vpop.f32.mrf.mxu0
    %4354 = vdwg.mxu0
    %4355 = vmatprep.subr.mxu0 0.0
    %4356 = vmatpush1.msra.mxu0 0.0
    %4357 = vmatprep.subr.mxu0 0.0
    %4358 = vmatpush1.msra.mxu0 0.0
    %4359 = vmatprep.subr.mxu0 0.0
    %4360 = vmatpush1.msra.mxu0 0.0
    %4361 = vmatprep.subr.mxu0 0.0
    %4362 = vmatpush1.msra.mxu0 0.0
    %4363 = vmatprep.subr.mxu0 0.0
    %4364 = vmatpush1.msra.mxu0 0.0
    %4365 = vmatprep.subr.mxu0 0.0
    %4366 = vmatpush1.msra.mxu0 0.0
    %4367 = vmatprep.subr.mxu0 0.0
    %4368 = vmatpush1.msra.mxu0 0.0
    %4369 = vmatprep.subr.mxu0 0.0
    %4370 = vmatpush1.msra.mxu0 0.0
    %4371 = vmatprep.subr.mxu0 0.0
    %v4372 = vand.u32 %v3985, 4294901760
    %4373 = vmatpush1.msra.mxu0 %v4372
    %4374 = vmatprep.subr.mxu0 0.0
    %v4375 = vand.u32 %v3984, 4294901760
    %4376 = vmatpush1.msra.mxu0 %v4375
    %4377 = vmatprep.subr.mxu0 0.0
    %v4378 = vand.u32 %v3983, 4294901760
    %4379 = vmatpush1.msra.mxu0 %v4378
    %4380 = vmatprep.subr.mxu0 0.0
    %v4381 = vand.u32 %v3982, 4294901760
    %4382 = vmatpush1.msra.mxu0 %v4381
    %4383 = vmatprep.subr.mxu0 0.0
    %v4384 = vand.u32 %v3981, 4294901760
    %4385 = vmatpush1.msra.mxu0 %v4384
    %4386 = vmatprep.subr.mxu0 0.0
    %v4387 = vand.u32 %v3980, 4294901760
    %4388 = vmatpush1.msra.mxu0 %v4387
    %4389 = vmatprep.subr.mxu0 0.0
    %v4390 = vand.u32 %v3979, 4294901760
    %4391 = vmatpush1.msra.mxu0 %v4390
    %4392 = vmatprep.subr.mxu0 0.0
    %v4393 = vand.u32 %v3978, 4294901760
    %4394 = vmatpush1.msra.mxu0 %v4393
    %4395 = vmatprep.subr.mxu0 0.0
    %4396 = vmatpush2.msra.mxu0 0.0
    %4397 = vmatprep.subr.mxu0 0.0
    %4398 = vmatpush2.msra.mxu0 0.0
    %4399 = vmatprep.subr.mxu0 0.0
    %4400 = vmatpush2.msra.mxu0 0.0
    %4401 = vmatprep.subr.mxu0 0.0
    %4402 = vmatpush2.msra.mxu0 0.0
    %4403 = vmatprep.subr.mxu0 0.0
    %4404 = vmatpush2.msra.mxu0 0.0
    %4405 = vmatprep.subr.mxu0 0.0
    %4406 = vmatpush2.msra.mxu0 0.0
    %4407 = vmatprep.subr.mxu0 0.0
    %4408 = vmatpush2.msra.mxu0 0.0
    %4409 = vmatprep.subr.mxu0 0.0
    %4410 = vmatpush2.msra.mxu0 0.0
    %4411 = vmatprep.subr.mxu0 0.0
    %4412 = vmatpush2.msra.mxu0 0.0
    %4413 = vmatprep.subr.mxu0 0.0
    %4414 = vmatpush2.msra.mxu0 0.0
    %4415 = vmatprep.subr.mxu0 0.0
    %4416 = vmatpush2.msra.mxu0 0.0
    %4417 = vmatprep.subr.mxu0 0.0
    %4418 = vmatpush2.msra.mxu0 0.0
    %4419 = vmatprep.subr.mxu0 0.0
    %4420 = vmatpush2.msra.mxu0 0.0
    %4421 = vmatprep.subr.mxu0 0.0
    %4422 = vmatpush2.msra.mxu0 0.0
    %4423 = vmatprep.subr.mxu0 0.0
    %4424 = vmatpush2.msra.mxu0 0.0
    %4425 = vmatprep.subr.mxu0 0.0
    %4426 = vmatpush2.msra.mxu0 0.0
    %4427 = vmatprep.mubr.f32.mxu0 0.0
    %v4428 = vand.u32 %v3993, 4294901760
    %v4429 = vsub.f32 %v3993, %v4428
    %v4430 = vand.u32 %v4429, 4294901760
    %4431 = vmatmul.mubr.f32.gmra.mxu0 %v4430
    %v4432 = vpop.f32.mrf.mxu0
    %v4433 = vadd.f32 %v4331, %v4432
    %v4434 = vpop.f32.mrf.mxu0
    %4435 = vmatprep.mubr.f32.mxu0 0.0
    %v4436 = vand.u32 %v3996, 4294901760
    %v4437 = vsub.f32 %v3996, %v4436
    %v4438 = vand.u32 %v4437, 4294901760
    %4439 = vmatmul.mubr.f32.gmra.mxu0 %v4438
    %v4440 = vpop.f32.mrf.mxu0
    %v4441 = vadd.f32 %v4338, %v4440
    %v4442 = vpop.f32.mrf.mxu0
    %4443 = vmatprep.mubr.f32.mxu0 0.0
    %v4444 = vand.u32 %v3999, 4294901760
    %v4445 = vsub.f32 %v3999, %v4444
    %v4446 = vand.u32 %v4445, 4294901760
    %4447 = vmatmul.mubr.f32.gmra.mxu0 %v4446
    %v4448 = vpop.f32.mrf.mxu0
    %v4449 = vadd.f32 %v4345, %v4448
    %v4450 = vpop.f32.mrf.mxu0
    %4451 = vmatprep.mubr.f32.mxu0 0.0
    %v4452 = vand.u32 %v4002, 4294901760
    %v4453 = vsub.f32 %v4002, %v4452
    %v4454 = vand.u32 %v4453, 4294901760
    %4455 = vmatmul.mubr.f32.gmra.mxu0 %v4454
    %v4456 = vpop.f32.mrf.mxu0
    %v4457 = vadd.f32 %v4352, %v4456
    %v4458 = vpop.f32.mrf.mxu0
    %4459 = vdwg.mxu0
    %4460 = vmatprep.subr.mxu0 0.0
    %4461 = vmatpush1.msra.mxu0 0.0
    %4462 = vmatprep.subr.mxu0 0.0
    %4463 = vmatpush1.msra.mxu0 0.0
    %4464 = vmatprep.subr.mxu0 0.0
    %4465 = vmatpush1.msra.mxu0 0.0
    %4466 = vmatprep.subr.mxu0 0.0
    %4467 = vmatpush1.msra.mxu0 0.0
    %4468 = vmatprep.subr.mxu0 0.0
    %4469 = vmatpush1.msra.mxu0 0.0
    %4470 = vmatprep.subr.mxu0 0.0
    %4471 = vmatpush1.msra.mxu0 0.0
    %4472 = vmatprep.subr.mxu0 0.0
    %4473 = vmatpush1.msra.mxu0 0.0
    %4474 = vmatprep.subr.mxu0 0.0
    %4475 = vmatpush1.msra.mxu0 0.0
    %4476 = vmatprep.subr.mxu0 0.0
    %v4477 = vand.u32 %v3985, 4294901760
    %v4478 = vsub.f32 %v3985, %v4477
    %v4479 = vand.u32 %v4478, 4294901760
    %4480 = vmatpush1.msra.mxu0 %v4479
    %4481 = vmatprep.subr.mxu0 0.0
    %v4482 = vand.u32 %v3984, 4294901760
    %v4483 = vsub.f32 %v3984, %v4482
    %v4484 = vand.u32 %v4483, 4294901760
    %4485 = vmatpush1.msra.mxu0 %v4484
    %4486 = vmatprep.subr.mxu0 0.0
    %v4487 = vand.u32 %v3983, 4294901760
    %v4488 = vsub.f32 %v3983, %v4487
    %v4489 = vand.u32 %v4488, 4294901760
    %4490 = vmatpush1.msra.mxu0 %v4489
    %4491 = vmatprep.subr.mxu0 0.0
    %v4492 = vand.u32 %v3982, 4294901760
    %v4493 = vsub.f32 %v3982, %v4492
    %v4494 = vand.u32 %v4493, 4294901760
    %4495 = vmatpush1.msra.mxu0 %v4494
    %4496 = vmatprep.subr.mxu0 0.0
    %v4497 = vand.u32 %v3981, 4294901760
    %v4498 = vsub.f32 %v3981, %v4497
    %v4499 = vand.u32 %v4498, 4294901760
    %4500 = vmatpush1.msra.mxu0 %v4499
    %4501 = vmatprep.subr.mxu0 0.0
    %v4502 = vand.u32 %v3980, 4294901760
    %v4503 = vsub.f32 %v3980, %v4502
    %v4504 = vand.u32 %v4503, 4294901760
    %4505 = vmatpush1.msra.mxu0 %v4504
    %4506 = vmatprep.subr.mxu0 0.0
    %v4507 = vand.u32 %v3979, 4294901760
    %v4508 = vsub.f32 %v3979, %v4507
    %v4509 = vand.u32 %v4508, 4294901760
    %4510 = vmatpush1.msra.mxu0 %v4509
    %4511 = vmatprep.subr.mxu0 0.0
    %v4512 = vand.u32 %v3978, 4294901760
    %v4513 = vsub.f32 %v3978, %v4512
    %v4514 = vand.u32 %v4513, 4294901760
    %4515 = vmatpush1.msra.mxu0 %v4514
    %4516 = vmatprep.subr.mxu0 0.0
    %4517 = vmatpush2.msra.mxu0 0.0
    %4518 = vmatprep.subr.mxu0 0.0
    %4519 = vmatpush2.msra.mxu0 0.0
    %4520 = vmatprep.subr.mxu0 0.0
    %4521 = vmatpush2.msra.mxu0 0.0
    %4522 = vmatprep.subr.mxu0 0.0
    %4523 = vmatpush2.msra.mxu0 0.0
    %4524 = vmatprep.subr.mxu0 0.0
    %4525 = vmatpush2.msra.mxu0 0.0
    %4526 = vmatprep.subr.mxu0 0.0
    %4527 = vmatpush2.msra.mxu0 0.0
    %4528 = vmatprep.subr.mxu0 0.0
    %4529 = vmatpush2.msra.mxu0 0.0
    %4530 = vmatprep.subr.mxu0 0.0
    %4531 = vmatpush2.msra.mxu0 0.0
    %4532 = vmatprep.subr.mxu0 0.0
    %4533 = vmatpush2.msra.mxu0 0.0
    %4534 = vmatprep.subr.mxu0 0.0
    %4535 = vmatpush2.msra.mxu0 0.0
    %4536 = vmatprep.subr.mxu0 0.0
    %4537 = vmatpush2.msra.mxu0 0.0
    %4538 = vmatprep.subr.mxu0 0.0
    %4539 = vmatpush2.msra.mxu0 0.0
    %4540 = vmatprep.subr.mxu0 0.0
    %4541 = vmatpush2.msra.mxu0 0.0
    %4542 = vmatprep.subr.mxu0 0.0
    %4543 = vmatpush2.msra.mxu0 0.0
    %4544 = vmatprep.subr.mxu0 0.0
    %4545 = vmatpush2.msra.mxu0 0.0
    %4546 = vmatprep.subr.mxu0 0.0
    %4547 = vmatpush2.msra.mxu0 0.0
    %4548 = vmatprep.mubr.f32.mxu0 0.0
    %v4549 = vand.u32 %v3993, 4294901760
    %4550 = vmatmul.mubr.f32.gmra.mxu0 %v4549
    %v4551 = vpop.f32.mrf.mxu0
    %v4552 = vadd.f32 %v4433, %v4551
    %v4553 = vpop.f32.mrf.mxu0
    %4554 = vmatprep.mubr.f32.mxu0 0.0
    %v4555 = vand.u32 %v3996, 4294901760
    %4556 = vmatmul.mubr.f32.gmra.mxu0 %v4555
    %v4557 = vpop.f32.mrf.mxu0
    %v4558 = vadd.f32 %v4441, %v4557
    %v4559 = vpop.f32.mrf.mxu0
    %4560 = vmatprep.mubr.f32.mxu0 0.0
    %v4561 = vand.u32 %v3999, 4294901760
    %4562 = vmatmul.mubr.f32.gmra.mxu0 %v4561
    %v4563 = vpop.f32.mrf.mxu0
    %v4564 = vadd.f32 %v4449, %v4563
    %v4565 = vpop.f32.mrf.mxu0
    %4566 = vmatprep.mubr.f32.mxu0 0.0
    %v4567 = vand.u32 %v4002, 4294901760
    %4568 = vmatmul.mubr.f32.gmra.mxu0 %v4567
    %v4569 = vpop.f32.mrf.mxu0
    %v4570 = vadd.f32 %v4457, %v4569
    %v4571 = vpop.f32.mrf.mxu0
    %4572 = vdwg.mxu0
    %4573 = vmatprep.subr.mxu0 0.0
    %4574 = vmatpush1.msra.mxu0 0.0
    %4575 = vmatprep.subr.mxu0 0.0
    %4576 = vmatpush1.msra.mxu0 0.0
    %4577 = vmatprep.subr.mxu0 0.0
    %4578 = vmatpush1.msra.mxu0 0.0
    %4579 = vmatprep.subr.mxu0 0.0
    %4580 = vmatpush1.msra.mxu0 0.0
    %4581 = vmatprep.subr.mxu0 0.0
    %4582 = vmatpush1.msra.mxu0 0.0
    %4583 = vmatprep.subr.mxu0 0.0
    %4584 = vmatpush1.msra.mxu0 0.0
    %4585 = vmatprep.subr.mxu0 0.0
    %4586 = vmatpush1.msra.mxu0 0.0
    %4587 = vmatprep.subr.mxu0 0.0
    %4588 = vmatpush1.msra.mxu0 0.0
    %4589 = vmatprep.subr.mxu0 0.0
    %v4590 = vand.u32 %v3985, 4294901760
    %4591 = vmatpush1.msra.mxu0 %v4590
    %4592 = vmatprep.subr.mxu0 0.0
    %v4593 = vand.u32 %v3984, 4294901760
    %4594 = vmatpush1.msra.mxu0 %v4593
    %4595 = vmatprep.subr.mxu0 0.0
    %v4596 = vand.u32 %v3983, 4294901760
    %4597 = vmatpush1.msra.mxu0 %v4596
    %4598 = vmatprep.subr.mxu0 0.0
    %v4599 = vand.u32 %v3982, 4294901760
    %4600 = vmatpush1.msra.mxu0 %v4599
    %4601 = vmatprep.subr.mxu0 0.0
    %v4602 = vand.u32 %v3981, 4294901760
    %4603 = vmatpush1.msra.mxu0 %v4602
    %4604 = vmatprep.subr.mxu0 0.0
    %v4605 = vand.u32 %v3980, 4294901760
    %4606 = vmatpush1.msra.mxu0 %v4605
    %4607 = vmatprep.subr.mxu0 0.0
    %v4608 = vand.u32 %v3979, 4294901760
    %4609 = vmatpush1.msra.mxu0 %v4608
    %4610 = vmatprep.subr.mxu0 0.0
    %v4611 = vand.u32 %v3978, 4294901760
    %4612 = vmatpush1.msra.mxu0 %v4611
    %4613 = vmatprep.subr.mxu0 0.0
    %4614 = vmatpush2.msra.mxu0 0.0
    %4615 = vmatprep.subr.mxu0 0.0
    %4616 = vmatpush2.msra.mxu0 0.0
    %4617 = vmatprep.subr.mxu0 0.0
    %4618 = vmatpush2.msra.mxu0 0.0
    %4619 = vmatprep.subr.mxu0 0.0
    %4620 = vmatpush2.msra.mxu0 0.0
    %4621 = vmatprep.subr.mxu0 0.0
    %4622 = vmatpush2.msra.mxu0 0.0
    %4623 = vmatprep.subr.mxu0 0.0
    %4624 = vmatpush2.msra.mxu0 0.0
    %4625 = vmatprep.subr.mxu0 0.0
    %4626 = vmatpush2.msra.mxu0 0.0
    %4627 = vmatprep.subr.mxu0 0.0
    %4628 = vmatpush2.msra.mxu0 0.0
    %4629 = vmatprep.subr.mxu0 0.0
    %4630 = vmatpush2.msra.mxu0 0.0
    %4631 = vmatprep.subr.mxu0 0.0
    %4632 = vmatpush2.msra.mxu0 0.0
    %4633 = vmatprep.subr.mxu0 0.0
    %4634 = vmatpush2.msra.mxu0 0.0
    %4635 = vmatprep.subr.mxu0 0.0
    %4636 = vmatpush2.msra.mxu0 0.0
    %4637 = vmatprep.subr.mxu0 0.0
    %4638 = vmatpush2.msra.mxu0 0.0
    %4639 = vmatprep.subr.mxu0 0.0
    %4640 = vmatpush2.msra.mxu0 0.0
    %4641 = vmatprep.subr.mxu0 0.0
    %4642 = vmatpush2.msra.mxu0 0.0
    %4643 = vmatprep.subr.mxu0 0.0
    %4644 = vmatpush2.msra.mxu0 0.0
    %4645 = vmatprep.mubr.f32.mxu0 0.0
    %v4646 = vand.u32 %v3993, 4294901760
    %4647 = vmatmul.mubr.f32.gmra.mxu0 %v4646
    %v4648 = vpop.f32.mrf.mxu0
    %v4649 = vadd.f32 %v4552, %v4648
    %v4650 = vpop.f32.mrf.mxu0
    %4651 = vmatprep.mubr.f32.mxu0 0.0
    %v4652 = vand.u32 %v3996, 4294901760
    %4653 = vmatmul.mubr.f32.gmra.mxu0 %v4652
    %v4654 = vpop.f32.mrf.mxu0
    %v4655 = vadd.f32 %v4558, %v4654
    %v4656 = vpop.f32.mrf.mxu0
    %4657 = vmatprep.mubr.f32.mxu0 0.0
    %v4658 = vand.u32 %v3999, 4294901760
    %4659 = vmatmul.mubr.f32.gmra.mxu0 %v4658
    %v4660 = vpop.f32.mrf.mxu0
    %v4661 = vadd.f32 %v4564, %v4660
    %v4662 = vpop.f32.mrf.mxu0
    %4663 = vmatprep.mubr.f32.mxu0 0.0
    %v4664 = vand.u32 %v4002, 4294901760
    %4665 = vmatmul.mubr.f32.gmra.mxu0 %v4664
    %v4666 = vpop.f32.mrf.mxu0
    %v4667 = vadd.f32 %v4570, %v4666
    %v4668 = vpop.f32.mrf.mxu0
    %4669 = vdwg.mxu0
    %v4670 = vmax.f32 %v4649, 0.0
    %v4671 = vmax.f32 %v4655, 0.0
    %v4672 = vmax.f32 %v4661, 0.0
    %v4673 = vmax.f32 %v4667, 0.0
    %v4674 = vld [vmem:[#allocation14 + $0x40] sm:$0xff]
    %v4675 = vld [vmem:[#allocation14 + $0x48] sm:$0xff]
    %v4676 = vld [vmem:[#allocation14 + $0x50] sm:$0xff]
    %v4677 = vld [vmem:[#allocation14 + $0x58] sm:$0xff]
    %v4678 = vld [vmem:[#allocation14 + $0x60] sm:$0xff]
    %v4679 = vld [vmem:[#allocation14 + $0x68] sm:$0xff]
    %v4680 = vld [vmem:[#allocation14 + $0x70] sm:$0xff]
    %v4681 = vld [vmem:[#allocation14 + $0x78] sm:$0xff]
    %v4682 = vld [vmem:[#allocation14 + $0x80] sm:$0xff]
    %v4683 = vld [vmem:[#allocation14 + $0x88] sm:$0xff]
    %v4684 = vld [vmem:[#allocation14 + $0x90] sm:$0xff]
    %v4685 = vld [vmem:[#allocation14 + $0x98] sm:$0xff]
    %v4686 = vld [vmem:[#allocation14 + $0xa0] sm:$0xff]
    %v4687 = vld [vmem:[#allocation14 + $0xa8] sm:$0xff]
    %v4688 = vld [vmem:[#allocation14 + $0xb0] sm:$0xff]
    %v4689 = vld [vmem:[#allocation14 + $0xb8] sm:$0xff]
    %v4690 = vld [vmem:[#allocation14 + $0xc0] sm:$0xff]
    %v4691 = vld [vmem:[#allocation14 + $0xc8] sm:$0xff]
    %v4692 = vld [vmem:[#allocation14 + $0xd0] sm:$0xff]
    %v4693 = vld [vmem:[#allocation14 + $0xd8] sm:$0xff]
    %v4694 = vld [vmem:[#allocation14 + $0xe0] sm:$0xff]
    %v4695 = vld [vmem:[#allocation14 + $0xe8] sm:$0xff]
    %v4696 = vld [vmem:[#allocation14 + $0xf0] sm:$0xff]
    %v4697 = vld [vmem:[#allocation14 + $0xf8] sm:$0xff]
    %v4698 = vld [vmem:[#allocation14 + $0x100] sm:$0xff]
    %v4699 = vld [vmem:[#allocation14 + $0x108] sm:$0xff]
    %v4700 = vld [vmem:[#allocation14 + $0x110] sm:$0xff]
    %v4701 = vld [vmem:[#allocation14 + $0x118] sm:$0xff]
    %v4702 = vld [vmem:[#allocation14 + $0x120] sm:$0xff]
    %v4703 = vld [vmem:[#allocation14 + $0x128] sm:$0xff]
    %v4704 = vld [vmem:[#allocation14 + $0x130] sm:$0xff]
    %v4705 = vld [vmem:[#allocation14 + $0x138] sm:$0xff]
    %v4706 = vld [vmem:[%s8 + $0x1] sm:$0x1]
    %v4707 = vld [vmem:[%s8 + $0x2] sm:$0x1]
    %v4708 = vlaneseq
    %v4709 = vshrl.u32 %v4708, 7
    %v4710 = vsub.s32 0, %v4709
    %v4711 = vrot.slane %v4706, %v4710
    %4712 = vmatprep.subr.mxu0 0.0
    %v4713 = vand.u32 %v4689, 4294901760
    %4714 = vmatpush1.msra.mxu0 %v4713
    %4715 = vmatprep.subr.mxu0 0.0
    %v4716 = vand.u32 %v4688, 4294901760
    %4717 = vmatpush1.msra.mxu0 %v4716
    %4718 = vmatprep.subr.mxu0 0.0
    %v4719 = vand.u32 %v4687, 4294901760
    %4720 = vmatpush1.msra.mxu0 %v4719
    %4721 = vmatprep.subr.mxu0 0.0
    %v4722 = vand.u32 %v4686, 4294901760
    %4723 = vmatpush1.msra.mxu0 %v4722
    %4724 = vmatprep.subr.mxu0 0.0
    %v4725 = vand.u32 %v4685, 4294901760
    %4726 = vmatpush1.msra.mxu0 %v4725
    %4727 = vmatprep.subr.mxu0 0.0
    %v4728 = vand.u32 %v4684, 4294901760
    %4729 = vmatpush1.msra.mxu0 %v4728
    %4730 = vmatprep.subr.mxu0 0.0
    %v4731 = vand.u32 %v4683, 4294901760
    %4732 = vmatpush1.msra.mxu0 %v4731
    %4733 = vmatprep.subr.mxu0 0.0
    %v4734 = vand.u32 %v4682, 4294901760
    %4735 = vmatpush1.msra.mxu0 %v4734
    %4736 = vmatprep.subr.mxu0 0.0
    %v4737 = vand.u32 %v4681, 4294901760
    %4738 = vmatpush1.msra.mxu0 %v4737
    %4739 = vmatprep.subr.mxu0 0.0
    %v4740 = vand.u32 %v4680, 4294901760
    %4741 = vmatpush1.msra.mxu0 %v4740
    %4742 = vmatprep.subr.mxu0 0.0
    %v4743 = vand.u32 %v4679, 4294901760
    %4744 = vmatpush1.msra.mxu0 %v4743
    %4745 = vmatprep.subr.mxu0 0.0
    %v4746 = vand.u32 %v4678, 4294901760
    %4747 = vmatpush1.msra.mxu0 %v4746
    %4748 = vmatprep.subr.mxu0 0.0
    %v4749 = vand.u32 %v4677, 4294901760
    %4750 = vmatpush1.msra.mxu0 %v4749
    %4751 = vmatprep.subr.mxu0 0.0
    %v4752 = vand.u32 %v4676, 4294901760
    %4753 = vmatpush1.msra.mxu0 %v4752
    %4754 = vmatprep.subr.mxu0 0.0
    %v4755 = vand.u32 %v4675, 4294901760
    %4756 = vmatpush1.msra.mxu0 %v4755
    %4757 = vmatprep.subr.mxu0 0.0
    %v4758 = vand.u32 %v4674, 4294901760
    %4759 = vmatpush1.msra.mxu0 %v4758
    %4760 = vmatprep.subr.mxu0 0.0
    %4761 = vmatpush2.msra.mxu0 0.0
    %4762 = vmatprep.subr.mxu0 0.0
    %4763 = vmatpush2.msra.mxu0 0.0
    %4764 = vmatprep.subr.mxu0 0.0
    %4765 = vmatpush2.msra.mxu0 0.0
    %4766 = vmatprep.subr.mxu0 0.0
    %4767 = vmatpush2.msra.mxu0 0.0
    %4768 = vmatprep.subr.mxu0 0.0
    %4769 = vmatpush2.msra.mxu0 0.0
    %4770 = vmatprep.subr.mxu0 0.0
    %4771 = vmatpush2.msra.mxu0 0.0
    %4772 = vmatprep.subr.mxu0 0.0
    %4773 = vmatpush2.msra.mxu0 0.0
    %4774 = vmatprep.subr.mxu0 0.0
    %4775 = vmatpush2.msra.mxu0 0.0
    %4776 = vmatprep.subr.mxu0 0.0
    %4777 = vmatpush2.msra.mxu0 0.0
    %4778 = vmatprep.subr.mxu0 0.0
    %4779 = vmatpush2.msra.mxu0 0.0
    %4780 = vmatprep.subr.mxu0 0.0
    %4781 = vmatpush2.msra.mxu0 0.0
    %4782 = vmatprep.subr.mxu0 0.0
    %4783 = vmatpush2.msra.mxu0 0.0
    %4784 = vmatprep.subr.mxu0 0.0
    %4785 = vmatpush2.msra.mxu0 0.0
    %4786 = vmatprep.subr.mxu0 0.0
    %4787 = vmatpush2.msra.mxu0 0.0
    %4788 = vmatprep.subr.mxu0 0.0
    %4789 = vmatpush2.msra.mxu0 0.0
    %4790 = vmatprep.subr.mxu0 0.0
    %4791 = vmatpush2.msra.mxu0 0.0
    %4792 = vmatprep.mubr.f32.mxu0 0.0
    %v4793 = vand.u32 %v4670, 4294901760
    %v4794 = vsub.f32 %v4670, %v4793
    %v4795 = vand.u32 %v4794, 4294901760
    %v4796 = vsub.f32 %v4794, %v4795
    %v4797 = vand.u32 %v4796, 4294901760
    %4798 = vmatmul.mubr.f32.gmra.mxu0 %v4797
    %v4799 = vpop.f32.mrf.mxu0
    %v4800 = vadd.f32 %v4711, %v4799
    %v4801 = vpop.f32.mrf.mxu0
    %4802 = vmatprep.mubr.f32.mxu0 0.0
    %v4803 = vand.u32 %v4671, 4294901760
    %v4804 = vsub.f32 %v4671, %v4803
    %v4805 = vand.u32 %v4804, 4294901760
    %v4806 = vsub.f32 %v4804, %v4805
    %v4807 = vand.u32 %v4806, 4294901760
    %4808 = vmatmul.mubr.f32.gmra.mxu0 %v4807
    %v4809 = vpop.f32.mrf.mxu0
    %v4810 = vadd.f32 %v4711, %v4809
    %v4811 = vpop.f32.mrf.mxu0
    %4812 = vmatprep.mubr.f32.mxu0 0.0
    %v4813 = vand.u32 %v4672, 4294901760
    %v4814 = vsub.f32 %v4672, %v4813
    %v4815 = vand.u32 %v4814, 4294901760
    %v4816 = vsub.f32 %v4814, %v4815
    %v4817 = vand.u32 %v4816, 4294901760
    %4818 = vmatmul.mubr.f32.gmra.mxu0 %v4817
    %v4819 = vpop.f32.mrf.mxu0
    %v4820 = vadd.f32 %v4711, %v4819
    %v4821 = vpop.f32.mrf.mxu0
    %4822 = vmatprep.mubr.f32.mxu0 0.0
    %v4823 = vand.u32 %v4673, 4294901760
    %v4824 = vsub.f32 %v4673, %v4823
    %v4825 = vand.u32 %v4824, 4294901760
    %v4826 = vsub.f32 %v4824, %v4825
    %v4827 = vand.u32 %v4826, 4294901760
    %4828 = vmatmul.mubr.f32.gmra.mxu0 %v4827
    %v4829 = vpop.f32.mrf.mxu0
    %v4830 = vadd.f32 %v4711, %v4829
    %v4831 = vpop.f32.mrf.mxu0
    %4832 = vdwg.mxu0
    %4833 = vmatprep.subr.mxu0 0.0
    %v4834 = vand.u32 %v4689, 4294901760
    %v4835 = vsub.f32 %v4689, %v4834
    %v4836 = vand.u32 %v4835, 4294901760
    %v4837 = vsub.f32 %v4835, %v4836
    %v4838 = vand.u32 %v4837, 4294901760
    %4839 = vmatpush1.msra.mxu0 %v4838
    %4840 = vmatprep.subr.mxu0 0.0
    %v4841 = vand.u32 %v4688, 4294901760
    %v4842 = vsub.f32 %v4688, %v4841
    %v4843 = vand.u32 %v4842, 4294901760
    %v4844 = vsub.f32 %v4842, %v4843
    %v4845 = vand.u32 %v4844, 4294901760
    %4846 = vmatpush1.msra.mxu0 %v4845
    %4847 = vmatprep.subr.mxu0 0.0
    %v4848 = vand.u32 %v4687, 4294901760
    %v4849 = vsub.f32 %v4687, %v4848
    %v4850 = vand.u32 %v4849, 4294901760
    %v4851 = vsub.f32 %v4849, %v4850
    %v4852 = vand.u32 %v4851, 4294901760
    %4853 = vmatpush1.msra.mxu0 %v4852
    %4854 = vmatprep.subr.mxu0 0.0
    %v4855 = vand.u32 %v4686, 4294901760
    %v4856 = vsub.f32 %v4686, %v4855
    %v4857 = vand.u32 %v4856, 4294901760
    %v4858 = vsub.f32 %v4856, %v4857
    %v4859 = vand.u32 %v4858, 4294901760
    %4860 = vmatpush1.msra.mxu0 %v4859
    %4861 = vmatprep.subr.mxu0 0.0
    %v4862 = vand.u32 %v4685, 4294901760
    %v4863 = vsub.f32 %v4685, %v4862
    %v4864 = vand.u32 %v4863, 4294901760
    %v4865 = vsub.f32 %v4863, %v4864
    %v4866 = vand.u32 %v4865, 4294901760
    %4867 = vmatpush1.msra.mxu0 %v4866
    %4868 = vmatprep.subr.mxu0 0.0
    %v4869 = vand.u32 %v4684, 4294901760
    %v4870 = vsub.f32 %v4684, %v4869
    %v4871 = vand.u32 %v4870, 4294901760
    %v4872 = vsub.f32 %v4870, %v4871
    %v4873 = vand.u32 %v4872, 4294901760
    %4874 = vmatpush1.msra.mxu0 %v4873
    %4875 = vmatprep.subr.mxu0 0.0
    %v4876 = vand.u32 %v4683, 4294901760
    %v4877 = vsub.f32 %v4683, %v4876
    %v4878 = vand.u32 %v4877, 4294901760
    %v4879 = vsub.f32 %v4877, %v4878
    %v4880 = vand.u32 %v4879, 4294901760
    %4881 = vmatpush1.msra.mxu0 %v4880
    %4882 = vmatprep.subr.mxu0 0.0
    %v4883 = vand.u32 %v4682, 4294901760
    %v4884 = vsub.f32 %v4682, %v4883
    %v4885 = vand.u32 %v4884, 4294901760
    %v4886 = vsub.f32 %v4884, %v4885
    %v4887 = vand.u32 %v4886, 4294901760
    %4888 = vmatpush1.msra.mxu0 %v4887
    %4889 = vmatprep.subr.mxu0 0.0
    %v4890 = vand.u32 %v4681, 4294901760
    %v4891 = vsub.f32 %v4681, %v4890
    %v4892 = vand.u32 %v4891, 4294901760
    %v4893 = vsub.f32 %v4891, %v4892
    %v4894 = vand.u32 %v4893, 4294901760
    %4895 = vmatpush1.msra.mxu0 %v4894
    %4896 = vmatprep.subr.mxu0 0.0
    %v4897 = vand.u32 %v4680, 4294901760
    %v4898 = vsub.f32 %v4680, %v4897
    %v4899 = vand.u32 %v4898, 4294901760
    %v4900 = vsub.f32 %v4898, %v4899
    %v4901 = vand.u32 %v4900, 4294901760
    %4902 = vmatpush1.msra.mxu0 %v4901
    %4903 = vmatprep.subr.mxu0 0.0
    %v4904 = vand.u32 %v4679, 4294901760
    %v4905 = vsub.f32 %v4679, %v4904
    %v4906 = vand.u32 %v4905, 4294901760
    %v4907 = vsub.f32 %v4905, %v4906
    %v4908 = vand.u32 %v4907, 4294901760
    %4909 = vmatpush1.msra.mxu0 %v4908
    %4910 = vmatprep.subr.mxu0 0.0
    %v4911 = vand.u32 %v4678, 4294901760
    %v4912 = vsub.f32 %v4678, %v4911
    %v4913 = vand.u32 %v4912, 4294901760
    %v4914 = vsub.f32 %v4912, %v4913
    %v4915 = vand.u32 %v4914, 4294901760
    %4916 = vmatpush1.msra.mxu0 %v4915
    %4917 = vmatprep.subr.mxu0 0.0
    %v4918 = vand.u32 %v4677, 4294901760
    %v4919 = vsub.f32 %v4677, %v4918
    %v4920 = vand.u32 %v4919, 4294901760
    %v4921 = vsub.f32 %v4919, %v4920
    %v4922 = vand.u32 %v4921, 4294901760
    %4923 = vmatpush1.msra.mxu0 %v4922
    %4924 = vmatprep.subr.mxu0 0.0
    %v4925 = vand.u32 %v4676, 4294901760
    %v4926 = vsub.f32 %v4676, %v4925
    %v4927 = vand.u32 %v4926, 4294901760
    %v4928 = vsub.f32 %v4926, %v4927
    %v4929 = vand.u32 %v4928, 4294901760
    %4930 = vmatpush1.msra.mxu0 %v4929
    %4931 = vmatprep.subr.mxu0 0.0
    %v4932 = vand.u32 %v4675, 4294901760
    %v4933 = vsub.f32 %v4675, %v4932
    %v4934 = vand.u32 %v4933, 4294901760
    %v4935 = vsub.f32 %v4933, %v4934
    %v4936 = vand.u32 %v4935, 4294901760
    %4937 = vmatpush1.msra.mxu0 %v4936
    %4938 = vmatprep.subr.mxu0 0.0
    %v4939 = vand.u32 %v4674, 4294901760
    %v4940 = vsub.f32 %v4674, %v4939
    %v4941 = vand.u32 %v4940, 4294901760
    %v4942 = vsub.f32 %v4940, %v4941
    %v4943 = vand.u32 %v4942, 4294901760
    %4944 = vmatpush1.msra.mxu0 %v4943
    %4945 = vmatprep.subr.mxu0 0.0
    %4946 = vmatpush2.msra.mxu0 0.0
    %4947 = vmatprep.subr.mxu0 0.0
    %4948 = vmatpush2.msra.mxu0 0.0
    %4949 = vmatprep.subr.mxu0 0.0
    %4950 = vmatpush2.msra.mxu0 0.0
    %4951 = vmatprep.subr.mxu0 0.0
    %4952 = vmatpush2.msra.mxu0 0.0
    %4953 = vmatprep.subr.mxu0 0.0
    %4954 = vmatpush2.msra.mxu0 0.0
    %4955 = vmatprep.subr.mxu0 0.0
    %4956 = vmatpush2.msra.mxu0 0.0
    %4957 = vmatprep.subr.mxu0 0.0
    %4958 = vmatpush2.msra.mxu0 0.0
    %4959 = vmatprep.subr.mxu0 0.0
    %4960 = vmatpush2.msra.mxu0 0.0
    %4961 = vmatprep.subr.mxu0 0.0
    %4962 = vmatpush2.msra.mxu0 0.0
    %4963 = vmatprep.subr.mxu0 0.0
    %4964 = vmatpush2.msra.mxu0 0.0
    %4965 = vmatprep.subr.mxu0 0.0
    %4966 = vmatpush2.msra.mxu0 0.0
    %4967 = vmatprep.subr.mxu0 0.0
    %4968 = vmatpush2.msra.mxu0 0.0
    %4969 = vmatprep.subr.mxu0 0.0
    %4970 = vmatpush2.msra.mxu0 0.0
    %4971 = vmatprep.subr.mxu0 0.0
    %4972 = vmatpush2.msra.mxu0 0.0
    %4973 = vmatprep.subr.mxu0 0.0
    %4974 = vmatpush2.msra.mxu0 0.0
    %4975 = vmatprep.subr.mxu0 0.0
    %4976 = vmatpush2.msra.mxu0 0.0
    %4977 = vmatprep.mubr.f32.mxu0 0.0
    %v4978 = vand.u32 %v4670, 4294901760
    %4979 = vmatmul.mubr.f32.gmra.mxu0 %v4978
    %v4980 = vpop.f32.mrf.mxu0
    %v4981 = vadd.f32 %v4800, %v4980
    %v4982 = vpop.f32.mrf.mxu0
    %4983 = vmatprep.mubr.f32.mxu0 0.0
    %v4984 = vand.u32 %v4671, 4294901760
    %4985 = vmatmul.mubr.f32.gmra.mxu0 %v4984
    %v4986 = vpop.f32.mrf.mxu0
    %v4987 = vadd.f32 %v4810, %v4986
    %v4988 = vpop.f32.mrf.mxu0
    %4989 = vmatprep.mubr.f32.mxu0 0.0
    %v4990 = vand.u32 %v4672, 4294901760
    %4991 = vmatmul.mubr.f32.gmra.mxu0 %v4990
    %v4992 = vpop.f32.mrf.mxu0
    %v4993 = vadd.f32 %v4820, %v4992
    %v4994 = vpop.f32.mrf.mxu0
    %4995 = vmatprep.mubr.f32.mxu0 0.0
    %v4996 = vand.u32 %v4673, 4294901760
    %4997 = vmatmul.mubr.f32.gmra.mxu0 %v4996
    %v4998 = vpop.f32.mrf.mxu0
    %v4999 = vadd.f32 %v4830, %v4998
    %v5000 = vpop.f32.mrf.mxu0
    %5001 = vdwg.mxu0
    %5002 = vmatprep.subr.mxu0 0.0
    %v5003 = vand.u32 %v4689, 4294901760
    %v5004 = vsub.f32 %v4689, %v5003
    %5005 = vmatpush1.msra.mxu0 %v5004
    %5006 = vmatprep.subr.mxu0 0.0
    %v5007 = vand.u32 %v4688, 4294901760
    %v5008 = vsub.f32 %v4688, %v5007
    %5009 = vmatpush1.msra.mxu0 %v5008
    %5010 = vmatprep.subr.mxu0 0.0
    %v5011 = vand.u32 %v4687, 4294901760
    %v5012 = vsub.f32 %v4687, %v5011
    %5013 = vmatpush1.msra.mxu0 %v5012
    %5014 = vmatprep.subr.mxu0 0.0
    %v5015 = vand.u32 %v4686, 4294901760
    %v5016 = vsub.f32 %v4686, %v5015
    %5017 = vmatpush1.msra.mxu0 %v5016
    %5018 = vmatprep.subr.mxu0 0.0
    %v5019 = vand.u32 %v4685, 4294901760
    %v5020 = vsub.f32 %v4685, %v5019
    %5021 = vmatpush1.msra.mxu0 %v5020
    %5022 = vmatprep.subr.mxu0 0.0
    %v5023 = vand.u32 %v4684, 4294901760
    %v5024 = vsub.f32 %v4684, %v5023
    %5025 = vmatpush1.msra.mxu0 %v5024
    %5026 = vmatprep.subr.mxu0 0.0
    %v5027 = vand.u32 %v4683, 4294901760
    %v5028 = vsub.f32 %v4683, %v5027
    %5029 = vmatpush1.msra.mxu0 %v5028
    %5030 = vmatprep.subr.mxu0 0.0
    %v5031 = vand.u32 %v4682, 4294901760
    %v5032 = vsub.f32 %v4682, %v5031
    %5033 = vmatpush1.msra.mxu0 %v5032
    %5034 = vmatprep.subr.mxu0 0.0
    %v5035 = vand.u32 %v4681, 4294901760
    %v5036 = vsub.f32 %v4681, %v5035
    %5037 = vmatpush1.msra.mxu0 %v5036
    %5038 = vmatprep.subr.mxu0 0.0
    %v5039 = vand.u32 %v4680, 4294901760
    %v5040 = vsub.f32 %v4680, %v5039
    %5041 = vmatpush1.msra.mxu0 %v5040
    %5042 = vmatprep.subr.mxu0 0.0
    %v5043 = vand.u32 %v4679, 4294901760
    %v5044 = vsub.f32 %v4679, %v5043
    %5045 = vmatpush1.msra.mxu0 %v5044
    %5046 = vmatprep.subr.mxu0 0.0
    %v5047 = vand.u32 %v4678, 4294901760
    %v5048 = vsub.f32 %v4678, %v5047
    %5049 = vmatpush1.msra.mxu0 %v5048
    %5050 = vmatprep.subr.mxu0 0.0
    %v5051 = vand.u32 %v4677, 4294901760
    %v5052 = vsub.f32 %v4677, %v5051
    %5053 = vmatpush1.msra.mxu0 %v5052
    %5054 = vmatprep.subr.mxu0 0.0
    %v5055 = vand.u32 %v4676, 4294901760
    %v5056 = vsub.f32 %v4676, %v5055
    %5057 = vmatpush1.msra.mxu0 %v5056
    %5058 = vmatprep.subr.mxu0 0.0
    %v5059 = vand.u32 %v4675, 4294901760
    %v5060 = vsub.f32 %v4675, %v5059
    %5061 = vmatpush1.msra.mxu0 %v5060
    %5062 = vmatprep.subr.mxu0 0.0
    %v5063 = vand.u32 %v4674, 4294901760
    %v5064 = vsub.f32 %v4674, %v5063
    %5065 = vmatpush1.msra.mxu0 %v5064
    %5066 = vmatprep.subr.mxu0 0.0
    %5067 = vmatpush2.msra.mxu0 0.0
    %5068 = vmatprep.subr.mxu0 0.0
    %5069 = vmatpush2.msra.mxu0 0.0
    %5070 = vmatprep.subr.mxu0 0.0
    %5071 = vmatpush2.msra.mxu0 0.0
    %5072 = vmatprep.subr.mxu0 0.0
    %5073 = vmatpush2.msra.mxu0 0.0
    %5074 = vmatprep.subr.mxu0 0.0
    %5075 = vmatpush2.msra.mxu0 0.0
    %5076 = vmatprep.subr.mxu0 0.0
    %5077 = vmatpush2.msra.mxu0 0.0
    %5078 = vmatprep.subr.mxu0 0.0
    %5079 = vmatpush2.msra.mxu0 0.0
    %5080 = vmatprep.subr.mxu0 0.0
    %5081 = vmatpush2.msra.mxu0 0.0
    %5082 = vmatprep.subr.mxu0 0.0
    %5083 = vmatpush2.msra.mxu0 0.0
    %5084 = vmatprep.subr.mxu0 0.0
    %5085 = vmatpush2.msra.mxu0 0.0
    %5086 = vmatprep.subr.mxu0 0.0
    %5087 = vmatpush2.msra.mxu0 0.0
    %5088 = vmatprep.subr.mxu0 0.0
    %5089 = vmatpush2.msra.mxu0 0.0
    %5090 = vmatprep.subr.mxu0 0.0
    %5091 = vmatpush2.msra.mxu0 0.0
    %5092 = vmatprep.subr.mxu0 0.0
    %5093 = vmatpush2.msra.mxu0 0.0
    %5094 = vmatprep.subr.mxu0 0.0
    %5095 = vmatpush2.msra.mxu0 0.0
    %5096 = vmatprep.subr.mxu0 0.0
    %5097 = vmatpush2.msra.mxu0 0.0
    %5098 = vmatprep.mubr.f32.mxu0 0.0
    %v5099 = vand.u32 %v4670, 4294901760
    %v5100 = vsub.f32 %v4670, %v5099
    %5101 = vmatmul.mubr.f32.gmra.mxu0 %v5100
    %v5102 = vpop.f32.mrf.mxu0
    %v5103 = vadd.f32 %v4981, %v5102
    %v5104 = vpop.f32.mrf.mxu0
    %5105 = vmatprep.mubr.f32.mxu0 0.0
    %v5106 = vand.u32 %v4671, 4294901760
    %v5107 = vsub.f32 %v4671, %v5106
    %5108 = vmatmul.mubr.f32.gmra.mxu0 %v5107
    %v5109 = vpop.f32.mrf.mxu0
    %v5110 = vadd.f32 %v4987, %v5109
    %v5111 = vpop.f32.mrf.mxu0
    %5112 = vmatprep.mubr.f32.mxu0 0.0
    %v5113 = vand.u32 %v4672, 4294901760
    %v5114 = vsub.f32 %v4672, %v5113
    %5115 = vmatmul.mubr.f32.gmra.mxu0 %v5114
    %v5116 = vpop.f32.mrf.mxu0
    %v5117 = vadd.f32 %v4993, %v5116
    %v5118 = vpop.f32.mrf.mxu0
    %5119 = vmatprep.mubr.f32.mxu0 0.0
    %v5120 = vand.u32 %v4673, 4294901760
    %v5121 = vsub.f32 %v4673, %v5120
    %5122 = vmatmul.mubr.f32.gmra.mxu0 %v5121
    %v5123 = vpop.f32.mrf.mxu0
    %v5124 = vadd.f32 %v4999, %v5123
    %v5125 = vpop.f32.mrf.mxu0
    %5126 = vdwg.mxu0
    %5127 = vmatprep.subr.mxu0 0.0
    %v5128 = vand.u32 %v4689, 4294901760
    %5129 = vmatpush1.msra.mxu0 %v5128
    %5130 = vmatprep.subr.mxu0 0.0
    %v5131 = vand.u32 %v4688, 4294901760
    %5132 = vmatpush1.msra.mxu0 %v5131
    %5133 = vmatprep.subr.mxu0 0.0
    %v5134 = vand.u32 %v4687, 4294901760
    %5135 = vmatpush1.msra.mxu0 %v5134
    %5136 = vmatprep.subr.mxu0 0.0
    %v5137 = vand.u32 %v4686, 4294901760
    %5138 = vmatpush1.msra.mxu0 %v5137
    %5139 = vmatprep.subr.mxu0 0.0
    %v5140 = vand.u32 %v4685, 4294901760
    %5141 = vmatpush1.msra.mxu0 %v5140
    %5142 = vmatprep.subr.mxu0 0.0
    %v5143 = vand.u32 %v4684, 4294901760
    %5144 = vmatpush1.msra.mxu0 %v5143
    %5145 = vmatprep.subr.mxu0 0.0
    %v5146 = vand.u32 %v4683, 4294901760
    %5147 = vmatpush1.msra.mxu0 %v5146
    %5148 = vmatprep.subr.mxu0 0.0
    %v5149 = vand.u32 %v4682, 4294901760
    %5150 = vmatpush1.msra.mxu0 %v5149
    %5151 = vmatprep.subr.mxu0 0.0
    %v5152 = vand.u32 %v4681, 4294901760
    %5153 = vmatpush1.msra.mxu0 %v5152
    %5154 = vmatprep.subr.mxu0 0.0
    %v5155 = vand.u32 %v4680, 4294901760
    %5156 = vmatpush1.msra.mxu0 %v5155
    %5157 = vmatprep.subr.mxu0 0.0
    %v5158 = vand.u32 %v4679, 4294901760
    %5159 = vmatpush1.msra.mxu0 %v5158
    %5160 = vmatprep.subr.mxu0 0.0
    %v5161 = vand.u32 %v4678, 4294901760
    %5162 = vmatpush1.msra.mxu0 %v5161
    %5163 = vmatprep.subr.mxu0 0.0
    %v5164 = vand.u32 %v4677, 4294901760
    %5165 = vmatpush1.msra.mxu0 %v5164
    %5166 = vmatprep.subr.mxu0 0.0
    %v5167 = vand.u32 %v4676, 4294901760
    %5168 = vmatpush1.msra.mxu0 %v5167
    %5169 = vmatprep.subr.mxu0 0.0
    %v5170 = vand.u32 %v4675, 4294901760
    %5171 = vmatpush1.msra.mxu0 %v5170
    %5172 = vmatprep.subr.mxu0 0.0
    %v5173 = vand.u32 %v4674, 4294901760
    %5174 = vmatpush1.msra.mxu0 %v5173
    %5175 = vmatprep.subr.mxu0 0.0
    %5176 = vmatpush2.msra.mxu0 0.0
    %5177 = vmatprep.subr.mxu0 0.0
    %5178 = vmatpush2.msra.mxu0 0.0
    %5179 = vmatprep.subr.mxu0 0.0
    %5180 = vmatpush2.msra.mxu0 0.0
    %5181 = vmatprep.subr.mxu0 0.0
    %5182 = vmatpush2.msra.mxu0 0.0
    %5183 = vmatprep.subr.mxu0 0.0
    %5184 = vmatpush2.msra.mxu0 0.0
    %5185 = vmatprep.subr.mxu0 0.0
    %5186 = vmatpush2.msra.mxu0 0.0
    %5187 = vmatprep.subr.mxu0 0.0
    %5188 = vmatpush2.msra.mxu0 0.0
    %5189 = vmatprep.subr.mxu0 0.0
    %5190 = vmatpush2.msra.mxu0 0.0
    %5191 = vmatprep.subr.mxu0 0.0
    %5192 = vmatpush2.msra.mxu0 0.0
    %5193 = vmatprep.subr.mxu0 0.0
    %5194 = vmatpush2.msra.mxu0 0.0
    %5195 = vmatprep.subr.mxu0 0.0
    %5196 = vmatpush2.msra.mxu0 0.0
    %5197 = vmatprep.subr.mxu0 0.0
    %5198 = vmatpush2.msra.mxu0 0.0
    %5199 = vmatprep.subr.mxu0 0.0
    %5200 = vmatpush2.msra.mxu0 0.0
    %5201 = vmatprep.subr.mxu0 0.0
    %5202 = vmatpush2.msra.mxu0 0.0
    %5203 = vmatprep.subr.mxu0 0.0
    %5204 = vmatpush2.msra.mxu0 0.0
    %5205 = vmatprep.subr.mxu0 0.0
    %5206 = vmatpush2.msra.mxu0 0.0
    %5207 = vmatprep.mubr.f32.mxu0 0.0
    %v5208 = vand.u32 %v4670, 4294901760
    %v5209 = vsub.f32 %v4670, %v5208
    %v5210 = vand.u32 %v5209, 4294901760
    %5211 = vmatmul.mubr.f32.gmra.mxu0 %v5210
    %v5212 = vpop.f32.mrf.mxu0
    %v5213 = vadd.f32 %v5103, %v5212
    %v5214 = vpop.f32.mrf.mxu0
    %5215 = vmatprep.mubr.f32.mxu0 0.0
    %v5216 = vand.u32 %v4671, 4294901760
    %v5217 = vsub.f32 %v4671, %v5216
    %v5218 = vand.u32 %v5217, 4294901760
    %5219 = vmatmul.mubr.f32.gmra.mxu0 %v5218
    %v5220 = vpop.f32.mrf.mxu0
    %v5221 = vadd.f32 %v5110, %v5220
    %v5222 = vpop.f32.mrf.mxu0
    %5223 = vmatprep.mubr.f32.mxu0 0.0
    %v5224 = vand.u32 %v4672, 4294901760
    %v5225 = vsub.f32 %v4672, %v5224
    %v5226 = vand.u32 %v5225, 4294901760
    %5227 = vmatmul.mubr.f32.gmra.mxu0 %v5226
    %v5228 = vpop.f32.mrf.mxu0
    %v5229 = vadd.f32 %v5117, %v5228
    %v5230 = vpop.f32.mrf.mxu0
    %5231 = vmatprep.mubr.f32.mxu0 0.0
    %v5232 = vand.u32 %v4673, 4294901760
    %v5233 = vsub.f32 %v4673, %v5232
    %v5234 = vand.u32 %v5233, 4294901760
    %5235 = vmatmul.mubr.f32.gmra.mxu0 %v5234
    %v5236 = vpop.f32.mrf.mxu0
    %v5237 = vadd.f32 %v5124, %v5236
    %v5238 = vpop.f32.mrf.mxu0
    %5239 = vdwg.mxu0
    %5240 = vmatprep.subr.mxu0 0.0
    %v5241 = vand.u32 %v4689, 4294901760
    %v5242 = vsub.f32 %v4689, %v5241
    %v5243 = vand.u32 %v5242, 4294901760
    %5244 = vmatpush1.msra.mxu0 %v5243
    %5245 = vmatprep.subr.mxu0 0.0
    %v5246 = vand.u32 %v4688, 4294901760
    %v5247 = vsub.f32 %v4688, %v5246
    %v5248 = vand.u32 %v5247, 4294901760
    %5249 = vmatpush1.msra.mxu0 %v5248
    %5250 = vmatprep.subr.mxu0 0.0
    %v5251 = vand.u32 %v4687, 4294901760
    %v5252 = vsub.f32 %v4687, %v5251
    %v5253 = vand.u32 %v5252, 4294901760
    %5254 = vmatpush1.msra.mxu0 %v5253
    %5255 = vmatprep.subr.mxu0 0.0
    %v5256 = vand.u32 %v4686, 4294901760
    %v5257 = vsub.f32 %v4686, %v5256
    %v5258 = vand.u32 %v5257, 4294901760
    %5259 = vmatpush1.msra.mxu0 %v5258
    %5260 = vmatprep.subr.mxu0 0.0
    %v5261 = vand.u32 %v4685, 4294901760
    %v5262 = vsub.f32 %v4685, %v5261
    %v5263 = vand.u32 %v5262, 4294901760
    %5264 = vmatpush1.msra.mxu0 %v5263
    %5265 = vmatprep.subr.mxu0 0.0
    %v5266 = vand.u32 %v4684, 4294901760
    %v5267 = vsub.f32 %v4684, %v5266
    %v5268 = vand.u32 %v5267, 4294901760
    %5269 = vmatpush1.msra.mxu0 %v5268
    %5270 = vmatprep.subr.mxu0 0.0
    %v5271 = vand.u32 %v4683, 4294901760
    %v5272 = vsub.f32 %v4683, %v5271
    %v5273 = vand.u32 %v5272, 4294901760
    %5274 = vmatpush1.msra.mxu0 %v5273
    %5275 = vmatprep.subr.mxu0 0.0
    %v5276 = vand.u32 %v4682, 4294901760
    %v5277 = vsub.f32 %v4682, %v5276
    %v5278 = vand.u32 %v5277, 4294901760
    %5279 = vmatpush1.msra.mxu0 %v5278
    %5280 = vmatprep.subr.mxu0 0.0
    %v5281 = vand.u32 %v4681, 4294901760
    %v5282 = vsub.f32 %v4681, %v5281
    %v5283 = vand.u32 %v5282, 4294901760
    %5284 = vmatpush1.msra.mxu0 %v5283
    %5285 = vmatprep.subr.mxu0 0.0
    %v5286 = vand.u32 %v4680, 4294901760
    %v5287 = vsub.f32 %v4680, %v5286
    %v5288 = vand.u32 %v5287, 4294901760
    %5289 = vmatpush1.msra.mxu0 %v5288
    %5290 = vmatprep.subr.mxu0 0.0
    %v5291 = vand.u32 %v4679, 4294901760
    %v5292 = vsub.f32 %v4679, %v5291
    %v5293 = vand.u32 %v5292, 4294901760
    %5294 = vmatpush1.msra.mxu0 %v5293
    %5295 = vmatprep.subr.mxu0 0.0
    %v5296 = vand.u32 %v4678, 4294901760
    %v5297 = vsub.f32 %v4678, %v5296
    %v5298 = vand.u32 %v5297, 4294901760
    %5299 = vmatpush1.msra.mxu0 %v5298
    %5300 = vmatprep.subr.mxu0 0.0
    %v5301 = vand.u32 %v4677, 4294901760
    %v5302 = vsub.f32 %v4677, %v5301
    %v5303 = vand.u32 %v5302, 4294901760
    %5304 = vmatpush1.msra.mxu0 %v5303
    %5305 = vmatprep.subr.mxu0 0.0
    %v5306 = vand.u32 %v4676, 4294901760
    %v5307 = vsub.f32 %v4676, %v5306
    %v5308 = vand.u32 %v5307, 4294901760
    %5309 = vmatpush1.msra.mxu0 %v5308
    %5310 = vmatprep.subr.mxu0 0.0
    %v5311 = vand.u32 %v4675, 4294901760
    %v5312 = vsub.f32 %v4675, %v5311
    %v5313 = vand.u32 %v5312, 4294901760
    %5314 = vmatpush1.msra.mxu0 %v5313
    %5315 = vmatprep.subr.mxu0 0.0
    %v5316 = vand.u32 %v4674, 4294901760
    %v5317 = vsub.f32 %v4674, %v5316
    %v5318 = vand.u32 %v5317, 4294901760
    %5319 = vmatpush1.msra.mxu0 %v5318
    %5320 = vmatprep.subr.mxu0 0.0
    %5321 = vmatpush2.msra.mxu0 0.0
    %5322 = vmatprep.subr.mxu0 0.0
    %5323 = vmatpush2.msra.mxu0 0.0
    %5324 = vmatprep.subr.mxu0 0.0
    %5325 = vmatpush2.msra.mxu0 0.0
    %5326 = vmatprep.subr.mxu0 0.0
    %5327 = vmatpush2.msra.mxu0 0.0
    %5328 = vmatprep.subr.mxu0 0.0
    %5329 = vmatpush2.msra.mxu0 0.0
    %5330 = vmatprep.subr.mxu0 0.0
    %5331 = vmatpush2.msra.mxu0 0.0
    %5332 = vmatprep.subr.mxu0 0.0
    %5333 = vmatpush2.msra.mxu0 0.0
    %5334 = vmatprep.subr.mxu0 0.0
    %5335 = vmatpush2.msra.mxu0 0.0
    %5336 = vmatprep.subr.mxu0 0.0
    %5337 = vmatpush2.msra.mxu0 0.0
    %5338 = vmatprep.subr.mxu0 0.0
    %5339 = vmatpush2.msra.mxu0 0.0
    %5340 = vmatprep.subr.mxu0 0.0
    %5341 = vmatpush2.msra.mxu0 0.0
    %5342 = vmatprep.subr.mxu0 0.0
    %5343 = vmatpush2.msra.mxu0 0.0
    %5344 = vmatprep.subr.mxu0 0.0
    %5345 = vmatpush2.msra.mxu0 0.0
    %5346 = vmatprep.subr.mxu0 0.0
    %5347 = vmatpush2.msra.mxu0 0.0
    %5348 = vmatprep.subr.mxu0 0.0
    %5349 = vmatpush2.msra.mxu0 0.0
    %5350 = vmatprep.subr.mxu0 0.0
    %5351 = vmatpush2.msra.mxu0 0.0
    %5352 = vmatprep.mubr.f32.mxu0 0.0
    %v5353 = vand.u32 %v4670, 4294901760
    %5354 = vmatmul.mubr.f32.gmra.mxu0 %v5353
    %v5355 = vpop.f32.mrf.mxu0
    %v5356 = vadd.f32 %v5213, %v5355
    %v5357 = vpop.f32.mrf.mxu0
    %5358 = vmatprep.mubr.f32.mxu0 0.0
    %v5359 = vand.u32 %v4671, 4294901760
    %5360 = vmatmul.mubr.f32.gmra.mxu0 %v5359
    %v5361 = vpop.f32.mrf.mxu0
    %v5362 = vadd.f32 %v5221, %v5361
    %v5363 = vpop.f32.mrf.mxu0
    %5364 = vmatprep.mubr.f32.mxu0 0.0
    %v5365 = vand.u32 %v4672, 4294901760
    %5366 = vmatmul.mubr.f32.gmra.mxu0 %v5365
    %v5367 = vpop.f32.mrf.mxu0
    %v5368 = vadd.f32 %v5229, %v5367
    %v5369 = vpop.f32.mrf.mxu0
    %5370 = vmatprep.mubr.f32.mxu0 0.0
    %v5371 = vand.u32 %v4673, 4294901760
    %5372 = vmatmul.mubr.f32.gmra.mxu0 %v5371
    %v5373 = vpop.f32.mrf.mxu0
    %v5374 = vadd.f32 %v5237, %v5373
    %v5375 = vpop.f32.mrf.mxu0
    %5376 = vdwg.mxu0
    %5377 = vmatprep.subr.mxu0 0.0
    %v5378 = vand.u32 %v4689, 4294901760
    %5379 = vmatpush1.msra.mxu0 %v5378
    %5380 = vmatprep.subr.mxu0 0.0
    %v5381 = vand.u32 %v4688, 4294901760
    %5382 = vmatpush1.msra.mxu0 %v5381
    %5383 = vmatprep.subr.mxu0 0.0
    %v5384 = vand.u32 %v4687, 4294901760
    %5385 = vmatpush1.msra.mxu0 %v5384
    %5386 = vmatprep.subr.mxu0 0.0
    %v5387 = vand.u32 %v4686, 4294901760
    %5388 = vmatpush1.msra.mxu0 %v5387
    %5389 = vmatprep.subr.mxu0 0.0
    %v5390 = vand.u32 %v4685, 4294901760
    %5391 = vmatpush1.msra.mxu0 %v5390
    %5392 = vmatprep.subr.mxu0 0.0
    %v5393 = vand.u32 %v4684, 4294901760
    %5394 = vmatpush1.msra.mxu0 %v5393
    %5395 = vmatprep.subr.mxu0 0.0
    %v5396 = vand.u32 %v4683, 4294901760
    %5397 = vmatpush1.msra.mxu0 %v5396
    %5398 = vmatprep.subr.mxu0 0.0
    %v5399 = vand.u32 %v4682, 4294901760
    %5400 = vmatpush1.msra.mxu0 %v5399
    %5401 = vmatprep.subr.mxu0 0.0
    %v5402 = vand.u32 %v4681, 4294901760
    %5403 = vmatpush1.msra.mxu0 %v5402
    %5404 = vmatprep.subr.mxu0 0.0
    %v5405 = vand.u32 %v4680, 4294901760
    %5406 = vmatpush1.msra.mxu0 %v5405
    %5407 = vmatprep.subr.mxu0 0.0
    %v5408 = vand.u32 %v4679, 4294901760
    %5409 = vmatpush1.msra.mxu0 %v5408
    %5410 = vmatprep.subr.mxu0 0.0
    %v5411 = vand.u32 %v4678, 4294901760
    %5412 = vmatpush1.msra.mxu0 %v5411
    %5413 = vmatprep.subr.mxu0 0.0
    %v5414 = vand.u32 %v4677, 4294901760
    %5415 = vmatpush1.msra.mxu0 %v5414
    %5416 = vmatprep.subr.mxu0 0.0
    %v5417 = vand.u32 %v4676, 4294901760
    %5418 = vmatpush1.msra.mxu0 %v5417
    %5419 = vmatprep.subr.mxu0 0.0
    %v5420 = vand.u32 %v4675, 4294901760
    %5421 = vmatpush1.msra.mxu0 %v5420
    %5422 = vmatprep.subr.mxu0 0.0
    %v5423 = vand.u32 %v4674, 4294901760
    %5424 = vmatpush1.msra.mxu0 %v5423
    %5425 = vmatprep.subr.mxu0 0.0
    %5426 = vmatpush2.msra.mxu0 0.0
    %5427 = vmatprep.subr.mxu0 0.0
    %5428 = vmatpush2.msra.mxu0 0.0
    %5429 = vmatprep.subr.mxu0 0.0
    %5430 = vmatpush2.msra.mxu0 0.0
    %5431 = vmatprep.subr.mxu0 0.0
    %5432 = vmatpush2.msra.mxu0 0.0
    %5433 = vmatprep.subr.mxu0 0.0
    %5434 = vmatpush2.msra.mxu0 0.0
    %5435 = vmatprep.subr.mxu0 0.0
    %5436 = vmatpush2.msra.mxu0 0.0
    %5437 = vmatprep.subr.mxu0 0.0
    %5438 = vmatpush2.msra.mxu0 0.0
    %5439 = vmatprep.subr.mxu0 0.0
    %5440 = vmatpush2.msra.mxu0 0.0
    %5441 = vmatprep.subr.mxu0 0.0
    %5442 = vmatpush2.msra.mxu0 0.0
    %5443 = vmatprep.subr.mxu0 0.0
    %5444 = vmatpush2.msra.mxu0 0.0
    %5445 = vmatprep.subr.mxu0 0.0
    %5446 = vmatpush2.msra.mxu0 0.0
    %5447 = vmatprep.subr.mxu0 0.0
    %5448 = vmatpush2.msra.mxu0 0.0
    %5449 = vmatprep.subr.mxu0 0.0
    %5450 = vmatpush2.msra.mxu0 0.0
    %5451 = vmatprep.subr.mxu0 0.0
    %5452 = vmatpush2.msra.mxu0 0.0
    %5453 = vmatprep.subr.mxu0 0.0
    %5454 = vmatpush2.msra.mxu0 0.0
    %5455 = vmatprep.subr.mxu0 0.0
    %5456 = vmatpush2.msra.mxu0 0.0
    %5457 = vmatprep.mubr.f32.mxu0 0.0
    %v5458 = vand.u32 %v4670, 4294901760
    %5459 = vmatmul.mubr.f32.gmra.mxu0 %v5458
    %v5460 = vpop.f32.mrf.mxu0
    %v5461 = vadd.f32 %v5356, %v5460
    %v5462 = vpop.f32.mrf.mxu0
    %5463 = vmatprep.mubr.f32.mxu0 0.0
    %v5464 = vand.u32 %v4671, 4294901760
    %5465 = vmatmul.mubr.f32.gmra.mxu0 %v5464
    %v5466 = vpop.f32.mrf.mxu0
    %v5467 = vadd.f32 %v5362, %v5466
    %v5468 = vpop.f32.mrf.mxu0
    %5469 = vmatprep.mubr.f32.mxu0 0.0
    %v5470 = vand.u32 %v4672, 4294901760
    %5471 = vmatmul.mubr.f32.gmra.mxu0 %v5470
    %v5472 = vpop.f32.mrf.mxu0
    %v5473 = vadd.f32 %v5368, %v5472
    %v5474 = vpop.f32.mrf.mxu0
    %5475 = vmatprep.mubr.f32.mxu0 0.0
    %v5476 = vand.u32 %v4673, 4294901760
    %5477 = vmatmul.mubr.f32.gmra.mxu0 %v5476
    %v5478 = vpop.f32.mrf.mxu0
    %v5479 = vadd.f32 %v5374, %v5478
    %v5480 = vpop.f32.mrf.mxu0
    %5481 = vdwg.mxu0
    %v5482 = vmax.f32 %v5461, 0.0
    %v5483 = vmax.f32 %v5467, 0.0
    %v5484 = vmax.f32 %v5473, 0.0
    %v5485 = vmax.f32 %v5479, 0.0
    %5486 = vmatprep.subr.mxu0 0.0
    %v5487 = vand.u32 %v4705, 4294901760
    %5488 = vmatpush1.msra.mxu0 %v5487
    %5489 = vmatprep.subr.mxu0 0.0
    %v5490 = vand.u32 %v4704, 4294901760
    %5491 = vmatpush1.msra.mxu0 %v5490
    %5492 = vmatprep.subr.mxu0 0.0
    %v5493 = vand.u32 %v4703, 4294901760
    %5494 = vmatpush1.msra.mxu0 %v5493
    %5495 = vmatprep.subr.mxu0 0.0
    %v5496 = vand.u32 %v4702, 4294901760
    %5497 = vmatpush1.msra.mxu0 %v5496
    %5498 = vmatprep.subr.mxu0 0.0
    %v5499 = vand.u32 %v4701, 4294901760
    %5500 = vmatpush1.msra.mxu0 %v5499
    %5501 = vmatprep.subr.mxu0 0.0
    %v5502 = vand.u32 %v4700, 4294901760
    %5503 = vmatpush1.msra.mxu0 %v5502
    %5504 = vmatprep.subr.mxu0 0.0
    %v5505 = vand.u32 %v4699, 4294901760
    %5506 = vmatpush1.msra.mxu0 %v5505
    %5507 = vmatprep.subr.mxu0 0.0
    %v5508 = vand.u32 %v4698, 4294901760
    %5509 = vmatpush1.msra.mxu0 %v5508
    %5510 = vmatprep.subr.mxu0 0.0
    %v5511 = vand.u32 %v4697, 4294901760
    %5512 = vmatpush1.msra.mxu0 %v5511
    %5513 = vmatprep.subr.mxu0 0.0
    %v5514 = vand.u32 %v4696, 4294901760
    %5515 = vmatpush1.msra.mxu0 %v5514
    %5516 = vmatprep.subr.mxu0 0.0
    %v5517 = vand.u32 %v4695, 4294901760
    %5518 = vmatpush1.msra.mxu0 %v5517
    %5519 = vmatprep.subr.mxu0 0.0
    %v5520 = vand.u32 %v4694, 4294901760
    %5521 = vmatpush1.msra.mxu0 %v5520
    %5522 = vmatprep.subr.mxu0 0.0
    %v5523 = vand.u32 %v4693, 4294901760
    %5524 = vmatpush1.msra.mxu0 %v5523
    %5525 = vmatprep.subr.mxu0 0.0
    %v5526 = vand.u32 %v4692, 4294901760
    %5527 = vmatpush1.msra.mxu0 %v5526
    %5528 = vmatprep.subr.mxu0 0.0
    %v5529 = vand.u32 %v4691, 4294901760
    %5530 = vmatpush1.msra.mxu0 %v5529
    %5531 = vmatprep.subr.mxu0 0.0
    %v5532 = vand.u32 %v4690, 4294901760
    %5533 = vmatpush1.msra.mxu0 %v5532
    %5534 = vmatprep.subr.mxu0 0.0
    %5535 = vmatpush2.msra.mxu0 0.0
    %5536 = vmatprep.subr.mxu0 0.0
    %5537 = vmatpush2.msra.mxu0 0.0
    %5538 = vmatprep.subr.mxu0 0.0
    %5539 = vmatpush2.msra.mxu0 0.0
    %5540 = vmatprep.subr.mxu0 0.0
    %5541 = vmatpush2.msra.mxu0 0.0
    %5542 = vmatprep.subr.mxu0 0.0
    %5543 = vmatpush2.msra.mxu0 0.0
    %5544 = vmatprep.subr.mxu0 0.0
    %5545 = vmatpush2.msra.mxu0 0.0
    %5546 = vmatprep.subr.mxu0 0.0
    %5547 = vmatpush2.msra.mxu0 0.0
    %5548 = vmatprep.subr.mxu0 0.0
    %5549 = vmatpush2.msra.mxu0 0.0
    %5550 = vmatprep.subr.mxu0 0.0
    %5551 = vmatpush2.msra.mxu0 0.0
    %5552 = vmatprep.subr.mxu0 0.0
    %5553 = vmatpush2.msra.mxu0 0.0
    %5554 = vmatprep.subr.mxu0 0.0
    %5555 = vmatpush2.msra.mxu0 0.0
    %5556 = vmatprep.subr.mxu0 0.0
    %5557 = vmatpush2.msra.mxu0 0.0
    %5558 = vmatprep.subr.mxu0 0.0
    %5559 = vmatpush2.msra.mxu0 0.0
    %5560 = vmatprep.subr.mxu0 0.0
    %5561 = vmatpush2.msra.mxu0 0.0
    %5562 = vmatprep.subr.mxu0 0.0
    %5563 = vmatpush2.msra.mxu0 0.0
    %5564 = vmatprep.subr.mxu0 0.0
    %5565 = vmatpush2.msra.mxu0 0.0
    %5566 = vmatprep.mubr.f32.mxu0 0.0
    %v5567 = vand.u32 %v5482, 4294901760
    %v5568 = vsub.f32 %v5482, %v5567
    %v5569 = vand.u32 %v5568, 4294901760
    %v5570 = vsub.f32 %v5568, %v5569
    %v5571 = vand.u32 %v5570, 4294901760
    %5572 = vmatmul.mubr.f32.gmra.mxu0 %v5571
    %v5573 = vpop.f32.mrf.mxu0
    %v5574 = vadd.f32 0.0, %v5573
    %v5575 = vpop.f32.mrf.mxu0
    %5576 = vmatprep.mubr.f32.mxu0 0.0
    %v5577 = vand.u32 %v5483, 4294901760
    %v5578 = vsub.f32 %v5483, %v5577
    %v5579 = vand.u32 %v5578, 4294901760
    %v5580 = vsub.f32 %v5578, %v5579
    %v5581 = vand.u32 %v5580, 4294901760
    %5582 = vmatmul.mubr.f32.gmra.mxu0 %v5581
    %v5583 = vpop.f32.mrf.mxu0
    %v5584 = vadd.f32 0.0, %v5583
    %v5585 = vpop.f32.mrf.mxu0
    %5586 = vmatprep.mubr.f32.mxu0 0.0
    %v5587 = vand.u32 %v5484, 4294901760
    %v5588 = vsub.f32 %v5484, %v5587
    %v5589 = vand.u32 %v5588, 4294901760
    %v5590 = vsub.f32 %v5588, %v5589
    %v5591 = vand.u32 %v5590, 4294901760
    %5592 = vmatmul.mubr.f32.gmra.mxu0 %v5591
    %v5593 = vpop.f32.mrf.mxu0
    %v5594 = vadd.f32 0.0, %v5593
    %v5595 = vpop.f32.mrf.mxu0
    %5596 = vmatprep.mubr.f32.mxu0 0.0
    %v5597 = vand.u32 %v5485, 4294901760
    %v5598 = vsub.f32 %v5485, %v5597
    %v5599 = vand.u32 %v5598, 4294901760
    %v5600 = vsub.f32 %v5598, %v5599
    %v5601 = vand.u32 %v5600, 4294901760
    %5602 = vmatmul.mubr.f32.gmra.mxu0 %v5601
    %v5603 = vpop.f32.mrf.mxu0
    %v5604 = vadd.f32 0.0, %v5603
    %v5605 = vpop.f32.mrf.mxu0
    %5606 = vdwg.mxu0
    %5607 = vmatprep.subr.mxu0 0.0
    %v5608 = vand.u32 %v4705, 4294901760
    %v5609 = vsub.f32 %v4705, %v5608
    %v5610 = vand.u32 %v5609, 4294901760
    %v5611 = vsub.f32 %v5609, %v5610
    %v5612 = vand.u32 %v5611, 4294901760
    %5613 = vmatpush1.msra.mxu0 %v5612
    %5614 = vmatprep.subr.mxu0 0.0
    %v5615 = vand.u32 %v4704, 4294901760
    %v5616 = vsub.f32 %v4704, %v5615
    %v5617 = vand.u32 %v5616, 4294901760
    %v5618 = vsub.f32 %v5616, %v5617
    %v5619 = vand.u32 %v5618, 4294901760
    %5620 = vmatpush1.msra.mxu0 %v5619
    %5621 = vmatprep.subr.mxu0 0.0
    %v5622 = vand.u32 %v4703, 4294901760
    %v5623 = vsub.f32 %v4703, %v5622
    %v5624 = vand.u32 %v5623, 4294901760
    %v5625 = vsub.f32 %v5623, %v5624
    %v5626 = vand.u32 %v5625, 4294901760
    %5627 = vmatpush1.msra.mxu0 %v5626
    %5628 = vmatprep.subr.mxu0 0.0
    %v5629 = vand.u32 %v4702, 4294901760
    %v5630 = vsub.f32 %v4702, %v5629
    %v5631 = vand.u32 %v5630, 4294901760
    %v5632 = vsub.f32 %v5630, %v5631
    %v5633 = vand.u32 %v5632, 4294901760
    %5634 = vmatpush1.msra.mxu0 %v5633
    %5635 = vmatprep.subr.mxu0 0.0
    %v5636 = vand.u32 %v4701, 4294901760
    %v5637 = vsub.f32 %v4701, %v5636
    %v5638 = vand.u32 %v5637, 4294901760
    %v5639 = vsub.f32 %v5637, %v5638
    %v5640 = vand.u32 %v5639, 4294901760
    %5641 = vmatpush1.msra.mxu0 %v5640
    %5642 = vmatprep.subr.mxu0 0.0
    %v5643 = vand.u32 %v4700, 4294901760
    %v5644 = vsub.f32 %v4700, %v5643
    %v5645 = vand.u32 %v5644, 4294901760
    %v5646 = vsub.f32 %v5644, %v5645
    %v5647 = vand.u32 %v5646, 4294901760
    %5648 = vmatpush1.msra.mxu0 %v5647
    %5649 = vmatprep.subr.mxu0 0.0
    %v5650 = vand.u32 %v4699, 4294901760
    %v5651 = vsub.f32 %v4699, %v5650
    %v5652 = vand.u32 %v5651, 4294901760
    %v5653 = vsub.f32 %v5651, %v5652
    %v5654 = vand.u32 %v5653, 4294901760
    %5655 = vmatpush1.msra.mxu0 %v5654
    %5656 = vmatprep.subr.mxu0 0.0
    %v5657 = vand.u32 %v4698, 4294901760
    %v5658 = vsub.f32 %v4698, %v5657
    %v5659 = vand.u32 %v5658, 4294901760
    %v5660 = vsub.f32 %v5658, %v5659
    %v5661 = vand.u32 %v5660, 4294901760
    %5662 = vmatpush1.msra.mxu0 %v5661
    %5663 = vmatprep.subr.mxu0 0.0
    %v5664 = vand.u32 %v4697, 4294901760
    %v5665 = vsub.f32 %v4697, %v5664
    %v5666 = vand.u32 %v5665, 4294901760
    %v5667 = vsub.f32 %v5665, %v5666
    %v5668 = vand.u32 %v5667, 4294901760
    %5669 = vmatpush1.msra.mxu0 %v5668
    %5670 = vmatprep.subr.mxu0 0.0
    %v5671 = vand.u32 %v4696, 4294901760
    %v5672 = vsub.f32 %v4696, %v5671
    %v5673 = vand.u32 %v5672, 4294901760
    %v5674 = vsub.f32 %v5672, %v5673
    %v5675 = vand.u32 %v5674, 4294901760
    %5676 = vmatpush1.msra.mxu0 %v5675
    %5677 = vmatprep.subr.mxu0 0.0
    %v5678 = vand.u32 %v4695, 4294901760
    %v5679 = vsub.f32 %v4695, %v5678
    %v5680 = vand.u32 %v5679, 4294901760
    %v5681 = vsub.f32 %v5679, %v5680
    %v5682 = vand.u32 %v5681, 4294901760
    %5683 = vmatpush1.msra.mxu0 %v5682
    %5684 = vmatprep.subr.mxu0 0.0
    %v5685 = vand.u32 %v4694, 4294901760
    %v5686 = vsub.f32 %v4694, %v5685
    %v5687 = vand.u32 %v5686, 4294901760
    %v5688 = vsub.f32 %v5686, %v5687
    %v5689 = vand.u32 %v5688, 4294901760
    %5690 = vmatpush1.msra.mxu0 %v5689
    %5691 = vmatprep.subr.mxu0 0.0
    %v5692 = vand.u32 %v4693, 4294901760
    %v5693 = vsub.f32 %v4693, %v5692
    %v5694 = vand.u32 %v5693, 4294901760
    %v5695 = vsub.f32 %v5693, %v5694
    %v5696 = vand.u32 %v5695, 4294901760
    %5697 = vmatpush1.msra.mxu0 %v5696
    %5698 = vmatprep.subr.mxu0 0.0
    %v5699 = vand.u32 %v4692, 4294901760
    %v5700 = vsub.f32 %v4692, %v5699
    %v5701 = vand.u32 %v5700, 4294901760
    %v5702 = vsub.f32 %v5700, %v5701
    %v5703 = vand.u32 %v5702, 4294901760
    %5704 = vmatpush1.msra.mxu0 %v5703
    %5705 = vmatprep.subr.mxu0 0.0
    %v5706 = vand.u32 %v4691, 4294901760
    %v5707 = vsub.f32 %v4691, %v5706
    %v5708 = vand.u32 %v5707, 4294901760
    %v5709 = vsub.f32 %v5707, %v5708
    %v5710 = vand.u32 %v5709, 4294901760
    %5711 = vmatpush1.msra.mxu0 %v5710
    %5712 = vmatprep.subr.mxu0 0.0
    %v5713 = vand.u32 %v4690, 4294901760
    %v5714 = vsub.f32 %v4690, %v5713
    %v5715 = vand.u32 %v5714, 4294901760
    %v5716 = vsub.f32 %v5714, %v5715
    %v5717 = vand.u32 %v5716, 4294901760
    %5718 = vmatpush1.msra.mxu0 %v5717
    %5719 = vmatprep.subr.mxu0 0.0
    %5720 = vmatpush2.msra.mxu0 0.0
    %5721 = vmatprep.subr.mxu0 0.0
    %5722 = vmatpush2.msra.mxu0 0.0
    %5723 = vmatprep.subr.mxu0 0.0
    %5724 = vmatpush2.msra.mxu0 0.0
    %5725 = vmatprep.subr.mxu0 0.0
    %5726 = vmatpush2.msra.mxu0 0.0
    %5727 = vmatprep.subr.mxu0 0.0
    %5728 = vmatpush2.msra.mxu0 0.0
    %5729 = vmatprep.subr.mxu0 0.0
    %5730 = vmatpush2.msra.mxu0 0.0
    %5731 = vmatprep.subr.mxu0 0.0
    %5732 = vmatpush2.msra.mxu0 0.0
    %5733 = vmatprep.subr.mxu0 0.0
    %5734 = vmatpush2.msra.mxu0 0.0
    %5735 = vmatprep.subr.mxu0 0.0
    %5736 = vmatpush2.msra.mxu0 0.0
    %5737 = vmatprep.subr.mxu0 0.0
    %5738 = vmatpush2.msra.mxu0 0.0
    %5739 = vmatprep.subr.mxu0 0.0
    %5740 = vmatpush2.msra.mxu0 0.0
    %5741 = vmatprep.subr.mxu0 0.0
    %5742 = vmatpush2.msra.mxu0 0.0
    %5743 = vmatprep.subr.mxu0 0.0
    %5744 = vmatpush2.msra.mxu0 0.0
    %5745 = vmatprep.subr.mxu0 0.0
    %5746 = vmatpush2.msra.mxu0 0.0
    %5747 = vmatprep.subr.mxu0 0.0
    %5748 = vmatpush2.msra.mxu0 0.0
    %5749 = vmatprep.subr.mxu0 0.0
    %5750 = vmatpush2.msra.mxu0 0.0
    %5751 = vmatprep.mubr.f32.mxu0 0.0
    %v5752 = vand.u32 %v5482, 4294901760
    %5753 = vmatmul.mubr.f32.gmra.mxu0 %v5752
    %v5754 = vpop.f32.mrf.mxu0
    %v5755 = vadd.f32 %v5574, %v5754
    %v5756 = vpop.f32.mrf.mxu0
    %5757 = vmatprep.mubr.f32.mxu0 0.0
    %v5758 = vand.u32 %v5483, 4294901760
    %5759 = vmatmul.mubr.f32.gmra.mxu0 %v5758
    %v5760 = vpop.f32.mrf.mxu0
    %v5761 = vadd.f32 %v5584, %v5760
    %v5762 = vpop.f32.mrf.mxu0
    %5763 = vmatprep.mubr.f32.mxu0 0.0
    %v5764 = vand.u32 %v5484, 4294901760
    %5765 = vmatmul.mubr.f32.gmra.mxu0 %v5764
    %v5766 = vpop.f32.mrf.mxu0
    %v5767 = vadd.f32 %v5594, %v5766
    %v5768 = vpop.f32.mrf.mxu0
    %5769 = vmatprep.mubr.f32.mxu0 0.0
    %v5770 = vand.u32 %v5485, 4294901760
    %5771 = vmatmul.mubr.f32.gmra.mxu0 %v5770
    %v5772 = vpop.f32.mrf.mxu0
    %v5773 = vadd.f32 %v5604, %v5772
    %v5774 = vpop.f32.mrf.mxu0
    %5775 = vdwg.mxu0
    %5776 = vmatprep.subr.mxu0 0.0
    %v5777 = vand.u32 %v4705, 4294901760
    %v5778 = vsub.f32 %v4705, %v5777
    %5779 = vmatpush1.msra.mxu0 %v5778
    %5780 = vmatprep.subr.mxu0 0.0
    %v5781 = vand.u32 %v4704, 4294901760
    %v5782 = vsub.f32 %v4704, %v5781
    %5783 = vmatpush1.msra.mxu0 %v5782
    %5784 = vmatprep.subr.mxu0 0.0
    %v5785 = vand.u32 %v4703, 4294901760
    %v5786 = vsub.f32 %v4703, %v5785
    %5787 = vmatpush1.msra.mxu0 %v5786
    %5788 = vmatprep.subr.mxu0 0.0
    %v5789 = vand.u32 %v4702, 4294901760
    %v5790 = vsub.f32 %v4702, %v5789
    %5791 = vmatpush1.msra.mxu0 %v5790
    %5792 = vmatprep.subr.mxu0 0.0
    %v5793 = vand.u32 %v4701, 4294901760
    %v5794 = vsub.f32 %v4701, %v5793
    %5795 = vmatpush1.msra.mxu0 %v5794
    %5796 = vmatprep.subr.mxu0 0.0
    %v5797 = vand.u32 %v4700, 4294901760
    %v5798 = vsub.f32 %v4700, %v5797
    %5799 = vmatpush1.msra.mxu0 %v5798
    %5800 = vmatprep.subr.mxu0 0.0
    %v5801 = vand.u32 %v4699, 4294901760
    %v5802 = vsub.f32 %v4699, %v5801
    %5803 = vmatpush1.msra.mxu0 %v5802
    %5804 = vmatprep.subr.mxu0 0.0
    %v5805 = vand.u32 %v4698, 4294901760
    %v5806 = vsub.f32 %v4698, %v5805
    %5807 = vmatpush1.msra.mxu0 %v5806
    %5808 = vmatprep.subr.mxu0 0.0
    %v5809 = vand.u32 %v4697, 4294901760
    %v5810 = vsub.f32 %v4697, %v5809
    %5811 = vmatpush1.msra.mxu0 %v5810
    %5812 = vmatprep.subr.mxu0 0.0
    %v5813 = vand.u32 %v4696, 4294901760
    %v5814 = vsub.f32 %v4696, %v5813
    %5815 = vmatpush1.msra.mxu0 %v5814
    %5816 = vmatprep.subr.mxu0 0.0
    %v5817 = vand.u32 %v4695, 4294901760
    %v5818 = vsub.f32 %v4695, %v5817
    %5819 = vmatpush1.msra.mxu0 %v5818
    %5820 = vmatprep.subr.mxu0 0.0
    %v5821 = vand.u32 %v4694, 4294901760
    %v5822 = vsub.f32 %v4694, %v5821
    %5823 = vmatpush1.msra.mxu0 %v5822
    %5824 = vmatprep.subr.mxu0 0.0
    %v5825 = vand.u32 %v4693, 4294901760
    %v5826 = vsub.f32 %v4693, %v5825
    %5827 = vmatpush1.msra.mxu0 %v5826
    %5828 = vmatprep.subr.mxu0 0.0
    %v5829 = vand.u32 %v4692, 4294901760
    %v5830 = vsub.f32 %v4692, %v5829
    %5831 = vmatpush1.msra.mxu0 %v5830
    %5832 = vmatprep.subr.mxu0 0.0
    %v5833 = vand.u32 %v4691, 4294901760
    %v5834 = vsub.f32 %v4691, %v5833
    %5835 = vmatpush1.msra.mxu0 %v5834
    %5836 = vmatprep.subr.mxu0 0.0
    %v5837 = vand.u32 %v4690, 4294901760
    %v5838 = vsub.f32 %v4690, %v5837
    %5839 = vmatpush1.msra.mxu0 %v5838
    %5840 = vmatprep.subr.mxu0 0.0
    %5841 = vmatpush2.msra.mxu0 0.0
    %5842 = vmatprep.subr.mxu0 0.0
    %5843 = vmatpush2.msra.mxu0 0.0
    %5844 = vmatprep.subr.mxu0 0.0
    %5845 = vmatpush2.msra.mxu0 0.0
    %5846 = vmatprep.subr.mxu0 0.0
    %5847 = vmatpush2.msra.mxu0 0.0
    %5848 = vmatprep.subr.mxu0 0.0
    %5849 = vmatpush2.msra.mxu0 0.0
    %5850 = vmatprep.subr.mxu0 0.0
    %5851 = vmatpush2.msra.mxu0 0.0
    %5852 = vmatprep.subr.mxu0 0.0
    %5853 = vmatpush2.msra.mxu0 0.0
    %5854 = vmatprep.subr.mxu0 0.0
    %5855 = vmatpush2.msra.mxu0 0.0
    %5856 = vmatprep.subr.mxu0 0.0
    %5857 = vmatpush2.msra.mxu0 0.0
    %5858 = vmatprep.subr.mxu0 0.0
    %5859 = vmatpush2.msra.mxu0 0.0
    %5860 = vmatprep.subr.mxu0 0.0
    %5861 = vmatpush2.msra.mxu0 0.0
    %5862 = vmatprep.subr.mxu0 0.0
    %5863 = vmatpush2.msra.mxu0 0.0
    %5864 = vmatprep.subr.mxu0 0.0
    %5865 = vmatpush2.msra.mxu0 0.0
    %5866 = vmatprep.subr.mxu0 0.0
    %5867 = vmatpush2.msra.mxu0 0.0
    %5868 = vmatprep.subr.mxu0 0.0
    %5869 = vmatpush2.msra.mxu0 0.0
    %5870 = vmatprep.subr.mxu0 0.0
    %5871 = vmatpush2.msra.mxu0 0.0
    %5872 = vmatprep.mubr.f32.mxu0 0.0
    %v5873 = vand.u32 %v5482, 4294901760
    %v5874 = vsub.f32 %v5482, %v5873
    %5875 = vmatmul.mubr.f32.gmra.mxu0 %v5874
    %v5876 = vpop.f32.mrf.mxu0
    %v5877 = vadd.f32 %v5755, %v5876
    %v5878 = vpop.f32.mrf.mxu0
    %5879 = vmatprep.mubr.f32.mxu0 0.0
    %v5880 = vand.u32 %v5483, 4294901760
    %v5881 = vsub.f32 %v5483, %v5880
    %5882 = vmatmul.mubr.f32.gmra.mxu0 %v5881
    %v5883 = vpop.f32.mrf.mxu0
    %v5884 = vadd.f32 %v5761, %v5883
    %v5885 = vpop.f32.mrf.mxu0
    %5886 = vmatprep.mubr.f32.mxu0 0.0
    %v5887 = vand.u32 %v5484, 4294901760
    %v5888 = vsub.f32 %v5484, %v5887
    %5889 = vmatmul.mubr.f32.gmra.mxu0 %v5888
    %v5890 = vpop.f32.mrf.mxu0
    %v5891 = vadd.f32 %v5767, %v5890
    %v5892 = vpop.f32.mrf.mxu0
    %5893 = vmatprep.mubr.f32.mxu0 0.0
    %v5894 = vand.u32 %v5485, 4294901760
    %v5895 = vsub.f32 %v5485, %v5894
    %5896 = vmatmul.mubr.f32.gmra.mxu0 %v5895
    %v5897 = vpop.f32.mrf.mxu0
    %v5898 = vadd.f32 %v5773, %v5897
    %v5899 = vpop.f32.mrf.mxu0
    %5900 = vdwg.mxu0
    %5901 = vmatprep.subr.mxu0 0.0
    %v5902 = vand.u32 %v4705, 4294901760
    %5903 = vmatpush1.msra.mxu0 %v5902
    %5904 = vmatprep.subr.mxu0 0.0
    %v5905 = vand.u32 %v4704, 4294901760
    %5906 = vmatpush1.msra.mxu0 %v5905
    %5907 = vmatprep.subr.mxu0 0.0
    %v5908 = vand.u32 %v4703, 4294901760
    %5909 = vmatpush1.msra.mxu0 %v5908
    %5910 = vmatprep.subr.mxu0 0.0
    %v5911 = vand.u32 %v4702, 4294901760
    %5912 = vmatpush1.msra.mxu0 %v5911
    %5913 = vmatprep.subr.mxu0 0.0
    %v5914 = vand.u32 %v4701, 4294901760
    %5915 = vmatpush1.msra.mxu0 %v5914
    %5916 = vmatprep.subr.mxu0 0.0
    %v5917 = vand.u32 %v4700, 4294901760
    %5918 = vmatpush1.msra.mxu0 %v5917
    %5919 = vmatprep.subr.mxu0 0.0
    %v5920 = vand.u32 %v4699, 4294901760
    %5921 = vmatpush1.msra.mxu0 %v5920
    %5922 = vmatprep.subr.mxu0 0.0
    %v5923 = vand.u32 %v4698, 4294901760
    %5924 = vmatpush1.msra.mxu0 %v5923
    %5925 = vmatprep.subr.mxu0 0.0
    %v5926 = vand.u32 %v4697, 4294901760
    %5927 = vmatpush1.msra.mxu0 %v5926
    %5928 = vmatprep.subr.mxu0 0.0
    %v5929 = vand.u32 %v4696, 4294901760
    %5930 = vmatpush1.msra.mxu0 %v5929
    %5931 = vmatprep.subr.mxu0 0.0
    %v5932 = vand.u32 %v4695, 4294901760
    %5933 = vmatpush1.msra.mxu0 %v5932
    %5934 = vmatprep.subr.mxu0 0.0
    %v5935 = vand.u32 %v4694, 4294901760
    %5936 = vmatpush1.msra.mxu0 %v5935
    %5937 = vmatprep.subr.mxu0 0.0
    %v5938 = vand.u32 %v4693, 4294901760
    %5939 = vmatpush1.msra.mxu0 %v5938
    %5940 = vmatprep.subr.mxu0 0.0
    %v5941 = vand.u32 %v4692, 4294901760
    %5942 = vmatpush1.msra.mxu0 %v5941
    %5943 = vmatprep.subr.mxu0 0.0
    %v5944 = vand.u32 %v4691, 4294901760
    %5945 = vmatpush1.msra.mxu0 %v5944
    %5946 = vmatprep.subr.mxu0 0.0
    %v5947 = vand.u32 %v4690, 4294901760
    %5948 = vmatpush1.msra.mxu0 %v5947
    %5949 = vmatprep.subr.mxu0 0.0
    %5950 = vmatpush2.msra.mxu0 0.0
    %5951 = vmatprep.subr.mxu0 0.0
    %5952 = vmatpush2.msra.mxu0 0.0
    %5953 = vmatprep.subr.mxu0 0.0
    %5954 = vmatpush2.msra.mxu0 0.0
    %5955 = vmatprep.subr.mxu0 0.0
    %5956 = vmatpush2.msra.mxu0 0.0
    %5957 = vmatprep.subr.mxu0 0.0
    %5958 = vmatpush2.msra.mxu0 0.0
    %5959 = vmatprep.subr.mxu0 0.0
    %5960 = vmatpush2.msra.mxu0 0.0
    %5961 = vmatprep.subr.mxu0 0.0
    %5962 = vmatpush2.msra.mxu0 0.0
    %5963 = vmatprep.subr.mxu0 0.0
    %5964 = vmatpush2.msra.mxu0 0.0
    %5965 = vmatprep.subr.mxu0 0.0
    %5966 = vmatpush2.msra.mxu0 0.0
    %5967 = vmatprep.subr.mxu0 0.0
    %5968 = vmatpush2.msra.mxu0 0.0
    %5969 = vmatprep.subr.mxu0 0.0
    %5970 = vmatpush2.msra.mxu0 0.0
    %5971 = vmatprep.subr.mxu0 0.0
    %5972 = vmatpush2.msra.mxu0 0.0
    %5973 = vmatprep.subr.mxu0 0.0
    %5974 = vmatpush2.msra.mxu0 0.0
    %5975 = vmatprep.subr.mxu0 0.0
    %5976 = vmatpush2.msra.mxu0 0.0
    %5977 = vmatprep.subr.mxu0 0.0
    %5978 = vmatpush2.msra.mxu0 0.0
    %5979 = vmatprep.subr.mxu0 0.0
    %5980 = vmatpush2.msra.mxu0 0.0
    %5981 = vmatprep.mubr.f32.mxu0 0.0
    %v5982 = vand.u32 %v5482, 4294901760
    %v5983 = vsub.f32 %v5482, %v5982
    %v5984 = vand.u32 %v5983, 4294901760
    %5985 = vmatmul.mubr.f32.gmra.mxu0 %v5984
    %v5986 = vpop.f32.mrf.mxu0
    %v5987 = vadd.f32 %v5877, %v5986
    %v5988 = vpop.f32.mrf.mxu0
    %5989 = vmatprep.mubr.f32.mxu0 0.0
    %v5990 = vand.u32 %v5483, 4294901760
    %v5991 = vsub.f32 %v5483, %v5990
    %v5992 = vand.u32 %v5991, 4294901760
    %5993 = vmatmul.mubr.f32.gmra.mxu0 %v5992
    %v5994 = vpop.f32.mrf.mxu0
    %v5995 = vadd.f32 %v5884, %v5994
    %v5996 = vpop.f32.mrf.mxu0
    %5997 = vmatprep.mubr.f32.mxu0 0.0
    %v5998 = vand.u32 %v5484, 4294901760
    %v5999 = vsub.f32 %v5484, %v5998
    %v6000 = vand.u32 %v5999, 4294901760
    %6001 = vmatmul.mubr.f32.gmra.mxu0 %v6000
    %v6002 = vpop.f32.mrf.mxu0
    %v6003 = vadd.f32 %v5891, %v6002
    %v6004 = vpop.f32.mrf.mxu0
    %6005 = vmatprep.mubr.f32.mxu0 0.0
    %v6006 = vand.u32 %v5485, 4294901760
    %v6007 = vsub.f32 %v5485, %v6006
    %v6008 = vand.u32 %v6007, 4294901760
    %6009 = vmatmul.mubr.f32.gmra.mxu0 %v6008
    %v6010 = vpop.f32.mrf.mxu0
    %v6011 = vadd.f32 %v5898, %v6010
    %v6012 = vpop.f32.mrf.mxu0
    %6013 = vdwg.mxu0
    %6014 = vmatprep.subr.mxu0 0.0
    %v6015 = vand.u32 %v4705, 4294901760
    %v6016 = vsub.f32 %v4705, %v6015
    %v6017 = vand.u32 %v6016, 4294901760
    %6018 = vmatpush1.msra.mxu0 %v6017
    %6019 = vmatprep.subr.mxu0 0.0
    %v6020 = vand.u32 %v4704, 4294901760
    %v6021 = vsub.f32 %v4704, %v6020
    %v6022 = vand.u32 %v6021, 4294901760
    %6023 = vmatpush1.msra.mxu0 %v6022
    %6024 = vmatprep.subr.mxu0 0.0
    %v6025 = vand.u32 %v4703, 4294901760
    %v6026 = vsub.f32 %v4703, %v6025
    %v6027 = vand.u32 %v6026, 4294901760
    %6028 = vmatpush1.msra.mxu0 %v6027
    %6029 = vmatprep.subr.mxu0 0.0
    %v6030 = vand.u32 %v4702, 4294901760
    %v6031 = vsub.f32 %v4702, %v6030
    %v6032 = vand.u32 %v6031, 4294901760
    %6033 = vmatpush1.msra.mxu0 %v6032
    %6034 = vmatprep.subr.mxu0 0.0
    %v6035 = vand.u32 %v4701, 4294901760
    %v6036 = vsub.f32 %v4701, %v6035
    %v6037 = vand.u32 %v6036, 4294901760
    %6038 = vmatpush1.msra.mxu0 %v6037
    %6039 = vmatprep.subr.mxu0 0.0
    %v6040 = vand.u32 %v4700, 4294901760
    %v6041 = vsub.f32 %v4700, %v6040
    %v6042 = vand.u32 %v6041, 4294901760
    %6043 = vmatpush1.msra.mxu0 %v6042
    %6044 = vmatprep.subr.mxu0 0.0
    %v6045 = vand.u32 %v4699, 4294901760
    %v6046 = vsub.f32 %v4699, %v6045
    %v6047 = vand.u32 %v6046, 4294901760
    %6048 = vmatpush1.msra.mxu0 %v6047
    %6049 = vmatprep.subr.mxu0 0.0
    %v6050 = vand.u32 %v4698, 4294901760
    %v6051 = vsub.f32 %v4698, %v6050
    %v6052 = vand.u32 %v6051, 4294901760
    %6053 = vmatpush1.msra.mxu0 %v6052
    %6054 = vmatprep.subr.mxu0 0.0
    %v6055 = vand.u32 %v4697, 4294901760
    %v6056 = vsub.f32 %v4697, %v6055
    %v6057 = vand.u32 %v6056, 4294901760
    %6058 = vmatpush1.msra.mxu0 %v6057
    %6059 = vmatprep.subr.mxu0 0.0
    %v6060 = vand.u32 %v4696, 4294901760
    %v6061 = vsub.f32 %v4696, %v6060
    %v6062 = vand.u32 %v6061, 4294901760
    %6063 = vmatpush1.msra.mxu0 %v6062
    %6064 = vmatprep.subr.mxu0 0.0
    %v6065 = vand.u32 %v4695, 4294901760
    %v6066 = vsub.f32 %v4695, %v6065
    %v6067 = vand.u32 %v6066, 4294901760
    %6068 = vmatpush1.msra.mxu0 %v6067
    %6069 = vmatprep.subr.mxu0 0.0
    %v6070 = vand.u32 %v4694, 4294901760
    %v6071 = vsub.f32 %v4694, %v6070
    %v6072 = vand.u32 %v6071, 4294901760
    %6073 = vmatpush1.msra.mxu0 %v6072
    %6074 = vmatprep.subr.mxu0 0.0
    %v6075 = vand.u32 %v4693, 4294901760
    %v6076 = vsub.f32 %v4693, %v6075
    %v6077 = vand.u32 %v6076, 4294901760
    %6078 = vmatpush1.msra.mxu0 %v6077
    %6079 = vmatprep.subr.mxu0 0.0
    %v6080 = vand.u32 %v4692, 4294901760
    %v6081 = vsub.f32 %v4692, %v6080
    %v6082 = vand.u32 %v6081, 4294901760
    %6083 = vmatpush1.msra.mxu0 %v6082
    %6084 = vmatprep.subr.mxu0 0.0
    %v6085 = vand.u32 %v4691, 4294901760
    %v6086 = vsub.f32 %v4691, %v6085
    %v6087 = vand.u32 %v6086, 4294901760
    %6088 = vmatpush1.msra.mxu0 %v6087
    %6089 = vmatprep.subr.mxu0 0.0
    %v6090 = vand.u32 %v4690, 4294901760
    %v6091 = vsub.f32 %v4690, %v6090
    %v6092 = vand.u32 %v6091, 4294901760
    %6093 = vmatpush1.msra.mxu0 %v6092
    %6094 = vmatprep.subr.mxu0 0.0
    %6095 = vmatpush2.msra.mxu0 0.0
    %6096 = vmatprep.subr.mxu0 0.0
    %6097 = vmatpush2.msra.mxu0 0.0
    %6098 = vmatprep.subr.mxu0 0.0
    %6099 = vmatpush2.msra.mxu0 0.0
    %6100 = vmatprep.subr.mxu0 0.0
    %6101 = vmatpush2.msra.mxu0 0.0
    %6102 = vmatprep.subr.mxu0 0.0
    %6103 = vmatpush2.msra.mxu0 0.0
    %6104 = vmatprep.subr.mxu0 0.0
    %6105 = vmatpush2.msra.mxu0 0.0
    %6106 = vmatprep.subr.mxu0 0.0
    %6107 = vmatpush2.msra.mxu0 0.0
    %6108 = vmatprep.subr.mxu0 0.0
    %6109 = vmatpush2.msra.mxu0 0.0
    %6110 = vmatprep.subr.mxu0 0.0
    %6111 = vmatpush2.msra.mxu0 0.0
    %6112 = vmatprep.subr.mxu0 0.0
    %6113 = vmatpush2.msra.mxu0 0.0
    %6114 = vmatprep.subr.mxu0 0.0
    %6115 = vmatpush2.msra.mxu0 0.0
    %6116 = vmatprep.subr.mxu0 0.0
    %6117 = vmatpush2.msra.mxu0 0.0
    %6118 = vmatprep.subr.mxu0 0.0
    %6119 = vmatpush2.msra.mxu0 0.0
    %6120 = vmatprep.subr.mxu0 0.0
    %6121 = vmatpush2.msra.mxu0 0.0
    %6122 = vmatprep.subr.mxu0 0.0
    %6123 = vmatpush2.msra.mxu0 0.0
    %6124 = vmatprep.subr.mxu0 0.0
    %6125 = vmatpush2.msra.mxu0 0.0
    %6126 = vmatprep.mubr.f32.mxu0 0.0
    %v6127 = vand.u32 %v5482, 4294901760
    %6128 = vmatmul.mubr.f32.gmra.mxu0 %v6127
    %v6129 = vpop.f32.mrf.mxu0
    %v6130 = vadd.f32 %v5987, %v6129
    %v6131 = vpop.f32.mrf.mxu0
    %6132 = vmatprep.mubr.f32.mxu0 0.0
    %v6133 = vand.u32 %v5483, 4294901760
    %6134 = vmatmul.mubr.f32.gmra.mxu0 %v6133
    %v6135 = vpop.f32.mrf.mxu0
    %v6136 = vadd.f32 %v5995, %v6135
    %v6137 = vpop.f32.mrf.mxu0
    %6138 = vmatprep.mubr.f32.mxu0 0.0
    %v6139 = vand.u32 %v5484, 4294901760
    %6140 = vmatmul.mubr.f32.gmra.mxu0 %v6139
    %v6141 = vpop.f32.mrf.mxu0
    %v6142 = vadd.f32 %v6003, %v6141
    %v6143 = vpop.f32.mrf.mxu0
    %6144 = vmatprep.mubr.f32.mxu0 0.0
    %v6145 = vand.u32 %v5485, 4294901760
    %6146 = vmatmul.mubr.f32.gmra.mxu0 %v6145
    %v6147 = vpop.f32.mrf.mxu0
    %v6148 = vadd.f32 %v6011, %v6147
    %v6149 = vpop.f32.mrf.mxu0
    %6150 = vdwg.mxu0
    %6151 = vmatprep.subr.mxu0 0.0
    %v6152 = vand.u32 %v4705, 4294901760
    %6153 = vmatpush1.msra.mxu0 %v6152
    %6154 = vmatprep.subr.mxu0 0.0
    %v6155 = vand.u32 %v4704, 4294901760
    %6156 = vmatpush1.msra.mxu0 %v6155
    %6157 = vmatprep.subr.mxu0 0.0
    %v6158 = vand.u32 %v4703, 4294901760
    %6159 = vmatpush1.msra.mxu0 %v6158
    %6160 = vmatprep.subr.mxu0 0.0
    %v6161 = vand.u32 %v4702, 4294901760
    %6162 = vmatpush1.msra.mxu0 %v6161
    %6163 = vmatprep.subr.mxu0 0.0
    %v6164 = vand.u32 %v4701, 4294901760
    %6165 = vmatpush1.msra.mxu0 %v6164
    %6166 = vmatprep.subr.mxu0 0.0
    %v6167 = vand.u32 %v4700, 4294901760
    %6168 = vmatpush1.msra.mxu0 %v6167
    %6169 = vmatprep.subr.mxu0 0.0
    %v6170 = vand.u32 %v4699, 4294901760
    %6171 = vmatpush1.msra.mxu0 %v6170
    %6172 = vmatprep.subr.mxu0 0.0
    %v6173 = vand.u32 %v4698, 4294901760
    %6174 = vmatpush1.msra.mxu0 %v6173
    %6175 = vmatprep.subr.mxu0 0.0
    %v6176 = vand.u32 %v4697, 4294901760
    %6177 = vmatpush1.msra.mxu0 %v6176
    %6178 = vmatprep.subr.mxu0 0.0
    %v6179 = vand.u32 %v4696, 4294901760
    %6180 = vmatpush1.msra.mxu0 %v6179
    %6181 = vmatprep.subr.mxu0 0.0
    %v6182 = vand.u32 %v4695, 4294901760
    %6183 = vmatpush1.msra.mxu0 %v6182
    %6184 = vmatprep.subr.mxu0 0.0
    %v6185 = vand.u32 %v4694, 4294901760
    %6186 = vmatpush1.msra.mxu0 %v6185
    %6187 = vmatprep.subr.mxu0 0.0
    %v6188 = vand.u32 %v4693, 4294901760
    %6189 = vmatpush1.msra.mxu0 %v6188
    %6190 = vmatprep.subr.mxu0 0.0
    %v6191 = vand.u32 %v4692, 4294901760
    %6192 = vmatpush1.msra.mxu0 %v6191
    %6193 = vmatprep.subr.mxu0 0.0
    %v6194 = vand.u32 %v4691, 4294901760
    %6195 = vmatpush1.msra.mxu0 %v6194
    %6196 = vmatprep.subr.mxu0 0.0
    %v6197 = vand.u32 %v4690, 4294901760
    %6198 = vmatpush1.msra.mxu0 %v6197
    %6199 = vmatprep.subr.mxu0 0.0
    %6200 = vmatpush2.msra.mxu0 0.0
    %6201 = vmatprep.subr.mxu0 0.0
    %6202 = vmatpush2.msra.mxu0 0.0
    %6203 = vmatprep.subr.mxu0 0.0
    %6204 = vmatpush2.msra.mxu0 0.0
    %6205 = vmatprep.subr.mxu0 0.0
    %6206 = vmatpush2.msra.mxu0 0.0
    %6207 = vmatprep.subr.mxu0 0.0
    %6208 = vmatpush2.msra.mxu0 0.0
    %6209 = vmatprep.subr.mxu0 0.0
    %6210 = vmatpush2.msra.mxu0 0.0
    %6211 = vmatprep.subr.mxu0 0.0
    %6212 = vmatpush2.msra.mxu0 0.0
    %6213 = vmatprep.subr.mxu0 0.0
    %6214 = vmatpush2.msra.mxu0 0.0
    %6215 = vmatprep.subr.mxu0 0.0
    %6216 = vmatpush2.msra.mxu0 0.0
    %6217 = vmatprep.subr.mxu0 0.0
    %6218 = vmatpush2.msra.mxu0 0.0
    %6219 = vmatprep.subr.mxu0 0.0
    %6220 = vmatpush2.msra.mxu0 0.0
    %6221 = vmatprep.subr.mxu0 0.0
    %6222 = vmatpush2.msra.mxu0 0.0
    %6223 = vmatprep.subr.mxu0 0.0
    %6224 = vmatpush2.msra.mxu0 0.0
    %6225 = vmatprep.subr.mxu0 0.0
    %6226 = vmatpush2.msra.mxu0 0.0
    %6227 = vmatprep.subr.mxu0 0.0
    %6228 = vmatpush2.msra.mxu0 0.0
    %6229 = vmatprep.subr.mxu0 0.0
    %6230 = vmatpush2.msra.mxu0 0.0
    %6231 = vmatprep.mubr.f32.mxu0 0.0
    %v6232 = vand.u32 %v5482, 4294901760
    %6233 = vmatmul.mubr.f32.gmra.mxu0 %v6232
    %v6234 = vpop.f32.mrf.mxu0
    %v6235 = vadd.f32 %v6130, %v6234
    %v6236 = vpop.f32.mrf.mxu0
    %6237 = vmatprep.mubr.f32.mxu0 0.0
    %v6238 = vand.u32 %v5483, 4294901760
    %6239 = vmatmul.mubr.f32.gmra.mxu0 %v6238
    %v6240 = vpop.f32.mrf.mxu0
    %v6241 = vadd.f32 %v6136, %v6240
    %v6242 = vpop.f32.mrf.mxu0
    %6243 = vmatprep.mubr.f32.mxu0 0.0
    %v6244 = vand.u32 %v5484, 4294901760
    %6245 = vmatmul.mubr.f32.gmra.mxu0 %v6244
    %v6246 = vpop.f32.mrf.mxu0
    %v6247 = vadd.f32 %v6142, %v6246
    %v6248 = vpop.f32.mrf.mxu0
    %6249 = vmatprep.mubr.f32.mxu0 0.0
    %v6250 = vand.u32 %v5485, 4294901760
    %6251 = vmatmul.mubr.f32.gmra.mxu0 %v6250
    %v6252 = vpop.f32.mrf.mxu0
    %v6253 = vadd.f32 %v6148, %v6252
    %v6254 = vpop.f32.mrf.mxu0
    %6255 = vdwg.mxu0
    %v6256 = vadd.f32 %v4670, %v6235
    %v6257 = vadd.f32 %v4671, %v6241
    %v6258 = vadd.f32 %v4672, %v6247
    %v6259 = vadd.f32 %v4673, %v6253
    %v6260 = vlaneseq
    %v6261 = vshrl.u32 %v6260, 7
    %v6262 = vsub.s32 0, %v6261
    %v6263 = vrot.slane %v4707, %v6262
    %v6264 = vadd.f32 %v6256, %v6263
    %v6265 = vadd.f32 %v6257, %v6263
    %v6266 = vadd.f32 %v6258, %v6263
    %v6267 = vadd.f32 %v6259, %v6263
    %v6268 = vld [vmem:[#allocation14 + $0x140] sm:$0xff]
    %v6269 = vld [vmem:[#allocation14 + $0x148] sm:$0xff]
    %v6270 = vld [vmem:[#allocation14 + $0x150] sm:$0xff]
    %v6271 = vld [vmem:[#allocation14 + $0x158] sm:$0xff]
    %v6272 = vld [vmem:[#allocation14 + $0x160] sm:$0xff]
    %v6273 = vld [vmem:[#allocation14 + $0x168] sm:$0xff]
    %v6274 = vld [vmem:[#allocation14 + $0x170] sm:$0xff]
    %v6275 = vld [vmem:[#allocation14 + $0x178] sm:$0xff]
    %v6276 = vld [vmem:[#allocation14 + $0x180] sm:$0xff]
    %v6277 = vld [vmem:[#allocation14 + $0x188] sm:$0xff]
    %v6278 = vld [vmem:[#allocation14 + $0x190] sm:$0xff]
    %v6279 = vld [vmem:[#allocation14 + $0x198] sm:$0xff]
    %v6280 = vld [vmem:[#allocation14 + $0x1a0] sm:$0xff]
    %v6281 = vld [vmem:[#allocation14 + $0x1a8] sm:$0xff]
    %v6282 = vld [vmem:[#allocation14 + $0x1b0] sm:$0xff]
    %v6283 = vld [vmem:[#allocation14 + $0x1b8] sm:$0xff]
    %v6284 = vld [vmem:[#allocation14 + $0x1c0] sm:$0xff]
    %v6285 = vld [vmem:[#allocation14 + $0x1c8] sm:$0xff]
    %v6286 = vld [vmem:[#allocation14 + $0x1d0] sm:$0xff]
    %v6287 = vld [vmem:[#allocation14 + $0x1d8] sm:$0xff]
    %v6288 = vld [vmem:[#allocation14 + $0x1e0] sm:$0xff]
    %v6289 = vld [vmem:[#allocation14 + $0x1e8] sm:$0xff]
    %v6290 = vld [vmem:[#allocation14 + $0x1f0] sm:$0xff]
    %v6291 = vld [vmem:[#allocation14 + $0x1f8] sm:$0xff]
    %v6292 = vld [vmem:[#allocation14 + $0x200] sm:$0xff]
    %v6293 = vld [vmem:[#allocation14 + $0x208] sm:$0xff]
    %v6294 = vld [vmem:[#allocation14 + $0x210] sm:$0xff]
    %v6295 = vld [vmem:[#allocation14 + $0x218] sm:$0xff]
    %v6296 = vld [vmem:[#allocation14 + $0x220] sm:$0xff]
    %v6297 = vld [vmem:[#allocation14 + $0x228] sm:$0xff]
    %v6298 = vld [vmem:[#allocation14 + $0x230] sm:$0xff]
    %v6299 = vld [vmem:[#allocation14 + $0x238] sm:$0xff]
    %v6300 = vld [vmem:[%s8 + $0x3] sm:$0x1]
    %v6301 = vld [vmem:[%s8 + $0x4] sm:$0x1]
    %v6302 = vlaneseq
    %v6303 = vshrl.u32 %v6302, 7
    %v6304 = vsub.s32 0, %v6303
    %v6305 = vrot.slane %v6300, %v6304
    %6306 = vmatprep.subr.mxu0 0.0
    %v6307 = vand.u32 %v6283, 4294901760
    %6308 = vmatpush1.msra.mxu0 %v6307
    %6309 = vmatprep.subr.mxu0 0.0
    %v6310 = vand.u32 %v6282, 4294901760
    %6311 = vmatpush1.msra.mxu0 %v6310
    %6312 = vmatprep.subr.mxu0 0.0
    %v6313 = vand.u32 %v6281, 4294901760
    %6314 = vmatpush1.msra.mxu0 %v6313
    %6315 = vmatprep.subr.mxu0 0.0
    %v6316 = vand.u32 %v6280, 4294901760
    %6317 = vmatpush1.msra.mxu0 %v6316
    %6318 = vmatprep.subr.mxu0 0.0
    %v6319 = vand.u32 %v6279, 4294901760
    %6320 = vmatpush1.msra.mxu0 %v6319
    %6321 = vmatprep.subr.mxu0 0.0
    %v6322 = vand.u32 %v6278, 4294901760
    %6323 = vmatpush1.msra.mxu0 %v6322
    %6324 = vmatprep.subr.mxu0 0.0
    %v6325 = vand.u32 %v6277, 4294901760
    %6326 = vmatpush1.msra.mxu0 %v6325
    %6327 = vmatprep.subr.mxu0 0.0
    %v6328 = vand.u32 %v6276, 4294901760
    %6329 = vmatpush1.msra.mxu0 %v6328
    %6330 = vmatprep.subr.mxu0 0.0
    %v6331 = vand.u32 %v6275, 4294901760
    %6332 = vmatpush1.msra.mxu0 %v6331
    %6333 = vmatprep.subr.mxu0 0.0
    %v6334 = vand.u32 %v6274, 4294901760
    %6335 = vmatpush1.msra.mxu0 %v6334
    %6336 = vmatprep.subr.mxu0 0.0
    %v6337 = vand.u32 %v6273, 4294901760
    %6338 = vmatpush1.msra.mxu0 %v6337
    %6339 = vmatprep.subr.mxu0 0.0
    %v6340 = vand.u32 %v6272, 4294901760
    %6341 = vmatpush1.msra.mxu0 %v6340
    %6342 = vmatprep.subr.mxu0 0.0
    %v6343 = vand.u32 %v6271, 4294901760
    %6344 = vmatpush1.msra.mxu0 %v6343
    %6345 = vmatprep.subr.mxu0 0.0
    %v6346 = vand.u32 %v6270, 4294901760
    %6347 = vmatpush1.msra.mxu0 %v6346
    %6348 = vmatprep.subr.mxu0 0.0
    %v6349 = vand.u32 %v6269, 4294901760
    %6350 = vmatpush1.msra.mxu0 %v6349
    %6351 = vmatprep.subr.mxu0 0.0
    %v6352 = vand.u32 %v6268, 4294901760
    %6353 = vmatpush1.msra.mxu0 %v6352
    %6354 = vmatprep.subr.mxu0 0.0
    %6355 = vmatpush2.msra.mxu0 0.0
    %6356 = vmatprep.subr.mxu0 0.0
    %6357 = vmatpush2.msra.mxu0 0.0
    %6358 = vmatprep.subr.mxu0 0.0
    %6359 = vmatpush2.msra.mxu0 0.0
    %6360 = vmatprep.subr.mxu0 0.0
    %6361 = vmatpush2.msra.mxu0 0.0
    %6362 = vmatprep.subr.mxu0 0.0
    %6363 = vmatpush2.msra.mxu0 0.0
    %6364 = vmatprep.subr.mxu0 0.0
    %6365 = vmatpush2.msra.mxu0 0.0
    %6366 = vmatprep.subr.mxu0 0.0
    %6367 = vmatpush2.msra.mxu0 0.0
    %6368 = vmatprep.subr.mxu0 0.0
    %6369 = vmatpush2.msra.mxu0 0.0
    %6370 = vmatprep.subr.mxu0 0.0
    %6371 = vmatpush2.msra.mxu0 0.0
    %6372 = vmatprep.subr.mxu0 0.0
    %6373 = vmatpush2.msra.mxu0 0.0
    %6374 = vmatprep.subr.mxu0 0.0
    %6375 = vmatpush2.msra.mxu0 0.0
    %6376 = vmatprep.subr.mxu0 0.0
    %6377 = vmatpush2.msra.mxu0 0.0
    %6378 = vmatprep.subr.mxu0 0.0
    %6379 = vmatpush2.msra.mxu0 0.0
    %6380 = vmatprep.subr.mxu0 0.0
    %6381 = vmatpush2.msra.mxu0 0.0
    %6382 = vmatprep.subr.mxu0 0.0
    %6383 = vmatpush2.msra.mxu0 0.0
    %6384 = vmatprep.subr.mxu0 0.0
    %6385 = vmatpush2.msra.mxu0 0.0
    %6386 = vmatprep.mubr.f32.mxu0 0.0
    %v6387 = vand.u32 %v6264, 4294901760
    %v6388 = vsub.f32 %v6264, %v6387
    %v6389 = vand.u32 %v6388, 4294901760
    %v6390 = vsub.f32 %v6388, %v6389
    %v6391 = vand.u32 %v6390, 4294901760
    %6392 = vmatmul.mubr.f32.gmra.mxu0 %v6391
    %v6393 = vpop.f32.mrf.mxu0
    %v6394 = vadd.f32 %v6305, %v6393
    %v6395 = vpop.f32.mrf.mxu0
    %6396 = vmatprep.mubr.f32.mxu0 0.0
    %v6397 = vand.u32 %v6265, 4294901760
    %v6398 = vsub.f32 %v6265, %v6397
    %v6399 = vand.u32 %v6398, 4294901760
    %v6400 = vsub.f32 %v6398, %v6399
    %v6401 = vand.u32 %v6400, 4294901760
    %6402 = vmatmul.mubr.f32.gmra.mxu0 %v6401
    %v6403 = vpop.f32.mrf.mxu0
    %v6404 = vadd.f32 %v6305, %v6403
    %v6405 = vpop.f32.mrf.mxu0
    %6406 = vmatprep.mubr.f32.mxu0 0.0
    %v6407 = vand.u32 %v6266, 4294901760
    %v6408 = vsub.f32 %v6266, %v6407
    %v6409 = vand.u32 %v6408, 4294901760
    %v6410 = vsub.f32 %v6408, %v6409
    %v6411 = vand.u32 %v6410, 4294901760
    %6412 = vmatmul.mubr.f32.gmra.mxu0 %v6411
    %v6413 = vpop.f32.mrf.mxu0
    %v6414 = vadd.f32 %v6305, %v6413
    %v6415 = vpop.f32.mrf.mxu0
    %6416 = vmatprep.mubr.f32.mxu0 0.0
    %v6417 = vand.u32 %v6267, 4294901760
    %v6418 = vsub.f32 %v6267, %v6417
    %v6419 = vand.u32 %v6418, 4294901760
    %v6420 = vsub.f32 %v6418, %v6419
    %v6421 = vand.u32 %v6420, 4294901760
    %6422 = vmatmul.mubr.f32.gmra.mxu0 %v6421
    %v6423 = vpop.f32.mrf.mxu0
    %v6424 = vadd.f32 %v6305, %v6423
    %v6425 = vpop.f32.mrf.mxu0
    %6426 = vdwg.mxu0
    %6427 = vmatprep.subr.mxu0 0.0
    %v6428 = vand.u32 %v6283, 4294901760
    %v6429 = vsub.f32 %v6283, %v6428
    %v6430 = vand.u32 %v6429, 4294901760
    %v6431 = vsub.f32 %v6429, %v6430
    %v6432 = vand.u32 %v6431, 4294901760
    %6433 = vmatpush1.msra.mxu0 %v6432
    %6434 = vmatprep.subr.mxu0 0.0
    %v6435 = vand.u32 %v6282, 4294901760
    %v6436 = vsub.f32 %v6282, %v6435
    %v6437 = vand.u32 %v6436, 4294901760
    %v6438 = vsub.f32 %v6436, %v6437
    %v6439 = vand.u32 %v6438, 4294901760
    %6440 = vmatpush1.msra.mxu0 %v6439
    %6441 = vmatprep.subr.mxu0 0.0
    %v6442 = vand.u32 %v6281, 4294901760
    %v6443 = vsub.f32 %v6281, %v6442
    %v6444 = vand.u32 %v6443, 4294901760
    %v6445 = vsub.f32 %v6443, %v6444
    %v6446 = vand.u32 %v6445, 4294901760
    %6447 = vmatpush1.msra.mxu0 %v6446
    %6448 = vmatprep.subr.mxu0 0.0
    %v6449 = vand.u32 %v6280, 4294901760
    %v6450 = vsub.f32 %v6280, %v6449
    %v6451 = vand.u32 %v6450, 4294901760
    %v6452 = vsub.f32 %v6450, %v6451
    %v6453 = vand.u32 %v6452, 4294901760
    %6454 = vmatpush1.msra.mxu0 %v6453
    %6455 = vmatprep.subr.mxu0 0.0
    %v6456 = vand.u32 %v6279, 4294901760
    %v6457 = vsub.f32 %v6279, %v6456
    %v6458 = vand.u32 %v6457, 4294901760
    %v6459 = vsub.f32 %v6457, %v6458
    %v6460 = vand.u32 %v6459, 4294901760
    %6461 = vmatpush1.msra.mxu0 %v6460
    %6462 = vmatprep.subr.mxu0 0.0
    %v6463 = vand.u32 %v6278, 4294901760
    %v6464 = vsub.f32 %v6278, %v6463
    %v6465 = vand.u32 %v6464, 4294901760
    %v6466 = vsub.f32 %v6464, %v6465
    %v6467 = vand.u32 %v6466, 4294901760
    %6468 = vmatpush1.msra.mxu0 %v6467
    %6469 = vmatprep.subr.mxu0 0.0
    %v6470 = vand.u32 %v6277, 4294901760
    %v6471 = vsub.f32 %v6277, %v6470
    %v6472 = vand.u32 %v6471, 4294901760
    %v6473 = vsub.f32 %v6471, %v6472
    %v6474 = vand.u32 %v6473, 4294901760
    %6475 = vmatpush1.msra.mxu0 %v6474
    %6476 = vmatprep.subr.mxu0 0.0
    %v6477 = vand.u32 %v6276, 4294901760
    %v6478 = vsub.f32 %v6276, %v6477
    %v6479 = vand.u32 %v6478, 4294901760
    %v6480 = vsub.f32 %v6478, %v6479
    %v6481 = vand.u32 %v6480, 4294901760
    %6482 = vmatpush1.msra.mxu0 %v6481
    %6483 = vmatprep.subr.mxu0 0.0
    %v6484 = vand.u32 %v6275, 4294901760
    %v6485 = vsub.f32 %v6275, %v6484
    %v6486 = vand.u32 %v6485, 4294901760
    %v6487 = vsub.f32 %v6485, %v6486
    %v6488 = vand.u32 %v6487, 4294901760
    %6489 = vmatpush1.msra.mxu0 %v6488
    %6490 = vmatprep.subr.mxu0 0.0
    %v6491 = vand.u32 %v6274, 4294901760
    %v6492 = vsub.f32 %v6274, %v6491
    %v6493 = vand.u32 %v6492, 4294901760
    %v6494 = vsub.f32 %v6492, %v6493
    %v6495 = vand.u32 %v6494, 4294901760
    %6496 = vmatpush1.msra.mxu0 %v6495
    %6497 = vmatprep.subr.mxu0 0.0
    %v6498 = vand.u32 %v6273, 4294901760
    %v6499 = vsub.f32 %v6273, %v6498
    %v6500 = vand.u32 %v6499, 4294901760
    %v6501 = vsub.f32 %v6499, %v6500
    %v6502 = vand.u32 %v6501, 4294901760
    %6503 = vmatpush1.msra.mxu0 %v6502
    %6504 = vmatprep.subr.mxu0 0.0
    %v6505 = vand.u32 %v6272, 4294901760
    %v6506 = vsub.f32 %v6272, %v6505
    %v6507 = vand.u32 %v6506, 4294901760
    %v6508 = vsub.f32 %v6506, %v6507
    %v6509 = vand.u32 %v6508, 4294901760
    %6510 = vmatpush1.msra.mxu0 %v6509
    %6511 = vmatprep.subr.mxu0 0.0
    %v6512 = vand.u32 %v6271, 4294901760
    %v6513 = vsub.f32 %v6271, %v6512
    %v6514 = vand.u32 %v6513, 4294901760
    %v6515 = vsub.f32 %v6513, %v6514
    %v6516 = vand.u32 %v6515, 4294901760
    %6517 = vmatpush1.msra.mxu0 %v6516
    %6518 = vmatprep.subr.mxu0 0.0
    %v6519 = vand.u32 %v6270, 4294901760
    %v6520 = vsub.f32 %v6270, %v6519
    %v6521 = vand.u32 %v6520, 4294901760
    %v6522 = vsub.f32 %v6520, %v6521
    %v6523 = vand.u32 %v6522, 4294901760
    %6524 = vmatpush1.msra.mxu0 %v6523
    %6525 = vmatprep.subr.mxu0 0.0
    %v6526 = vand.u32 %v6269, 4294901760
    %v6527 = vsub.f32 %v6269, %v6526
    %v6528 = vand.u32 %v6527, 4294901760
    %v6529 = vsub.f32 %v6527, %v6528
    %v6530 = vand.u32 %v6529, 4294901760
    %6531 = vmatpush1.msra.mxu0 %v6530
    %6532 = vmatprep.subr.mxu0 0.0
    %v6533 = vand.u32 %v6268, 4294901760
    %v6534 = vsub.f32 %v6268, %v6533
    %v6535 = vand.u32 %v6534, 4294901760
    %v6536 = vsub.f32 %v6534, %v6535
    %v6537 = vand.u32 %v6536, 4294901760
    %6538 = vmatpush1.msra.mxu0 %v6537
    %6539 = vmatprep.subr.mxu0 0.0
    %6540 = vmatpush2.msra.mxu0 0.0
    %6541 = vmatprep.subr.mxu0 0.0
    %6542 = vmatpush2.msra.mxu0 0.0
    %6543 = vmatprep.subr.mxu0 0.0
    %6544 = vmatpush2.msra.mxu0 0.0
    %6545 = vmatprep.subr.mxu0 0.0
    %6546 = vmatpush2.msra.mxu0 0.0
    %6547 = vmatprep.subr.mxu0 0.0
    %6548 = vmatpush2.msra.mxu0 0.0
    %6549 = vmatprep.subr.mxu0 0.0
    %6550 = vmatpush2.msra.mxu0 0.0
    %6551 = vmatprep.subr.mxu0 0.0
    %6552 = vmatpush2.msra.mxu0 0.0
    %6553 = vmatprep.subr.mxu0 0.0
    %6554 = vmatpush2.msra.mxu0 0.0
    %6555 = vmatprep.subr.mxu0 0.0
    %6556 = vmatpush2.msra.mxu0 0.0
    %6557 = vmatprep.subr.mxu0 0.0
    %6558 = vmatpush2.msra.mxu0 0.0
    %6559 = vmatprep.subr.mxu0 0.0
    %6560 = vmatpush2.msra.mxu0 0.0
    %6561 = vmatprep.subr.mxu0 0.0
    %6562 = vmatpush2.msra.mxu0 0.0
    %6563 = vmatprep.subr.mxu0 0.0
    %6564 = vmatpush2.msra.mxu0 0.0
    %6565 = vmatprep.subr.mxu0 0.0
    %6566 = vmatpush2.msra.mxu0 0.0
    %6567 = vmatprep.subr.mxu0 0.0
    %6568 = vmatpush2.msra.mxu0 0.0
    %6569 = vmatprep.subr.mxu0 0.0
    %6570 = vmatpush2.msra.mxu0 0.0
    %6571 = vmatprep.mubr.f32.mxu0 0.0
    %v6572 = vand.u32 %v6264, 4294901760
    %6573 = vmatmul.mubr.f32.gmra.mxu0 %v6572
    %v6574 = vpop.f32.mrf.mxu0
    %v6575 = vadd.f32 %v6394, %v6574
    %v6576 = vpop.f32.mrf.mxu0
    %6577 = vmatprep.mubr.f32.mxu0 0.0
    %v6578 = vand.u32 %v6265, 4294901760
    %6579 = vmatmul.mubr.f32.gmra.mxu0 %v6578
    %v6580 = vpop.f32.mrf.mxu0
    %v6581 = vadd.f32 %v6404, %v6580
    %v6582 = vpop.f32.mrf.mxu0
    %6583 = vmatprep.mubr.f32.mxu0 0.0
    %v6584 = vand.u32 %v6266, 4294901760
    %6585 = vmatmul.mubr.f32.gmra.mxu0 %v6584
    %v6586 = vpop.f32.mrf.mxu0
    %v6587 = vadd.f32 %v6414, %v6586
    %v6588 = vpop.f32.mrf.mxu0
    %6589 = vmatprep.mubr.f32.mxu0 0.0
    %v6590 = vand.u32 %v6267, 4294901760
    %6591 = vmatmul.mubr.f32.gmra.mxu0 %v6590
    %v6592 = vpop.f32.mrf.mxu0
    %v6593 = vadd.f32 %v6424, %v6592
    %v6594 = vpop.f32.mrf.mxu0
    %6595 = vdwg.mxu0
    %6596 = vmatprep.subr.mxu0 0.0
    %v6597 = vand.u32 %v6283, 4294901760
    %v6598 = vsub.f32 %v6283, %v6597
    %6599 = vmatpush1.msra.mxu0 %v6598
    %6600 = vmatprep.subr.mxu0 0.0
    %v6601 = vand.u32 %v6282, 4294901760
    %v6602 = vsub.f32 %v6282, %v6601
    %6603 = vmatpush1.msra.mxu0 %v6602
    %6604 = vmatprep.subr.mxu0 0.0
    %v6605 = vand.u32 %v6281, 4294901760
    %v6606 = vsub.f32 %v6281, %v6605
    %6607 = vmatpush1.msra.mxu0 %v6606
    %6608 = vmatprep.subr.mxu0 0.0
    %v6609 = vand.u32 %v6280, 4294901760
    %v6610 = vsub.f32 %v6280, %v6609
    %6611 = vmatpush1.msra.mxu0 %v6610
    %6612 = vmatprep.subr.mxu0 0.0
    %v6613 = vand.u32 %v6279, 4294901760
    %v6614 = vsub.f32 %v6279, %v6613
    %6615 = vmatpush1.msra.mxu0 %v6614
    %6616 = vmatprep.subr.mxu0 0.0
    %v6617 = vand.u32 %v6278, 4294901760
    %v6618 = vsub.f32 %v6278, %v6617
    %6619 = vmatpush1.msra.mxu0 %v6618
    %6620 = vmatprep.subr.mxu0 0.0
    %v6621 = vand.u32 %v6277, 4294901760
    %v6622 = vsub.f32 %v6277, %v6621
    %6623 = vmatpush1.msra.mxu0 %v6622
    %6624 = vmatprep.subr.mxu0 0.0
    %v6625 = vand.u32 %v6276, 4294901760
    %v6626 = vsub.f32 %v6276, %v6625
    %6627 = vmatpush1.msra.mxu0 %v6626
    %6628 = vmatprep.subr.mxu0 0.0
    %v6629 = vand.u32 %v6275, 4294901760
    %v6630 = vsub.f32 %v6275, %v6629
    %6631 = vmatpush1.msra.mxu0 %v6630
    %6632 = vmatprep.subr.mxu0 0.0
    %v6633 = vand.u32 %v6274, 4294901760
    %v6634 = vsub.f32 %v6274, %v6633
    %6635 = vmatpush1.msra.mxu0 %v6634
    %6636 = vmatprep.subr.mxu0 0.0
    %v6637 = vand.u32 %v6273, 4294901760
    %v6638 = vsub.f32 %v6273, %v6637
    %6639 = vmatpush1.msra.mxu0 %v6638
    %6640 = vmatprep.subr.mxu0 0.0
    %v6641 = vand.u32 %v6272, 4294901760
    %v6642 = vsub.f32 %v6272, %v6641
    %6643 = vmatpush1.msra.mxu0 %v6642
    %6644 = vmatprep.subr.mxu0 0.0
    %v6645 = vand.u32 %v6271, 4294901760
    %v6646 = vsub.f32 %v6271, %v6645
    %6647 = vmatpush1.msra.mxu0 %v6646
    %6648 = vmatprep.subr.mxu0 0.0
    %v6649 = vand.u32 %v6270, 4294901760
    %v6650 = vsub.f32 %v6270, %v6649
    %6651 = vmatpush1.msra.mxu0 %v6650
    %6652 = vmatprep.subr.mxu0 0.0
    %v6653 = vand.u32 %v6269, 4294901760
    %v6654 = vsub.f32 %v6269, %v6653
    %6655 = vmatpush1.msra.mxu0 %v6654
    %6656 = vmatprep.subr.mxu0 0.0
    %v6657 = vand.u32 %v6268, 4294901760
    %v6658 = vsub.f32 %v6268, %v6657
    %6659 = vmatpush1.msra.mxu0 %v6658
    %6660 = vmatprep.subr.mxu0 0.0
    %6661 = vmatpush2.msra.mxu0 0.0
    %6662 = vmatprep.subr.mxu0 0.0
    %6663 = vmatpush2.msra.mxu0 0.0
    %6664 = vmatprep.subr.mxu0 0.0
    %6665 = vmatpush2.msra.mxu0 0.0
    %6666 = vmatprep.subr.mxu0 0.0
    %6667 = vmatpush2.msra.mxu0 0.0
    %6668 = vmatprep.subr.mxu0 0.0
    %6669 = vmatpush2.msra.mxu0 0.0
    %6670 = vmatprep.subr.mxu0 0.0
    %6671 = vmatpush2.msra.mxu0 0.0
    %6672 = vmatprep.subr.mxu0 0.0
    %6673 = vmatpush2.msra.mxu0 0.0
    %6674 = vmatprep.subr.mxu0 0.0
    %6675 = vmatpush2.msra.mxu0 0.0
    %6676 = vmatprep.subr.mxu0 0.0
    %6677 = vmatpush2.msra.mxu0 0.0
    %6678 = vmatprep.subr.mxu0 0.0
    %6679 = vmatpush2.msra.mxu0 0.0
    %6680 = vmatprep.subr.mxu0 0.0
    %6681 = vmatpush2.msra.mxu0 0.0
    %6682 = vmatprep.subr.mxu0 0.0
    %6683 = vmatpush2.msra.mxu0 0.0
    %6684 = vmatprep.subr.mxu0 0.0
    %6685 = vmatpush2.msra.mxu0 0.0
    %6686 = vmatprep.subr.mxu0 0.0
    %6687 = vmatpush2.msra.mxu0 0.0
    %6688 = vmatprep.subr.mxu0 0.0
    %6689 = vmatpush2.msra.mxu0 0.0
    %6690 = vmatprep.subr.mxu0 0.0
    %6691 = vmatpush2.msra.mxu0 0.0
    %6692 = vmatprep.mubr.f32.mxu0 0.0
    %v6693 = vand.u32 %v6264, 4294901760
    %v6694 = vsub.f32 %v6264, %v6693
    %6695 = vmatmul.mubr.f32.gmra.mxu0 %v6694
    %v6696 = vpop.f32.mrf.mxu0
    %v6697 = vadd.f32 %v6575, %v6696
    %v6698 = vpop.f32.mrf.mxu0
    %6699 = vmatprep.mubr.f32.mxu0 0.0
    %v6700 = vand.u32 %v6265, 4294901760
    %v6701 = vsub.f32 %v6265, %v6700
    %6702 = vmatmul.mubr.f32.gmra.mxu0 %v6701
    %v6703 = vpop.f32.mrf.mxu0
    %v6704 = vadd.f32 %v6581, %v6703
    %v6705 = vpop.f32.mrf.mxu0
    %6706 = vmatprep.mubr.f32.mxu0 0.0
    %v6707 = vand.u32 %v6266, 4294901760
    %v6708 = vsub.f32 %v6266, %v6707
    %6709 = vmatmul.mubr.f32.gmra.mxu0 %v6708
    %v6710 = vpop.f32.mrf.mxu0
    %v6711 = vadd.f32 %v6587, %v6710
    %v6712 = vpop.f32.mrf.mxu0
    %6713 = vmatprep.mubr.f32.mxu0 0.0
    %v6714 = vand.u32 %v6267, 4294901760
    %v6715 = vsub.f32 %v6267, %v6714
    %6716 = vmatmul.mubr.f32.gmra.mxu0 %v6715
    %v6717 = vpop.f32.mrf.mxu0
    %v6718 = vadd.f32 %v6593, %v6717
    %v6719 = vpop.f32.mrf.mxu0
    %6720 = vdwg.mxu0
    %6721 = vmatprep.subr.mxu0 0.0
    %v6722 = vand.u32 %v6283, 4294901760
    %6723 = vmatpush1.msra.mxu0 %v6722
    %6724 = vmatprep.subr.mxu0 0.0
    %v6725 = vand.u32 %v6282, 4294901760
    %6726 = vmatpush1.msra.mxu0 %v6725
    %6727 = vmatprep.subr.mxu0 0.0
    %v6728 = vand.u32 %v6281, 4294901760
    %6729 = vmatpush1.msra.mxu0 %v6728
    %6730 = vmatprep.subr.mxu0 0.0
    %v6731 = vand.u32 %v6280, 4294901760
    %6732 = vmatpush1.msra.mxu0 %v6731
    %6733 = vmatprep.subr.mxu0 0.0
    %v6734 = vand.u32 %v6279, 4294901760
    %6735 = vmatpush1.msra.mxu0 %v6734
    %6736 = vmatprep.subr.mxu0 0.0
    %v6737 = vand.u32 %v6278, 4294901760
    %6738 = vmatpush1.msra.mxu0 %v6737
    %6739 = vmatprep.subr.mxu0 0.0
    %v6740 = vand.u32 %v6277, 4294901760
    %6741 = vmatpush1.msra.mxu0 %v6740
    %6742 = vmatprep.subr.mxu0 0.0
    %v6743 = vand.u32 %v6276, 4294901760
    %6744 = vmatpush1.msra.mxu0 %v6743
    %6745 = vmatprep.subr.mxu0 0.0
    %v6746 = vand.u32 %v6275, 4294901760
    %6747 = vmatpush1.msra.mxu0 %v6746
    %6748 = vmatprep.subr.mxu0 0.0
    %v6749 = vand.u32 %v6274, 4294901760
    %6750 = vmatpush1.msra.mxu0 %v6749
    %6751 = vmatprep.subr.mxu0 0.0
    %v6752 = vand.u32 %v6273, 4294901760
    %6753 = vmatpush1.msra.mxu0 %v6752
    %6754 = vmatprep.subr.mxu0 0.0
    %v6755 = vand.u32 %v6272, 4294901760
    %6756 = vmatpush1.msra.mxu0 %v6755
    %6757 = vmatprep.subr.mxu0 0.0
    %v6758 = vand.u32 %v6271, 4294901760
    %6759 = vmatpush1.msra.mxu0 %v6758
    %6760 = vmatprep.subr.mxu0 0.0
    %v6761 = vand.u32 %v6270, 4294901760
    %6762 = vmatpush1.msra.mxu0 %v6761
    %6763 = vmatprep.subr.mxu0 0.0
    %v6764 = vand.u32 %v6269, 4294901760
    %6765 = vmatpush1.msra.mxu0 %v6764
    %6766 = vmatprep.subr.mxu0 0.0
    %v6767 = vand.u32 %v6268, 4294901760
    %6768 = vmatpush1.msra.mxu0 %v6767
    %6769 = vmatprep.subr.mxu0 0.0
    %6770 = vmatpush2.msra.mxu0 0.0
    %6771 = vmatprep.subr.mxu0 0.0
    %6772 = vmatpush2.msra.mxu0 0.0
    %6773 = vmatprep.subr.mxu0 0.0
    %6774 = vmatpush2.msra.mxu0 0.0
    %6775 = vmatprep.subr.mxu0 0.0
    %6776 = vmatpush2.msra.mxu0 0.0
    %6777 = vmatprep.subr.mxu0 0.0
    %6778 = vmatpush2.msra.mxu0 0.0
    %6779 = vmatprep.subr.mxu0 0.0
    %6780 = vmatpush2.msra.mxu0 0.0
    %6781 = vmatprep.subr.mxu0 0.0
    %6782 = vmatpush2.msra.mxu0 0.0
    %6783 = vmatprep.subr.mxu0 0.0
    %6784 = vmatpush2.msra.mxu0 0.0
    %6785 = vmatprep.subr.mxu0 0.0
    %6786 = vmatpush2.msra.mxu0 0.0
    %6787 = vmatprep.subr.mxu0 0.0
    %6788 = vmatpush2.msra.mxu0 0.0
    %6789 = vmatprep.subr.mxu0 0.0
    %6790 = vmatpush2.msra.mxu0 0.0
    %6791 = vmatprep.subr.mxu0 0.0
    %6792 = vmatpush2.msra.mxu0 0.0
    %6793 = vmatprep.subr.mxu0 0.0
    %6794 = vmatpush2.msra.mxu0 0.0
    %6795 = vmatprep.subr.mxu0 0.0
    %6796 = vmatpush2.msra.mxu0 0.0
    %6797 = vmatprep.subr.mxu0 0.0
    %6798 = vmatpush2.msra.mxu0 0.0
    %6799 = vmatprep.subr.mxu0 0.0
    %6800 = vmatpush2.msra.mxu0 0.0
    %6801 = vmatprep.mubr.f32.mxu0 0.0
    %v6802 = vand.u32 %v6264, 4294901760
    %v6803 = vsub.f32 %v6264, %v6802
    %v6804 = vand.u32 %v6803, 4294901760
    %6805 = vmatmul.mubr.f32.gmra.mxu0 %v6804
    %v6806 = vpop.f32.mrf.mxu0
    %v6807 = vadd.f32 %v6697, %v6806
    %v6808 = vpop.f32.mrf.mxu0
    %6809 = vmatprep.mubr.f32.mxu0 0.0
    %v6810 = vand.u32 %v6265, 4294901760
    %v6811 = vsub.f32 %v6265, %v6810
    %v6812 = vand.u32 %v6811, 4294901760
    %6813 = vmatmul.mubr.f32.gmra.mxu0 %v6812
    %v6814 = vpop.f32.mrf.mxu0
    %v6815 = vadd.f32 %v6704, %v6814
    %v6816 = vpop.f32.mrf.mxu0
    %6817 = vmatprep.mubr.f32.mxu0 0.0
    %v6818 = vand.u32 %v6266, 4294901760
    %v6819 = vsub.f32 %v6266, %v6818
    %v6820 = vand.u32 %v6819, 4294901760
    %6821 = vmatmul.mubr.f32.gmra.mxu0 %v6820
    %v6822 = vpop.f32.mrf.mxu0
    %v6823 = vadd.f32 %v6711, %v6822
    %v6824 = vpop.f32.mrf.mxu0
    %6825 = vmatprep.mubr.f32.mxu0 0.0
    %v6826 = vand.u32 %v6267, 4294901760
    %v6827 = vsub.f32 %v6267, %v6826
    %v6828 = vand.u32 %v6827, 4294901760
    %6829 = vmatmul.mubr.f32.gmra.mxu0 %v6828
    %v6830 = vpop.f32.mrf.mxu0
    %v6831 = vadd.f32 %v6718, %v6830
    %v6832 = vpop.f32.mrf.mxu0
    %6833 = vdwg.mxu0
    %6834 = vmatprep.subr.mxu0 0.0
    %v6835 = vand.u32 %v6283, 4294901760
    %v6836 = vsub.f32 %v6283, %v6835
    %v6837 = vand.u32 %v6836, 4294901760
    %6838 = vmatpush1.msra.mxu0 %v6837
    %6839 = vmatprep.subr.mxu0 0.0
    %v6840 = vand.u32 %v6282, 4294901760
    %v6841 = vsub.f32 %v6282, %v6840
    %v6842 = vand.u32 %v6841, 4294901760
    %6843 = vmatpush1.msra.mxu0 %v6842
    %6844 = vmatprep.subr.mxu0 0.0
    %v6845 = vand.u32 %v6281, 4294901760
    %v6846 = vsub.f32 %v6281, %v6845
    %v6847 = vand.u32 %v6846, 4294901760
    %6848 = vmatpush1.msra.mxu0 %v6847
    %6849 = vmatprep.subr.mxu0 0.0
    %v6850 = vand.u32 %v6280, 4294901760
    %v6851 = vsub.f32 %v6280, %v6850
    %v6852 = vand.u32 %v6851, 4294901760
    %6853 = vmatpush1.msra.mxu0 %v6852
    %6854 = vmatprep.subr.mxu0 0.0
    %v6855 = vand.u32 %v6279, 4294901760
    %v6856 = vsub.f32 %v6279, %v6855
    %v6857 = vand.u32 %v6856, 4294901760
    %6858 = vmatpush1.msra.mxu0 %v6857
    %6859 = vmatprep.subr.mxu0 0.0
    %v6860 = vand.u32 %v6278, 4294901760
    %v6861 = vsub.f32 %v6278, %v6860
    %v6862 = vand.u32 %v6861, 4294901760
    %6863 = vmatpush1.msra.mxu0 %v6862
    %6864 = vmatprep.subr.mxu0 0.0
    %v6865 = vand.u32 %v6277, 4294901760
    %v6866 = vsub.f32 %v6277, %v6865
    %v6867 = vand.u32 %v6866, 4294901760
    %6868 = vmatpush1.msra.mxu0 %v6867
    %6869 = vmatprep.subr.mxu0 0.0
    %v6870 = vand.u32 %v6276, 4294901760
    %v6871 = vsub.f32 %v6276, %v6870
    %v6872 = vand.u32 %v6871, 4294901760
    %6873 = vmatpush1.msra.mxu0 %v6872
    %6874 = vmatprep.subr.mxu0 0.0
    %v6875 = vand.u32 %v6275, 4294901760
    %v6876 = vsub.f32 %v6275, %v6875
    %v6877 = vand.u32 %v6876, 4294901760
    %6878 = vmatpush1.msra.mxu0 %v6877
    %6879 = vmatprep.subr.mxu0 0.0
    %v6880 = vand.u32 %v6274, 4294901760
    %v6881 = vsub.f32 %v6274, %v6880
    %v6882 = vand.u32 %v6881, 4294901760
    %6883 = vmatpush1.msra.mxu0 %v6882
    %6884 = vmatprep.subr.mxu0 0.0
    %v6885 = vand.u32 %v6273, 4294901760
    %v6886 = vsub.f32 %v6273, %v6885
    %v6887 = vand.u32 %v6886, 4294901760
    %6888 = vmatpush1.msra.mxu0 %v6887
    %6889 = vmatprep.subr.mxu0 0.0
    %v6890 = vand.u32 %v6272, 4294901760
    %v6891 = vsub.f32 %v6272, %v6890
    %v6892 = vand.u32 %v6891, 4294901760
    %6893 = vmatpush1.msra.mxu0 %v6892
    %6894 = vmatprep.subr.mxu0 0.0
    %v6895 = vand.u32 %v6271, 4294901760
    %v6896 = vsub.f32 %v6271, %v6895
    %v6897 = vand.u32 %v6896, 4294901760
    %6898 = vmatpush1.msra.mxu0 %v6897
    %6899 = vmatprep.subr.mxu0 0.0
    %v6900 = vand.u32 %v6270, 4294901760
    %v6901 = vsub.f32 %v6270, %v6900
    %v6902 = vand.u32 %v6901, 4294901760
    %6903 = vmatpush1.msra.mxu0 %v6902
    %6904 = vmatprep.subr.mxu0 0.0
    %v6905 = vand.u32 %v6269, 4294901760
    %v6906 = vsub.f32 %v6269, %v6905
    %v6907 = vand.u32 %v6906, 4294901760
    %6908 = vmatpush1.msra.mxu0 %v6907
    %6909 = vmatprep.subr.mxu0 0.0
    %v6910 = vand.u32 %v6268, 4294901760
    %v6911 = vsub.f32 %v6268, %v6910
    %v6912 = vand.u32 %v6911, 4294901760
    %6913 = vmatpush1.msra.mxu0 %v6912
    %6914 = vmatprep.subr.mxu0 0.0
    %6915 = vmatpush2.msra.mxu0 0.0
    %6916 = vmatprep.subr.mxu0 0.0
    %6917 = vmatpush2.msra.mxu0 0.0
    %6918 = vmatprep.subr.mxu0 0.0
    %6919 = vmatpush2.msra.mxu0 0.0
    %6920 = vmatprep.subr.mxu0 0.0
    %6921 = vmatpush2.msra.mxu0 0.0
    %6922 = vmatprep.subr.mxu0 0.0
    %6923 = vmatpush2.msra.mxu0 0.0
    %6924 = vmatprep.subr.mxu0 0.0
    %6925 = vmatpush2.msra.mxu0 0.0
    %6926 = vmatprep.subr.mxu0 0.0
    %6927 = vmatpush2.msra.mxu0 0.0
    %6928 = vmatprep.subr.mxu0 0.0
    %6929 = vmatpush2.msra.mxu0 0.0
    %6930 = vmatprep.subr.mxu0 0.0
    %6931 = vmatpush2.msra.mxu0 0.0
    %6932 = vmatprep.subr.mxu0 0.0
    %6933 = vmatpush2.msra.mxu0 0.0
    %6934 = vmatprep.subr.mxu0 0.0
    %6935 = vmatpush2.msra.mxu0 0.0
    %6936 = vmatprep.subr.mxu0 0.0
    %6937 = vmatpush2.msra.mxu0 0.0
    %6938 = vmatprep.subr.mxu0 0.0
    %6939 = vmatpush2.msra.mxu0 0.0
    %6940 = vmatprep.subr.mxu0 0.0
    %6941 = vmatpush2.msra.mxu0 0.0
    %6942 = vmatprep.subr.mxu0 0.0
    %6943 = vmatpush2.msra.mxu0 0.0
    %6944 = vmatprep.subr.mxu0 0.0
    %6945 = vmatpush2.msra.mxu0 0.0
    %6946 = vmatprep.mubr.f32.mxu0 0.0
    %v6947 = vand.u32 %v6264, 4294901760
    %6948 = vmatmul.mubr.f32.gmra.mxu0 %v6947
    %v6949 = vpop.f32.mrf.mxu0
    %v6950 = vadd.f32 %v6807, %v6949
    %v6951 = vpop.f32.mrf.mxu0
    %6952 = vmatprep.mubr.f32.mxu0 0.0
    %v6953 = vand.u32 %v6265, 4294901760
    %6954 = vmatmul.mubr.f32.gmra.mxu0 %v6953
    %v6955 = vpop.f32.mrf.mxu0
    %v6956 = vadd.f32 %v6815, %v6955
    %v6957 = vpop.f32.mrf.mxu0
    %6958 = vmatprep.mubr.f32.mxu0 0.0
    %v6959 = vand.u32 %v6266, 4294901760
    %6960 = vmatmul.mubr.f32.gmra.mxu0 %v6959
    %v6961 = vpop.f32.mrf.mxu0
    %v6962 = vadd.f32 %v6823, %v6961
    %v6963 = vpop.f32.mrf.mxu0
    %6964 = vmatprep.mubr.f32.mxu0 0.0
    %v6965 = vand.u32 %v6267, 4294901760
    %6966 = vmatmul.mubr.f32.gmra.mxu0 %v6965
    %v6967 = vpop.f32.mrf.mxu0
    %v6968 = vadd.f32 %v6831, %v6967
    %v6969 = vpop.f32.mrf.mxu0
    %6970 = vdwg.mxu0
    %6971 = vmatprep.subr.mxu0 0.0
    %v6972 = vand.u32 %v6283, 4294901760
    %6973 = vmatpush1.msra.mxu0 %v6972
    %6974 = vmatprep.subr.mxu0 0.0
    %v6975 = vand.u32 %v6282, 4294901760
    %6976 = vmatpush1.msra.mxu0 %v6975
    %6977 = vmatprep.subr.mxu0 0.0
    %v6978 = vand.u32 %v6281, 4294901760
    %6979 = vmatpush1.msra.mxu0 %v6978
    %6980 = vmatprep.subr.mxu0 0.0
    %v6981 = vand.u32 %v6280, 4294901760
    %6982 = vmatpush1.msra.mxu0 %v6981
    %6983 = vmatprep.subr.mxu0 0.0
    %v6984 = vand.u32 %v6279, 4294901760
    %6985 = vmatpush1.msra.mxu0 %v6984
    %6986 = vmatprep.subr.mxu0 0.0
    %v6987 = vand.u32 %v6278, 4294901760
    %6988 = vmatpush1.msra.mxu0 %v6987
    %6989 = vmatprep.subr.mxu0 0.0
    %v6990 = vand.u32 %v6277, 4294901760
    %6991 = vmatpush1.msra.mxu0 %v6990
    %6992 = vmatprep.subr.mxu0 0.0
    %v6993 = vand.u32 %v6276, 4294901760
    %6994 = vmatpush1.msra.mxu0 %v6993
    %6995 = vmatprep.subr.mxu0 0.0
    %v6996 = vand.u32 %v6275, 4294901760
    %6997 = vmatpush1.msra.mxu0 %v6996
    %6998 = vmatprep.subr.mxu0 0.0
    %v6999 = vand.u32 %v6274, 4294901760
    %7000 = vmatpush1.msra.mxu0 %v6999
    %7001 = vmatprep.subr.mxu0 0.0
    %v7002 = vand.u32 %v6273, 4294901760
    %7003 = vmatpush1.msra.mxu0 %v7002
    %7004 = vmatprep.subr.mxu0 0.0
    %v7005 = vand.u32 %v6272, 4294901760
    %7006 = vmatpush1.msra.mxu0 %v7005
    %7007 = vmatprep.subr.mxu0 0.0
    %v7008 = vand.u32 %v6271, 4294901760
    %7009 = vmatpush1.msra.mxu0 %v7008
    %7010 = vmatprep.subr.mxu0 0.0
    %v7011 = vand.u32 %v6270, 4294901760
    %7012 = vmatpush1.msra.mxu0 %v7011
    %7013 = vmatprep.subr.mxu0 0.0
    %v7014 = vand.u32 %v6269, 4294901760
    %7015 = vmatpush1.msra.mxu0 %v7014
    %7016 = vmatprep.subr.mxu0 0.0
    %v7017 = vand.u32 %v6268, 4294901760
    %7018 = vmatpush1.msra.mxu0 %v7017
    %7019 = vmatprep.subr.mxu0 0.0
    %7020 = vmatpush2.msra.mxu0 0.0
    %7021 = vmatprep.subr.mxu0 0.0
    %7022 = vmatpush2.msra.mxu0 0.0
    %7023 = vmatprep.subr.mxu0 0.0
    %7024 = vmatpush2.msra.mxu0 0.0
    %7025 = vmatprep.subr.mxu0 0.0
    %7026 = vmatpush2.msra.mxu0 0.0
    %7027 = vmatprep.subr.mxu0 0.0
    %7028 = vmatpush2.msra.mxu0 0.0
    %7029 = vmatprep.subr.mxu0 0.0
    %7030 = vmatpush2.msra.mxu0 0.0
    %7031 = vmatprep.subr.mxu0 0.0
    %7032 = vmatpush2.msra.mxu0 0.0
    %7033 = vmatprep.subr.mxu0 0.0
    %7034 = vmatpush2.msra.mxu0 0.0
    %7035 = vmatprep.subr.mxu0 0.0
    %7036 = vmatpush2.msra.mxu0 0.0
    %7037 = vmatprep.subr.mxu0 0.0
    %7038 = vmatpush2.msra.mxu0 0.0
    %7039 = vmatprep.subr.mxu0 0.0
    %7040 = vmatpush2.msra.mxu0 0.0
    %7041 = vmatprep.subr.mxu0 0.0
    %7042 = vmatpush2.msra.mxu0 0.0
    %7043 = vmatprep.subr.mxu0 0.0
    %7044 = vmatpush2.msra.mxu0 0.0
    %7045 = vmatprep.subr.mxu0 0.0
    %7046 = vmatpush2.msra.mxu0 0.0
    %7047 = vmatprep.subr.mxu0 0.0
    %7048 = vmatpush2.msra.mxu0 0.0
    %7049 = vmatprep.subr.mxu0 0.0
    %7050 = vmatpush2.msra.mxu0 0.0
    %7051 = vmatprep.mubr.f32.mxu0 0.0
    %v7052 = vand.u32 %v6264, 4294901760
    %7053 = vmatmul.mubr.f32.gmra.mxu0 %v7052
    %v7054 = vpop.f32.mrf.mxu0
    %v7055 = vadd.f32 %v6950, %v7054
    %v7056 = vpop.f32.mrf.mxu0
    %7057 = vmatprep.mubr.f32.mxu0 0.0
    %v7058 = vand.u32 %v6265, 4294901760
    %7059 = vmatmul.mubr.f32.gmra.mxu0 %v7058
    %v7060 = vpop.f32.mrf.mxu0
    %v7061 = vadd.f32 %v6956, %v7060
    %v7062 = vpop.f32.mrf.mxu0
    %7063 = vmatprep.mubr.f32.mxu0 0.0
    %v7064 = vand.u32 %v6266, 4294901760
    %7065 = vmatmul.mubr.f32.gmra.mxu0 %v7064
    %v7066 = vpop.f32.mrf.mxu0
    %v7067 = vadd.f32 %v6962, %v7066
    %v7068 = vpop.f32.mrf.mxu0
    %7069 = vmatprep.mubr.f32.mxu0 0.0
    %v7070 = vand.u32 %v6267, 4294901760
    %7071 = vmatmul.mubr.f32.gmra.mxu0 %v7070
    %v7072 = vpop.f32.mrf.mxu0
    %v7073 = vadd.f32 %v6968, %v7072
    %v7074 = vpop.f32.mrf.mxu0
    %7075 = vdwg.mxu0
    %v7076 = vmax.f32 %v7055, 0.0
    %v7077 = vmax.f32 %v7061, 0.0
    %v7078 = vmax.f32 %v7067, 0.0
    %v7079 = vmax.f32 %v7073, 0.0
    %7080 = vmatprep.subr.mxu0 0.0
    %v7081 = vand.u32 %v6299, 4294901760
    %7082 = vmatpush1.msra.mxu0 %v7081
    %7083 = vmatprep.subr.mxu0 0.0
    %v7084 = vand.u32 %v6298, 4294901760
    %7085 = vmatpush1.msra.mxu0 %v7084
    %7086 = vmatprep.subr.mxu0 0.0
    %v7087 = vand.u32 %v6297, 4294901760
    %7088 = vmatpush1.msra.mxu0 %v7087
    %7089 = vmatprep.subr.mxu0 0.0
    %v7090 = vand.u32 %v6296, 4294901760
    %7091 = vmatpush1.msra.mxu0 %v7090
    %7092 = vmatprep.subr.mxu0 0.0
    %v7093 = vand.u32 %v6295, 4294901760
    %7094 = vmatpush1.msra.mxu0 %v7093
    %7095 = vmatprep.subr.mxu0 0.0
    %v7096 = vand.u32 %v6294, 4294901760
    %7097 = vmatpush1.msra.mxu0 %v7096
    %7098 = vmatprep.subr.mxu0 0.0
    %v7099 = vand.u32 %v6293, 4294901760
    %7100 = vmatpush1.msra.mxu0 %v7099
    %7101 = vmatprep.subr.mxu0 0.0
    %v7102 = vand.u32 %v6292, 4294901760
    %7103 = vmatpush1.msra.mxu0 %v7102
    %7104 = vmatprep.subr.mxu0 0.0
    %v7105 = vand.u32 %v6291, 4294901760
    %7106 = vmatpush1.msra.mxu0 %v7105
    %7107 = vmatprep.subr.mxu0 0.0
    %v7108 = vand.u32 %v6290, 4294901760
    %7109 = vmatpush1.msra.mxu0 %v7108
    %7110 = vmatprep.subr.mxu0 0.0
    %v7111 = vand.u32 %v6289, 4294901760
    %7112 = vmatpush1.msra.mxu0 %v7111
    %7113 = vmatprep.subr.mxu0 0.0
    %v7114 = vand.u32 %v6288, 4294901760
    %7115 = vmatpush1.msra.mxu0 %v7114
    %7116 = vmatprep.subr.mxu0 0.0
    %v7117 = vand.u32 %v6287, 4294901760
    %7118 = vmatpush1.msra.mxu0 %v7117
    %7119 = vmatprep.subr.mxu0 0.0
    %v7120 = vand.u32 %v6286, 4294901760
    %7121 = vmatpush1.msra.mxu0 %v7120
    %7122 = vmatprep.subr.mxu0 0.0
    %v7123 = vand.u32 %v6285, 4294901760
    %7124 = vmatpush1.msra.mxu0 %v7123
    %7125 = vmatprep.subr.mxu0 0.0
    %v7126 = vand.u32 %v6284, 4294901760
    %7127 = vmatpush1.msra.mxu0 %v7126
    %7128 = vmatprep.subr.mxu0 0.0
    %7129 = vmatpush2.msra.mxu0 0.0
    %7130 = vmatprep.subr.mxu0 0.0
    %7131 = vmatpush2.msra.mxu0 0.0
    %7132 = vmatprep.subr.mxu0 0.0
    %7133 = vmatpush2.msra.mxu0 0.0
    %7134 = vmatprep.subr.mxu0 0.0
    %7135 = vmatpush2.msra.mxu0 0.0
    %7136 = vmatprep.subr.mxu0 0.0
    %7137 = vmatpush2.msra.mxu0 0.0
    %7138 = vmatprep.subr.mxu0 0.0
    %7139 = vmatpush2.msra.mxu0 0.0
    %7140 = vmatprep.subr.mxu0 0.0
    %7141 = vmatpush2.msra.mxu0 0.0
    %7142 = vmatprep.subr.mxu0 0.0
    %7143 = vmatpush2.msra.mxu0 0.0
    %7144 = vmatprep.subr.mxu0 0.0
    %7145 = vmatpush2.msra.mxu0 0.0
    %7146 = vmatprep.subr.mxu0 0.0
    %7147 = vmatpush2.msra.mxu0 0.0
    %7148 = vmatprep.subr.mxu0 0.0
    %7149 = vmatpush2.msra.mxu0 0.0
    %7150 = vmatprep.subr.mxu0 0.0
    %7151 = vmatpush2.msra.mxu0 0.0
    %7152 = vmatprep.subr.mxu0 0.0
    %7153 = vmatpush2.msra.mxu0 0.0
    %7154 = vmatprep.subr.mxu0 0.0
    %7155 = vmatpush2.msra.mxu0 0.0
    %7156 = vmatprep.subr.mxu0 0.0
    %7157 = vmatpush2.msra.mxu0 0.0
    %7158 = vmatprep.subr.mxu0 0.0
    %7159 = vmatpush2.msra.mxu0 0.0
    %7160 = vmatprep.mubr.f32.mxu0 0.0
    %v7161 = vand.u32 %v7076, 4294901760
    %v7162 = vsub.f32 %v7076, %v7161
    %v7163 = vand.u32 %v7162, 4294901760
    %v7164 = vsub.f32 %v7162, %v7163
    %v7165 = vand.u32 %v7164, 4294901760
    %7166 = vmatmul.mubr.f32.gmra.mxu0 %v7165
    %v7167 = vpop.f32.mrf.mxu0
    %v7168 = vadd.f32 0.0, %v7167
    %v7169 = vpop.f32.mrf.mxu0
    %7170 = vmatprep.mubr.f32.mxu0 0.0
    %v7171 = vand.u32 %v7077, 4294901760
    %v7172 = vsub.f32 %v7077, %v7171
    %v7173 = vand.u32 %v7172, 4294901760
    %v7174 = vsub.f32 %v7172, %v7173
    %v7175 = vand.u32 %v7174, 4294901760
    %7176 = vmatmul.mubr.f32.gmra.mxu0 %v7175
    %v7177 = vpop.f32.mrf.mxu0
    %v7178 = vadd.f32 0.0, %v7177
    %v7179 = vpop.f32.mrf.mxu0
    %7180 = vmatprep.mubr.f32.mxu0 0.0
    %v7181 = vand.u32 %v7078, 4294901760
    %v7182 = vsub.f32 %v7078, %v7181
    %v7183 = vand.u32 %v7182, 4294901760
    %v7184 = vsub.f32 %v7182, %v7183
    %v7185 = vand.u32 %v7184, 4294901760
    %7186 = vmatmul.mubr.f32.gmra.mxu0 %v7185
    %v7187 = vpop.f32.mrf.mxu0
    %v7188 = vadd.f32 0.0, %v7187
    %v7189 = vpop.f32.mrf.mxu0
    %7190 = vmatprep.mubr.f32.mxu0 0.0
    %v7191 = vand.u32 %v7079, 4294901760
    %v7192 = vsub.f32 %v7079, %v7191
    %v7193 = vand.u32 %v7192, 4294901760
    %v7194 = vsub.f32 %v7192, %v7193
    %v7195 = vand.u32 %v7194, 4294901760
    %7196 = vmatmul.mubr.f32.gmra.mxu0 %v7195
    %v7197 = vpop.f32.mrf.mxu0
    %v7198 = vadd.f32 0.0, %v7197
    %v7199 = vpop.f32.mrf.mxu0
    %7200 = vdwg.mxu0
    %7201 = vmatprep.subr.mxu0 0.0
    %v7202 = vand.u32 %v6299, 4294901760
    %v7203 = vsub.f32 %v6299, %v7202
    %v7204 = vand.u32 %v7203, 4294901760
    %v7205 = vsub.f32 %v7203, %v7204
    %v7206 = vand.u32 %v7205, 4294901760
    %7207 = vmatpush1.msra.mxu0 %v7206
    %7208 = vmatprep.subr.mxu0 0.0
    %v7209 = vand.u32 %v6298, 4294901760
    %v7210 = vsub.f32 %v6298, %v7209
    %v7211 = vand.u32 %v7210, 4294901760
    %v7212 = vsub.f32 %v7210, %v7211
    %v7213 = vand.u32 %v7212, 4294901760
    %7214 = vmatpush1.msra.mxu0 %v7213
    %7215 = vmatprep.subr.mxu0 0.0
    %v7216 = vand.u32 %v6297, 4294901760
    %v7217 = vsub.f32 %v6297, %v7216
    %v7218 = vand.u32 %v7217, 4294901760
    %v7219 = vsub.f32 %v7217, %v7218
    %v7220 = vand.u32 %v7219, 4294901760
    %7221 = vmatpush1.msra.mxu0 %v7220
    %7222 = vmatprep.subr.mxu0 0.0
    %v7223 = vand.u32 %v6296, 4294901760
    %v7224 = vsub.f32 %v6296, %v7223
    %v7225 = vand.u32 %v7224, 4294901760
    %v7226 = vsub.f32 %v7224, %v7225
    %v7227 = vand.u32 %v7226, 4294901760
    %7228 = vmatpush1.msra.mxu0 %v7227
    %7229 = vmatprep.subr.mxu0 0.0
    %v7230 = vand.u32 %v6295, 4294901760
    %v7231 = vsub.f32 %v6295, %v7230
    %v7232 = vand.u32 %v7231, 4294901760
    %v7233 = vsub.f32 %v7231, %v7232
    %v7234 = vand.u32 %v7233, 4294901760
    %7235 = vmatpush1.msra.mxu0 %v7234
    %7236 = vmatprep.subr.mxu0 0.0
    %v7237 = vand.u32 %v6294, 4294901760
    %v7238 = vsub.f32 %v6294, %v7237
    %v7239 = vand.u32 %v7238, 4294901760
    %v7240 = vsub.f32 %v7238, %v7239
    %v7241 = vand.u32 %v7240, 4294901760
    %7242 = vmatpush1.msra.mxu0 %v7241
    %7243 = vmatprep.subr.mxu0 0.0
    %v7244 = vand.u32 %v6293, 4294901760
    %v7245 = vsub.f32 %v6293, %v7244
    %v7246 = vand.u32 %v7245, 4294901760
    %v7247 = vsub.f32 %v7245, %v7246
    %v7248 = vand.u32 %v7247, 4294901760
    %7249 = vmatpush1.msra.mxu0 %v7248
    %7250 = vmatprep.subr.mxu0 0.0
    %v7251 = vand.u32 %v6292, 4294901760
    %v7252 = vsub.f32 %v6292, %v7251
    %v7253 = vand.u32 %v7252, 4294901760
    %v7254 = vsub.f32 %v7252, %v7253
    %v7255 = vand.u32 %v7254, 4294901760
    %7256 = vmatpush1.msra.mxu0 %v7255
    %7257 = vmatprep.subr.mxu0 0.0
    %v7258 = vand.u32 %v6291, 4294901760
    %v7259 = vsub.f32 %v6291, %v7258
    %v7260 = vand.u32 %v7259, 4294901760
    %v7261 = vsub.f32 %v7259, %v7260
    %v7262 = vand.u32 %v7261, 4294901760
    %7263 = vmatpush1.msra.mxu0 %v7262
    %7264 = vmatprep.subr.mxu0 0.0
    %v7265 = vand.u32 %v6290, 4294901760
    %v7266 = vsub.f32 %v6290, %v7265
    %v7267 = vand.u32 %v7266, 4294901760
    %v7268 = vsub.f32 %v7266, %v7267
    %v7269 = vand.u32 %v7268, 4294901760
    %7270 = vmatpush1.msra.mxu0 %v7269
    %7271 = vmatprep.subr.mxu0 0.0
    %v7272 = vand.u32 %v6289, 4294901760
    %v7273 = vsub.f32 %v6289, %v7272
    %v7274 = vand.u32 %v7273, 4294901760
    %v7275 = vsub.f32 %v7273, %v7274
    %v7276 = vand.u32 %v7275, 4294901760
    %7277 = vmatpush1.msra.mxu0 %v7276
    %7278 = vmatprep.subr.mxu0 0.0
    %v7279 = vand.u32 %v6288, 4294901760
    %v7280 = vsub.f32 %v6288, %v7279
    %v7281 = vand.u32 %v7280, 4294901760
    %v7282 = vsub.f32 %v7280, %v7281
    %v7283 = vand.u32 %v7282, 4294901760
    %7284 = vmatpush1.msra.mxu0 %v7283
    %7285 = vmatprep.subr.mxu0 0.0
    %v7286 = vand.u32 %v6287, 4294901760
    %v7287 = vsub.f32 %v6287, %v7286
    %v7288 = vand.u32 %v7287, 4294901760
    %v7289 = vsub.f32 %v7287, %v7288
    %v7290 = vand.u32 %v7289, 4294901760
    %7291 = vmatpush1.msra.mxu0 %v7290
    %7292 = vmatprep.subr.mxu0 0.0
    %v7293 = vand.u32 %v6286, 4294901760
    %v7294 = vsub.f32 %v6286, %v7293
    %v7295 = vand.u32 %v7294, 4294901760
    %v7296 = vsub.f32 %v7294, %v7295
    %v7297 = vand.u32 %v7296, 4294901760
    %7298 = vmatpush1.msra.mxu0 %v7297
    %7299 = vmatprep.subr.mxu0 0.0
    %v7300 = vand.u32 %v6285, 4294901760
    %v7301 = vsub.f32 %v6285, %v7300
    %v7302 = vand.u32 %v7301, 4294901760
    %v7303 = vsub.f32 %v7301, %v7302
    %v7304 = vand.u32 %v7303, 4294901760
    %7305 = vmatpush1.msra.mxu0 %v7304
    %7306 = vmatprep.subr.mxu0 0.0
    %v7307 = vand.u32 %v6284, 4294901760
    %v7308 = vsub.f32 %v6284, %v7307
    %v7309 = vand.u32 %v7308, 4294901760
    %v7310 = vsub.f32 %v7308, %v7309
    %v7311 = vand.u32 %v7310, 4294901760
    %7312 = vmatpush1.msra.mxu0 %v7311
    %7313 = vmatprep.subr.mxu0 0.0
    %7314 = vmatpush2.msra.mxu0 0.0
    %7315 = vmatprep.subr.mxu0 0.0
    %7316 = vmatpush2.msra.mxu0 0.0
    %7317 = vmatprep.subr.mxu0 0.0
    %7318 = vmatpush2.msra.mxu0 0.0
    %7319 = vmatprep.subr.mxu0 0.0
    %7320 = vmatpush2.msra.mxu0 0.0
    %7321 = vmatprep.subr.mxu0 0.0
    %7322 = vmatpush2.msra.mxu0 0.0
    %7323 = vmatprep.subr.mxu0 0.0
    %7324 = vmatpush2.msra.mxu0 0.0
    %7325 = vmatprep.subr.mxu0 0.0
    %7326 = vmatpush2.msra.mxu0 0.0
    %7327 = vmatprep.subr.mxu0 0.0
    %7328 = vmatpush2.msra.mxu0 0.0
    %7329 = vmatprep.subr.mxu0 0.0
    %7330 = vmatpush2.msra.mxu0 0.0
    %7331 = vmatprep.subr.mxu0 0.0
    %7332 = vmatpush2.msra.mxu0 0.0
    %7333 = vmatprep.subr.mxu0 0.0
    %7334 = vmatpush2.msra.mxu0 0.0
    %7335 = vmatprep.subr.mxu0 0.0
    %7336 = vmatpush2.msra.mxu0 0.0
    %7337 = vmatprep.subr.mxu0 0.0
    %7338 = vmatpush2.msra.mxu0 0.0
    %7339 = vmatprep.subr.mxu0 0.0
    %7340 = vmatpush2.msra.mxu0 0.0
    %7341 = vmatprep.subr.mxu0 0.0
    %7342 = vmatpush2.msra.mxu0 0.0
    %7343 = vmatprep.subr.mxu0 0.0
    %7344 = vmatpush2.msra.mxu0 0.0
    %7345 = vmatprep.mubr.f32.mxu0 0.0
    %v7346 = vand.u32 %v7076, 4294901760
    %7347 = vmatmul.mubr.f32.gmra.mxu0 %v7346
    %v7348 = vpop.f32.mrf.mxu0
    %v7349 = vadd.f32 %v7168, %v7348
    %v7350 = vpop.f32.mrf.mxu0
    %7351 = vmatprep.mubr.f32.mxu0 0.0
    %v7352 = vand.u32 %v7077, 4294901760
    %7353 = vmatmul.mubr.f32.gmra.mxu0 %v7352
    %v7354 = vpop.f32.mrf.mxu0
    %v7355 = vadd.f32 %v7178, %v7354
    %v7356 = vpop.f32.mrf.mxu0
    %7357 = vmatprep.mubr.f32.mxu0 0.0
    %v7358 = vand.u32 %v7078, 4294901760
    %7359 = vmatmul.mubr.f32.gmra.mxu0 %v7358
    %v7360 = vpop.f32.mrf.mxu0
    %v7361 = vadd.f32 %v7188, %v7360
    %v7362 = vpop.f32.mrf.mxu0
    %7363 = vmatprep.mubr.f32.mxu0 0.0
    %v7364 = vand.u32 %v7079, 4294901760
    %7365 = vmatmul.mubr.f32.gmra.mxu0 %v7364
    %v7366 = vpop.f32.mrf.mxu0
    %v7367 = vadd.f32 %v7198, %v7366
    %v7368 = vpop.f32.mrf.mxu0
    %7369 = vdwg.mxu0
    %7370 = vmatprep.subr.mxu0 0.0
    %v7371 = vand.u32 %v6299, 4294901760
    %v7372 = vsub.f32 %v6299, %v7371
    %7373 = vmatpush1.msra.mxu0 %v7372
    %7374 = vmatprep.subr.mxu0 0.0
    %v7375 = vand.u32 %v6298, 4294901760
    %v7376 = vsub.f32 %v6298, %v7375
    %7377 = vmatpush1.msra.mxu0 %v7376
    %7378 = vmatprep.subr.mxu0 0.0
    %v7379 = vand.u32 %v6297, 4294901760
    %v7380 = vsub.f32 %v6297, %v7379
    %7381 = vmatpush1.msra.mxu0 %v7380
    %7382 = vmatprep.subr.mxu0 0.0
    %v7383 = vand.u32 %v6296, 4294901760
    %v7384 = vsub.f32 %v6296, %v7383
    %7385 = vmatpush1.msra.mxu0 %v7384
    %7386 = vmatprep.subr.mxu0 0.0
    %v7387 = vand.u32 %v6295, 4294901760
    %v7388 = vsub.f32 %v6295, %v7387
    %7389 = vmatpush1.msra.mxu0 %v7388
    %7390 = vmatprep.subr.mxu0 0.0
    %v7391 = vand.u32 %v6294, 4294901760
    %v7392 = vsub.f32 %v6294, %v7391
    %7393 = vmatpush1.msra.mxu0 %v7392
    %7394 = vmatprep.subr.mxu0 0.0
    %v7395 = vand.u32 %v6293, 4294901760
    %v7396 = vsub.f32 %v6293, %v7395
    %7397 = vmatpush1.msra.mxu0 %v7396
    %7398 = vmatprep.subr.mxu0 0.0
    %v7399 = vand.u32 %v6292, 4294901760
    %v7400 = vsub.f32 %v6292, %v7399
    %7401 = vmatpush1.msra.mxu0 %v7400
    %7402 = vmatprep.subr.mxu0 0.0
    %v7403 = vand.u32 %v6291, 4294901760
    %v7404 = vsub.f32 %v6291, %v7403
    %7405 = vmatpush1.msra.mxu0 %v7404
    %7406 = vmatprep.subr.mxu0 0.0
    %v7407 = vand.u32 %v6290, 4294901760
    %v7408 = vsub.f32 %v6290, %v7407
    %7409 = vmatpush1.msra.mxu0 %v7408
    %7410 = vmatprep.subr.mxu0 0.0
    %v7411 = vand.u32 %v6289, 4294901760
    %v7412 = vsub.f32 %v6289, %v7411
    %7413 = vmatpush1.msra.mxu0 %v7412
    %7414 = vmatprep.subr.mxu0 0.0
    %v7415 = vand.u32 %v6288, 4294901760
    %v7416 = vsub.f32 %v6288, %v7415
    %7417 = vmatpush1.msra.mxu0 %v7416
    %7418 = vmatprep.subr.mxu0 0.0
    %v7419 = vand.u32 %v6287, 4294901760
    %v7420 = vsub.f32 %v6287, %v7419
    %7421 = vmatpush1.msra.mxu0 %v7420
    %7422 = vmatprep.subr.mxu0 0.0
    %v7423 = vand.u32 %v6286, 4294901760
    %v7424 = vsub.f32 %v6286, %v7423
    %7425 = vmatpush1.msra.mxu0 %v7424
    %7426 = vmatprep.subr.mxu0 0.0
    %v7427 = vand.u32 %v6285, 4294901760
    %v7428 = vsub.f32 %v6285, %v7427
    %7429 = vmatpush1.msra.mxu0 %v7428
    %7430 = vmatprep.subr.mxu0 0.0
    %v7431 = vand.u32 %v6284, 4294901760
    %v7432 = vsub.f32 %v6284, %v7431
    %7433 = vmatpush1.msra.mxu0 %v7432
    %7434 = vmatprep.subr.mxu0 0.0
    %7435 = vmatpush2.msra.mxu0 0.0
    %7436 = vmatprep.subr.mxu0 0.0
    %7437 = vmatpush2.msra.mxu0 0.0
    %7438 = vmatprep.subr.mxu0 0.0
    %7439 = vmatpush2.msra.mxu0 0.0
    %7440 = vmatprep.subr.mxu0 0.0
    %7441 = vmatpush2.msra.mxu0 0.0
    %7442 = vmatprep.subr.mxu0 0.0
    %7443 = vmatpush2.msra.mxu0 0.0
    %7444 = vmatprep.subr.mxu0 0.0
    %7445 = vmatpush2.msra.mxu0 0.0
    %7446 = vmatprep.subr.mxu0 0.0
    %7447 = vmatpush2.msra.mxu0 0.0
    %7448 = vmatprep.subr.mxu0 0.0
    %7449 = vmatpush2.msra.mxu0 0.0
    %7450 = vmatprep.subr.mxu0 0.0
    %7451 = vmatpush2.msra.mxu0 0.0
    %7452 = vmatprep.subr.mxu0 0.0
    %7453 = vmatpush2.msra.mxu0 0.0
    %7454 = vmatprep.subr.mxu0 0.0
    %7455 = vmatpush2.msra.mxu0 0.0
    %7456 = vmatprep.subr.mxu0 0.0
    %7457 = vmatpush2.msra.mxu0 0.0
    %7458 = vmatprep.subr.mxu0 0.0
    %7459 = vmatpush2.msra.mxu0 0.0
    %7460 = vmatprep.subr.mxu0 0.0
    %7461 = vmatpush2.msra.mxu0 0.0
    %7462 = vmatprep.subr.mxu0 0.0
    %7463 = vmatpush2.msra.mxu0 0.0
    %7464 = vmatprep.subr.mxu0 0.0
    %7465 = vmatpush2.msra.mxu0 0.0
    %7466 = vmatprep.mubr.f32.mxu0 0.0
    %v7467 = vand.u32 %v7076, 4294901760
    %v7468 = vsub.f32 %v7076, %v7467
    %7469 = vmatmul.mubr.f32.gmra.mxu0 %v7468
    %v7470 = vpop.f32.mrf.mxu0
    %v7471 = vadd.f32 %v7349, %v7470
    %v7472 = vpop.f32.mrf.mxu0
    %7473 = vmatprep.mubr.f32.mxu0 0.0
    %v7474 = vand.u32 %v7077, 4294901760
    %v7475 = vsub.f32 %v7077, %v7474
    %7476 = vmatmul.mubr.f32.gmra.mxu0 %v7475
    %v7477 = vpop.f32.mrf.mxu0
    %v7478 = vadd.f32 %v7355, %v7477
    %v7479 = vpop.f32.mrf.mxu0
    %7480 = vmatprep.mubr.f32.mxu0 0.0
    %v7481 = vand.u32 %v7078, 4294901760
    %v7482 = vsub.f32 %v7078, %v7481
    %7483 = vmatmul.mubr.f32.gmra.mxu0 %v7482
    %v7484 = vpop.f32.mrf.mxu0
    %v7485 = vadd.f32 %v7361, %v7484
    %v7486 = vpop.f32.mrf.mxu0
    %7487 = vmatprep.mubr.f32.mxu0 0.0
    %v7488 = vand.u32 %v7079, 4294901760
    %v7489 = vsub.f32 %v7079, %v7488
    %7490 = vmatmul.mubr.f32.gmra.mxu0 %v7489
    %v7491 = vpop.f32.mrf.mxu0
    %v7492 = vadd.f32 %v7367, %v7491
    %v7493 = vpop.f32.mrf.mxu0
    %7494 = vdwg.mxu0
    %7495 = vmatprep.subr.mxu0 0.0
    %v7496 = vand.u32 %v6299, 4294901760
    %7497 = vmatpush1.msra.mxu0 %v7496
    %7498 = vmatprep.subr.mxu0 0.0
    %v7499 = vand.u32 %v6298, 4294901760
    %7500 = vmatpush1.msra.mxu0 %v7499
    %7501 = vmatprep.subr.mxu0 0.0
    %v7502 = vand.u32 %v6297, 4294901760
    %7503 = vmatpush1.msra.mxu0 %v7502
    %7504 = vmatprep.subr.mxu0 0.0
    %v7505 = vand.u32 %v6296, 4294901760
    %7506 = vmatpush1.msra.mxu0 %v7505
    %7507 = vmatprep.subr.mxu0 0.0
    %v7508 = vand.u32 %v6295, 4294901760
    %7509 = vmatpush1.msra.mxu0 %v7508
    %7510 = vmatprep.subr.mxu0 0.0
    %v7511 = vand.u32 %v6294, 4294901760
    %7512 = vmatpush1.msra.mxu0 %v7511
    %7513 = vmatprep.subr.mxu0 0.0
    %v7514 = vand.u32 %v6293, 4294901760
    %7515 = vmatpush1.msra.mxu0 %v7514
    %7516 = vmatprep.subr.mxu0 0.0
    %v7517 = vand.u32 %v6292, 4294901760
    %7518 = vmatpush1.msra.mxu0 %v7517
    %7519 = vmatprep.subr.mxu0 0.0
    %v7520 = vand.u32 %v6291, 4294901760
    %7521 = vmatpush1.msra.mxu0 %v7520
    %7522 = vmatprep.subr.mxu0 0.0
    %v7523 = vand.u32 %v6290, 4294901760
    %7524 = vmatpush1.msra.mxu0 %v7523
    %7525 = vmatprep.subr.mxu0 0.0
    %v7526 = vand.u32 %v6289, 4294901760
    %7527 = vmatpush1.msra.mxu0 %v7526
    %7528 = vmatprep.subr.mxu0 0.0
    %v7529 = vand.u32 %v6288, 4294901760
    %7530 = vmatpush1.msra.mxu0 %v7529
    %7531 = vmatprep.subr.mxu0 0.0
    %v7532 = vand.u32 %v6287, 4294901760
    %7533 = vmatpush1.msra.mxu0 %v7532
    %7534 = vmatprep.subr.mxu0 0.0
    %v7535 = vand.u32 %v6286, 4294901760
    %7536 = vmatpush1.msra.mxu0 %v7535
    %7537 = vmatprep.subr.mxu0 0.0
    %v7538 = vand.u32 %v6285, 4294901760
    %7539 = vmatpush1.msra.mxu0 %v7538
    %7540 = vmatprep.subr.mxu0 0.0
    %v7541 = vand.u32 %v6284, 4294901760
    %7542 = vmatpush1.msra.mxu0 %v7541
    %7543 = vmatprep.subr.mxu0 0.0
    %7544 = vmatpush2.msra.mxu0 0.0
    %7545 = vmatprep.subr.mxu0 0.0
    %7546 = vmatpush2.msra.mxu0 0.0
    %7547 = vmatprep.subr.mxu0 0.0
    %7548 = vmatpush2.msra.mxu0 0.0
    %7549 = vmatprep.subr.mxu0 0.0
    %7550 = vmatpush2.msra.mxu0 0.0
    %7551 = vmatprep.subr.mxu0 0.0
    %7552 = vmatpush2.msra.mxu0 0.0
    %7553 = vmatprep.subr.mxu0 0.0
    %7554 = vmatpush2.msra.mxu0 0.0
    %7555 = vmatprep.subr.mxu0 0.0
    %7556 = vmatpush2.msra.mxu0 0.0
    %7557 = vmatprep.subr.mxu0 0.0
    %7558 = vmatpush2.msra.mxu0 0.0
    %7559 = vmatprep.subr.mxu0 0.0
    %7560 = vmatpush2.msra.mxu0 0.0
    %7561 = vmatprep.subr.mxu0 0.0
    %7562 = vmatpush2.msra.mxu0 0.0
    %7563 = vmatprep.subr.mxu0 0.0
    %7564 = vmatpush2.msra.mxu0 0.0
    %7565 = vmatprep.subr.mxu0 0.0
    %7566 = vmatpush2.msra.mxu0 0.0
    %7567 = vmatprep.subr.mxu0 0.0
    %7568 = vmatpush2.msra.mxu0 0.0
    %7569 = vmatprep.subr.mxu0 0.0
    %7570 = vmatpush2.msra.mxu0 0.0
    %7571 = vmatprep.subr.mxu0 0.0
    %7572 = vmatpush2.msra.mxu0 0.0
    %7573 = vmatprep.subr.mxu0 0.0
    %7574 = vmatpush2.msra.mxu0 0.0
    %7575 = vmatprep.mubr.f32.mxu0 0.0
    %v7576 = vand.u32 %v7076, 4294901760
    %v7577 = vsub.f32 %v7076, %v7576
    %v7578 = vand.u32 %v7577, 4294901760
    %7579 = vmatmul.mubr.f32.gmra.mxu0 %v7578
    %v7580 = vpop.f32.mrf.mxu0
    %v7581 = vadd.f32 %v7471, %v7580
    %v7582 = vpop.f32.mrf.mxu0
    %7583 = vmatprep.mubr.f32.mxu0 0.0
    %v7584 = vand.u32 %v7077, 4294901760
    %v7585 = vsub.f32 %v7077, %v7584
    %v7586 = vand.u32 %v7585, 4294901760
    %7587 = vmatmul.mubr.f32.gmra.mxu0 %v7586
    %v7588 = vpop.f32.mrf.mxu0
    %v7589 = vadd.f32 %v7478, %v7588
    %v7590 = vpop.f32.mrf.mxu0
    %7591 = vmatprep.mubr.f32.mxu0 0.0
    %v7592 = vand.u32 %v7078, 4294901760
    %v7593 = vsub.f32 %v7078, %v7592
    %v7594 = vand.u32 %v7593, 4294901760
    %7595 = vmatmul.mubr.f32.gmra.mxu0 %v7594
    %v7596 = vpop.f32.mrf.mxu0
    %v7597 = vadd.f32 %v7485, %v7596
    %v7598 = vpop.f32.mrf.mxu0
    %7599 = vmatprep.mubr.f32.mxu0 0.0
    %v7600 = vand.u32 %v7079, 4294901760
    %v7601 = vsub.f32 %v7079, %v7600
    %v7602 = vand.u32 %v7601, 4294901760
    %7603 = vmatmul.mubr.f32.gmra.mxu0 %v7602
    %v7604 = vpop.f32.mrf.mxu0
    %v7605 = vadd.f32 %v7492, %v7604
    %v7606 = vpop.f32.mrf.mxu0
    %7607 = vdwg.mxu0
    %7608 = vmatprep.subr.mxu0 0.0
    %v7609 = vand.u32 %v6299, 4294901760
    %v7610 = vsub.f32 %v6299, %v7609
    %v7611 = vand.u32 %v7610, 4294901760
    %7612 = vmatpush1.msra.mxu0 %v7611
    %7613 = vmatprep.subr.mxu0 0.0
    %v7614 = vand.u32 %v6298, 4294901760
    %v7615 = vsub.f32 %v6298, %v7614
    %v7616 = vand.u32 %v7615, 4294901760
    %7617 = vmatpush1.msra.mxu0 %v7616
    %7618 = vmatprep.subr.mxu0 0.0
    %v7619 = vand.u32 %v6297, 4294901760
    %v7620 = vsub.f32 %v6297, %v7619
    %v7621 = vand.u32 %v7620, 4294901760
    %7622 = vmatpush1.msra.mxu0 %v7621
    %7623 = vmatprep.subr.mxu0 0.0
    %v7624 = vand.u32 %v6296, 4294901760
    %v7625 = vsub.f32 %v6296, %v7624
    %v7626 = vand.u32 %v7625, 4294901760
    %7627 = vmatpush1.msra.mxu0 %v7626
    %7628 = vmatprep.subr.mxu0 0.0
    %v7629 = vand.u32 %v6295, 4294901760
    %v7630 = vsub.f32 %v6295, %v7629
    %v7631 = vand.u32 %v7630, 4294901760
    %7632 = vmatpush1.msra.mxu0 %v7631
    %7633 = vmatprep.subr.mxu0 0.0
    %v7634 = vand.u32 %v6294, 4294901760
    %v7635 = vsub.f32 %v6294, %v7634
    %v7636 = vand.u32 %v7635, 4294901760
    %7637 = vmatpush1.msra.mxu0 %v7636
    %7638 = vmatprep.subr.mxu0 0.0
    %v7639 = vand.u32 %v6293, 4294901760
    %v7640 = vsub.f32 %v6293, %v7639
    %v7641 = vand.u32 %v7640, 4294901760
    %7642 = vmatpush1.msra.mxu0 %v7641
    %7643 = vmatprep.subr.mxu0 0.0
    %v7644 = vand.u32 %v6292, 4294901760
    %v7645 = vsub.f32 %v6292, %v7644
    %v7646 = vand.u32 %v7645, 4294901760
    %7647 = vmatpush1.msra.mxu0 %v7646
    %7648 = vmatprep.subr.mxu0 0.0
    %v7649 = vand.u32 %v6291, 4294901760
    %v7650 = vsub.f32 %v6291, %v7649
    %v7651 = vand.u32 %v7650, 4294901760
    %7652 = vmatpush1.msra.mxu0 %v7651
    %7653 = vmatprep.subr.mxu0 0.0
    %v7654 = vand.u32 %v6290, 4294901760
    %v7655 = vsub.f32 %v6290, %v7654
    %v7656 = vand.u32 %v7655, 4294901760
    %7657 = vmatpush1.msra.mxu0 %v7656
    %7658 = vmatprep.subr.mxu0 0.0
    %v7659 = vand.u32 %v6289, 4294901760
    %v7660 = vsub.f32 %v6289, %v7659
    %v7661 = vand.u32 %v7660, 4294901760
    %7662 = vmatpush1.msra.mxu0 %v7661
    %7663 = vmatprep.subr.mxu0 0.0
    %v7664 = vand.u32 %v6288, 4294901760
    %v7665 = vsub.f32 %v6288, %v7664
    %v7666 = vand.u32 %v7665, 4294901760
    %7667 = vmatpush1.msra.mxu0 %v7666
    %7668 = vmatprep.subr.mxu0 0.0
    %v7669 = vand.u32 %v6287, 4294901760
    %v7670 = vsub.f32 %v6287, %v7669
    %v7671 = vand.u32 %v7670, 4294901760
    %7672 = vmatpush1.msra.mxu0 %v7671
    %7673 = vmatprep.subr.mxu0 0.0
    %v7674 = vand.u32 %v6286, 4294901760
    %v7675 = vsub.f32 %v6286, %v7674
    %v7676 = vand.u32 %v7675, 4294901760
    %7677 = vmatpush1.msra.mxu0 %v7676
    %7678 = vmatprep.subr.mxu0 0.0
    %v7679 = vand.u32 %v6285, 4294901760
    %v7680 = vsub.f32 %v6285, %v7679
    %v7681 = vand.u32 %v7680, 4294901760
    %7682 = vmatpush1.msra.mxu0 %v7681
    %7683 = vmatprep.subr.mxu0 0.0
    %v7684 = vand.u32 %v6284, 4294901760
    %v7685 = vsub.f32 %v6284, %v7684
    %v7686 = vand.u32 %v7685, 4294901760
    %7687 = vmatpush1.msra.mxu0 %v7686
    %7688 = vmatprep.subr.mxu0 0.0
    %7689 = vmatpush2.msra.mxu0 0.0
    %7690 = vmatprep.subr.mxu0 0.0
    %7691 = vmatpush2.msra.mxu0 0.0
    %7692 = vmatprep.subr.mxu0 0.0
    %7693 = vmatpush2.msra.mxu0 0.0
    %7694 = vmatprep.subr.mxu0 0.0
    %7695 = vmatpush2.msra.mxu0 0.0
    %7696 = vmatprep.subr.mxu0 0.0
    %7697 = vmatpush2.msra.mxu0 0.0
    %7698 = vmatprep.subr.mxu0 0.0
    %7699 = vmatpush2.msra.mxu0 0.0
    %7700 = vmatprep.subr.mxu0 0.0
    %7701 = vmatpush2.msra.mxu0 0.0
    %7702 = vmatprep.subr.mxu0 0.0
    %7703 = vmatpush2.msra.mxu0 0.0
    %7704 = vmatprep.subr.mxu0 0.0
    %7705 = vmatpush2.msra.mxu0 0.0
    %7706 = vmatprep.subr.mxu0 0.0
    %7707 = vmatpush2.msra.mxu0 0.0
    %7708 = vmatprep.subr.mxu0 0.0
    %7709 = vmatpush2.msra.mxu0 0.0
    %7710 = vmatprep.subr.mxu0 0.0
    %7711 = vmatpush2.msra.mxu0 0.0
    %7712 = vmatprep.subr.mxu0 0.0
    %7713 = vmatpush2.msra.mxu0 0.0
    %7714 = vmatprep.subr.mxu0 0.0
    %7715 = vmatpush2.msra.mxu0 0.0
    %7716 = vmatprep.subr.mxu0 0.0
    %7717 = vmatpush2.msra.mxu0 0.0
    %7718 = vmatprep.subr.mxu0 0.0
    %7719 = vmatpush2.msra.mxu0 0.0
    %7720 = vmatprep.mubr.f32.mxu0 0.0
    %v7721 = vand.u32 %v7076, 4294901760
    %7722 = vmatmul.mubr.f32.gmra.mxu0 %v7721
    %v7723 = vpop.f32.mrf.mxu0
    %v7724 = vadd.f32 %v7581, %v7723
    %v7725 = vpop.f32.mrf.mxu0
    %7726 = vmatprep.mubr.f32.mxu0 0.0
    %v7727 = vand.u32 %v7077, 4294901760
    %7728 = vmatmul.mubr.f32.gmra.mxu0 %v7727
    %v7729 = vpop.f32.mrf.mxu0
    %v7730 = vadd.f32 %v7589, %v7729
    %v7731 = vpop.f32.mrf.mxu0
    %7732 = vmatprep.mubr.f32.mxu0 0.0
    %v7733 = vand.u32 %v7078, 4294901760
    %7734 = vmatmul.mubr.f32.gmra.mxu0 %v7733
    %v7735 = vpop.f32.mrf.mxu0
    %v7736 = vadd.f32 %v7597, %v7735
    %v7737 = vpop.f32.mrf.mxu0
    %7738 = vmatprep.mubr.f32.mxu0 0.0
    %v7739 = vand.u32 %v7079, 4294901760
    %7740 = vmatmul.mubr.f32.gmra.mxu0 %v7739
    %v7741 = vpop.f32.mrf.mxu0
    %v7742 = vadd.f32 %v7605, %v7741
    %v7743 = vpop.f32.mrf.mxu0
    %7744 = vdwg.mxu0
    %7745 = vmatprep.subr.mxu0 0.0
    %v7746 = vand.u32 %v6299, 4294901760
    %7747 = vmatpush1.msra.mxu0 %v7746
    %7748 = vmatprep.subr.mxu0 0.0
    %v7749 = vand.u32 %v6298, 4294901760
    %7750 = vmatpush1.msra.mxu0 %v7749
    %7751 = vmatprep.subr.mxu0 0.0
    %v7752 = vand.u32 %v6297, 4294901760
    %7753 = vmatpush1.msra.mxu0 %v7752
    %7754 = vmatprep.subr.mxu0 0.0
    %v7755 = vand.u32 %v6296, 4294901760
    %7756 = vmatpush1.msra.mxu0 %v7755
    %7757 = vmatprep.subr.mxu0 0.0
    %v7758 = vand.u32 %v6295, 4294901760
    %7759 = vmatpush1.msra.mxu0 %v7758
    %7760 = vmatprep.subr.mxu0 0.0
    %v7761 = vand.u32 %v6294, 4294901760
    %7762 = vmatpush1.msra.mxu0 %v7761
    %7763 = vmatprep.subr.mxu0 0.0
    %v7764 = vand.u32 %v6293, 4294901760
    %7765 = vmatpush1.msra.mxu0 %v7764
    %7766 = vmatprep.subr.mxu0 0.0
    %v7767 = vand.u32 %v6292, 4294901760
    %7768 = vmatpush1.msra.mxu0 %v7767
    %7769 = vmatprep.subr.mxu0 0.0
    %v7770 = vand.u32 %v6291, 4294901760
    %7771 = vmatpush1.msra.mxu0 %v7770
    %7772 = vmatprep.subr.mxu0 0.0
    %v7773 = vand.u32 %v6290, 4294901760
    %7774 = vmatpush1.msra.mxu0 %v7773
    %7775 = vmatprep.subr.mxu0 0.0
    %v7776 = vand.u32 %v6289, 4294901760
    %7777 = vmatpush1.msra.mxu0 %v7776
    %7778 = vmatprep.subr.mxu0 0.0
    %v7779 = vand.u32 %v6288, 4294901760
    %7780 = vmatpush1.msra.mxu0 %v7779
    %7781 = vmatprep.subr.mxu0 0.0
    %v7782 = vand.u32 %v6287, 4294901760
    %7783 = vmatpush1.msra.mxu0 %v7782
    %7784 = vmatprep.subr.mxu0 0.0
    %v7785 = vand.u32 %v6286, 4294901760
    %7786 = vmatpush1.msra.mxu0 %v7785
    %7787 = vmatprep.subr.mxu0 0.0
    %v7788 = vand.u32 %v6285, 4294901760
    %7789 = vmatpush1.msra.mxu0 %v7788
    %7790 = vmatprep.subr.mxu0 0.0
    %v7791 = vand.u32 %v6284, 4294901760
    %7792 = vmatpush1.msra.mxu0 %v7791
    %7793 = vmatprep.subr.mxu0 0.0
    %7794 = vmatpush2.msra.mxu0 0.0
    %7795 = vmatprep.subr.mxu0 0.0
    %7796 = vmatpush2.msra.mxu0 0.0
    %7797 = vmatprep.subr.mxu0 0.0
    %7798 = vmatpush2.msra.mxu0 0.0
    %7799 = vmatprep.subr.mxu0 0.0
    %7800 = vmatpush2.msra.mxu0 0.0
    %7801 = vmatprep.subr.mxu0 0.0
    %7802 = vmatpush2.msra.mxu0 0.0
    %7803 = vmatprep.subr.mxu0 0.0
    %7804 = vmatpush2.msra.mxu0 0.0
    %7805 = vmatprep.subr.mxu0 0.0
    %7806 = vmatpush2.msra.mxu0 0.0
    %7807 = vmatprep.subr.mxu0 0.0
    %7808 = vmatpush2.msra.mxu0 0.0
    %7809 = vmatprep.subr.mxu0 0.0
    %7810 = vmatpush2.msra.mxu0 0.0
    %7811 = vmatprep.subr.mxu0 0.0
    %7812 = vmatpush2.msra.mxu0 0.0
    %7813 = vmatprep.subr.mxu0 0.0
    %7814 = vmatpush2.msra.mxu0 0.0
    %7815 = vmatprep.subr.mxu0 0.0
    %7816 = vmatpush2.msra.mxu0 0.0
    %7817 = vmatprep.subr.mxu0 0.0
    %7818 = vmatpush2.msra.mxu0 0.0
    %7819 = vmatprep.subr.mxu0 0.0
    %7820 = vmatpush2.msra.mxu0 0.0
    %7821 = vmatprep.subr.mxu0 0.0
    %7822 = vmatpush2.msra.mxu0 0.0
    %7823 = vmatprep.subr.mxu0 0.0
    %7824 = vmatpush2.msra.mxu0 0.0
    %7825 = vmatprep.mubr.f32.mxu0 0.0
    %v7826 = vand.u32 %v7076, 4294901760
    %7827 = vmatmul.mubr.f32.gmra.mxu0 %v7826
    %v7828 = vpop.f32.mrf.mxu0
    %v7829 = vadd.f32 %v7724, %v7828
    %v7830 = vpop.f32.mrf.mxu0
    %7831 = vmatprep.mubr.f32.mxu0 0.0
    %v7832 = vand.u32 %v7077, 4294901760
    %7833 = vmatmul.mubr.f32.gmra.mxu0 %v7832
    %v7834 = vpop.f32.mrf.mxu0
    %v7835 = vadd.f32 %v7730, %v7834
    %v7836 = vpop.f32.mrf.mxu0
    %7837 = vmatprep.mubr.f32.mxu0 0.0
    %v7838 = vand.u32 %v7078, 4294901760
    %7839 = vmatmul.mubr.f32.gmra.mxu0 %v7838
    %v7840 = vpop.f32.mrf.mxu0
    %v7841 = vadd.f32 %v7736, %v7840
    %v7842 = vpop.f32.mrf.mxu0
    %7843 = vmatprep.mubr.f32.mxu0 0.0
    %v7844 = vand.u32 %v7079, 4294901760
    %7845 = vmatmul.mubr.f32.gmra.mxu0 %v7844
    %v7846 = vpop.f32.mrf.mxu0
    %v7847 = vadd.f32 %v7742, %v7846
    %v7848 = vpop.f32.mrf.mxu0
    %7849 = vdwg.mxu0
    %v7850 = vadd.f32 %v6264, %v7829
    %v7851 = vadd.f32 %v6265, %v7835
    %v7852 = vadd.f32 %v6266, %v7841
    %v7853 = vadd.f32 %v6267, %v7847
    %v7854 = vlaneseq
    %v7855 = vshrl.u32 %v7854, 7
    %v7856 = vsub.s32 0, %v7855
    %v7857 = vrot.slane %v6301, %v7856
    %v7858 = vadd.f32 %v7850, %v7857
    %v7859 = vadd.f32 %v7851, %v7857
    %v7860 = vadd.f32 %v7852, %v7857
    %v7861 = vadd.f32 %v7853, %v7857
    %v7862 = vld [vmem:[#allocation15] sm:$0xff]
    %v7863 = vld [vmem:[#allocation15 + $0x8] sm:$0xff]
    %v7864 = vld [vmem:[#allocation15 + $0x10] sm:$0xff]
    %v7865 = vld [vmem:[#allocation15 + $0x18] sm:$0xff]
    %v7866 = vld [vmem:[#allocation15 + $0x20] sm:$0xff]
    %v7867 = vld [vmem:[#allocation15 + $0x28] sm:$0xff]
    %v7868 = vld [vmem:[#allocation15 + $0x30] sm:$0xff]
    %v7869 = vld [vmem:[#allocation15 + $0x38] sm:$0xff]
    %v7870 = vld [vmem:[#allocation15 + $0x40] sm:$0xff]
    %v7871 = vld [vmem:[#allocation15 + $0x48] sm:$0xff]
    %v7872 = vld [vmem:[#allocation15 + $0x50] sm:$0xff]
    %v7873 = vld [vmem:[#allocation15 + $0x58] sm:$0xff]
    %v7874 = vld [vmem:[#allocation15 + $0x60] sm:$0xff]
    %v7875 = vld [vmem:[#allocation15 + $0x68] sm:$0xff]
    %v7876 = vld [vmem:[#allocation15 + $0x70] sm:$0xff]
    %v7877 = vld [vmem:[#allocation15 + $0x78] sm:$0xff]
    %v7878 = vld [vmem:[%s10] sm:$0x1]
    %v7880 = vlaneseq
    %v7881 = vshrl.u32 %v7880, 7
    %v7882 = vsub.s32 0, %v7881
    %v7883 = vrot.slane %v7878, %v7882
    %7885 = vmatprep.subr.mxu0 0.0
    %v7886 = vand.u32 %v7877, 4294901760
    %7887 = vmatpush1.msra.mxu0 %v7886
    %7888 = vmatprep.subr.mxu0 0.0
    %v7889 = vand.u32 %v7876, 4294901760
    %7890 = vmatpush1.msra.mxu0 %v7889
    %7891 = vmatprep.subr.mxu0 0.0
    %v7892 = vand.u32 %v7875, 4294901760
    %7893 = vmatpush1.msra.mxu0 %v7892
    %7894 = vmatprep.subr.mxu0 0.0
    %v7895 = vand.u32 %v7874, 4294901760
    %7896 = vmatpush1.msra.mxu0 %v7895
    %7897 = vmatprep.subr.mxu0 0.0
    %v7898 = vand.u32 %v7873, 4294901760
    %7899 = vmatpush1.msra.mxu0 %v7898
    %7900 = vmatprep.subr.mxu0 0.0
    %v7901 = vand.u32 %v7872, 4294901760
    %7902 = vmatpush1.msra.mxu0 %v7901
    %7903 = vmatprep.subr.mxu0 0.0
    %v7904 = vand.u32 %v7871, 4294901760
    %7905 = vmatpush1.msra.mxu0 %v7904
    %7906 = vmatprep.subr.mxu0 0.0
    %v7907 = vand.u32 %v7870, 4294901760
    %7908 = vmatpush1.msra.mxu0 %v7907
    %7909 = vmatprep.subr.mxu0 0.0
    %v7910 = vand.u32 %v7869, 4294901760
    %7911 = vmatpush1.msra.mxu0 %v7910
    %7912 = vmatprep.subr.mxu0 0.0
    %v7913 = vand.u32 %v7868, 4294901760
    %7914 = vmatpush1.msra.mxu0 %v7913
    %7915 = vmatprep.subr.mxu0 0.0
    %v7916 = vand.u32 %v7867, 4294901760
    %7917 = vmatpush1.msra.mxu0 %v7916
    %7918 = vmatprep.subr.mxu0 0.0
    %v7919 = vand.u32 %v7866, 4294901760
    %7920 = vmatpush1.msra.mxu0 %v7919
    %7921 = vmatprep.subr.mxu0 0.0
    %v7922 = vand.u32 %v7865, 4294901760
    %7923 = vmatpush1.msra.mxu0 %v7922
    %7924 = vmatprep.subr.mxu0 0.0
    %v7925 = vand.u32 %v7864, 4294901760
    %7926 = vmatpush1.msra.mxu0 %v7925
    %7927 = vmatprep.subr.mxu0 0.0
    %v7928 = vand.u32 %v7863, 4294901760
    %7929 = vmatpush1.msra.mxu0 %v7928
    %7930 = vmatprep.subr.mxu0 0.0
    %v7931 = vand.u32 %v7862, 4294901760
    %7932 = vmatpush1.msra.mxu0 %v7931
    %7933 = vmatprep.subr.mxu0 0.0
    %7934 = vmatpush2.msra.mxu0 0.0
    %7935 = vmatprep.subr.mxu0 0.0
    %7936 = vmatpush2.msra.mxu0 0.0
    %7937 = vmatprep.subr.mxu0 0.0
    %7938 = vmatpush2.msra.mxu0 0.0
    %7939 = vmatprep.subr.mxu0 0.0
    %7940 = vmatpush2.msra.mxu0 0.0
    %7941 = vmatprep.subr.mxu0 0.0
    %7942 = vmatpush2.msra.mxu0 0.0
    %7943 = vmatprep.subr.mxu0 0.0
    %7944 = vmatpush2.msra.mxu0 0.0
    %7945 = vmatprep.subr.mxu0 0.0
    %7946 = vmatpush2.msra.mxu0 0.0
    %7947 = vmatprep.subr.mxu0 0.0
    %7948 = vmatpush2.msra.mxu0 0.0
    %7949 = vmatprep.subr.mxu0 0.0
    %7950 = vmatpush2.msra.mxu0 0.0
    %7951 = vmatprep.subr.mxu0 0.0
    %7952 = vmatpush2.msra.mxu0 0.0
    %7953 = vmatprep.subr.mxu0 0.0
    %7954 = vmatpush2.msra.mxu0 0.0
    %7955 = vmatprep.subr.mxu0 0.0
    %7956 = vmatpush2.msra.mxu0 0.0
    %7957 = vmatprep.subr.mxu0 0.0
    %7958 = vmatpush2.msra.mxu0 0.0
    %7959 = vmatprep.subr.mxu0 0.0
    %7960 = vmatpush2.msra.mxu0 0.0
    %7961 = vmatprep.subr.mxu0 0.0
    %7962 = vmatpush2.msra.mxu0 0.0
    %7963 = vmatprep.subr.mxu0 0.0
    %7964 = vmatpush2.msra.mxu0 0.0
    %7965 = vmatprep.mubr.f32.mxu0 0.0
    %v7966 = vand.u32 %v7858, 4294901760
    %v7967 = vsub.f32 %v7858, %v7966
    %v7968 = vand.u32 %v7967, 4294901760
    %v7969 = vsub.f32 %v7967, %v7968
    %v7970 = vand.u32 %v7969, 4294901760
    %7971 = vmatmul.mubr.f32.gmra.mxu0 %v7970
    %v7972 = vpop.f32.mrf.mxu0
    %v7973 = vadd.f32 %v7883, %v7972
    %v7974 = vpop.f32.mrf.mxu0
    %7975 = vmatprep.mubr.f32.mxu0 0.0
    %v7976 = vand.u32 %v7859, 4294901760
    %v7977 = vsub.f32 %v7859, %v7976
    %v7978 = vand.u32 %v7977, 4294901760
    %v7979 = vsub.f32 %v7977, %v7978
    %v7980 = vand.u32 %v7979, 4294901760
    %7981 = vmatmul.mubr.f32.gmra.mxu0 %v7980
    %v7982 = vpop.f32.mrf.mxu0
    %v7983 = vadd.f32 %v7883, %v7982
    %v7984 = vpop.f32.mrf.mxu0
    %7985 = vmatprep.mubr.f32.mxu0 0.0
    %v7986 = vand.u32 %v7860, 4294901760
    %v7987 = vsub.f32 %v7860, %v7986
    %v7988 = vand.u32 %v7987, 4294901760
    %v7989 = vsub.f32 %v7987, %v7988
    %v7990 = vand.u32 %v7989, 4294901760
    %7991 = vmatmul.mubr.f32.gmra.mxu0 %v7990
    %v7992 = vpop.f32.mrf.mxu0
    %v7993 = vadd.f32 %v7883, %v7992
    %v7994 = vpop.f32.mrf.mxu0
    %7995 = vmatprep.mubr.f32.mxu0 0.0
    %v7996 = vand.u32 %v7861, 4294901760
    %v7997 = vsub.f32 %v7861, %v7996
    %v7998 = vand.u32 %v7997, 4294901760
    %v7999 = vsub.f32 %v7997, %v7998
    %v8000 = vand.u32 %v7999, 4294901760
    %8001 = vmatmul.mubr.f32.gmra.mxu0 %v8000
    %v8002 = vpop.f32.mrf.mxu0
    %v8003 = vadd.f32 %v7883, %v8002
    %v8004 = vpop.f32.mrf.mxu0
    %8005 = vdwg.mxu0
    %8006 = vmatprep.subr.mxu0 0.0
    %v8007 = vand.u32 %v7877, 4294901760
    %v8008 = vsub.f32 %v7877, %v8007
    %v8009 = vand.u32 %v8008, 4294901760
    %v8010 = vsub.f32 %v8008, %v8009
    %v8011 = vand.u32 %v8010, 4294901760
    %8012 = vmatpush1.msra.mxu0 %v8011
    %8013 = vmatprep.subr.mxu0 0.0
    %v8014 = vand.u32 %v7876, 4294901760
    %v8015 = vsub.f32 %v7876, %v8014
    %v8016 = vand.u32 %v8015, 4294901760
    %v8017 = vsub.f32 %v8015, %v8016
    %v8018 = vand.u32 %v8017, 4294901760
    %8019 = vmatpush1.msra.mxu0 %v8018
    %8020 = vmatprep.subr.mxu0 0.0
    %v8021 = vand.u32 %v7875, 4294901760
    %v8022 = vsub.f32 %v7875, %v8021
    %v8023 = vand.u32 %v8022, 4294901760
    %v8024 = vsub.f32 %v8022, %v8023
    %v8025 = vand.u32 %v8024, 4294901760
    %8026 = vmatpush1.msra.mxu0 %v8025
    %8027 = vmatprep.subr.mxu0 0.0
    %v8028 = vand.u32 %v7874, 4294901760
    %v8029 = vsub.f32 %v7874, %v8028
    %v8030 = vand.u32 %v8029, 4294901760
    %v8031 = vsub.f32 %v8029, %v8030
    %v8032 = vand.u32 %v8031, 4294901760
    %8033 = vmatpush1.msra.mxu0 %v8032
    %8034 = vmatprep.subr.mxu0 0.0
    %v8035 = vand.u32 %v7873, 4294901760
    %v8036 = vsub.f32 %v7873, %v8035
    %v8037 = vand.u32 %v8036, 4294901760
    %v8038 = vsub.f32 %v8036, %v8037
    %v8039 = vand.u32 %v8038, 4294901760
    %8040 = vmatpush1.msra.mxu0 %v8039
    %8041 = vmatprep.subr.mxu0 0.0
    %v8042 = vand.u32 %v7872, 4294901760
    %v8043 = vsub.f32 %v7872, %v8042
    %v8044 = vand.u32 %v8043, 4294901760
    %v8045 = vsub.f32 %v8043, %v8044
    %v8046 = vand.u32 %v8045, 4294901760
    %8047 = vmatpush1.msra.mxu0 %v8046
    %8048 = vmatprep.subr.mxu0 0.0
    %v8049 = vand.u32 %v7871, 4294901760
    %v8050 = vsub.f32 %v7871, %v8049
    %v8051 = vand.u32 %v8050, 4294901760
    %v8052 = vsub.f32 %v8050, %v8051
    %v8053 = vand.u32 %v8052, 4294901760
    %8054 = vmatpush1.msra.mxu0 %v8053
    %8055 = vmatprep.subr.mxu0 0.0
    %v8056 = vand.u32 %v7870, 4294901760
    %v8057 = vsub.f32 %v7870, %v8056
    %v8058 = vand.u32 %v8057, 4294901760
    %v8059 = vsub.f32 %v8057, %v8058
    %v8060 = vand.u32 %v8059, 4294901760
    %8061 = vmatpush1.msra.mxu0 %v8060
    %8062 = vmatprep.subr.mxu0 0.0
    %v8063 = vand.u32 %v7869, 4294901760
    %v8064 = vsub.f32 %v7869, %v8063
    %v8065 = vand.u32 %v8064, 4294901760
    %v8066 = vsub.f32 %v8064, %v8065
    %v8067 = vand.u32 %v8066, 4294901760
    %8068 = vmatpush1.msra.mxu0 %v8067
    %8069 = vmatprep.subr.mxu0 0.0
    %v8070 = vand.u32 %v7868, 4294901760
    %v8071 = vsub.f32 %v7868, %v8070
    %v8072 = vand.u32 %v8071, 4294901760
    %v8073 = vsub.f32 %v8071, %v8072
    %v8074 = vand.u32 %v8073, 4294901760
    %8075 = vmatpush1.msra.mxu0 %v8074
    %8076 = vmatprep.subr.mxu0 0.0
    %v8077 = vand.u32 %v7867, 4294901760
    %v8078 = vsub.f32 %v7867, %v8077
    %v8079 = vand.u32 %v8078, 4294901760
    %v8080 = vsub.f32 %v8078, %v8079
    %v8081 = vand.u32 %v8080, 4294901760
    %8082 = vmatpush1.msra.mxu0 %v8081
    %8083 = vmatprep.subr.mxu0 0.0
    %v8084 = vand.u32 %v7866, 4294901760
    %v8085 = vsub.f32 %v7866, %v8084
    %v8086 = vand.u32 %v8085, 4294901760
    %v8087 = vsub.f32 %v8085, %v8086
    %v8088 = vand.u32 %v8087, 4294901760
    %8089 = vmatpush1.msra.mxu0 %v8088
    %8090 = vmatprep.subr.mxu0 0.0
    %v8091 = vand.u32 %v7865, 4294901760
    %v8092 = vsub.f32 %v7865, %v8091
    %v8093 = vand.u32 %v8092, 4294901760
    %v8094 = vsub.f32 %v8092, %v8093
    %v8095 = vand.u32 %v8094, 4294901760
    %8096 = vmatpush1.msra.mxu0 %v8095
    %8097 = vmatprep.subr.mxu0 0.0
    %v8098 = vand.u32 %v7864, 4294901760
    %v8099 = vsub.f32 %v7864, %v8098
    %v8100 = vand.u32 %v8099, 4294901760
    %v8101 = vsub.f32 %v8099, %v8100
    %v8102 = vand.u32 %v8101, 4294901760
    %8103 = vmatpush1.msra.mxu0 %v8102
    %8104 = vmatprep.subr.mxu0 0.0
    %v8105 = vand.u32 %v7863, 4294901760
    %v8106 = vsub.f32 %v7863, %v8105
    %v8107 = vand.u32 %v8106, 4294901760
    %v8108 = vsub.f32 %v8106, %v8107
    %v8109 = vand.u32 %v8108, 4294901760
    %8110 = vmatpush1.msra.mxu0 %v8109
    %8111 = vmatprep.subr.mxu0 0.0
    %v8112 = vand.u32 %v7862, 4294901760
    %v8113 = vsub.f32 %v7862, %v8112
    %v8114 = vand.u32 %v8113, 4294901760
    %v8115 = vsub.f32 %v8113, %v8114
    %v8116 = vand.u32 %v8115, 4294901760
    %8117 = vmatpush1.msra.mxu0 %v8116
    %8118 = vmatprep.subr.mxu0 0.0
    %8119 = vmatpush2.msra.mxu0 0.0
    %8120 = vmatprep.subr.mxu0 0.0
    %8121 = vmatpush2.msra.mxu0 0.0
    %8122 = vmatprep.subr.mxu0 0.0
    %8123 = vmatpush2.msra.mxu0 0.0
    %8124 = vmatprep.subr.mxu0 0.0
    %8125 = vmatpush2.msra.mxu0 0.0
    %8126 = vmatprep.subr.mxu0 0.0
    %8127 = vmatpush2.msra.mxu0 0.0
    %8128 = vmatprep.subr.mxu0 0.0
    %8129 = vmatpush2.msra.mxu0 0.0
    %8130 = vmatprep.subr.mxu0 0.0
    %8131 = vmatpush2.msra.mxu0 0.0
    %8132 = vmatprep.subr.mxu0 0.0
    %8133 = vmatpush2.msra.mxu0 0.0
    %8134 = vmatprep.subr.mxu0 0.0
    %8135 = vmatpush2.msra.mxu0 0.0
    %8136 = vmatprep.subr.mxu0 0.0
    %8137 = vmatpush2.msra.mxu0 0.0
    %8138 = vmatprep.subr.mxu0 0.0
    %8139 = vmatpush2.msra.mxu0 0.0
    %8140 = vmatprep.subr.mxu0 0.0
    %8141 = vmatpush2.msra.mxu0 0.0
    %8142 = vmatprep.subr.mxu0 0.0
    %8143 = vmatpush2.msra.mxu0 0.0
    %8144 = vmatprep.subr.mxu0 0.0
    %8145 = vmatpush2.msra.mxu0 0.0
    %8146 = vmatprep.subr.mxu0 0.0
    %8147 = vmatpush2.msra.mxu0 0.0
    %8148 = vmatprep.subr.mxu0 0.0
    %8149 = vmatpush2.msra.mxu0 0.0
    %8150 = vmatprep.mubr.f32.mxu0 0.0
    %v8151 = vand.u32 %v7858, 4294901760
    %8152 = vmatmul.mubr.f32.gmra.mxu0 %v8151
    %v8153 = vpop.f32.mrf.mxu0
    %v8154 = vadd.f32 %v7973, %v8153
    %v8155 = vpop.f32.mrf.mxu0
    %8156 = vmatprep.mubr.f32.mxu0 0.0
    %v8157 = vand.u32 %v7859, 4294901760
    %8158 = vmatmul.mubr.f32.gmra.mxu0 %v8157
    %v8159 = vpop.f32.mrf.mxu0
    %v8160 = vadd.f32 %v7983, %v8159
    %v8161 = vpop.f32.mrf.mxu0
    %8162 = vmatprep.mubr.f32.mxu0 0.0
    %v8163 = vand.u32 %v7860, 4294901760
    %8164 = vmatmul.mubr.f32.gmra.mxu0 %v8163
    %v8165 = vpop.f32.mrf.mxu0
    %v8166 = vadd.f32 %v7993, %v8165
    %v8167 = vpop.f32.mrf.mxu0
    %8168 = vmatprep.mubr.f32.mxu0 0.0
    %v8169 = vand.u32 %v7861, 4294901760
    %8170 = vmatmul.mubr.f32.gmra.mxu0 %v8169
    %v8171 = vpop.f32.mrf.mxu0
    %v8172 = vadd.f32 %v8003, %v8171
    %v8173 = vpop.f32.mrf.mxu0
    %8174 = vdwg.mxu0
    %8175 = vmatprep.subr.mxu0 0.0
    %v8176 = vand.u32 %v7877, 4294901760
    %v8177 = vsub.f32 %v7877, %v8176
    %8178 = vmatpush1.msra.mxu0 %v8177
    %8179 = vmatprep.subr.mxu0 0.0
    %v8180 = vand.u32 %v7876, 4294901760
    %v8181 = vsub.f32 %v7876, %v8180
    %8182 = vmatpush1.msra.mxu0 %v8181
    %8183 = vmatprep.subr.mxu0 0.0
    %v8184 = vand.u32 %v7875, 4294901760
    %v8185 = vsub.f32 %v7875, %v8184
    %8186 = vmatpush1.msra.mxu0 %v8185
    %8187 = vmatprep.subr.mxu0 0.0
    %v8188 = vand.u32 %v7874, 4294901760
    %v8189 = vsub.f32 %v7874, %v8188
    %8190 = vmatpush1.msra.mxu0 %v8189
    %8191 = vmatprep.subr.mxu0 0.0
    %v8192 = vand.u32 %v7873, 4294901760
    %v8193 = vsub.f32 %v7873, %v8192
    %8194 = vmatpush1.msra.mxu0 %v8193
    %8195 = vmatprep.subr.mxu0 0.0
    %v8196 = vand.u32 %v7872, 4294901760
    %v8197 = vsub.f32 %v7872, %v8196
    %8198 = vmatpush1.msra.mxu0 %v8197
    %8199 = vmatprep.subr.mxu0 0.0
    %v8200 = vand.u32 %v7871, 4294901760
    %v8201 = vsub.f32 %v7871, %v8200
    %8202 = vmatpush1.msra.mxu0 %v8201
    %8203 = vmatprep.subr.mxu0 0.0
    %v8204 = vand.u32 %v7870, 4294901760
    %v8205 = vsub.f32 %v7870, %v8204
    %8206 = vmatpush1.msra.mxu0 %v8205
    %8207 = vmatprep.subr.mxu0 0.0
    %v8208 = vand.u32 %v7869, 4294901760
    %v8209 = vsub.f32 %v7869, %v8208
    %8210 = vmatpush1.msra.mxu0 %v8209
    %8211 = vmatprep.subr.mxu0 0.0
    %v8212 = vand.u32 %v7868, 4294901760
    %v8213 = vsub.f32 %v7868, %v8212
    %8214 = vmatpush1.msra.mxu0 %v8213
    %8215 = vmatprep.subr.mxu0 0.0
    %v8216 = vand.u32 %v7867, 4294901760
    %v8217 = vsub.f32 %v7867, %v8216
    %8218 = vmatpush1.msra.mxu0 %v8217
    %8219 = vmatprep.subr.mxu0 0.0
    %v8220 = vand.u32 %v7866, 4294901760
    %v8221 = vsub.f32 %v7866, %v8220
    %8222 = vmatpush1.msra.mxu0 %v8221
    %8223 = vmatprep.subr.mxu0 0.0
    %v8224 = vand.u32 %v7865, 4294901760
    %v8225 = vsub.f32 %v7865, %v8224
    %8226 = vmatpush1.msra.mxu0 %v8225
    %8227 = vmatprep.subr.mxu0 0.0
    %v8228 = vand.u32 %v7864, 4294901760
    %v8229 = vsub.f32 %v7864, %v8228
    %8230 = vmatpush1.msra.mxu0 %v8229
    %8231 = vmatprep.subr.mxu0 0.0
    %v8232 = vand.u32 %v7863, 4294901760
    %v8233 = vsub.f32 %v7863, %v8232
    %8234 = vmatpush1.msra.mxu0 %v8233
    %8235 = vmatprep.subr.mxu0 0.0
    %v8236 = vand.u32 %v7862, 4294901760
    %v8237 = vsub.f32 %v7862, %v8236
    %8238 = vmatpush1.msra.mxu0 %v8237
    %8239 = vmatprep.subr.mxu0 0.0
    %8240 = vmatpush2.msra.mxu0 0.0
    %8241 = vmatprep.subr.mxu0 0.0
    %8242 = vmatpush2.msra.mxu0 0.0
    %8243 = vmatprep.subr.mxu0 0.0
    %8244 = vmatpush2.msra.mxu0 0.0
    %8245 = vmatprep.subr.mxu0 0.0
    %8246 = vmatpush2.msra.mxu0 0.0
    %8247 = vmatprep.subr.mxu0 0.0
    %8248 = vmatpush2.msra.mxu0 0.0
    %8249 = vmatprep.subr.mxu0 0.0
    %8250 = vmatpush2.msra.mxu0 0.0
    %8251 = vmatprep.subr.mxu0 0.0
    %8252 = vmatpush2.msra.mxu0 0.0
    %8253 = vmatprep.subr.mxu0 0.0
    %8254 = vmatpush2.msra.mxu0 0.0
    %8255 = vmatprep.subr.mxu0 0.0
    %8256 = vmatpush2.msra.mxu0 0.0
    %8257 = vmatprep.subr.mxu0 0.0
    %8258 = vmatpush2.msra.mxu0 0.0
    %8259 = vmatprep.subr.mxu0 0.0
    %8260 = vmatpush2.msra.mxu0 0.0
    %8261 = vmatprep.subr.mxu0 0.0
    %8262 = vmatpush2.msra.mxu0 0.0
    %8263 = vmatprep.subr.mxu0 0.0
    %8264 = vmatpush2.msra.mxu0 0.0
    %8265 = vmatprep.subr.mxu0 0.0
    %8266 = vmatpush2.msra.mxu0 0.0
    %8267 = vmatprep.subr.mxu0 0.0
    %8268 = vmatpush2.msra.mxu0 0.0
    %8269 = vmatprep.subr.mxu0 0.0
    %8270 = vmatpush2.msra.mxu0 0.0
    %8271 = vmatprep.mubr.f32.mxu0 0.0
    %v8272 = vand.u32 %v7858, 4294901760
    %v8273 = vsub.f32 %v7858, %v8272
    %8274 = vmatmul.mubr.f32.gmra.mxu0 %v8273
    %v8275 = vpop.f32.mrf.mxu0
    %v8276 = vadd.f32 %v8154, %v8275
    %v8277 = vpop.f32.mrf.mxu0
    %8278 = vmatprep.mubr.f32.mxu0 0.0
    %v8279 = vand.u32 %v7859, 4294901760
    %v8280 = vsub.f32 %v7859, %v8279
    %8281 = vmatmul.mubr.f32.gmra.mxu0 %v8280
    %v8282 = vpop.f32.mrf.mxu0
    %v8283 = vadd.f32 %v8160, %v8282
    %v8284 = vpop.f32.mrf.mxu0
    %8285 = vmatprep.mubr.f32.mxu0 0.0
    %v8286 = vand.u32 %v7860, 4294901760
    %v8287 = vsub.f32 %v7860, %v8286
    %8288 = vmatmul.mubr.f32.gmra.mxu0 %v8287
    %v8289 = vpop.f32.mrf.mxu0
    %v8290 = vadd.f32 %v8166, %v8289
    %v8291 = vpop.f32.mrf.mxu0
    %8292 = vmatprep.mubr.f32.mxu0 0.0
    %v8293 = vand.u32 %v7861, 4294901760
    %v8294 = vsub.f32 %v7861, %v8293
    %8295 = vmatmul.mubr.f32.gmra.mxu0 %v8294
    %v8296 = vpop.f32.mrf.mxu0
    %v8297 = vadd.f32 %v8172, %v8296
    %v8298 = vpop.f32.mrf.mxu0
    %8299 = vdwg.mxu0
    %8300 = vmatprep.subr.mxu0 0.0
    %v8301 = vand.u32 %v7877, 4294901760
    %8302 = vmatpush1.msra.mxu0 %v8301
    %8303 = vmatprep.subr.mxu0 0.0
    %v8304 = vand.u32 %v7876, 4294901760
    %8305 = vmatpush1.msra.mxu0 %v8304
    %8306 = vmatprep.subr.mxu0 0.0
    %v8307 = vand.u32 %v7875, 4294901760
    %8308 = vmatpush1.msra.mxu0 %v8307
    %8309 = vmatprep.subr.mxu0 0.0
    %v8310 = vand.u32 %v7874, 4294901760
    %8311 = vmatpush1.msra.mxu0 %v8310
    %8312 = vmatprep.subr.mxu0 0.0
    %v8313 = vand.u32 %v7873, 4294901760
    %8314 = vmatpush1.msra.mxu0 %v8313
    %8315 = vmatprep.subr.mxu0 0.0
    %v8316 = vand.u32 %v7872, 4294901760
    %8317 = vmatpush1.msra.mxu0 %v8316
    %8318 = vmatprep.subr.mxu0 0.0
    %v8319 = vand.u32 %v7871, 4294901760
    %8320 = vmatpush1.msra.mxu0 %v8319
    %8321 = vmatprep.subr.mxu0 0.0
    %v8322 = vand.u32 %v7870, 4294901760
    %8323 = vmatpush1.msra.mxu0 %v8322
    %8324 = vmatprep.subr.mxu0 0.0
    %v8325 = vand.u32 %v7869, 4294901760
    %8326 = vmatpush1.msra.mxu0 %v8325
    %8327 = vmatprep.subr.mxu0 0.0
    %v8328 = vand.u32 %v7868, 4294901760
    %8329 = vmatpush1.msra.mxu0 %v8328
    %8330 = vmatprep.subr.mxu0 0.0
    %v8331 = vand.u32 %v7867, 4294901760
    %8332 = vmatpush1.msra.mxu0 %v8331
    %8333 = vmatprep.subr.mxu0 0.0
    %v8334 = vand.u32 %v7866, 4294901760
    %8335 = vmatpush1.msra.mxu0 %v8334
    %8336 = vmatprep.subr.mxu0 0.0
    %v8337 = vand.u32 %v7865, 4294901760
    %8338 = vmatpush1.msra.mxu0 %v8337
    %8339 = vmatprep.subr.mxu0 0.0
    %v8340 = vand.u32 %v7864, 4294901760
    %8341 = vmatpush1.msra.mxu0 %v8340
    %8342 = vmatprep.subr.mxu0 0.0
    %v8343 = vand.u32 %v7863, 4294901760
    %8344 = vmatpush1.msra.mxu0 %v8343
    %8345 = vmatprep.subr.mxu0 0.0
    %v8346 = vand.u32 %v7862, 4294901760
    %8347 = vmatpush1.msra.mxu0 %v8346
    %8348 = vmatprep.subr.mxu0 0.0
    %8349 = vmatpush2.msra.mxu0 0.0
    %8350 = vmatprep.subr.mxu0 0.0
    %8351 = vmatpush2.msra.mxu0 0.0
    %8352 = vmatprep.subr.mxu0 0.0
    %8353 = vmatpush2.msra.mxu0 0.0
    %8354 = vmatprep.subr.mxu0 0.0
    %8355 = vmatpush2.msra.mxu0 0.0
    %8356 = vmatprep.subr.mxu0 0.0
    %8357 = vmatpush2.msra.mxu0 0.0
    %8358 = vmatprep.subr.mxu0 0.0
    %8359 = vmatpush2.msra.mxu0 0.0
    %8360 = vmatprep.subr.mxu0 0.0
    %8361 = vmatpush2.msra.mxu0 0.0
    %8362 = vmatprep.subr.mxu0 0.0
    %8363 = vmatpush2.msra.mxu0 0.0
    %8364 = vmatprep.subr.mxu0 0.0
    %8365 = vmatpush2.msra.mxu0 0.0
    %8366 = vmatprep.subr.mxu0 0.0
    %8367 = vmatpush2.msra.mxu0 0.0
    %8368 = vmatprep.subr.mxu0 0.0
    %8369 = vmatpush2.msra.mxu0 0.0
    %8370 = vmatprep.subr.mxu0 0.0
    %8371 = vmatpush2.msra.mxu0 0.0
    %8372 = vmatprep.subr.mxu0 0.0
    %8373 = vmatpush2.msra.mxu0 0.0
    %8374 = vmatprep.subr.mxu0 0.0
    %8375 = vmatpush2.msra.mxu0 0.0
    %8376 = vmatprep.subr.mxu0 0.0
    %8377 = vmatpush2.msra.mxu0 0.0
    %8378 = vmatprep.subr.mxu0 0.0
    %8379 = vmatpush2.msra.mxu0 0.0
    %8380 = vmatprep.mubr.f32.mxu0 0.0
    %v8381 = vand.u32 %v7858, 4294901760
    %v8382 = vsub.f32 %v7858, %v8381
    %v8383 = vand.u32 %v8382, 4294901760
    %8384 = vmatmul.mubr.f32.gmra.mxu0 %v8383
    %v8385 = vpop.f32.mrf.mxu0
    %v8386 = vadd.f32 %v8276, %v8385
    %v8387 = vpop.f32.mrf.mxu0
    %8388 = vmatprep.mubr.f32.mxu0 0.0
    %v8389 = vand.u32 %v7859, 4294901760
    %v8390 = vsub.f32 %v7859, %v8389
    %v8391 = vand.u32 %v8390, 4294901760
    %8392 = vmatmul.mubr.f32.gmra.mxu0 %v8391
    %v8393 = vpop.f32.mrf.mxu0
    %v8394 = vadd.f32 %v8283, %v8393
    %v8395 = vpop.f32.mrf.mxu0
    %8396 = vmatprep.mubr.f32.mxu0 0.0
    %v8397 = vand.u32 %v7860, 4294901760
    %v8398 = vsub.f32 %v7860, %v8397
    %v8399 = vand.u32 %v8398, 4294901760
    %8400 = vmatmul.mubr.f32.gmra.mxu0 %v8399
    %v8401 = vpop.f32.mrf.mxu0
    %v8402 = vadd.f32 %v8290, %v8401
    %v8403 = vpop.f32.mrf.mxu0
    %8404 = vmatprep.mubr.f32.mxu0 0.0
    %v8405 = vand.u32 %v7861, 4294901760
    %v8406 = vsub.f32 %v7861, %v8405
    %v8407 = vand.u32 %v8406, 4294901760
    %8408 = vmatmul.mubr.f32.gmra.mxu0 %v8407
    %v8409 = vpop.f32.mrf.mxu0
    %v8410 = vadd.f32 %v8297, %v8409
    %v8411 = vpop.f32.mrf.mxu0
    %8412 = vdwg.mxu0
    %8413 = vmatprep.subr.mxu0 0.0
    %v8414 = vand.u32 %v7877, 4294901760
    %v8415 = vsub.f32 %v7877, %v8414
    %v8416 = vand.u32 %v8415, 4294901760
    %8417 = vmatpush1.msra.mxu0 %v8416
    %8418 = vmatprep.subr.mxu0 0.0
    %v8419 = vand.u32 %v7876, 4294901760
    %v8420 = vsub.f32 %v7876, %v8419
    %v8421 = vand.u32 %v8420, 4294901760
    %8422 = vmatpush1.msra.mxu0 %v8421
    %8423 = vmatprep.subr.mxu0 0.0
    %v8424 = vand.u32 %v7875, 4294901760
    %v8425 = vsub.f32 %v7875, %v8424
    %v8426 = vand.u32 %v8425, 4294901760
    %8427 = vmatpush1.msra.mxu0 %v8426
    %8428 = vmatprep.subr.mxu0 0.0
    %v8429 = vand.u32 %v7874, 4294901760
    %v8430 = vsub.f32 %v7874, %v8429
    %v8431 = vand.u32 %v8430, 4294901760
    %8432 = vmatpush1.msra.mxu0 %v8431
    %8433 = vmatprep.subr.mxu0 0.0
    %v8434 = vand.u32 %v7873, 4294901760
    %v8435 = vsub.f32 %v7873, %v8434
    %v8436 = vand.u32 %v8435, 4294901760
    %8437 = vmatpush1.msra.mxu0 %v8436
    %8438 = vmatprep.subr.mxu0 0.0
    %v8439 = vand.u32 %v7872, 4294901760
    %v8440 = vsub.f32 %v7872, %v8439
    %v8441 = vand.u32 %v8440, 4294901760
    %8442 = vmatpush1.msra.mxu0 %v8441
    %8443 = vmatprep.subr.mxu0 0.0
    %v8444 = vand.u32 %v7871, 4294901760
    %v8445 = vsub.f32 %v7871, %v8444
    %v8446 = vand.u32 %v8445, 4294901760
    %8447 = vmatpush1.msra.mxu0 %v8446
    %8448 = vmatprep.subr.mxu0 0.0
    %v8449 = vand.u32 %v7870, 4294901760
    %v8450 = vsub.f32 %v7870, %v8449
    %v8451 = vand.u32 %v8450, 4294901760
    %8452 = vmatpush1.msra.mxu0 %v8451
    %8453 = vmatprep.subr.mxu0 0.0
    %v8454 = vand.u32 %v7869, 4294901760
    %v8455 = vsub.f32 %v7869, %v8454
    %v8456 = vand.u32 %v8455, 4294901760
    %8457 = vmatpush1.msra.mxu0 %v8456
    %8458 = vmatprep.subr.mxu0 0.0
    %v8459 = vand.u32 %v7868, 4294901760
    %v8460 = vsub.f32 %v7868, %v8459
    %v8461 = vand.u32 %v8460, 4294901760
    %8462 = vmatpush1.msra.mxu0 %v8461
    %8463 = vmatprep.subr.mxu0 0.0
    %v8464 = vand.u32 %v7867, 4294901760
    %v8465 = vsub.f32 %v7867, %v8464
    %v8466 = vand.u32 %v8465, 4294901760
    %8467 = vmatpush1.msra.mxu0 %v8466
    %8468 = vmatprep.subr.mxu0 0.0
    %v8469 = vand.u32 %v7866, 4294901760
    %v8470 = vsub.f32 %v7866, %v8469
    %v8471 = vand.u32 %v8470, 4294901760
    %8472 = vmatpush1.msra.mxu0 %v8471
    %8473 = vmatprep.subr.mxu0 0.0
    %v8474 = vand.u32 %v7865, 4294901760
    %v8475 = vsub.f32 %v7865, %v8474
    %v8476 = vand.u32 %v8475, 4294901760
    %8477 = vmatpush1.msra.mxu0 %v8476
    %8478 = vmatprep.subr.mxu0 0.0
    %v8479 = vand.u32 %v7864, 4294901760
    %v8480 = vsub.f32 %v7864, %v8479
    %v8481 = vand.u32 %v8480, 4294901760
    %8482 = vmatpush1.msra.mxu0 %v8481
    %8483 = vmatprep.subr.mxu0 0.0
    %v8484 = vand.u32 %v7863, 4294901760
    %v8485 = vsub.f32 %v7863, %v8484
    %v8486 = vand.u32 %v8485, 4294901760
    %8487 = vmatpush1.msra.mxu0 %v8486
    %8488 = vmatprep.subr.mxu0 0.0
    %v8489 = vand.u32 %v7862, 4294901760
    %v8490 = vsub.f32 %v7862, %v8489
    %v8491 = vand.u32 %v8490, 4294901760
    %8492 = vmatpush1.msra.mxu0 %v8491
    %8493 = vmatprep.subr.mxu0 0.0
    %8494 = vmatpush2.msra.mxu0 0.0
    %8495 = vmatprep.subr.mxu0 0.0
    %8496 = vmatpush2.msra.mxu0 0.0
    %8497 = vmatprep.subr.mxu0 0.0
    %8498 = vmatpush2.msra.mxu0 0.0
    %8499 = vmatprep.subr.mxu0 0.0
    %8500 = vmatpush2.msra.mxu0 0.0
    %8501 = vmatprep.subr.mxu0 0.0
    %8502 = vmatpush2.msra.mxu0 0.0
    %8503 = vmatprep.subr.mxu0 0.0
    %8504 = vmatpush2.msra.mxu0 0.0
    %8505 = vmatprep.subr.mxu0 0.0
    %8506 = vmatpush2.msra.mxu0 0.0
    %8507 = vmatprep.subr.mxu0 0.0
    %8508 = vmatpush2.msra.mxu0 0.0
    %8509 = vmatprep.subr.mxu0 0.0
    %8510 = vmatpush2.msra.mxu0 0.0
    %8511 = vmatprep.subr.mxu0 0.0
    %8512 = vmatpush2.msra.mxu0 0.0
    %8513 = vmatprep.subr.mxu0 0.0
    %8514 = vmatpush2.msra.mxu0 0.0
    %8515 = vmatprep.subr.mxu0 0.0
    %8516 = vmatpush2.msra.mxu0 0.0
    %8517 = vmatprep.subr.mxu0 0.0
    %8518 = vmatpush2.msra.mxu0 0.0
    %8519 = vmatprep.subr.mxu0 0.0
    %8520 = vmatpush2.msra.mxu0 0.0
    %8521 = vmatprep.subr.mxu0 0.0
    %8522 = vmatpush2.msra.mxu0 0.0
    %8523 = vmatprep.subr.mxu0 0.0
    %8524 = vmatpush2.msra.mxu0 0.0
    %8525 = vmatprep.mubr.f32.mxu0 0.0
    %v8526 = vand.u32 %v7858, 4294901760
    %8527 = vmatmul.mubr.f32.gmra.mxu0 %v8526
    %v8528 = vpop.f32.mrf.mxu0
    %v8529 = vadd.f32 %v8386, %v8528
    %v8530 = vpop.f32.mrf.mxu0
    %8531 = vmatprep.mubr.f32.mxu0 0.0
    %v8532 = vand.u32 %v7859, 4294901760
    %8533 = vmatmul.mubr.f32.gmra.mxu0 %v8532
    %v8534 = vpop.f32.mrf.mxu0
    %v8535 = vadd.f32 %v8394, %v8534
    %v8536 = vpop.f32.mrf.mxu0
    %8537 = vmatprep.mubr.f32.mxu0 0.0
    %v8538 = vand.u32 %v7860, 4294901760
    %8539 = vmatmul.mubr.f32.gmra.mxu0 %v8538
    %v8540 = vpop.f32.mrf.mxu0
    %v8541 = vadd.f32 %v8402, %v8540
    %v8542 = vpop.f32.mrf.mxu0
    %8543 = vmatprep.mubr.f32.mxu0 0.0
    %v8544 = vand.u32 %v7861, 4294901760
    %8545 = vmatmul.mubr.f32.gmra.mxu0 %v8544
    %v8546 = vpop.f32.mrf.mxu0
    %v8547 = vadd.f32 %v8410, %v8546
    %v8548 = vpop.f32.mrf.mxu0
    %8549 = vdwg.mxu0
    %8550 = vmatprep.subr.mxu0 0.0
    %v8551 = vand.u32 %v7877, 4294901760
    %8552 = vmatpush1.msra.mxu0 %v8551
    %8553 = vmatprep.subr.mxu0 0.0
    %v8554 = vand.u32 %v7876, 4294901760
    %8555 = vmatpush1.msra.mxu0 %v8554
    %8556 = vmatprep.subr.mxu0 0.0
    %v8557 = vand.u32 %v7875, 4294901760
    %8558 = vmatpush1.msra.mxu0 %v8557
    %8559 = vmatprep.subr.mxu0 0.0
    %v8560 = vand.u32 %v7874, 4294901760
    %8561 = vmatpush1.msra.mxu0 %v8560
    %8562 = vmatprep.subr.mxu0 0.0
    %v8563 = vand.u32 %v7873, 4294901760
    %8564 = vmatpush1.msra.mxu0 %v8563
    %8565 = vmatprep.subr.mxu0 0.0
    %v8566 = vand.u32 %v7872, 4294901760
    %8567 = vmatpush1.msra.mxu0 %v8566
    %8568 = vmatprep.subr.mxu0 0.0
    %v8569 = vand.u32 %v7871, 4294901760
    %8570 = vmatpush1.msra.mxu0 %v8569
    %8571 = vmatprep.subr.mxu0 0.0
    %v8572 = vand.u32 %v7870, 4294901760
    %8573 = vmatpush1.msra.mxu0 %v8572
    %8574 = vmatprep.subr.mxu0 0.0
    %v8575 = vand.u32 %v7869, 4294901760
    %8576 = vmatpush1.msra.mxu0 %v8575
    %8577 = vmatprep.subr.mxu0 0.0
    %v8578 = vand.u32 %v7868, 4294901760
    %8579 = vmatpush1.msra.mxu0 %v8578
    %8580 = vmatprep.subr.mxu0 0.0
    %v8581 = vand.u32 %v7867, 4294901760
    %8582 = vmatpush1.msra.mxu0 %v8581
    %8583 = vmatprep.subr.mxu0 0.0
    %v8584 = vand.u32 %v7866, 4294901760
    %8585 = vmatpush1.msra.mxu0 %v8584
    %8586 = vmatprep.subr.mxu0 0.0
    %v8587 = vand.u32 %v7865, 4294901760
    %8588 = vmatpush1.msra.mxu0 %v8587
    %8589 = vmatprep.subr.mxu0 0.0
    %v8590 = vand.u32 %v7864, 4294901760
    %8591 = vmatpush1.msra.mxu0 %v8590
    %8592 = vmatprep.subr.mxu0 0.0
    %v8593 = vand.u32 %v7863, 4294901760
    %8594 = vmatpush1.msra.mxu0 %v8593
    %8595 = vmatprep.subr.mxu0 0.0
    %v8596 = vand.u32 %v7862, 4294901760
    %8597 = vmatpush1.msra.mxu0 %v8596
    %8598 = vmatprep.subr.mxu0 0.0
    %8599 = vmatpush2.msra.mxu0 0.0
    %8600 = vmatprep.subr.mxu0 0.0
    %8601 = vmatpush2.msra.mxu0 0.0
    %8602 = vmatprep.subr.mxu0 0.0
    %8603 = vmatpush2.msra.mxu0 0.0
    %8604 = vmatprep.subr.mxu0 0.0
    %8605 = vmatpush2.msra.mxu0 0.0
    %8606 = vmatprep.subr.mxu0 0.0
    %8607 = vmatpush2.msra.mxu0 0.0
    %8608 = vmatprep.subr.mxu0 0.0
    %8609 = vmatpush2.msra.mxu0 0.0
    %8610 = vmatprep.subr.mxu0 0.0
    %8611 = vmatpush2.msra.mxu0 0.0
    %8612 = vmatprep.subr.mxu0 0.0
    %8613 = vmatpush2.msra.mxu0 0.0
    %8614 = vmatprep.subr.mxu0 0.0
    %8615 = vmatpush2.msra.mxu0 0.0
    %8616 = vmatprep.subr.mxu0 0.0
    %8617 = vmatpush2.msra.mxu0 0.0
    %8618 = vmatprep.subr.mxu0 0.0
    %8619 = vmatpush2.msra.mxu0 0.0
    %8620 = vmatprep.subr.mxu0 0.0
    %8621 = vmatpush2.msra.mxu0 0.0
    %8622 = vmatprep.subr.mxu0 0.0
    %8623 = vmatpush2.msra.mxu0 0.0
    %8624 = vmatprep.subr.mxu0 0.0
    %8625 = vmatpush2.msra.mxu0 0.0
    %8626 = vmatprep.subr.mxu0 0.0
    %8627 = vmatpush2.msra.mxu0 0.0
    %8628 = vmatprep.subr.mxu0 0.0
    %8629 = vmatpush2.msra.mxu0 0.0
    %8630 = vmatprep.mubr.f32.mxu0 0.0
    %v8631 = vand.u32 %v7858, 4294901760
    %8632 = vmatmul.mubr.f32.gmra.mxu0 %v8631
    %v8633 = vpop.f32.mrf.mxu0
    %v8634 = vadd.f32 %v8529, %v8633
    %v8635 = vpop.f32.mrf.mxu0
    %8636 = vmatprep.mubr.f32.mxu0 0.0
    %v8637 = vand.u32 %v7859, 4294901760
    %8638 = vmatmul.mubr.f32.gmra.mxu0 %v8637
    %v8639 = vpop.f32.mrf.mxu0
    %v8640 = vadd.f32 %v8535, %v8639
    %v8641 = vpop.f32.mrf.mxu0
    %8642 = vmatprep.mubr.f32.mxu0 0.0
    %v8643 = vand.u32 %v7860, 4294901760
    %8644 = vmatmul.mubr.f32.gmra.mxu0 %v8643
    %v8645 = vpop.f32.mrf.mxu0
    %v8646 = vadd.f32 %v8541, %v8645
    %v8647 = vpop.f32.mrf.mxu0
    %8648 = vmatprep.mubr.f32.mxu0 0.0
    %v8649 = vand.u32 %v7861, 4294901760
    %8650 = vmatmul.mubr.f32.gmra.mxu0 %v8649
    %v8651 = vpop.f32.mrf.mxu0
    %v8652 = vadd.f32 %v8547, %v8651
    %v8653 = vpop.f32.mrf.mxu0
    %8654 = vdwg.mxu0
    %v8655 = vmul.f32 %v8634, %v8634
    %v8656 = vmul.f32 %v8640, %v8640
    %v8657 = vmul.f32 %v8646, %v8646
    %v8658 = vmul.f32 %v8652, %v8652
    %8659 = vadd.xlane.f32.xlu0 %v8655
    %v8660 = vpop.xlane.xlu0 %8659
    %8661 = vadd.xlane.f32.xlu0 %v8656
    %v8662 = vpop.xlane.xlu0 %8661
    %8663 = vadd.xlane.f32.xlu0 %v8657
    %v8664 = vpop.xlane.xlu0 %8663
    %8665 = vadd.xlane.f32.xlu0 %v8658
    %v8666 = vpop.xlane.xlu0 %8665
    %v8667 = vmax.f32 %v8660, 1e-24
    %v8668 = vmax.f32 %v8662, 1e-24
    %v8669 = vmax.f32 %v8664, 1e-24
    %v8670 = vmax.f32 %v8666, 1e-24
    %v8671 = vrsqrt.pop %v8667
    %v8672 = vrsqrt.pop %v8668
    %v8673 = vrsqrt.pop %v8669
    %v8674 = vrsqrt.pop %v8670
    %v8675 = vmul.f32 %v8634, %v8671
    %v8676 = vmul.f32 %v8640, %v8672
    %v8677 = vmul.f32 %v8646, %v8673
    %v8678 = vmul.f32 %v8652, %v8674
    %v8681 = vunpack.c.l.s4 1966171168
    %v8682 = vunpack.c.0.s8 %v8681
    %v8683 = vlaneseq
    %v8684 = vshrl.u32 %v8683, 7
    %v8685 = vsub.s32 %v8682, %v8684
    %v8686 = vrot.slane %v3973, %v8685
    %v8687 = vcombine.high %v8686, %v8686
    %v8689 = vunpack.c.l.s4 1966171168
    %v8690 = vunpack.c.0.s8 %v8689
    %v8691 = vlaneseq
    %v8692 = vshrl.u32 %v8691, 7
    %v8693 = vsub.s32 %v8690, %v8692
    %v8694 = vrot.slane %v8686, %v8693
    %v8696 = vunpack.c.l.s4 1966171168
    %v8697 = vunpack.c.0.s8 %v8696
    %v8698 = vlaneseq
    %v8699 = vshrl.u32 %v8698, 7
    %v8700 = vsub.s32 %v8697, %v8699
    %v8701 = vrot.slane %v8687, %v8700
    %v8702 = vlaneseq
    %v8703 = vshrl.u32 %v8702, 7
    %v8704 = vsub.s32 0, %v8703
    %v8705 = vrot.slane %v8694, %v8704
    %v8706 = vlaneseq
    %v8707 = vshrl.u32 %v8706, 7
    %v8708 = vsub.s32 0, %v8707
    %v8709 = vrot.slane %v8701, %v8708
    %v8712 = vmul.f32 %v8675, %v8705
    %v8713 = vmul.f32 %v8676, %v8705
    %v8714 = vmul.f32 %v8677, %v8709
    %v8715 = vmul.f32 %v8678, %v8709
    %8716 = vadd.xlane.f32.xlu0 %v8712
    %v8717 = vpop.xlane.xlu0 %8716
    %8718 = vadd.xlane.f32.xlu0 %v8713
    %v8719 = vpop.xlane.xlu0 %8718
    %8720 = vadd.xlane.f32.xlu0 %v8714
    %v8721 = vpop.xlane.xlu0 %8720
    %8722 = vadd.xlane.f32.xlu0 %v8715
    %v8723 = vpop.xlane.xlu0 %8722
    %s8724 = sld [smem:[#allocation2]]
    %v8725 = vstv %s8724
    %v8726 = vmul.f32 %v8717, %v8725
    %v8727 = vmul.f32 %v8719, %v8725
    %v8728 = vmul.f32 %v8721, %v8725
    %v8729 = vmul.f32 %v8723, %v8725
    %v8734 = vlaneseq
    %v8735 = vand.u32 %v8734, 127
    %v8736 = vlaneseq
    %v8737 = vshrl.u32 %v8736, 7
    %v8738 = vsub.s32 %v8735, %v8737
    %v8739 = vrot.slane %v8726, %v8738
    %v8740 = vadd.s32 %v8735, 4294967288
    %v8741 = vlaneseq
    %v8742 = vshrl.u32 %v8741, 7
    %v8743 = vsub.s32 %v8740, %v8742
    %v8744 = vrot.slane %v8727, %v8743
    %vm8745 = vcmask 130112
    %v8746 = vsel %vm8745, %v8744, %v8739
    %v8747 = vlaneseq
    %v8748 = vshrl.u32 %v8747, 7
    %v8749 = vsub.s32 %v8735, %v8748
    %v8750 = vrot.slane %v8728, %v8749
    %v8751 = vlaneseq
    %v8752 = vshrl.u32 %v8751, 7
    %v8753 = vsub.s32 %v8740, %v8752
    %v8754 = vrot.slane %v8729, %v8753
    %v8755 = vsel %vm8745, %v8754, %v8750
    %vm8756 = vcmask 1041409
    %v8757 = vsel %vm8756, %v8755, %v8746
    %vm8759 = vcmask 130048
    %v8760 = vsel %vm8759, %v8757, 0.0
    %8761 = vst [vmem:[#allocation17] sm:$0x3] %v8760
    // Predicated region
    $region82: #{tpu_custom_call.1} parent=1 // pred_check
      _
    $region83: #{tpu_custom_call.1} parent=1 // pred_check_branch
      %8763 = sbr.rel (0) target = $region85
    $region84: #{tpu_custom_call.1} parent=1 // pred_region
      %s8765 = ssub.s32 32, 32
      %8766 = vsyncadd [#allocation5], %s8765
      %s8768 = sshll.u32 [#allocation17], 4
      %s8769 = int_to_ptr.vmem [resolvable:$true] %s8768
      %8771 = dma.vmem_to_hbm [thread:$0]  %s8769, 32, %s12, [#allocation5]
    $region85: #{tpu_custom_call.1} parent=1 // pred_fallthru
      _
    // Predicated region
    $region86: #{tpu_custom_call.1} parent=1 // pred_check
      _
    $region87: #{tpu_custom_call.1} parent=1 // pred_check_branch
      %8773 = sbr.rel (0) target = $region89
    $region88: #{tpu_custom_call.1} parent=1 // pred_region
      %8774 = dma.done [#allocation5], 32
    $region89: #{tpu_custom_call.1} parent=1 // pred_fallthru
      _
    %8775 = vsyncpa [#allocation4], 1
    %8776 = vsyncpa [#allocation7], 1
    %8777 = vsyncpa [#allocation10], 1
    %8778 = vsyncpa [#allocation13], 1
    %8779 = vsyncpa [#allocation16], 1
    %8780 = vsyncpa [#allocation5], 1

</llo_original>
